<compile_context>
chip_gen: v7x
topology: tpu7x:2x2x1
jax: 0.10.0
libtpu: 0.0.40
codegen_flags: <defaults>
</compile_context>

<pallas_src>
import functools

import jax
import jax.numpy as jnp
from jax.experimental import pallas as pl
from jax.experimental.pallas import tpu as pltpu

MXU_DTYPE = jnp.bfloat16  # matmul operand dtype; accumulation is always f32


def _leaky_relu(x, slope=0.2):
    return jnp.where(x > 0, x, slope * x)


def _round_up(v, m):
    return -(-v // m) * m


def _zero_pad_border_and_fill(xp_ref, interior, H, W):
    """Write `interior` (H, W, C) into xp_ref[1:H+1, 1:W+1, :] and zero ONLY the
    one-pixel border; the interior is fully overwritten every grid step, so a
    full-buffer memset would just burn the (scarce) vector-store slot."""
    c = xp_ref.shape[2]
    zrow = jnp.zeros((1, W + 2, c), xp_ref.dtype)
    zcol = jnp.zeros((H + 2, 1, c), xp_ref.dtype)
    xp_ref[0:1, :, :] = zrow
    xp_ref[H + 1:H + 2, :, :] = zrow
    xp_ref[:, 0:1, :] = zcol
    xp_ref[:, W + 1:W + 2, :] = zcol
    xp_ref[1:H + 1, 1:W + 1, :] = interior


def _conv3x3_taps(xp_ref, w_ref, acc_ref, H, W):
    """Unrolled 9-tap 3x3 conv (stride 1, pad 1).

    xp_ref : (H+2, W+2, Cin) f32 zero-padded, already-activated input.
    w_ref  : (9, Cin, Cout) bf16, tap-major (ky, kx).
    acc_ref: (H*W, Cout) f32 VMEM accumulator (overwritten by tap 0).
    """
    c_in = xp_ref.shape[2]
    tap = 0
    for dy in range(3):
        for dx in range(3):
            a = xp_ref[dy:dy + H, dx:dx + W, :]            # (H, W, Cin) f32 vld
            a = a.reshape(H * W, c_in).astype(MXU_DTYPE)   # bf16 MXU operand
            p = jnp.dot(a, w_ref[tap], preferred_element_type=jnp.float32)
            if tap == 0:
                acc_ref[...] = p
            else:
                acc_ref[...] += p
            tap += 1


def _resnet_block_kernel(x_ref, w0_ref, b0_ref, w1_ref, b1_ref, *rest,
                         learned_shortcut):
    # Refs (one batch element per grid step):
    #   x_ref : (1, H, W, Cin)  f32
    #   w0_ref: (9, Cin, Chid)  bf16   b0_ref: (1, Chid) f32
    #   w1_ref: (9, Chid, Cout) bf16   b1_ref: (1, Cout) f32
    #   ws_ref: (Cin, Cout)     bf16   [only if learned_shortcut]
    #   o_ref : (1, H, W, Cout)
    #   xp0   : VMEM (H+2, W+2, Cin)  f32   padded act(x)
    #   xp1   : VMEM (H+2, W+2, Chid) f32   padded act(hidden)
    #   acc0  : VMEM (H*W, Chid) f32        conv_0 accumulator
    #   acc1  : VMEM (H*W, Cout) f32        conv_1 accumulator
    if learned_shortcut:
        ws_ref, o_ref, xp0_ref, xp1_ref, acc0_ref, acc1_ref = rest
    else:
        o_ref, xp0_ref, xp1_ref, acc0_ref, acc1_ref = rest
        ws_ref = None

    H = xp0_ref.shape[0] - 2
    W = xp0_ref.shape[1] - 2
    cin = x_ref.shape[3]
    chid = b0_ref.shape[1]
    cout = b1_ref.shape[1]

    # ---- hidden = conv_0(leaky_relu(x)) + b0 ------------------------------
    # leaky_relu(0) == 0, so activate-then-pad == pad-then-activate.
    _zero_pad_border_and_fill(xp0_ref, _leaky_relu(x_ref[0]), H, W)
    _conv3x3_taps(xp0_ref, w0_ref, acc0_ref, H, W)
    h = acc0_ref[...] + b0_ref[...]                        # (H*W, Chid) f32

    # ---- dx = conv_1(leaky_relu(hidden)) + b1 -----------------------------
    _zero_pad_border_and_fill(xp1_ref, _leaky_relu(h).reshape(H, W, chid), H, W)
    _conv3x3_taps(xp1_ref, w1_ref, acc1_ref, H, W)
    dx = acc1_ref[...] + b1_ref[...]                       # (H*W, Cout) f32

    # ---- out = shortcut(x) + 0.1 * dx (fused epilogue) --------------------
    # x is re-read here instead of being held live across both convs.
    if learned_shortcut:
        x2d = x_ref[0].reshape(H * W, cin)
        xs = jnp.dot(x2d.astype(MXU_DTYPE), ws_ref[...],
                     preferred_element_type=jnp.float32)
    else:
        xs = x_ref[0].reshape(H * W, cout)                 # identity path, exact f32
    out = xs + 0.1 * dx
    o_ref[...] = out.reshape(1, H, W, cout).astype(o_ref.dtype)


def _padded_bytes(shape, dtype):
    """Rough VMEM footprint of a buffer, including (8,128) trailing-dim padding."""
    shape = list(shape)
    shape[-1] = _round_up(shape[-1], 128)
    if len(shape) >= 2:
        shape[-2] = _round_up(shape[-2], 8)
    n = 1
    for s in shape:
        n *= s
    return n * jnp.dtype(dtype).itemsize


def resnet_block_forward_nhwc(x_nhwc, params):
    """ResnetBlock forward, NHWC in / NHWC out (the kernel's native layout).

    Keep activations NHWC end-to-end across blocks and call this directly; the
    NCHW wrapper below exists only for the PyTorch interface at the model
    boundary (each NCHW<->NHWC transpose is a full-tensor HBM read+write)."""
    w0, b0, w1, b1, ws = (params["w0"], params["b0"],
                          params["w1"], params["b1"], params["ws"])
    learned = ws is not None

    N, H, W, cin = x_nhwc.shape
    chid = w0.shape[-1]
    cout = w1.shape[-1]

    # Per-tap (9, Cin, Cout) bf16 weight slabs (halves weight DMA, feeds the
    # MXU natively); biases stay f32 (added post-matmul in f32).  Tiny ops.
    w0r = w0.reshape(9, cin, chid).astype(MXU_DTYPE)
    w1r = w1.reshape(9, chid, cout).astype(MXU_DTYPE)
    b0r = b0.reshape(1, chid).astype(jnp.float32)
    b1r = b1.reshape(1, cout).astype(jnp.float32)

    kernel = functools.partial(_resnet_block_kernel, learned_shortcut=learned)

    in_specs = [
        pl.BlockSpec((1, H, W, cin), lambda n: (n, 0, 0, 0)),   # streamed x
        pl.BlockSpec((9, cin, chid), lambda n: (0, 0, 0)),      # resident weights
        pl.BlockSpec((1, chid), lambda n: (0, 0)),
        pl.BlockSpec((9, chid, cout), lambda n: (0, 0, 0)),
        pl.BlockSpec((1, cout), lambda n: (0, 0)),
    ]
    args = [x_nhwc, w0r, b0r, w1r, b1r]
    if learned:
        in_specs.append(pl.BlockSpec((cin, cout), lambda n: (0, 0)))
        args.append(ws.astype(MXU_DTYPE))

    scratch_shapes = [
        pltpu.VMEM((H + 2, W + 2, cin), jnp.float32),   # padded act(x)
        pltpu.VMEM((H + 2, W + 2, chid), jnp.float32),  # padded act(hidden)
        pltpu.VMEM((H * W, chid), jnp.float32),         # conv_0 accumulator
        pltpu.VMEM((H * W, cout), jnp.float32),         # conv_1 accumulator
    ]

    # Explicit scoped-VMEM budget: double-buffered streamed blocks + resident
    # weights + scratches, with generous headroom (defaults are only 16/32 MiB
    # and would bind first at production sizes).
    vmem_bytes = (
        2 * _padded_bytes((1, H, W, cin), x_nhwc.dtype)
        + 2 * _padded_bytes((1, H, W, cout), x_nhwc.dtype)
        + 2 * (_padded_bytes((9, cin, chid), MXU_DTYPE)
               + _padded_bytes((9, chid, cout), MXU_DTYPE)
               + _padded_bytes((1, chid), jnp.float32)
               + _padded_bytes((1, cout), jnp.float32)
               + (_padded_bytes((cin, cout), MXU_DTYPE) if learned else 0))
        + _padded_bytes((H + 2, W + 2, cin), jnp.float32)
        + _padded_bytes((H + 2, W + 2, chid), jnp.float32)
        + _padded_bytes((H * W, chid), jnp.float32)
        + _padded_bytes((H * W, cout), jnp.float32)
    )
    vmem_limit = int(min(max(2 * vmem_bytes + (8 << 20), 32 << 20), 56 << 20))

    return pl.pallas_call(
        kernel,
        out_shape=jax.ShapeDtypeStruct((N, H, W, cout), x_nhwc.dtype),
        grid=(N,),   # batch axis; keep it >= 2 / even so both v7x cores get work
        in_specs=in_specs,
        out_specs=pl.BlockSpec((1, H, W, cout), lambda n: (n, 0, 0, 0)),
        scratch_shapes=scratch_shapes,
        compiler_params=pltpu.CompilerParams(
            dimension_semantics=("parallel",),
            vmem_limit_bytes=vmem_limit),
    )(*args)


def resnet_block_forward(x_nchw, params):
    """PyTorch-layout wrapper: (N, fin, H, W) -> (N, fout, H, W)."""
    x = jnp.transpose(x_nchw, (0, 2, 3, 1))                # NCHW -> NHWC (model boundary)
    y = resnet_block_forward_nhwc(x, params)
    return jnp.transpose(y, (0, 3, 1, 2))                  # NHWC -> NCHW


# ---------------------------------------------------------------------------
# Pure-JAX reference for verification
# ---------------------------------------------------------------------------
def _ref_forward(x_nchw, params):
    w0, b0, w1, b1, ws = (params["w0"], params["b0"],
                          params["w1"], params["b1"], params["ws"])
    x = jnp.transpose(x_nchw, (0, 2, 3, 1))
    dn = ("NHWC", "HWIO", "NHWC")
    act = lambda v: jnp.where(v > 0, v, 0.2 * v)
    conv = functools.partial(jax.lax.conv_general_dilated,
                             window_strides=(1, 1), dimension_numbers=dn)
    dx = conv(act(x), w0, padding="SAME") + b0.reshape(1, 1, 1, -1)
    dx = conv(act(dx), w1, padding="SAME") + b1.reshape(1, 1, 1, -1)
    if ws is not None:
        x_s = conv(x, ws.reshape(1, 1, *ws.shape), padding="VALID")
    else:
        x_s = x
    out = x_s + 0.1 * dx
    return jnp.transpose(out, (0, 3, 1, 2))


# ---------------------------------------------------------------------------
# Deterministic parameter init (shapes follow nn.Conv2d in __init__)
# ---------------------------------------------------------------------------
def init_params(key, fin, fout, fhidden=None, is_bias=True):
    if fhidden is None:
        fhidden = min(fin, fout)
    learned_shortcut = fin != fout
    k0, k1, k2, k3, k4 = jax.random.split(key, 5)
    # Weights stored HWIO (kh, kw, Cin, Cout); equivalent to PyTorch OIHW transposed.
    w0 = 0.1 * jax.random.normal(k0, (3, 3, fin, fhidden), jnp.float32)
    b0 = 0.1 * jax.random.normal(k1, (fhidden,), jnp.float32)
    w1 = 0.1 * jax.random.normal(k2, (3, 3, fhidden, fout), jnp.float32)
    b1 = (0.1 * jax.random.normal(k3, (fout,), jnp.float32)
          if is_bias else jnp.zeros((fout,), jnp.float32))
    ws = (0.1 * jax.random.normal(k4, (fin, fout), jnp.float32)
          if learned_shortcut else None)
    return {"w0": w0, "b0": b0, "w1": w1, "b1": b1, "ws": ws}


if __name__ == "__main__":
    key = jax.random.PRNGKey(0)
    kp, kx = jax.random.split(key)

    # Small shapes: batch=2, fin=4, fout=8 (-> learned shortcut, fhidden=4), spatial=16.
    N, fin, fout, H, W = 2, 4, 8, 16, 16
    params = init_params(kp, fin, fout, fhidden=None, is_bias=True)
    x = jax.random.normal(kx, (N, fin, H, W), jnp.float32)   # PyTorch NCHW input

    fwd = jax.jit(resnet_block_forward)
    out = jax.block_until_ready(fwd(x, params))

    ref = _ref_forward(x, params)
    assert out.shape == (N, fout, H, W), out.shape
    # Tolerance loosened vs. the pure-f32 version: MXU operands are bf16
    # (accumulation is f32), and the residual scale factor 0.1 bounds the
    # conv-chain rounding contribution.
    assert jnp.allclose(out, ref, atol=3e-2, rtol=3e-2), \
        float(jnp.max(jnp.abs(out - ref)))

    # Also exercise the identity-shortcut path (fin == fout).
    params_id = init_params(kp, fin, fin, fhidden=None, is_bias=True)
    out_id = jax.block_until_ready(jax.jit(resnet_block_forward)(x, params_id))
    ref_id = _ref_forward(x, params_id)
    assert out_id.shape == (N, fin, H, W), out_id.shape
    assert jnp.allclose(out_id, ref_id, atol=3e-2, rtol=3e-2), \
        float(jnp.max(jnp.abs(out_id - ref_id)))

    print("KERNEL_OK")
</pallas_src>

<mosaic_0001>
module attributes {stable_mosaic.version = 11 : i64} {
  func.func @_resnet_block_kernel(%arg0: i32, %arg1: memref<1x16x16x4xf32, #tpu.memory_space<vmem>>, %arg2: memref<9x4x4xbf16, #tpu.memory_space<vmem>>, %arg3: memref<1x4xf32, #tpu.memory_space<vmem>>, %arg4: memref<9x4x8xbf16, #tpu.memory_space<vmem>>, %arg5: memref<1x8xf32, #tpu.memory_space<vmem>>, %arg6: memref<4x8xbf16, #tpu.memory_space<vmem>>, %arg7: memref<1x16x16x8xf32, #tpu.memory_space<vmem>>, %arg8: memref<18x18x4xf32, #tpu.memory_space<vmem>>, %arg9: memref<18x18x4xf32, #tpu.memory_space<vmem>>, %arg10: memref<256x4xf32, #tpu.memory_space<vmem>>, %arg11: memref<256x8xf32, #tpu.memory_space<vmem>>) attributes {dimension_semantics = [#tpu.dimension_semantics<parallel>], iteration_bounds = array<i64: 2>, scalar_prefetch = 0 : i64, scratch_operands = 4 : i64, tpu.core_type = #tpu.core_type<tc>, window_params = [{transform_indices = @transform_0, window_bounds = array<i64: 1, 16, 16, 4>}, {pipeline_mode = #tpu.pipeline_mode<synchronous>, transform_indices = @transform_1, window_bounds = array<i64: 9, 4, 4>}, {pipeline_mode = #tpu.pipeline_mode<synchronous>, transform_indices = @transform_2, window_bounds = array<i64: 1, 4>}, {pipeline_mode = #tpu.pipeline_mode<synchronous>, transform_indices = @transform_3, window_bounds = array<i64: 9, 4, 8>}, {pipeline_mode = #tpu.pipeline_mode<synchronous>, transform_indices = @transform_4, window_bounds = array<i64: 1, 8>}, {pipeline_mode = #tpu.pipeline_mode<synchronous>, transform_indices = @transform_5, window_bounds = array<i64: 4, 8>}, {transform_indices = @transform_6, window_bounds = array<i64: 1, 16, 16, 8>}]} {
    %c0 = arith.constant 0 : index
    %c0_0 = arith.constant 0 : index
    %c0_1 = arith.constant 0 : index
    %c0_2 = arith.constant 0 : index
    %0 = vector.load %arg1[%c0, %c0_0, %c0_1, %c0_2] : memref<1x16x16x4xf32, #tpu.memory_space<vmem>>, vector<1x16x16x4xf32>
    %1 = vector.shape_cast %0 : vector<1x16x16x4xf32> to vector<16x16x4xf32>
    %cst = arith.constant 0.000000e+00 : f32
    %2 = vector.broadcast %cst : f32 to vector<16x16x4xf32>
    %3 = arith.cmpf ogt, %1, %2 : vector<16x16x4xf32>
    %cst_3 = arith.constant 2.000000e-01 : f32
    %4 = vector.broadcast %cst_3 : f32 to vector<16x16x4xf32>
    %5 = arith.mulf %4, %1 : vector<16x16x4xf32>
    %6 = arith.select %3, %1, %5 : vector<16x16x4xi1>, vector<16x16x4xf32>
    %cst_4 = arith.constant 0.000000e+00 : f32
    %7 = vector.broadcast %cst_4 : f32 to vector<1x18x4xf32>
    %cst_5 = arith.constant 0.000000e+00 : f32
    %8 = vector.broadcast %cst_5 : f32 to vector<18x1x4xf32>
    %c0_6 = arith.constant 0 : index
    %c0_7 = arith.constant 0 : index
    %c0_8 = arith.constant 0 : index
    %9 = vector.load %arg8[%c0_6, %c0_7, %c0_8] : memref<18x18x4xf32, #tpu.memory_space<vmem>>, vector<1x18x4xf32>
    tpu.vector_store %arg8[%c0_6, %c0_7, %c0_8], %7 {strides = array<i32>} : memref<18x18x4xf32, #tpu.memory_space<vmem>>, vector<1x18x4xf32>,
    %c17 = arith.constant 17 : index
    %c0_9 = arith.constant 0 : index
    %c0_10 = arith.constant 0 : index
    %10 = vector.load %arg8[%c17, %c0_9, %c0_10] : memref<18x18x4xf32, #tpu.memory_space<vmem>>, vector<1x18x4xf32>
    tpu.vector_store %arg8[%c17, %c0_9, %c0_10], %7 {strides = array<i32>} : memref<18x18x4xf32, #tpu.memory_space<vmem>>, vector<1x18x4xf32>,
    %c0_11 = arith.constant 0 : index
    %c0_12 = arith.constant 0 : index
    %c0_13 = arith.constant 0 : index
    %11 = vector.load %arg8[%c0_11, %c0_12, %c0_13] : memref<18x18x4xf32, #tpu.memory_space<vmem>>, vector<18x1x4xf32>
    tpu.vector_store %arg8[%c0_11, %c0_12, %c0_13], %8 {strides = array<i32>} : memref<18x18x4xf32, #tpu.memory_space<vmem>>, vector<18x1x4xf32>,
    %c0_14 = arith.constant 0 : index
    %c17_15 = arith.constant 17 : index
    %c0_16 = arith.constant 0 : index
    %12 = vector.load %arg8[%c0_14, %c17_15, %c0_16] : memref<18x18x4xf32, #tpu.memory_space<vmem>>, vector<18x1x4xf32>
    tpu.vector_store %arg8[%c0_14, %c17_15, %c0_16], %8 {strides = array<i32>} : memref<18x18x4xf32, #tpu.memory_space<vmem>>, vector<18x1x4xf32>,
    %c1 = arith.constant 1 : index
    %c1_17 = arith.constant 1 : index
    %c0_18 = arith.constant 0 : index
    %13 = vector.load %arg8[%c1, %c1_17, %c0_18] : memref<18x18x4xf32, #tpu.memory_space<vmem>>, vector<16x16x4xf32>
    tpu.vector_store %arg8[%c1, %c1_17, %c0_18], %6 {strides = array<i32>} : memref<18x18x4xf32, #tpu.memory_space<vmem>>, vector<16x16x4xf32>,
    %c0_19 = arith.constant 0 : index
    %c0_20 = arith.constant 0 : index
    %c0_21 = arith.constant 0 : index
    %14 = vector.load %arg8[%c0_19, %c0_20, %c0_21] : memref<18x18x4xf32, #tpu.memory_space<vmem>>, vector<16x16x4xf32>
    %15 = vector.shape_cast %14 : vector<16x16x4xf32> to vector<256x4xf32>
    %16 = arith.truncf %15 : vector<256x4xf32> to vector<256x4xbf16>
    %c0_22 = arith.constant 0 : index
    %c0_23 = arith.constant 0 : index
    %c0_24 = arith.constant 0 : index
    %17 = vector.load %arg2[%c0_22, %c0_23, %c0_24] : memref<9x4x4xbf16, #tpu.memory_space<vmem>>, vector<1x4x4xbf16>
    %18 = vector.shape_cast %17 : vector<1x4x4xbf16> to vector<4x4xbf16>
    %cst_25 = arith.constant dense<0.000000e+00> : vector<256x4xf32>
    %19 = tpu.matmul %16, %18, %cst_25 {dimension_numbers = #tpu.dot_dimension_numbers<[1], [0], [0], [1], [0, 0, 1, 1], [], []>} : vector<256x4xbf16>, vector<4x4xbf16>, vector<256x4xf32> -> vector<256x4xf32>
    %c0_26 = arith.constant 0 : index
    %c0_27 = arith.constant 0 : index
    %20 = vector.load %arg10[%c0_26, %c0_27] : memref<256x4xf32, #tpu.memory_space<vmem>>, vector<256x4xf32>
    tpu.vector_store %arg10[%c0_26, %c0_27], %19 {strides = array<i32>} : memref<256x4xf32, #tpu.memory_space<vmem>>, vector<256x4xf32>,
    %c0_28 = arith.constant 0 : index
    %c1_29 = arith.constant 1 : index
    %c0_30 = arith.constant 0 : index
    %21 = vector.load %arg8[%c0_28, %c1_29, %c0_30] : memref<18x18x4xf32, #tpu.memory_space<vmem>>, vector<16x16x4xf32>
    %22 = vector.shape_cast %21 : vector<16x16x4xf32> to vector<256x4xf32>
    %23 = arith.truncf %22 : vector<256x4xf32> to vector<256x4xbf16>
    %c1_31 = arith.constant 1 : index
    %c0_32 = arith.constant 0 : index
    %c0_33 = arith.constant 0 : index
    %24 = vector.load %arg2[%c1_31, %c0_32, %c0_33] : memref<9x4x4xbf16, #tpu.memory_space<vmem>>, vector<1x4x4xbf16>
    %25 = vector.shape_cast %24 : vector<1x4x4xbf16> to vector<4x4xbf16>
    %cst_34 = arith.constant dense<0.000000e+00> : vector<256x4xf32>
    %26 = tpu.matmul %23, %25, %cst_34 {dimension_numbers = #tpu.dot_dimension_numbers<[1], [0], [0], [1], [0, 0, 1, 1], [], []>} : vector<256x4xbf16>, vector<4x4xbf16>, vector<256x4xf32> -> vector<256x4xf32>
    %c0_35 = arith.constant 0 : index
    %c0_36 = arith.constant 0 : index
    %27 = vector.load %arg10[%c0_35, %c0_36] : memref<256x4xf32, #tpu.memory_space<vmem>>, vector<256x4xf32>
    %28 = arith.addf %27, %26 : vector<256x4xf32>
    %c0_37 = arith.constant 0 : index
    %c0_38 = arith.constant 0 : index
    %29 = vector.load %arg10[%c0_37, %c0_38] : memref<256x4xf32, #tpu.memory_space<vmem>>, vector<256x4xf32>
    tpu.vector_store %arg10[%c0_37, %c0_38], %28 {strides = array<i32>} : memref<256x4xf32, #tpu.memory_space<vmem>>, vector<256x4xf32>,
    %c0_39 = arith.constant 0 : index
    %c2 = arith.constant 2 : index
    %c0_40 = arith.constant 0 : index
    %30 = vector.load %arg8[%c0_39, %c2, %c0_40] : memref<18x18x4xf32, #tpu.memory_space<vmem>>, vector<16x16x4xf32>
    %31 = vector.shape_cast %30 : vector<16x16x4xf32> to vector<256x4xf32>
    %32 = arith.truncf %31 : vector<256x4xf32> to vector<256x4xbf16>
    %c2_41 = arith.constant 2 : index
    %c0_42 = arith.constant 0 : index
    %c0_43 = arith.constant 0 : index
    %33 = vector.load %arg2[%c2_41, %c0_42, %c0_43] : memref<9x4x4xbf16, #tpu.memory_space<vmem>>, vector<1x4x4xbf16>
    %34 = vector.shape_cast %33 : vector<1x4x4xbf16> to vector<4x4xbf16>
    %cst_44 = arith.constant dense<0.000000e+00> : vector<256x4xf32>
    %35 = tpu.matmul %32, %34, %cst_44 {dimension_numbers = #tpu.dot_dimension_numbers<[1], [0], [0], [1], [0, 0, 1, 1], [], []>} : vector<256x4xbf16>, vector<4x4xbf16>, vector<256x4xf32> -> vector<256x4xf32>
    %c0_45 = arith.constant 0 : index
    %c0_46 = arith.constant 0 : index
    %36 = vector.load %arg10[%c0_45, %c0_46] : memref<256x4xf32, #tpu.memory_space<vmem>>, vector<256x4xf32>
    %37 = arith.addf %36, %35 : vector<256x4xf32>
    %c0_47 = arith.constant 0 : index
    %c0_48 = arith.constant 0 : index
    %38 = vector.load %arg10[%c0_47, %c0_48] : memref<256x4xf32, #tpu.memory_space<vmem>>, vector<256x4xf32>
    tpu.vector_store %arg10[%c0_47, %c0_48], %37 {strides = array<i32>} : memref<256x4xf32, #tpu.memory_space<vmem>>, vector<256x4xf32>,
    %c1_49 = arith.constant 1 : index
    %c0_50 = arith.constant 0 : index
    %c0_51 = arith.constant 0 : index
    %39 = vector.load %arg8[%c1_49, %c0_50, %c0_51] : memref<18x18x4xf32, #tpu.memory_space<vmem>>, vector<16x16x4xf32>
    %40 = vector.shape_cast %39 : vector<16x16x4xf32> to vector<256x4xf32>
    %41 = arith.truncf %40 : vector<256x4xf32> to vector<256x4xbf16>
    %c3 = arith.constant 3 : index
    %c0_52 = arith.constant 0 : index
    %c0_53 = arith.constant 0 : index
    %42 = vector.load %arg2[%c3, %c0_52, %c0_53] : memref<9x4x4xbf16, #tpu.memory_space<vmem>>, vector<1x4x4xbf16>
    %43 = vector.shape_cast %42 : vector<1x4x4xbf16> to vector<4x4xbf16>
    %cst_54 = arith.constant dense<0.000000e+00> : vector<256x4xf32>
    %44 = tpu.matmul %41, %43, %cst_54 {dimension_numbers = #tpu.dot_dimension_numbers<[1], [0], [0], [1], [0, 0, 1, 1], [], []>} : vector<256x4xbf16>, vector<4x4xbf16>, vector<256x4xf32> -> vector<256x4xf32>
    %c0_55 = arith.constant 0 : index
    %c0_56 = arith.constant 0 : index
    %45 = vector.load %arg10[%c0_55, %c0_56] : memref<256x4xf32, #tpu.memory_space<vmem>>, vector<256x4xf32>
    %46 = arith.addf %45, %44 : vector<256x4xf32>
    %c0_57 = arith.constant 0 : index
    %c0_58 = arith.constant 0 : index
    %47 = vector.load %arg10[%c0_57, %c0_58] : memref<256x4xf32, #tpu.memory_space<vmem>>, vector<256x4xf32>
    tpu.vector_store %arg10[%c0_57, %c0_58], %46 {strides = array<i32>} : memref<256x4xf32, #tpu.memory_space<vmem>>, vector<256x4xf32>,
    %c1_59 = arith.constant 1 : index
    %c1_60 = arith.constant 1 : index
    %c0_61 = arith.constant 0 : index
    %48 = vector.load %arg8[%c1_59, %c1_60, %c0_61] : memref<18x18x4xf32, #tpu.memory_space<vmem>>, vector<16x16x4xf32>
    %49 = vector.shape_cast %48 : vector<16x16x4xf32> to vector<256x4xf32>
    %50 = arith.truncf %49 : vector<256x4xf32> to vector<256x4xbf16>
    %c4 = arith.constant 4 : index
    %c0_62 = arith.constant 0 : index
    %c0_63 = arith.constant 0 : index
    %51 = vector.load %arg2[%c4, %c0_62, %c0_63] : memref<9x4x4xbf16, #tpu.memory_space<vmem>>, vector<1x4x4xbf16>
    %52 = vector.shape_cast %51 : vector<1x4x4xbf16> to vector<4x4xbf16>
    %cst_64 = arith.constant dense<0.000000e+00> : vector<256x4xf32>
    %53 = tpu.matmul %50, %52, %cst_64 {dimension_numbers = #tpu.dot_dimension_numbers<[1], [0], [0], [1], [0, 0, 1, 1], [], []>} : vector<256x4xbf16>, vector<4x4xbf16>, vector<256x4xf32> -> vector<256x4xf32>
    %c0_65 = arith.constant 0 : index
    %c0_66 = arith.constant 0 : index
    %54 = vector.load %arg10[%c0_65, %c0_66] : memref<256x4xf32, #tpu.memory_space<vmem>>, vector<256x4xf32>
    %55 = arith.addf %54, %53 : vector<256x4xf32>
    %c0_67 = arith.constant 0 : index
    %c0_68 = arith.constant 0 : index
    %56 = vector.load %arg10[%c0_67, %c0_68] : memref<256x4xf32, #tpu.memory_space<vmem>>, vector<256x4xf32>
    tpu.vector_store %arg10[%c0_67, %c0_68], %55 {strides = array<i32>} : memref<256x4xf32, #tpu.memory_space<vmem>>, vector<256x4xf32>,
    %c1_69 = arith.constant 1 : index
    %c2_70 = arith.constant 2 : index
    %c0_71 = arith.constant 0 : index
    %57 = vector.load %arg8[%c1_69, %c2_70, %c0_71] : memref<18x18x4xf32, #tpu.memory_space<vmem>>, vector<16x16x4xf32>
    %58 = vector.shape_cast %57 : vector<16x16x4xf32> to vector<256x4xf32>
    %59 = arith.truncf %58 : vector<256x4xf32> to vector<256x4xbf16>
    %c5 = arith.constant 5 : index
    %c0_72 = arith.constant 0 : index
    %c0_73 = arith.constant 0 : index
    %60 = vector.load %arg2[%c5, %c0_72, %c0_73] : memref<9x4x4xbf16, #tpu.memory_space<vmem>>, vector<1x4x4xbf16>
    %61 = vector.shape_cast %60 : vector<1x4x4xbf16> to vector<4x4xbf16>
    %cst_74 = arith.constant dense<0.000000e+00> : vector<256x4xf32>
    %62 = tpu.matmul %59, %61, %cst_74 {dimension_numbers = #tpu.dot_dimension_numbers<[1], [0], [0], [1], [0, 0, 1, 1], [], []>} : vector<256x4xbf16>, vector<4x4xbf16>, vector<256x4xf32> -> vector<256x4xf32>
    %c0_75 = arith.constant 0 : index
    %c0_76 = arith.constant 0 : index
    %63 = vector.load %arg10[%c0_75, %c0_76] : memref<256x4xf32, #tpu.memory_space<vmem>>, vector<256x4xf32>
    %64 = arith.addf %63, %62 : vector<256x4xf32>
    %c0_77 = arith.constant 0 : index
    %c0_78 = arith.constant 0 : index
    %65 = vector.load %arg10[%c0_77, %c0_78] : memref<256x4xf32, #tpu.memory_space<vmem>>, vector<256x4xf32>
    tpu.vector_store %arg10[%c0_77, %c0_78], %64 {strides = array<i32>} : memref<256x4xf32, #tpu.memory_space<vmem>>, vector<256x4xf32>,
    %c2_79 = arith.constant 2 : index
    %c0_80 = arith.constant 0 : index
    %c0_81 = arith.constant 0 : index
    %66 = vector.load %arg8[%c2_79, %c0_80, %c0_81] : memref<18x18x4xf32, #tpu.memory_space<vmem>>, vector<16x16x4xf32>
    %67 = vector.shape_cast %66 : vector<16x16x4xf32> to vector<256x4xf32>
    %68 = arith.truncf %67 : vector<256x4xf32> to vector<256x4xbf16>
    %c6 = arith.constant 6 : index
    %c0_82 = arith.constant 0 : index
    %c0_83 = arith.constant 0 : index
    %69 = vector.load %arg2[%c6, %c0_82, %c0_83] : memref<9x4x4xbf16, #tpu.memory_space<vmem>>, vector<1x4x4xbf16>
    %70 = vector.shape_cast %69 : vector<1x4x4xbf16> to vector<4x4xbf16>
    %cst_84 = arith.constant dense<0.000000e+00> : vector<256x4xf32>
    %71 = tpu.matmul %68, %70, %cst_84 {dimension_numbers = #tpu.dot_dimension_numbers<[1], [0], [0], [1], [0, 0, 1, 1], [], []>} : vector<256x4xbf16>, vector<4x4xbf16>, vector<256x4xf32> -> vector<256x4xf32>
    %c0_85 = arith.constant 0 : index
    %c0_86 = arith.constant 0 : index
    %72 = vector.load %arg10[%c0_85, %c0_86] : memref<256x4xf32, #tpu.memory_space<vmem>>, vector<256x4xf32>
    %73 = arith.addf %72, %71 : vector<256x4xf32>
    %c0_87 = arith.constant 0 : index
    %c0_88 = arith.constant 0 : index
    %74 = vector.load %arg10[%c0_87, %c0_88] : memref<256x4xf32, #tpu.memory_space<vmem>>, vector<256x4xf32>
    tpu.vector_store %arg10[%c0_87, %c0_88], %73 {strides = array<i32>} : memref<256x4xf32, #tpu.memory_space<vmem>>, vector<256x4xf32>,
    %c2_89 = arith.constant 2 : index
    %c1_90 = arith.constant 1 : index
    %c0_91 = arith.constant 0 : index
    %75 = vector.load %arg8[%c2_89, %c1_90, %c0_91] : memref<18x18x4xf32, #tpu.memory_space<vmem>>, vector<16x16x4xf32>
    %76 = vector.shape_cast %75 : vector<16x16x4xf32> to vector<256x4xf32>
    %77 = arith.truncf %76 : vector<256x4xf32> to vector<256x4xbf16>
    %c7 = arith.constant 7 : index
    %c0_92 = arith.constant 0 : index
    %c0_93 = arith.constant 0 : index
    %78 = vector.load %arg2[%c7, %c0_92, %c0_93] : memref<9x4x4xbf16, #tpu.memory_space<vmem>>, vector<1x4x4xbf16>
    %79 = vector.shape_cast %78 : vector<1x4x4xbf16> to vector<4x4xbf16>
    %cst_94 = arith.constant dense<0.000000e+00> : vector<256x4xf32>
    %80 = tpu.matmul %77, %79, %cst_94 {dimension_numbers = #tpu.dot_dimension_numbers<[1], [0], [0], [1], [0, 0, 1, 1], [], []>} : vector<256x4xbf16>, vector<4x4xbf16>, vector<256x4xf32> -> vector<256x4xf32>
    %c0_95 = arith.constant 0 : index
    %c0_96 = arith.constant 0 : index
    %81 = vector.load %arg10[%c0_95, %c0_96] : memref<256x4xf32, #tpu.memory_space<vmem>>, vector<256x4xf32>
    %82 = arith.addf %81, %80 : vector<256x4xf32>
    %c0_97 = arith.constant 0 : index
    %c0_98 = arith.constant 0 : index
    %83 = vector.load %arg10[%c0_97, %c0_98] : memref<256x4xf32, #tpu.memory_space<vmem>>, vector<256x4xf32>
    tpu.vector_store %arg10[%c0_97, %c0_98], %82 {strides = array<i32>} : memref<256x4xf32, #tpu.memory_space<vmem>>, vector<256x4xf32>,
    %c2_99 = arith.constant 2 : index
    %c2_100 = arith.constant 2 : index
    %c0_101 = arith.constant 0 : index
    %84 = vector.load %arg8[%c2_99, %c2_100, %c0_101] : memref<18x18x4xf32, #tpu.memory_space<vmem>>, vector<16x16x4xf32>
    %85 = vector.shape_cast %84 : vector<16x16x4xf32> to vector<256x4xf32>
    %86 = arith.truncf %85 : vector<256x4xf32> to vector<256x4xbf16>
    %c8 = arith.constant 8 : index
    %c0_102 = arith.constant 0 : index
    %c0_103 = arith.constant 0 : index
    %87 = vector.load %arg2[%c8, %c0_102, %c0_103] : memref<9x4x4xbf16, #tpu.memory_space<vmem>>, vector<1x4x4xbf16>
    %88 = vector.shape_cast %87 : vector<1x4x4xbf16> to vector<4x4xbf16>
    %cst_104 = arith.constant dense<0.000000e+00> : vector<256x4xf32>
    %89 = tpu.matmul %86, %88, %cst_104 {dimension_numbers = #tpu.dot_dimension_numbers<[1], [0], [0], [1], [0, 0, 1, 1], [], []>} : vector<256x4xbf16>, vector<4x4xbf16>, vector<256x4xf32> -> vector<256x4xf32>
    %c0_105 = arith.constant 0 : index
    %c0_106 = arith.constant 0 : index
    %90 = vector.load %arg10[%c0_105, %c0_106] : memref<256x4xf32, #tpu.memory_space<vmem>>, vector<256x4xf32>
    %91 = arith.addf %90, %89 : vector<256x4xf32>
    %c0_107 = arith.constant 0 : index
    %c0_108 = arith.constant 0 : index
    %92 = vector.load %arg10[%c0_107, %c0_108] : memref<256x4xf32, #tpu.memory_space<vmem>>, vector<256x4xf32>
    tpu.vector_store %arg10[%c0_107, %c0_108], %91 {strides = array<i32>} : memref<256x4xf32, #tpu.memory_space<vmem>>, vector<256x4xf32>,
    %c0_109 = arith.constant 0 : index
    %c0_110 = arith.constant 0 : index
    %93 = vector.load %arg10[%c0_109, %c0_110] : memref<256x4xf32, #tpu.memory_space<vmem>>, vector<256x4xf32>
    %c0_111 = arith.constant 0 : index
    %c0_112 = arith.constant 0 : index
    %94 = vector.load %arg3[%c0_111, %c0_112] : memref<1x4xf32, #tpu.memory_space<vmem>>, vector<1x4xf32>
    %95 = vector.broadcast %94 : vector<1x4xf32> to vector<256x4xf32>
    %96 = arith.addf %93, %95 : vector<256x4xf32>
    %cst_113 = arith.constant 0.000000e+00 : f32
    %97 = vector.broadcast %cst_113 : f32 to vector<256x4xf32>
    %98 = arith.cmpf ogt, %96, %97 : vector<256x4xf32>
    %cst_114 = arith.constant 2.000000e-01 : f32
    %99 = vector.broadcast %cst_114 : f32 to vector<256x4xf32>
    %100 = arith.mulf %99, %96 : vector<256x4xf32>
    %101 = arith.select %98, %96, %100 : vector<256x4xi1>, vector<256x4xf32>
    %102 = vector.shape_cast %101 : vector<256x4xf32> to vector<16x16x4xf32>
    %cst_115 = arith.constant 0.000000e+00 : f32
    %103 = vector.broadcast %cst_115 : f32 to vector<1x18x4xf32>
    %cst_116 = arith.constant 0.000000e+00 : f32
    %104 = vector.broadcast %cst_116 : f32 to vector<18x1x4xf32>
    %c0_117 = arith.constant 0 : index
    %c0_118 = arith.constant 0 : index
    %c0_119 = arith.constant 0 : index
    %105 = vector.load %arg9[%c0_117, %c0_118, %c0_119] : memref<18x18x4xf32, #tpu.memory_space<vmem>>, vector<1x18x4xf32>
    tpu.vector_store %arg9[%c0_117, %c0_118, %c0_119], %103 {strides = array<i32>} : memref<18x18x4xf32, #tpu.memory_space<vmem>>, vector<1x18x4xf32>,
    %c17_120 = arith.constant 17 : index
    %c0_121 = arith.constant 0 : index
    %c0_122 = arith.constant 0 : index
    %106 = vector.load %arg9[%c17_120, %c0_121, %c0_122] : memref<18x18x4xf32, #tpu.memory_space<vmem>>, vector<1x18x4xf32>
    tpu.vector_store %arg9[%c17_120, %c0_121, %c0_122], %103 {strides = array<i32>} : memref<18x18x4xf32, #tpu.memory_space<vmem>>, vector<1x18x4xf32>,
    %c0_123 = arith.constant 0 : index
    %c0_124 = arith.constant 0 : index
    %c0_125 = arith.constant 0 : index
    %107 = vector.load %arg9[%c0_123, %c0_124, %c0_125] : memref<18x18x4xf32, #tpu.memory_space<vmem>>, vector<18x1x4xf32>
    tpu.vector_store %arg9[%c0_123, %c0_124, %c0_125], %104 {strides = array<i32>} : memref<18x18x4xf32, #tpu.memory_space<vmem>>, vector<18x1x4xf32>,
    %c0_126 = arith.constant 0 : index
    %c17_127 = arith.constant 17 : index
    %c0_128 = arith.constant 0 : index
    %108 = vector.load %arg9[%c0_126, %c17_127, %c0_128] : memref<18x18x4xf32, #tpu.memory_space<vmem>>, vector<18x1x4xf32>
    tpu.vector_store %arg9[%c0_126, %c17_127, %c0_128], %104 {strides = array<i32>} : memref<18x18x4xf32, #tpu.memory_space<vmem>>, vector<18x1x4xf32>,
    %c1_129 = arith.constant 1 : index
    %c1_130 = arith.constant 1 : index
    %c0_131 = arith.constant 0 : index
    %109 = vector.load %arg9[%c1_129, %c1_130, %c0_131] : memref<18x18x4xf32, #tpu.memory_space<vmem>>, vector<16x16x4xf32>
    tpu.vector_store %arg9[%c1_129, %c1_130, %c0_131], %102 {strides = array<i32>} : memref<18x18x4xf32, #tpu.memory_space<vmem>>, vector<16x16x4xf32>,
    %c0_132 = arith.constant 0 : index
    %c0_133 = arith.constant 0 : index
    %c0_134 = arith.constant 0 : index
    %110 = vector.load %arg9[%c0_132, %c0_133, %c0_134] : memref<18x18x4xf32, #tpu.memory_space<vmem>>, vector<16x16x4xf32>
    %111 = vector.shape_cast %110 : vector<16x16x4xf32> to vector<256x4xf32>
    %112 = arith.truncf %111 : vector<256x4xf32> to vector<256x4xbf16>
    %c0_135 = arith.constant 0 : index
    %c0_136 = arith.constant 0 : index
    %c0_137 = arith.constant 0 : index
    %113 = vector.load %arg4[%c0_135, %c0_136, %c0_137] : memref<9x4x8xbf16, #tpu.memory_space<vmem>>, vector<1x4x8xbf16>
    %114 = vector.shape_cast %113 : vector<1x4x8xbf16> to vector<4x8xbf16>
    %cst_138 = arith.constant dense<0.000000e+00> : vector<256x8xf32>
    %115 = tpu.matmul %112, %114, %cst_138 {dimension_numbers = #tpu.dot_dimension_numbers<[1], [0], [0], [1], [0, 0, 1, 1], [], []>} : vector<256x4xbf16>, vector<4x8xbf16>, vector<256x8xf32> -> vector<256x8xf32>
    %c0_139 = arith.constant 0 : index
    %c0_140 = arith.constant 0 : index
    %116 = vector.load %arg11[%c0_139, %c0_140] : memref<256x8xf32, #tpu.memory_space<vmem>>, vector<256x8xf32>
    tpu.vector_store %arg11[%c0_139, %c0_140], %115 {strides = array<i32>} : memref<256x8xf32, #tpu.memory_space<vmem>>, vector<256x8xf32>,
    %c0_141 = arith.constant 0 : index
    %c1_142 = arith.constant 1 : index
    %c0_143 = arith.constant 0 : index
    %117 = vector.load %arg9[%c0_141, %c1_142, %c0_143] : memref<18x18x4xf32, #tpu.memory_space<vmem>>, vector<16x16x4xf32>
    %118 = vector.shape_cast %117 : vector<16x16x4xf32> to vector<256x4xf32>
    %119 = arith.truncf %118 : vector<256x4xf32> to vector<256x4xbf16>
    %c1_144 = arith.constant 1 : index
    %c0_145 = arith.constant 0 : index
    %c0_146 = arith.constant 0 : index
    %120 = vector.load %arg4[%c1_144, %c0_145, %c0_146] : memref<9x4x8xbf16, #tpu.memory_space<vmem>>, vector<1x4x8xbf16>
    %121 = vector.shape_cast %120 : vector<1x4x8xbf16> to vector<4x8xbf16>
    %cst_147 = arith.constant dense<0.000000e+00> : vector<256x8xf32>
    %122 = tpu.matmul %119, %121, %cst_147 {dimension_numbers = #tpu.dot_dimension_numbers<[1], [0], [0], [1], [0, 0, 1, 1], [], []>} : vector<256x4xbf16>, vector<4x8xbf16>, vector<256x8xf32> -> vector<256x8xf32>
    %c0_148 = arith.constant 0 : index
    %c0_149 = arith.constant 0 : index
    %123 = vector.load %arg11[%c0_148, %c0_149] : memref<256x8xf32, #tpu.memory_space<vmem>>, vector<256x8xf32>
    %124 = arith.addf %123, %122 : vector<256x8xf32>
    %c0_150 = arith.constant 0 : index
    %c0_151 = arith.constant 0 : index
    %125 = vector.load %arg11[%c0_150, %c0_151] : memref<256x8xf32, #tpu.memory_space<vmem>>, vector<256x8xf32>
    tpu.vector_store %arg11[%c0_150, %c0_151], %124 {strides = array<i32>} : memref<256x8xf32, #tpu.memory_space<vmem>>, vector<256x8xf32>,
    %c0_152 = arith.constant 0 : index
    %c2_153 = arith.constant 2 : index
    %c0_154 = arith.constant 0 : index
    %126 = vector.load %arg9[%c0_152, %c2_153, %c0_154] : memref<18x18x4xf32, #tpu.memory_space<vmem>>, vector<16x16x4xf32>
    %127 = vector.shape_cast %126 : vector<16x16x4xf32> to vector<256x4xf32>
    %128 = arith.truncf %127 : vector<256x4xf32> to vector<256x4xbf16>
    %c2_155 = arith.constant 2 : index
    %c0_156 = arith.constant 0 : index
    %c0_157 = arith.constant 0 : index
    %129 = vector.load %arg4[%c2_155, %c0_156, %c0_157] : memref<9x4x8xbf16, #tpu.memory_space<vmem>>, vector<1x4x8xbf16>
    %130 = vector.shape_cast %129 : vector<1x4x8xbf16> to vector<4x8xbf16>
    %cst_158 = arith.constant dense<0.000000e+00> : vector<256x8xf32>
    %131 = tpu.matmul %128, %130, %cst_158 {dimension_numbers = #tpu.dot_dimension_numbers<[1], [0], [0], [1], [0, 0, 1, 1], [], []>} : vector<256x4xbf16>, vector<4x8xbf16>, vector<256x8xf32> -> vector<256x8xf32>
    %c0_159 = arith.constant 0 : index
    %c0_160 = arith.constant 0 : index
    %132 = vector.load %arg11[%c0_159, %c0_160] : memref<256x8xf32, #tpu.memory_space<vmem>>, vector<256x8xf32>
    %133 = arith.addf %132, %131 : vector<256x8xf32>
    %c0_161 = arith.constant 0 : index
    %c0_162 = arith.constant 0 : index
    %134 = vector.load %arg11[%c0_161, %c0_162] : memref<256x8xf32, #tpu.memory_space<vmem>>, vector<256x8xf32>
    tpu.vector_store %arg11[%c0_161, %c0_162], %133 {strides = array<i32>} : memref<256x8xf32, #tpu.memory_space<vmem>>, vector<256x8xf32>,
    %c1_163 = arith.constant 1 : index
    %c0_164 = arith.constant 0 : index
    %c0_165 = arith.constant 0 : index
    %135 = vector.load %arg9[%c1_163, %c0_164, %c0_165] : memref<18x18x4xf32, #tpu.memory_space<vmem>>, vector<16x16x4xf32>
    %136 = vector.shape_cast %135 : vector<16x16x4xf32> to vector<256x4xf32>
    %137 = arith.truncf %136 : vector<256x4xf32> to vector<256x4xbf16>
    %c3_166 = arith.constant 3 : index
    %c0_167 = arith.constant 0 : index
    %c0_168 = arith.constant 0 : index
    %138 = vector.load %arg4[%c3_166, %c0_167, %c0_168] : memref<9x4x8xbf16, #tpu.memory_space<vmem>>, vector<1x4x8xbf16>
    %139 = vector.shape_cast %138 : vector<1x4x8xbf16> to vector<4x8xbf16>
    %cst_169 = arith.constant dense<0.000000e+00> : vector<256x8xf32>
    %140 = tpu.matmul %137, %139, %cst_169 {dimension_numbers = #tpu.dot_dimension_numbers<[1], [0], [0], [1], [0, 0, 1, 1], [], []>} : vector<256x4xbf16>, vector<4x8xbf16>, vector<256x8xf32> -> vector<256x8xf32>
    %c0_170 = arith.constant 0 : index
    %c0_171 = arith.constant 0 : index
    %141 = vector.load %arg11[%c0_170, %c0_171] : memref<256x8xf32, #tpu.memory_space<vmem>>, vector<256x8xf32>
    %142 = arith.addf %141, %140 : vector<256x8xf32>
    %c0_172 = arith.constant 0 : index
    %c0_173 = arith.constant 0 : index
    %143 = vector.load %arg11[%c0_172, %c0_173] : memref<256x8xf32, #tpu.memory_space<vmem>>, vector<256x8xf32>
    tpu.vector_store %arg11[%c0_172, %c0_173], %142 {strides = array<i32>} : memref<256x8xf32, #tpu.memory_space<vmem>>, vector<256x8xf32>,
    %c1_174 = arith.constant 1 : index
    %c1_175 = arith.constant 1 : index
    %c0_176 = arith.constant 0 : index
    %144 = vector.load %arg9[%c1_174, %c1_175, %c0_176] : memref<18x18x4xf32, #tpu.memory_space<vmem>>, vector<16x16x4xf32>
    %145 = vector.shape_cast %144 : vector<16x16x4xf32> to vector<256x4xf32>
    %146 = arith.truncf %145 : vector<256x4xf32> to vector<256x4xbf16>
    %c4_177 = arith.constant 4 : index
    %c0_178 = arith.constant 0 : index
    %c0_179 = arith.constant 0 : index
    %147 = vector.load %arg4[%c4_177, %c0_178, %c0_179] : memref<9x4x8xbf16, #tpu.memory_space<vmem>>, vector<1x4x8xbf16>
    %148 = vector.shape_cast %147 : vector<1x4x8xbf16> to vector<4x8xbf16>
    %cst_180 = arith.constant dense<0.000000e+00> : vector<256x8xf32>
    %149 = tpu.matmul %146, %148, %cst_180 {dimension_numbers = #tpu.dot_dimension_numbers<[1], [0], [0], [1], [0, 0, 1, 1], [], []>} : vector<256x4xbf16>, vector<4x8xbf16>, vector<256x8xf32> -> vector<256x8xf32>
    %c0_181 = arith.constant 0 : index
    %c0_182 = arith.constant 0 : index
    %150 = vector.load %arg11[%c0_181, %c0_182] : memref<256x8xf32, #tpu.memory_space<vmem>>, vector<256x8xf32>
    %151 = arith.addf %150, %149 : vector<256x8xf32>
    %c0_183 = arith.constant 0 : index
    %c0_184 = arith.constant 0 : index
    %152 = vector.load %arg11[%c0_183, %c0_184] : memref<256x8xf32, #tpu.memory_space<vmem>>, vector<256x8xf32>
    tpu.vector_store %arg11[%c0_183, %c0_184], %151 {strides = array<i32>} : memref<256x8xf32, #tpu.memory_space<vmem>>, vector<256x8xf32>,
    %c1_185 = arith.constant 1 : index
    %c2_186 = arith.constant 2 : index
    %c0_187 = arith.constant 0 : index
    %153 = vector.load %arg9[%c1_185, %c2_186, %c0_187] : memref<18x18x4xf32, #tpu.memory_space<vmem>>, vector<16x16x4xf32>
    %154 = vector.shape_cast %153 : vector<16x16x4xf32> to vector<256x4xf32>
    %155 = arith.truncf %154 : vector<256x4xf32> to vector<256x4xbf16>
    %c5_188 = arith.constant 5 : index
    %c0_189 = arith.constant 0 : index
    %c0_190 = arith.constant 0 : index
    %156 = vector.load %arg4[%c5_188, %c0_189, %c0_190] : memref<9x4x8xbf16, #tpu.memory_space<vmem>>, vector<1x4x8xbf16>
    %157 = vector.shape_cast %156 : vector<1x4x8xbf16> to vector<4x8xbf16>
    %cst_191 = arith.constant dense<0.000000e+00> : vector<256x8xf32>
    %158 = tpu.matmul %155, %157, %cst_191 {dimension_numbers = #tpu.dot_dimension_numbers<[1], [0], [0], [1], [0, 0, 1, 1], [], []>} : vector<256x4xbf16>, vector<4x8xbf16>, vector<256x8xf32> -> vector<256x8xf32>
    %c0_192 = arith.constant 0 : index
    %c0_193 = arith.constant 0 : index
    %159 = vector.load %arg11[%c0_192, %c0_193] : memref<256x8xf32, #tpu.memory_space<vmem>>, vector<256x8xf32>
    %160 = arith.addf %159, %158 : vector<256x8xf32>
    %c0_194 = arith.constant 0 : index
    %c0_195 = arith.constant 0 : index
    %161 = vector.load %arg11[%c0_194, %c0_195] : memref<256x8xf32, #tpu.memory_space<vmem>>, vector<256x8xf32>
    tpu.vector_store %arg11[%c0_194, %c0_195], %160 {strides = array<i32>} : memref<256x8xf32, #tpu.memory_space<vmem>>, vector<256x8xf32>,
    %c2_196 = arith.constant 2 : index
    %c0_197 = arith.constant 0 : index
    %c0_198 = arith.constant 0 : index
    %162 = vector.load %arg9[%c2_196, %c0_197, %c0_198] : memref<18x18x4xf32, #tpu.memory_space<vmem>>, vector<16x16x4xf32>
    %163 = vector.shape_cast %162 : vector<16x16x4xf32> to vector<256x4xf32>
    %164 = arith.truncf %163 : vector<256x4xf32> to vector<256x4xbf16>
    %c6_199 = arith.constant 6 : index
    %c0_200 = arith.constant 0 : index
    %c0_201 = arith.constant 0 : index
    %165 = vector.load %arg4[%c6_199, %c0_200, %c0_201] : memref<9x4x8xbf16, #tpu.memory_space<vmem>>, vector<1x4x8xbf16>
    %166 = vector.shape_cast %165 : vector<1x4x8xbf16> to vector<4x8xbf16>
    %cst_202 = arith.constant dense<0.000000e+00> : vector<256x8xf32>
    %167 = tpu.matmul %164, %166, %cst_202 {dimension_numbers = #tpu.dot_dimension_numbers<[1], [0], [0], [1], [0, 0, 1, 1], [], []>} : vector<256x4xbf16>, vector<4x8xbf16>, vector<256x8xf32> -> vector<256x8xf32>
    %c0_203 = arith.constant 0 : index
    %c0_204 = arith.constant 0 : index
    %168 = vector.load %arg11[%c0_203, %c0_204] : memref<256x8xf32, #tpu.memory_space<vmem>>, vector<256x8xf32>
    %169 = arith.addf %168, %167 : vector<256x8xf32>
    %c0_205 = arith.constant 0 : index
    %c0_206 = arith.constant 0 : index
    %170 = vector.load %arg11[%c0_205, %c0_206] : memref<256x8xf32, #tpu.memory_space<vmem>>, vector<256x8xf32>
    tpu.vector_store %arg11[%c0_205, %c0_206], %169 {strides = array<i32>} : memref<256x8xf32, #tpu.memory_space<vmem>>, vector<256x8xf32>,
    %c2_207 = arith.constant 2 : index
    %c1_208 = arith.constant 1 : index
    %c0_209 = arith.constant 0 : index
    %171 = vector.load %arg9[%c2_207, %c1_208, %c0_209] : memref<18x18x4xf32, #tpu.memory_space<vmem>>, vector<16x16x4xf32>
    %172 = vector.shape_cast %171 : vector<16x16x4xf32> to vector<256x4xf32>
    %173 = arith.truncf %172 : vector<256x4xf32> to vector<256x4xbf16>
    %c7_210 = arith.constant 7 : index
    %c0_211 = arith.constant 0 : index
    %c0_212 = arith.constant 0 : index
    %174 = vector.load %arg4[%c7_210, %c0_211, %c0_212] : memref<9x4x8xbf16, #tpu.memory_space<vmem>>, vector<1x4x8xbf16>
    %175 = vector.shape_cast %174 : vector<1x4x8xbf16> to vector<4x8xbf16>
    %cst_213 = arith.constant dense<0.000000e+00> : vector<256x8xf32>
    %176 = tpu.matmul %173, %175, %cst_213 {dimension_numbers = #tpu.dot_dimension_numbers<[1], [0], [0], [1], [0, 0, 1, 1], [], []>} : vector<256x4xbf16>, vector<4x8xbf16>, vector<256x8xf32> -> vector<256x8xf32>
    %c0_214 = arith.constant 0 : index
    %c0_215 = arith.constant 0 : index
    %177 = vector.load %arg11[%c0_214, %c0_215] : memref<256x8xf32, #tpu.memory_space<vmem>>, vector<256x8xf32>
    %178 = arith.addf %177, %176 : vector<256x8xf32>
    %c0_216 = arith.constant 0 : index
    %c0_217 = arith.constant 0 : index
    %179 = vector.load %arg11[%c0_216, %c0_217] : memref<256x8xf32, #tpu.memory_space<vmem>>, vector<256x8xf32>
    tpu.vector_store %arg11[%c0_216, %c0_217], %178 {strides = array<i32>} : memref<256x8xf32, #tpu.memory_space<vmem>>, vector<256x8xf32>,
    %c2_218 = arith.constant 2 : index
    %c2_219 = arith.constant 2 : index
    %c0_220 = arith.constant 0 : index
    %180 = vector.load %arg9[%c2_218, %c2_219, %c0_220] : memref<18x18x4xf32, #tpu.memory_space<vmem>>, vector<16x16x4xf32>
    %181 = vector.shape_cast %180 : vector<16x16x4xf32> to vector<256x4xf32>
    %182 = arith.truncf %181 : vector<256x4xf32> to vector<256x4xbf16>
    %c8_221 = arith.constant 8 : index
    %c0_222 = arith.constant 0 : index
    %c0_223 = arith.constant 0 : index
    %183 = vector.load %arg4[%c8_221, %c0_222, %c0_223] : memref<9x4x8xbf16, #tpu.memory_space<vmem>>, vector<1x4x8xbf16>
    %184 = vector.shape_cast %183 : vector<1x4x8xbf16> to vector<4x8xbf16>
    %cst_224 = arith.constant dense<0.000000e+00> : vector<256x8xf32>
    %185 = tpu.matmul %182, %184, %cst_224 {dimension_numbers = #tpu.dot_dimension_numbers<[1], [0], [0], [1], [0, 0, 1, 1], [], []>} : vector<256x4xbf16>, vector<4x8xbf16>, vector<256x8xf32> -> vector<256x8xf32>
    %c0_225 = arith.constant 0 : index
    %c0_226 = arith.constant 0 : index
    %186 = vector.load %arg11[%c0_225, %c0_226] : memref<256x8xf32, #tpu.memory_space<vmem>>, vector<256x8xf32>
    %187 = arith.addf %186, %185 : vector<256x8xf32>
    %c0_227 = arith.constant 0 : index
    %c0_228 = arith.constant 0 : index
    %188 = vector.load %arg11[%c0_227, %c0_228] : memref<256x8xf32, #tpu.memory_space<vmem>>, vector<256x8xf32>
    tpu.vector_store %arg11[%c0_227, %c0_228], %187 {strides = array<i32>} : memref<256x8xf32, #tpu.memory_space<vmem>>, vector<256x8xf32>,
    %c0_229 = arith.constant 0 : index
    %c0_230 = arith.constant 0 : index
    %189 = vector.load %arg11[%c0_229, %c0_230] : memref<256x8xf32, #tpu.memory_space<vmem>>, vector<256x8xf32>
    %c0_231 = arith.constant 0 : index
    %c0_232 = arith.constant 0 : index
    %190 = vector.load %arg5[%c0_231, %c0_232] : memref<1x8xf32, #tpu.memory_space<vmem>>, vector<1x8xf32>
    %191 = vector.broadcast %190 : vector<1x8xf32> to vector<256x8xf32>
    %192 = arith.addf %189, %191 : vector<256x8xf32>
    %c0_233 = arith.constant 0 : index
    %c0_234 = arith.constant 0 : index
    %c0_235 = arith.constant 0 : index
    %c0_236 = arith.constant 0 : index
    %193 = vector.load %arg1[%c0_233, %c0_234, %c0_235, %c0_236] : memref<1x16x16x4xf32, #tpu.memory_space<vmem>>, vector<1x16x16x4xf32>
    %194 = vector.shape_cast %193 : vector<1x16x16x4xf32> to vector<16x16x4xf32>
    %195 = vector.shape_cast %194 : vector<16x16x4xf32> to vector<256x4xf32>
    %196 = arith.truncf %195 : vector<256x4xf32> to vector<256x4xbf16>
    %c0_237 = arith.constant 0 : index
    %c0_238 = arith.constant 0 : index
    %197 = vector.load %arg6[%c0_237, %c0_238] : memref<4x8xbf16, #tpu.memory_space<vmem>>, vector<4x8xbf16>
    %cst_239 = arith.constant dense<0.000000e+00> : vector<256x8xf32>
    %198 = tpu.matmul %196, %197, %cst_239 {dimension_numbers = #tpu.dot_dimension_numbers<[1], [0], [0], [1], [0, 0, 1, 1], [], []>} : vector<256x4xbf16>, vector<4x8xbf16>, vector<256x8xf32> -> vector<256x8xf32>
    %cst_240 = arith.constant 1.000000e-01 : f32
    %199 = vector.broadcast %cst_240 : f32 to vector<256x8xf32>
    %200 = arith.mulf %199, %192 : vector<256x8xf32>
    %201 = arith.addf %198, %200 : vector<256x8xf32>
    %202 = vector.shape_cast %201 : vector<256x8xf32> to vector<1x16x16x8xf32>
    %c0_241 = arith.constant 0 : index
    %c0_242 = arith.constant 0 : index
    %c0_243 = arith.constant 0 : index
    %c0_244 = arith.constant 0 : index
    %203 = vector.load %arg7[%c0_241, %c0_242, %c0_243, %c0_244] : memref<1x16x16x8xf32, #tpu.memory_space<vmem>>, vector<1x16x16x8xf32>
    tpu.vector_store %arg7[%c0_241, %c0_242, %c0_243, %c0_244], %202 {strides = array<i32>} : memref<1x16x16x8xf32, #tpu.memory_space<vmem>>, vector<1x16x16x8xf32>,
    return
  }
  func.func @transform_0(%arg0: i32) -> (i32, i32, i32, i32) {
    %c0_i32 = arith.constant 0 : i32
    %c0_i32_0 = arith.constant 0 : i32
    %c0_i32_1 = arith.constant 0 : i32
    %c0_i32_2 = arith.constant 0 : i32
    return %arg0, %c0_i32, %c0_i32_0, %c0_i32_1 : i32, i32, i32, i32
  }
  func.func @transform_1(%arg0: i32) -> (i32, i32, i32) {
    %c0_i32 = arith.constant 0 : i32
    %c0_i32_0 = arith.constant 0 : i32
    %c0_i32_1 = arith.constant 0 : i32
    %c0_i32_2 = arith.constant 0 : i32
    return %c0_i32, %c0_i32_0, %c0_i32_1 : i32, i32, i32
  }
  func.func @transform_2(%arg0: i32) -> (i32, i32) {
    %c0_i32 = arith.constant 0 : i32
    %c0_i32_0 = arith.constant 0 : i32
    %c0_i32_1 = arith.constant 0 : i32
    return %c0_i32, %c0_i32_0 : i32, i32
  }
  func.func @transform_3(%arg0: i32) -> (i32, i32, i32) {
    %c0_i32 = arith.constant 0 : i32
    %c0_i32_0 = arith.constant 0 : i32
    %c0_i32_1 = arith.constant 0 : i32
    %c0_i32_2 = arith.constant 0 : i32
    return %c0_i32, %c0_i32_0, %c0_i32_1 : i32, i32, i32
  }
  func.func @transform_4(%arg0: i32) -> (i32, i32) {
    %c0_i32 = arith.constant 0 : i32
    %c0_i32_0 = arith.constant 0 : i32
    %c0_i32_1 = arith.constant 0 : i32
    return %c0_i32, %c0_i32_0 : i32, i32
  }
  func.func @transform_5(%arg0: i32) -> (i32, i32) {
    %c0_i32 = arith.constant 0 : i32
    %c0_i32_0 = arith.constant 0 : i32
    %c0_i32_1 = arith.constant 0 : i32
    return %c0_i32, %c0_i32_0 : i32, i32
  }
  func.func @transform_6(%arg0: i32) -> (i32, i32, i32, i32) {
    %c0_i32 = arith.constant 0 : i32
    %c0_i32_0 = arith.constant 0 : i32
    %c0_i32_1 = arith.constant 0 : i32
    %c0_i32_2 = arith.constant 0 : i32
    return %arg0, %c0_i32, %c0_i32_0, %c0_i32_1 : i32, i32, i32, i32
  }
}

</mosaic_0001>

<llo_original>
// kernel: resnet_block_forward.1
$region0: #{resnet_block_forward.1}
  #allocation0 [shape = 'u32[]', space=smem, size = 0x4, offset = 0x4, fixed_abs, tag = 'smem constant byte address 0x4 - core index']
  #allocation1 [shape = 'u32[144,128]{1,0:T(1,128)}', space=vmem, size = 0x12000, scoped, tag = 'internal scratch']
  #allocation2 [shape = 'f32[18,18,4]{2,1,0:T(8,128)}', space=vmem, size = 0x36000, scoped, tag = 'scratch operand']
  #allocation3 [shape = 'f32[18,18,4]{2,1,0:T(8,128)}', space=vmem, size = 0x36000, scoped, tag = 'scratch operand']
  #allocation4 [shape = 'f32[256,4]{1,0:T(8,128)}', space=vmem, size = 0x20000, scoped, tag = 'scratch operand']
  #allocation5 [shape = 'f32[256,8]{1,0:T(8,128)}', space=vmem, size = 0x20000, scoped, tag = 'scratch operand']
  %s0 = inlined_call_operand.vmem [shape: f32[2,16,16,4], index: 0, kind: input, shape index: {}]
  %s1 = inlined_call_operand.vmem [shape: bf16[9,4,4], index: 1, kind: input, shape index: {}]
  %s2 = inlined_call_operand.vmem [shape: f32[1,4], index: 2, kind: input, shape index: {}]
  %s3 = inlined_call_operand.vmem [shape: bf16[9,4,8], index: 3, kind: input, shape index: {}]
  %s4 = inlined_call_operand.vmem [shape: f32[1,8], index: 4, kind: input, shape index: {}]
  %s5 = inlined_call_operand.vmem [shape: bf16[4,8], index: 5, kind: input, shape index: {}]
  %s6 = inlined_call_operand.vmem [shape: f32[2,16,16,8], index: 6, kind: output, shape index: {}]
  %s7 = sld [smem:[#allocation0]]
  $region57: #{resnet_block_forward.1} parent=0
    _
  %s9 = ssub.s32 1, %s7
  %s10 = scalar_select 0, %s9, %s7
  loop: start=0, step=1, limit=4
  $region2: #{resnet_block_forward.1} parent=0 // loop_pre_header
    _
  $region3: #{resnet_block_forward.1} parent=0 // loop_header
    %s12 = sphi 0, %s16
    %p13 = scmp.ge.s32.totalorder %s12, 4
    %s22 = sphi 0, %s24
    %s25 = sphi 0, %s22
    %s26 = sphi 0, %s25
    %s42 = sphi 0, %s26
    %s46 = sphi 0, %s46
    %s48 = sphi 0, %s46
    %s49 = sphi 0, %s48
    %s63 = sphi 0, %s49
    %s67 = sphi 0, %s67
    %s69 = sphi 0, %s67
    %s70 = sphi 0, %s69
    %s84 = sphi 0, %s70
    %s88 = sphi 0, %s88
    %s90 = sphi 0, %s88
    %s91 = sphi 0, %s90
    %s105 = sphi 0, %s91
    %s109 = sphi 0, %s109
    %s111 = sphi 0, %s109
    %s112 = sphi 0, %s111
    %s126 = sphi 0, %s112
    %s130 = sphi 0, %s130
    %s132 = sphi 0, %s130
    %s133 = sphi 0, %s132
    %s147 = sphi 0, %s133
    %s153 = sphi 0, %s155
    %s156 = sphi 0, %s153
    %s157 = sphi 0, %s156
    %s173 = sphi 0, %s157
  $region4: #{resnet_block_forward.1} parent=0 // loop_header_branch
    %15 = sbr.rel (%p13) target = $region8
  $region5: #{resnet_block_forward.1} parent=0 // loop_body
    %s17 = ssub.s32 %s12, 1
    %s18 = ssub.s32 %s12, 2
    %s19 = sadd.s32 %s12, 1
    %s20 = ssub.s32 %s12, %s19
    %p21 = scmp.eq.s32.totalorder %s20, 0
    %s23 = sadd.s32 %s22, 1
    %s24 = scalar_select %p21, %s22, %s23
    %p27 = pneg %p21
    %p28 = scmp.eq.s32.totalorder %s12, 1
    %p29 = por %p27, %p28
    %p30 = scmp.ne.s32.totalorder %s22, %s25
    %p31 = scmp.eq.s32.totalorder %s12, 0
    %p32 = por %p30, %p31
    %p33 = scmp.ne.s32.totalorder %s22, %s25
    %p34 = scmp.eq.s32.totalorder %s17, 1
    %p35 = por %p33, %p34
    %p36 = scmp.ne.s32.totalorder %s25, %s26
    %p37 = scmp.eq.s32.totalorder %s17, 0
    %p38 = por %p36, %p37
    %p39 = scmp.ne.s32.totalorder %s25, %s26
    %p40 = scmp.eq.s32.totalorder %s18, 1
    %p41 = por %p39, %p40
    %p43 = scmp.ne.s32.totalorder %s26, %s42
    %p44 = scmp.eq.s32.totalorder %s18, 0
    %p45 = por %p43, %p44
    %s47 = sadd.s32 %s46, 1
    %p50 = scmp.eq.s32.totalorder %s12, 1
    %p51 = scmp.ne.s32.totalorder %s46, %s48
    %p52 = scmp.eq.s32.totalorder %s12, 0
    %p53 = por %p51, %p52
    %p54 = scmp.ne.s32.totalorder %s46, %s48
    %p55 = scmp.eq.s32.totalorder %s17, 1
    %p56 = por %p54, %p55
    %p57 = scmp.ne.s32.totalorder %s48, %s49
    %p58 = scmp.eq.s32.totalorder %s17, 0
    %p59 = por %p57, %p58
    %p60 = scmp.ne.s32.totalorder %s48, %s49
    %p61 = scmp.eq.s32.totalorder %s18, 1
    %p62 = por %p60, %p61
    %p64 = scmp.ne.s32.totalorder %s49, %s63
    %p65 = scmp.eq.s32.totalorder %s18, 0
    %p66 = por %p64, %p65
    %s68 = sadd.s32 %s67, 1
    %p71 = scmp.eq.s32.totalorder %s12, 1
    %p72 = scmp.ne.s32.totalorder %s67, %s69
    %p73 = scmp.eq.s32.totalorder %s12, 0
    %p74 = por %p72, %p73
    %p75 = scmp.ne.s32.totalorder %s67, %s69
    %p76 = scmp.eq.s32.totalorder %s17, 1
    %p77 = por %p75, %p76
    %p78 = scmp.ne.s32.totalorder %s69, %s70
    %p79 = scmp.eq.s32.totalorder %s17, 0
    %p80 = por %p78, %p79
    %p81 = scmp.ne.s32.totalorder %s69, %s70
    %p82 = scmp.eq.s32.totalorder %s18, 1
    %p83 = por %p81, %p82
    %p85 = scmp.ne.s32.totalorder %s70, %s84
    %p86 = scmp.eq.s32.totalorder %s18, 0
    %p87 = por %p85, %p86
    %s89 = sadd.s32 %s88, 1
    %p92 = scmp.eq.s32.totalorder %s12, 1
    %p93 = scmp.ne.s32.totalorder %s88, %s90
    %p94 = scmp.eq.s32.totalorder %s12, 0
    %p95 = por %p93, %p94
    %p96 = scmp.ne.s32.totalorder %s88, %s90
    %p97 = scmp.eq.s32.totalorder %s17, 1
    %p98 = por %p96, %p97
    %p99 = scmp.ne.s32.totalorder %s90, %s91
    %p100 = scmp.eq.s32.totalorder %s17, 0
    %p101 = por %p99, %p100
    %p102 = scmp.ne.s32.totalorder %s90, %s91
    %p103 = scmp.eq.s32.totalorder %s18, 1
    %p104 = por %p102, %p103
    %p106 = scmp.ne.s32.totalorder %s91, %s105
    %p107 = scmp.eq.s32.totalorder %s18, 0
    %p108 = por %p106, %p107
    %s110 = sadd.s32 %s109, 1
    %p113 = scmp.eq.s32.totalorder %s12, 1
    %p114 = scmp.ne.s32.totalorder %s109, %s111
    %p115 = scmp.eq.s32.totalorder %s12, 0
    %p116 = por %p114, %p115
    %p117 = scmp.ne.s32.totalorder %s109, %s111
    %p118 = scmp.eq.s32.totalorder %s17, 1
    %p119 = por %p117, %p118
    %p120 = scmp.ne.s32.totalorder %s111, %s112
    %p121 = scmp.eq.s32.totalorder %s17, 0
    %p122 = por %p120, %p121
    %p123 = scmp.ne.s32.totalorder %s111, %s112
    %p124 = scmp.eq.s32.totalorder %s18, 1
    %p125 = por %p123, %p124
    %p127 = scmp.ne.s32.totalorder %s112, %s126
    %p128 = scmp.eq.s32.totalorder %s18, 0
    %p129 = por %p127, %p128
    %s131 = sadd.s32 %s130, 1
    %p134 = scmp.eq.s32.totalorder %s12, 1
    %p135 = scmp.ne.s32.totalorder %s130, %s132
    %p136 = scmp.eq.s32.totalorder %s12, 0
    %p137 = por %p135, %p136
    %p138 = scmp.ne.s32.totalorder %s130, %s132
    %p139 = scmp.eq.s32.totalorder %s17, 1
    %p140 = por %p138, %p139
    %p141 = scmp.ne.s32.totalorder %s132, %s133
    %p142 = scmp.eq.s32.totalorder %s17, 0
    %p143 = por %p141, %p142
    %p144 = scmp.ne.s32.totalorder %s132, %s133
    %p145 = scmp.eq.s32.totalorder %s18, 1
    %p146 = por %p144, %p145
    %p148 = scmp.ne.s32.totalorder %s133, %s147
    %p149 = scmp.eq.s32.totalorder %s18, 0
    %p150 = por %p148, %p149
    %s151 = ssub.s32 %s12, %s19
    %p152 = scmp.eq.s32.totalorder %s151, 0
    %s154 = sadd.s32 %s153, 1
    %s155 = scalar_select %p152, %s153, %s154
    %p158 = pneg %p152
    %p159 = scmp.eq.s32.totalorder %s12, 1
    %p160 = por %p158, %p159
    %p161 = scmp.ne.s32.totalorder %s153, %s156
    %p162 = scmp.eq.s32.totalorder %s12, 0
    %p163 = por %p161, %p162
    %p164 = scmp.ne.s32.totalorder %s153, %s156
    %p165 = scmp.eq.s32.totalorder %s17, 1
    %p166 = por %p164, %p165
    %p167 = scmp.ne.s32.totalorder %s156, %s157
    %p168 = scmp.eq.s32.totalorder %s17, 0
    %p169 = por %p167, %p168
    %p170 = scmp.ne.s32.totalorder %s156, %s157
    %p171 = scmp.eq.s32.totalorder %s18, 1
    %p172 = por %p170, %p171
    %p174 = scmp.ne.s32.totalorder %s157, %s173
    %p175 = scmp.eq.s32.totalorder %s18, 0
    %p176 = por %p174, %p175
    %p177 = scmp.le.s32.totalorder 1, %s12
    %p178 = scmp.lt.s32.totalorder %s12, 3
    %p179 = pnand %p177, %p178
    %p180 = pneg %p179
    // Predicated region
    $region9: #{resnet_block_forward.1} parent=5 // pred_check
      _
    $region10: #{resnet_block_forward.1} parent=5 // pred_check_branch
      %182 = sbr.rel (%p179) target = $region12
    $region11: #{resnet_block_forward.1} parent=5 // pred_region
      %s183 = ssub.s32 %s12, 1
      // Predicated region
      $region13: #{resnet_block_forward.1} parent=11 // pred_check
        %p184 = pneg %p59
      $region14: #{resnet_block_forward.1} parent=11 // pred_check_branch
        %186 = sbr.rel (%p184) target = $region16
      $region15: #{resnet_block_forward.1} parent=11 // pred_region
        _
      $region16: #{resnet_block_forward.1} parent=11 // pred_fallthru
        _
      // Predicated region
      $region17: #{resnet_block_forward.1} parent=11 // pred_check
        %p187 = pneg %p80
      $region18: #{resnet_block_forward.1} parent=11 // pred_check_branch
        %189 = sbr.rel (%p187) target = $region20
      $region19: #{resnet_block_forward.1} parent=11 // pred_region
        _
      $region20: #{resnet_block_forward.1} parent=11 // pred_fallthru
        _
      // Predicated region
      $region21: #{resnet_block_forward.1} parent=11 // pred_check
        %p190 = pneg %p101
      $region22: #{resnet_block_forward.1} parent=11 // pred_check_branch
        %192 = sbr.rel (%p190) target = $region24
      $region23: #{resnet_block_forward.1} parent=11 // pred_region
        _
      $region24: #{resnet_block_forward.1} parent=11 // pred_fallthru
        _
      // Predicated region
      $region25: #{resnet_block_forward.1} parent=11 // pred_check
        %p193 = pneg %p122
      $region26: #{resnet_block_forward.1} parent=11 // pred_check_branch
        %195 = sbr.rel (%p193) target = $region28
      $region27: #{resnet_block_forward.1} parent=11 // pred_region
        _
      $region28: #{resnet_block_forward.1} parent=11 // pred_fallthru
        _
      // Predicated region
      $region29: #{resnet_block_forward.1} parent=11 // pred_check
        %p196 = pneg %p143
      $region30: #{resnet_block_forward.1} parent=11 // pred_check_branch
        %198 = sbr.rel (%p196) target = $region32
      $region31: #{resnet_block_forward.1} parent=11 // pred_region
        _
      $region32: #{resnet_block_forward.1} parent=11 // pred_fallthru
        _
    $region12: #{resnet_block_forward.1} parent=5 // pred_fallthru
      _
    %p199 = scmp.lt.s32.totalorder %s12, 2
    // Predicated region
    $region33: #{resnet_block_forward.1} parent=5 // pred_check
      %p200 = pneg %p199
    $region34: #{resnet_block_forward.1} parent=5 // pred_check_branch
      %202 = sbr.rel (%p200) target = $region36
    $region35: #{resnet_block_forward.1} parent=5 // pred_region
      // Predicated region
      $region37: #{resnet_block_forward.1} parent=35 // pred_check
        %p203 = pneg %p32
      $region38: #{resnet_block_forward.1} parent=35 // pred_check_branch
        %205 = sbr.rel (%p203) target = $region40
      $region39: #{resnet_block_forward.1} parent=35 // pred_region
        %p206 = scmp.lt.s32.totalorder %s12, 1
        %s207 = scalar_select %p206, %s12, 1
        %s208 = smul.addr %s207, 32
        %s209 = smul.addr %s208, 8
        %s210 = scalar_lea.vmem %s0, %s209
      $region40: #{resnet_block_forward.1} parent=35 // pred_fallthru
        _
    $region36: #{resnet_block_forward.1} parent=5 // pred_fallthru
      _
    %p211 = scmp.le.s32.totalorder 1, %s12
    %p212 = scmp.lt.s32.totalorder %s12, 3
    %p213 = pnand %p211, %p212
    %p214 = pneg %p213
    // Predicated region
    $region41: #{resnet_block_forward.1} parent=5 // pred_check
      _
    $region42: #{resnet_block_forward.1} parent=5 // pred_check_branch
      %216 = sbr.rel (%p213) target = $region44
    $region43: #{resnet_block_forward.1} parent=5 // pred_region
      %s217 = ssub.s32 %s12, 1
      %p218 = scmp.lt.s32.totalorder %s17, 1
      %s219 = scalar_select %p218, %s17, 1
      %s220 = smul.addr %s219, 32
      %s221 = smul.addr %s220, 8
      %s222 = scalar_lea.vmem %s0, %s221
      %p223 = pneg %p38
      %p224 = pneg %p35
      %p225 = pneg %p59
      %p226 = pneg %p56
      %p227 = pneg %p80
      %p228 = pneg %p77
      %p229 = pneg %p101
      %p230 = pneg %p98
      %p231 = pneg %p122
      %p232 = pneg %p119
      %p233 = pneg %p143
      %p234 = pneg %p140
      %p235 = pneg %p169
      %p236 = pneg %p166
      %p237 = scmp.lt.s32.totalorder %s17, 1
      %s238 = scalar_select %p237, %s17, 1
      %s239 = smul.addr %s238, 32
      %s240 = smul.addr %s239, 8
      %s241 = scalar_lea.vmem %s6, %s240
      %p242 = scmp.lt.s32.totalorder %s17, 1
      %s243 = scalar_select %p242, %s17, 1
      %s244 = smul.addr %s243, 32
      %s245 = smul.addr %s244, 8
      %s246 = scalar_lea.vmem %s0, %s245
      %p247 = scmp.lt.s32.totalorder %s17, 1
      %s248 = scalar_select %p247, %s17, 1
      %s249 = smul.addr %s248, 32
      %s250 = smul.addr %s249, 8
      %s251 = scalar_lea.vmem %s6, %s250
      %v253 = vld [vmem:[%s246] sm:$0xff]
      %v254 = vld [vmem:[%s246 + $0x8] sm:$0xff]
      %v255 = vld [vmem:[%s246 + $0x10] sm:$0xff]
      %v256 = vld [vmem:[%s246 + $0x18] sm:$0xff]
      %v257 = vld [vmem:[%s246 + $0x20] sm:$0xff]
      %v258 = vld [vmem:[%s246 + $0x28] sm:$0xff]
      %v259 = vld [vmem:[%s246 + $0x30] sm:$0xff]
      %v260 = vld [vmem:[%s246 + $0x38] sm:$0xff]
      %v261 = vld [vmem:[%s246 + $0x40] sm:$0xff]
      %v262 = vld [vmem:[%s246 + $0x48] sm:$0xff]
      %v263 = vld [vmem:[%s246 + $0x50] sm:$0xff]
      %v264 = vld [vmem:[%s246 + $0x58] sm:$0xff]
      %v265 = vld [vmem:[%s246 + $0x60] sm:$0xff]
      %v266 = vld [vmem:[%s246 + $0x68] sm:$0xff]
      %v267 = vld [vmem:[%s246 + $0x70] sm:$0xff]
      %v268 = vld [vmem:[%s246 + $0x78] sm:$0xff]
      %v269 = vld [vmem:[%s246 + $0x80] sm:$0xff]
      %v270 = vld [vmem:[%s246 + $0x88] sm:$0xff]
      %v271 = vld [vmem:[%s246 + $0x90] sm:$0xff]
      %v272 = vld [vmem:[%s246 + $0x98] sm:$0xff]
      %v273 = vld [vmem:[%s246 + $0xa0] sm:$0xff]
      %v274 = vld [vmem:[%s246 + $0xa8] sm:$0xff]
      %v275 = vld [vmem:[%s246 + $0xb0] sm:$0xff]
      %v276 = vld [vmem:[%s246 + $0xb8] sm:$0xff]
      %v277 = vld [vmem:[%s246 + $0xc0] sm:$0xff]
      %v278 = vld [vmem:[%s246 + $0xc8] sm:$0xff]
      %v279 = vld [vmem:[%s246 + $0xd0] sm:$0xff]
      %v280 = vld [vmem:[%s246 + $0xd8] sm:$0xff]
      %v281 = vld [vmem:[%s246 + $0xe0] sm:$0xff]
      %v282 = vld [vmem:[%s246 + $0xe8] sm:$0xff]
      %v283 = vld [vmem:[%s246 + $0xf0] sm:$0xff]
      %v284 = vld [vmem:[%s246 + $0xf8] sm:$0xff]
      %vm285 = vcmp.gt.f32.partialorder %v253, 0.0
      %vm286 = vcmp.gt.f32.partialorder %v254, 0.0
      %vm287 = vcmp.gt.f32.partialorder %v255, 0.0
      %vm288 = vcmp.gt.f32.partialorder %v256, 0.0
      %vm289 = vcmp.gt.f32.partialorder %v257, 0.0
      %vm290 = vcmp.gt.f32.partialorder %v258, 0.0
      %vm291 = vcmp.gt.f32.partialorder %v259, 0.0
      %vm292 = vcmp.gt.f32.partialorder %v260, 0.0
      %vm293 = vcmp.gt.f32.partialorder %v261, 0.0
      %vm294 = vcmp.gt.f32.partialorder %v262, 0.0
      %vm295 = vcmp.gt.f32.partialorder %v263, 0.0
      %vm296 = vcmp.gt.f32.partialorder %v264, 0.0
      %vm297 = vcmp.gt.f32.partialorder %v265, 0.0
      %vm298 = vcmp.gt.f32.partialorder %v266, 0.0
      %vm299 = vcmp.gt.f32.partialorder %v267, 0.0
      %vm300 = vcmp.gt.f32.partialorder %v268, 0.0
      %vm301 = vcmp.gt.f32.partialorder %v269, 0.0
      %vm302 = vcmp.gt.f32.partialorder %v270, 0.0
      %vm303 = vcmp.gt.f32.partialorder %v271, 0.0
      %vm304 = vcmp.gt.f32.partialorder %v272, 0.0
      %vm305 = vcmp.gt.f32.partialorder %v273, 0.0
      %vm306 = vcmp.gt.f32.partialorder %v274, 0.0
      %vm307 = vcmp.gt.f32.partialorder %v275, 0.0
      %vm308 = vcmp.gt.f32.partialorder %v276, 0.0
      %vm309 = vcmp.gt.f32.partialorder %v277, 0.0
      %vm310 = vcmp.gt.f32.partialorder %v278, 0.0
      %vm311 = vcmp.gt.f32.partialorder %v279, 0.0
      %vm312 = vcmp.gt.f32.partialorder %v280, 0.0
      %vm313 = vcmp.gt.f32.partialorder %v281, 0.0
      %vm314 = vcmp.gt.f32.partialorder %v282, 0.0
      %vm315 = vcmp.gt.f32.partialorder %v283, 0.0
      %vm316 = vcmp.gt.f32.partialorder %v284, 0.0
      %v317 = vmul.f32 %v253, 0.2
      %v318 = vmul.f32 %v254, 0.2
      %v319 = vmul.f32 %v255, 0.2
      %v320 = vmul.f32 %v256, 0.2
      %v321 = vmul.f32 %v257, 0.2
      %v322 = vmul.f32 %v258, 0.2
      %v323 = vmul.f32 %v259, 0.2
      %v324 = vmul.f32 %v260, 0.2
      %v325 = vmul.f32 %v261, 0.2
      %v326 = vmul.f32 %v262, 0.2
      %v327 = vmul.f32 %v263, 0.2
      %v328 = vmul.f32 %v264, 0.2
      %v329 = vmul.f32 %v265, 0.2
      %v330 = vmul.f32 %v266, 0.2
      %v331 = vmul.f32 %v267, 0.2
      %v332 = vmul.f32 %v268, 0.2
      %v333 = vmul.f32 %v269, 0.2
      %v334 = vmul.f32 %v270, 0.2
      %v335 = vmul.f32 %v271, 0.2
      %v336 = vmul.f32 %v272, 0.2
      %v337 = vmul.f32 %v273, 0.2
      %v338 = vmul.f32 %v274, 0.2
      %v339 = vmul.f32 %v275, 0.2
      %v340 = vmul.f32 %v276, 0.2
      %v341 = vmul.f32 %v277, 0.2
      %v342 = vmul.f32 %v278, 0.2
      %v343 = vmul.f32 %v279, 0.2
      %v344 = vmul.f32 %v280, 0.2
      %v345 = vmul.f32 %v281, 0.2
      %v346 = vmul.f32 %v282, 0.2
      %v347 = vmul.f32 %v283, 0.2
      %v348 = vmul.f32 %v284, 0.2
      %v349 = vsel %vm285, %v253, %v317
      %v350 = vsel %vm286, %v254, %v318
      %v351 = vsel %vm287, %v255, %v319
      %v352 = vsel %vm288, %v256, %v320
      %v353 = vsel %vm289, %v257, %v321
      %v354 = vsel %vm290, %v258, %v322
      %v355 = vsel %vm291, %v259, %v323
      %v356 = vsel %vm292, %v260, %v324
      %v357 = vsel %vm293, %v261, %v325
      %v358 = vsel %vm294, %v262, %v326
      %v359 = vsel %vm295, %v263, %v327
      %v360 = vsel %vm296, %v264, %v328
      %v361 = vsel %vm297, %v265, %v329
      %v362 = vsel %vm298, %v266, %v330
      %v363 = vsel %vm299, %v267, %v331
      %v364 = vsel %vm300, %v268, %v332
      %v365 = vsel %vm301, %v269, %v333
      %v366 = vsel %vm302, %v270, %v334
      %v367 = vsel %vm303, %v271, %v335
      %v368 = vsel %vm304, %v272, %v336
      %v369 = vsel %vm305, %v273, %v337
      %v370 = vsel %vm306, %v274, %v338
      %v371 = vsel %vm307, %v275, %v339
      %v372 = vsel %vm308, %v276, %v340
      %v373 = vsel %vm309, %v277, %v341
      %v374 = vsel %vm310, %v278, %v342
      %v375 = vsel %vm311, %v279, %v343
      %v376 = vsel %vm312, %v280, %v344
      %v377 = vsel %vm313, %v281, %v345
      %v378 = vsel %vm314, %v282, %v346
      %v379 = vsel %vm315, %v283, %v347
      %v380 = vsel %vm316, %v284, %v348
      %vm381 = vcmask 31744
      %382 = vst.msk [vmem:[#allocation2] sm:$0xff] %vm381, 0.0
      %383 = vst.msk [vmem:[#allocation2 + $0x8] sm:$0xff] %vm381, 0.0
      %vm384 = vcmask 25600
      %385 = vst.msk [vmem:[#allocation2 + $0x10] sm:$0x3] %vm384, 0.0
      %s386 = scalar_lea.vmem [#allocation2], 408
      %387 = vst.msk [vmem:[%s386] sm:$0xff] %vm381, 0.0
      %388 = vst.msk [vmem:[%s386 + $0x8] sm:$0xff] %vm381, 0.0
      %389 = vst.msk [vmem:[%s386 + $0x10] sm:$0x3] %vm384, 0.0
      %vm390 = vcmask 24576
      %391 = vst.msk [vmem:[#allocation2] sm:$0x1] %vm390, 0.0
      %392 = vst.msk [vmem:[#allocation2 + $0x18] sm:$0x1] %vm390, 0.0
      %393 = vst.msk [vmem:[#allocation2 + $0x30] sm:$0x1] %vm390, 0.0
      %394 = vst.msk [vmem:[#allocation2 + $0x48] sm:$0x1] %vm390, 0.0
      %395 = vst.msk [vmem:[#allocation2 + $0x60] sm:$0x1] %vm390, 0.0
      %396 = vst.msk [vmem:[#allocation2 + $0x78] sm:$0x1] %vm390, 0.0
      %397 = vst.msk [vmem:[#allocation2 + $0x90] sm:$0x1] %vm390, 0.0
      %398 = vst.msk [vmem:[#allocation2 + $0xa8] sm:$0x1] %vm390, 0.0
      %399 = vst.msk [vmem:[#allocation2 + $0xc0] sm:$0x1] %vm390, 0.0
      %400 = vst.msk [vmem:[#allocation2 + $0xd8] sm:$0x1] %vm390, 0.0
      %401 = vst.msk [vmem:[#allocation2 + $0xf0] sm:$0x1] %vm390, 0.0
      %402 = vst.msk [vmem:[#allocation2 + $0x108] sm:$0x1] %vm390, 0.0
      %403 = vst.msk [vmem:[#allocation2 + $0x120] sm:$0x1] %vm390, 0.0
      %404 = vst.msk [vmem:[#allocation2 + $0x138] sm:$0x1] %vm390, 0.0
      %405 = vst.msk [vmem:[#allocation2 + $0x150] sm:$0x1] %vm390, 0.0
      %406 = vst.msk [vmem:[#allocation2 + $0x168] sm:$0x1] %vm390, 0.0
      %407 = vst.msk [vmem:[#allocation2 + $0x180] sm:$0x1] %vm390, 0.0
      %408 = vst.msk [vmem:[#allocation2 + $0x198] sm:$0x1] %vm390, 0.0
      %409 = vst.msk [vmem:[#allocation2 + $0x11] sm:$0x1] %vm390, 0.0
      %410 = vst.msk [vmem:[#allocation2 + $0x29] sm:$0x1] %vm390, 0.0
      %411 = vst.msk [vmem:[#allocation2 + $0x41] sm:$0x1] %vm390, 0.0
      %412 = vst.msk [vmem:[#allocation2 + $0x59] sm:$0x1] %vm390, 0.0
      %413 = vst.msk [vmem:[#allocation2 + $0x71] sm:$0x1] %vm390, 0.0
      %414 = vst.msk [vmem:[#allocation2 + $0x89] sm:$0x1] %vm390, 0.0
      %415 = vst.msk [vmem:[#allocation2 + $0xa1] sm:$0x1] %vm390, 0.0
      %416 = vst.msk [vmem:[#allocation2 + $0xb9] sm:$0x1] %vm390, 0.0
      %417 = vst.msk [vmem:[#allocation2 + $0xd1] sm:$0x1] %vm390, 0.0
      %418 = vst.msk [vmem:[#allocation2 + $0xe9] sm:$0x1] %vm390, 0.0
      %419 = vst.msk [vmem:[#allocation2 + $0x101] sm:$0x1] %vm390, 0.0
      %420 = vst.msk [vmem:[#allocation2 + $0x119] sm:$0x1] %vm390, 0.0
      %421 = vst.msk [vmem:[#allocation2 + $0x131] sm:$0x1] %vm390, 0.0
      %422 = vst.msk [vmem:[#allocation2 + $0x149] sm:$0x1] %vm390, 0.0
      %423 = vst.msk [vmem:[#allocation2 + $0x161] sm:$0x1] %vm390, 0.0
      %424 = vst.msk [vmem:[#allocation2 + $0x179] sm:$0x1] %vm390, 0.0
      %425 = vst.msk [vmem:[#allocation2 + $0x191] sm:$0x1] %vm390, 0.0
      %426 = vst.msk [vmem:[#allocation2 + $0x1a9] sm:$0x1] %vm390, 0.0
      %s427 = scalar_lea.vmem [#allocation2], 24
      %428 = vst.msk [vmem:[%s427 + $0x1] sm:$0xff] %vm381, %v349
      %429 = vst.msk [vmem:[%s427 + $0x9] sm:$0xff] %vm381, %v350
      %430 = vst.msk [vmem:[%s427 + $0x19] sm:$0xff] %vm381, %v351
      %431 = vst.msk [vmem:[%s427 + $0x21] sm:$0xff] %vm381, %v352
      %432 = vst.msk [vmem:[%s427 + $0x31] sm:$0xff] %vm381, %v353
      %433 = vst.msk [vmem:[%s427 + $0x39] sm:$0xff] %vm381, %v354
      %434 = vst.msk [vmem:[%s427 + $0x49] sm:$0xff] %vm381, %v355
      %435 = vst.msk [vmem:[%s427 + $0x51] sm:$0xff] %vm381, %v356
      %436 = vst.msk [vmem:[%s427 + $0x61] sm:$0xff] %vm381, %v357
      %437 = vst.msk [vmem:[%s427 + $0x69] sm:$0xff] %vm381, %v358
      %438 = vst.msk [vmem:[%s427 + $0x79] sm:$0xff] %vm381, %v359
      %439 = vst.msk [vmem:[%s427 + $0x81] sm:$0xff] %vm381, %v360
      %440 = vst.msk [vmem:[%s427 + $0x91] sm:$0xff] %vm381, %v361
      %441 = vst.msk [vmem:[%s427 + $0x99] sm:$0xff] %vm381, %v362
      %442 = vst.msk [vmem:[%s427 + $0xa9] sm:$0xff] %vm381, %v363
      %443 = vst.msk [vmem:[%s427 + $0xb1] sm:$0xff] %vm381, %v364
      %444 = vst.msk [vmem:[%s427 + $0xc1] sm:$0xff] %vm381, %v365
      %445 = vst.msk [vmem:[%s427 + $0xc9] sm:$0xff] %vm381, %v366
      %446 = vst.msk [vmem:[%s427 + $0xd9] sm:$0xff] %vm381, %v367
      %447 = vst.msk [vmem:[%s427 + $0xe1] sm:$0xff] %vm381, %v368
      %448 = vst.msk [vmem:[%s427 + $0xf1] sm:$0xff] %vm381, %v369
      %449 = vst.msk [vmem:[%s427 + $0xf9] sm:$0xff] %vm381, %v370
      %450 = vst.msk [vmem:[%s427 + $0x109] sm:$0xff] %vm381, %v371
      %451 = vst.msk [vmem:[%s427 + $0x111] sm:$0xff] %vm381, %v372
      %452 = vst.msk [vmem:[%s427 + $0x121] sm:$0xff] %vm381, %v373
      %453 = vst.msk [vmem:[%s427 + $0x129] sm:$0xff] %vm381, %v374
      %454 = vst.msk [vmem:[%s427 + $0x139] sm:$0xff] %vm381, %v375
      %455 = vst.msk [vmem:[%s427 + $0x141] sm:$0xff] %vm381, %v376
      %456 = vst.msk [vmem:[%s427 + $0x151] sm:$0xff] %vm381, %v377
      %457 = vst.msk [vmem:[%s427 + $0x159] sm:$0xff] %vm381, %v378
      %458 = vst.msk [vmem:[%s427 + $0x169] sm:$0xff] %vm381, %v379
      %459 = vst.msk [vmem:[%s427 + $0x171] sm:$0xff] %vm381, %v380
      %v460 = vld [vmem:[#allocation2] sm:$0xff]
      %v461 = vld [vmem:[#allocation2 + $0x8] sm:$0xff]
      %v462 = vld [vmem:[#allocation2 + $0x18] sm:$0xff]
      %v463 = vld [vmem:[#allocation2 + $0x20] sm:$0xff]
      %v464 = vld [vmem:[#allocation2 + $0x30] sm:$0xff]
      %v465 = vld [vmem:[#allocation2 + $0x38] sm:$0xff]
      %v466 = vld [vmem:[#allocation2 + $0x48] sm:$0xff]
      %v467 = vld [vmem:[#allocation2 + $0x50] sm:$0xff]
      %v468 = vld [vmem:[#allocation2 + $0x60] sm:$0xff]
      %v469 = vld [vmem:[#allocation2 + $0x68] sm:$0xff]
      %v470 = vld [vmem:[#allocation2 + $0x78] sm:$0xff]
      %v471 = vld [vmem:[#allocation2 + $0x80] sm:$0xff]
      %v472 = vld [vmem:[#allocation2 + $0x90] sm:$0xff]
      %v473 = vld [vmem:[#allocation2 + $0x98] sm:$0xff]
      %v474 = vld [vmem:[#allocation2 + $0xa8] sm:$0xff]
      %v475 = vld [vmem:[#allocation2 + $0xb0] sm:$0xff]
      %v476 = vld [vmem:[#allocation2 + $0xc0] sm:$0xff]
      %v477 = vld [vmem:[#allocation2 + $0xc8] sm:$0xff]
      %v478 = vld [vmem:[#allocation2 + $0xd8] sm:$0xff]
      %v479 = vld [vmem:[#allocation2 + $0xe0] sm:$0xff]
      %v480 = vld [vmem:[#allocation2 + $0xf0] sm:$0xff]
      %v481 = vld [vmem:[#allocation2 + $0xf8] sm:$0xff]
      %v482 = vld [vmem:[#allocation2 + $0x108] sm:$0xff]
      %v483 = vld [vmem:[#allocation2 + $0x110] sm:$0xff]
      %v484 = vld [vmem:[#allocation2 + $0x120] sm:$0xff]
      %v485 = vld [vmem:[#allocation2 + $0x128] sm:$0xff]
      %v486 = vld [vmem:[#allocation2 + $0x138] sm:$0xff]
      %v487 = vld [vmem:[#allocation2 + $0x140] sm:$0xff]
      %v488 = vld [vmem:[#allocation2 + $0x150] sm:$0xff]
      %v489 = vld [vmem:[#allocation2 + $0x158] sm:$0xff]
      %v490 = vld [vmem:[#allocation2 + $0x168] sm:$0xff]
      %v491 = vld [vmem:[#allocation2 + $0x170] sm:$0xff]
      %v492 = vpack.c.bf16 %v461, %v460
      %v493 = vpack.c.bf16 %v463, %v462
      %v494 = vpack.c.bf16 %v465, %v464
      %v495 = vpack.c.bf16 %v467, %v466
      %v496 = vpack.c.bf16 %v469, %v468
      %v497 = vpack.c.bf16 %v471, %v470
      %v498 = vpack.c.bf16 %v473, %v472
      %v499 = vpack.c.bf16 %v475, %v474
      %v500 = vpack.c.bf16 %v477, %v476
      %v501 = vpack.c.bf16 %v479, %v478
      %v502 = vpack.c.bf16 %v481, %v480
      %v503 = vpack.c.bf16 %v483, %v482
      %v504 = vpack.c.bf16 %v485, %v484
      %v505 = vpack.c.bf16 %v487, %v486
      %v506 = vpack.c.bf16 %v489, %v488
      %v507 = vpack.c.bf16 %v491, %v490
      %v508 = vld [vmem:[%s1] sm:$0x3]
      %v510 = vsel %vm381, %v492, 0
      %v513 = vsel %vm381, %v493, 0
      %v516 = vsel %vm381, %v494, 0
      %v519 = vsel %vm381, %v495, 0
      %v522 = vsel %vm381, %v496, 0
      %v525 = vsel %vm381, %v497, 0
      %v528 = vsel %vm381, %v498, 0
      %v531 = vsel %vm381, %v499, 0
      %v534 = vsel %vm381, %v500, 0
      %v537 = vsel %vm381, %v501, 0
      %v540 = vsel %vm381, %v502, 0
      %v543 = vsel %vm381, %v503, 0
      %v546 = vsel %vm381, %v504, 0
      %v549 = vsel %vm381, %v505, 0
      %v552 = vsel %vm381, %v506, 0
      %v555 = vsel %vm381, %v507, 0
      %vm557 = vcmask 1041408
      %v559 = vsel %vm557, %v508, 0
      %561 = vmatprep.subr.bf16.mxu0 0
      %562 = vmatpush1.bf16.msra.mxu0 %v559
      %563 = vmatprep.subr.bf16.mxu0 0
      %564 = vmatpush1.bf16.msra.mxu0 0
      %565 = vmatprep.subr.bf16.mxu0 0
      %566 = vmatpush1.bf16.msra.mxu0 0
      %567 = vmatprep.subr.bf16.mxu0 0
      %568 = vmatpush1.bf16.msra.mxu0 0
      %569 = vmatprep.subr.bf16.mxu0 0
      %570 = vmatpush1.bf16.msra.mxu0 0
      %571 = vmatprep.subr.bf16.mxu0 0
      %572 = vmatpush1.bf16.msra.mxu0 0
      %573 = vmatprep.subr.bf16.mxu0 0
      %574 = vmatpush1.bf16.msra.mxu0 0
      %575 = vmatprep.subr.bf16.mxu0 0
      %576 = vmatpush1.bf16.msra.mxu0 0
      %577 = vmatprep.subr.bf16.mxu0 0
      %578 = vmatpush1.bf16.msra.mxu0 0
      %579 = vmatprep.subr.bf16.mxu0 0
      %580 = vmatpush1.bf16.msra.mxu0 0
      %581 = vmatprep.subr.bf16.mxu0 0
      %582 = vmatpush1.bf16.msra.mxu0 0
      %583 = vmatprep.subr.bf16.mxu0 0
      %584 = vmatpush1.bf16.msra.mxu0 0
      %585 = vmatprep.subr.bf16.mxu0 0
      %586 = vmatpush1.bf16.msra.mxu0 0
      %587 = vmatprep.subr.bf16.mxu0 0
      %588 = vmatpush1.bf16.msra.mxu0 0
      %589 = vmatprep.subr.bf16.mxu0 0
      %590 = vmatpush1.bf16.msra.mxu0 0
      %591 = vmatprep.subr.bf16.mxu0 0
      %592 = vmatpush1.bf16.msra.mxu0 0
      %593 = vmatprep.mubr.bf16.mxu0 0
      %594 = vmatmul.mubr.bf16.gmra.mrb[0].mxu0 %v510
      %v595 = vpop.f32.mrb[0].mxu0
      %v596 = vadd.f32 0.0, %v595
      %v597 = vpop.f32.mrb[0].mxu0
      %v598 = vpop.f32.mrb[0].mxu0
      %v599 = vadd.f32 0.0, %v598
      %v600 = vpop.f32.mrb[0].mxu0
      %601 = vmatprep.mubr.bf16.mxu0 0
      %602 = vmatmul.mubr.bf16.gmra.mrb[0].mxu0 %v513
      %v603 = vpop.f32.mrb[0].mxu0
      %v604 = vadd.f32 0.0, %v603
      %v605 = vpop.f32.mrb[0].mxu0
      %v606 = vpop.f32.mrb[0].mxu0
      %v607 = vadd.f32 0.0, %v606
      %v608 = vpop.f32.mrb[0].mxu0
      %609 = vmatprep.mubr.bf16.mxu0 0
      %610 = vmatmul.mubr.bf16.gmra.mrb[0].mxu0 %v516
      %v611 = vpop.f32.mrb[0].mxu0
      %v612 = vadd.f32 0.0, %v611
      %v613 = vpop.f32.mrb[0].mxu0
      %v614 = vpop.f32.mrb[0].mxu0
      %v615 = vadd.f32 0.0, %v614
      %v616 = vpop.f32.mrb[0].mxu0
      %617 = vmatprep.mubr.bf16.mxu0 0
      %618 = vmatmul.mubr.bf16.gmra.mrb[0].mxu0 %v519
      %v619 = vpop.f32.mrb[0].mxu0
      %v620 = vadd.f32 0.0, %v619
      %v621 = vpop.f32.mrb[0].mxu0
      %v622 = vpop.f32.mrb[0].mxu0
      %v623 = vadd.f32 0.0, %v622
      %v624 = vpop.f32.mrb[0].mxu0
      %625 = vmatprep.mubr.bf16.mxu0 0
      %626 = vmatmul.mubr.bf16.gmra.mrb[0].mxu0 %v522
      %v627 = vpop.f32.mrb[0].mxu0
      %v628 = vadd.f32 0.0, %v627
      %v629 = vpop.f32.mrb[0].mxu0
      %v630 = vpop.f32.mrb[0].mxu0
      %v631 = vadd.f32 0.0, %v630
      %v632 = vpop.f32.mrb[0].mxu0
      %633 = vmatprep.mubr.bf16.mxu0 0
      %634 = vmatmul.mubr.bf16.gmra.mrb[0].mxu0 %v525
      %v635 = vpop.f32.mrb[0].mxu0
      %v636 = vadd.f32 0.0, %v635
      %v637 = vpop.f32.mrb[0].mxu0
      %v638 = vpop.f32.mrb[0].mxu0
      %v639 = vadd.f32 0.0, %v638
      %v640 = vpop.f32.mrb[0].mxu0
      %641 = vmatprep.mubr.bf16.mxu0 0
      %642 = vmatmul.mubr.bf16.gmra.mrb[0].mxu0 %v528
      %v643 = vpop.f32.mrb[0].mxu0
      %v644 = vadd.f32 0.0, %v643
      %v645 = vpop.f32.mrb[0].mxu0
      %v646 = vpop.f32.mrb[0].mxu0
      %v647 = vadd.f32 0.0, %v646
      %v648 = vpop.f32.mrb[0].mxu0
      %649 = vmatprep.mubr.bf16.mxu0 0
      %650 = vmatmul.mubr.bf16.gmra.mrb[0].mxu0 %v531
      %v651 = vpop.f32.mrb[0].mxu0
      %v652 = vadd.f32 0.0, %v651
      %v653 = vpop.f32.mrb[0].mxu0
      %v654 = vpop.f32.mrb[0].mxu0
      %v655 = vadd.f32 0.0, %v654
      %v656 = vpop.f32.mrb[0].mxu0
      %657 = vmatprep.mubr.bf16.mxu0 0
      %658 = vmatmul.mubr.bf16.gmra.mrb[0].mxu0 %v534
      %v659 = vpop.f32.mrb[0].mxu0
      %v660 = vadd.f32 0.0, %v659
      %v661 = vpop.f32.mrb[0].mxu0
      %v662 = vpop.f32.mrb[0].mxu0
      %v663 = vadd.f32 0.0, %v662
      %v664 = vpop.f32.mrb[0].mxu0
      %665 = vmatprep.mubr.bf16.mxu0 0
      %666 = vmatmul.mubr.bf16.gmra.mrb[0].mxu0 %v537
      %v667 = vpop.f32.mrb[0].mxu0
      %v668 = vadd.f32 0.0, %v667
      %v669 = vpop.f32.mrb[0].mxu0
      %v670 = vpop.f32.mrb[0].mxu0
      %v671 = vadd.f32 0.0, %v670
      %v672 = vpop.f32.mrb[0].mxu0
      %673 = vmatprep.mubr.bf16.mxu0 0
      %674 = vmatmul.mubr.bf16.gmra.mrb[0].mxu0 %v540
      %v675 = vpop.f32.mrb[0].mxu0
      %v676 = vadd.f32 0.0, %v675
      %v677 = vpop.f32.mrb[0].mxu0
      %v678 = vpop.f32.mrb[0].mxu0
      %v679 = vadd.f32 0.0, %v678
      %v680 = vpop.f32.mrb[0].mxu0
      %681 = vmatprep.mubr.bf16.mxu0 0
      %682 = vmatmul.mubr.bf16.gmra.mrb[0].mxu0 %v543
      %v683 = vpop.f32.mrb[0].mxu0
      %v684 = vadd.f32 0.0, %v683
      %v685 = vpop.f32.mrb[0].mxu0
      %v686 = vpop.f32.mrb[0].mxu0
      %v687 = vadd.f32 0.0, %v686
      %v688 = vpop.f32.mrb[0].mxu0
      %689 = vmatprep.mubr.bf16.mxu0 0
      %690 = vmatmul.mubr.bf16.gmra.mrb[0].mxu0 %v546
      %v691 = vpop.f32.mrb[0].mxu0
      %v692 = vadd.f32 0.0, %v691
      %v693 = vpop.f32.mrb[0].mxu0
      %v694 = vpop.f32.mrb[0].mxu0
      %v695 = vadd.f32 0.0, %v694
      %v696 = vpop.f32.mrb[0].mxu0
      %697 = vmatprep.mubr.bf16.mxu0 0
      %698 = vmatmul.mubr.bf16.gmra.mrb[0].mxu0 %v549
      %v699 = vpop.f32.mrb[0].mxu0
      %v700 = vadd.f32 0.0, %v699
      %v701 = vpop.f32.mrb[0].mxu0
      %v702 = vpop.f32.mrb[0].mxu0
      %v703 = vadd.f32 0.0, %v702
      %v704 = vpop.f32.mrb[0].mxu0
      %705 = vmatprep.mubr.bf16.mxu0 0
      %706 = vmatmul.mubr.bf16.gmra.mrb[0].mxu0 %v552
      %v707 = vpop.f32.mrb[0].mxu0
      %v708 = vadd.f32 0.0, %v707
      %v709 = vpop.f32.mrb[0].mxu0
      %v710 = vpop.f32.mrb[0].mxu0
      %v711 = vadd.f32 0.0, %v710
      %v712 = vpop.f32.mrb[0].mxu0
      %713 = vmatprep.mubr.bf16.mxu0 0
      %714 = vmatmul.mubr.bf16.gmra.mrb[0].mxu0 %v555
      %v715 = vpop.f32.mrb[0].mxu0
      %v716 = vadd.f32 0.0, %v715
      %v717 = vpop.f32.mrb[0].mxu0
      %v718 = vpop.f32.mrb[0].mxu0
      %v719 = vadd.f32 0.0, %v718
      %v720 = vpop.f32.mrb[0].mxu0
      %721 = vdwg.mxu0
      %722 = vst.msk [vmem:[#allocation4] sm:$0xff] %vm381, %v596
      %723 = vst.msk [vmem:[#allocation4 + $0x8] sm:$0xff] %vm381, %v599
      %724 = vst.msk [vmem:[#allocation4 + $0x10] sm:$0xff] %vm381, %v604
      %725 = vst.msk [vmem:[#allocation4 + $0x18] sm:$0xff] %vm381, %v607
      %726 = vst.msk [vmem:[#allocation4 + $0x20] sm:$0xff] %vm381, %v612
      %727 = vst.msk [vmem:[#allocation4 + $0x28] sm:$0xff] %vm381, %v615
      %728 = vst.msk [vmem:[#allocation4 + $0x30] sm:$0xff] %vm381, %v620
      %729 = vst.msk [vmem:[#allocation4 + $0x38] sm:$0xff] %vm381, %v623
      %730 = vst.msk [vmem:[#allocation4 + $0x40] sm:$0xff] %vm381, %v628
      %731 = vst.msk [vmem:[#allocation4 + $0x48] sm:$0xff] %vm381, %v631
      %732 = vst.msk [vmem:[#allocation4 + $0x50] sm:$0xff] %vm381, %v636
      %733 = vst.msk [vmem:[#allocation4 + $0x58] sm:$0xff] %vm381, %v639
      %734 = vst.msk [vmem:[#allocation4 + $0x60] sm:$0xff] %vm381, %v644
      %735 = vst.msk [vmem:[#allocation4 + $0x68] sm:$0xff] %vm381, %v647
      %736 = vst.msk [vmem:[#allocation4 + $0x70] sm:$0xff] %vm381, %v652
      %737 = vst.msk [vmem:[#allocation4 + $0x78] sm:$0xff] %vm381, %v655
      %738 = vst.msk [vmem:[#allocation4 + $0x80] sm:$0xff] %vm381, %v660
      %739 = vst.msk [vmem:[#allocation4 + $0x88] sm:$0xff] %vm381, %v663
      %740 = vst.msk [vmem:[#allocation4 + $0x90] sm:$0xff] %vm381, %v668
      %741 = vst.msk [vmem:[#allocation4 + $0x98] sm:$0xff] %vm381, %v671
      %742 = vst.msk [vmem:[#allocation4 + $0xa0] sm:$0xff] %vm381, %v676
      %743 = vst.msk [vmem:[#allocation4 + $0xa8] sm:$0xff] %vm381, %v679
      %744 = vst.msk [vmem:[#allocation4 + $0xb0] sm:$0xff] %vm381, %v684
      %745 = vst.msk [vmem:[#allocation4 + $0xb8] sm:$0xff] %vm381, %v687
      %746 = vst.msk [vmem:[#allocation4 + $0xc0] sm:$0xff] %vm381, %v692
      %747 = vst.msk [vmem:[#allocation4 + $0xc8] sm:$0xff] %vm381, %v695
      %748 = vst.msk [vmem:[#allocation4 + $0xd0] sm:$0xff] %vm381, %v700
      %749 = vst.msk [vmem:[#allocation4 + $0xd8] sm:$0xff] %vm381, %v703
      %750 = vst.msk [vmem:[#allocation4 + $0xe0] sm:$0xff] %vm381, %v708
      %751 = vst.msk [vmem:[#allocation4 + $0xe8] sm:$0xff] %vm381, %v711
      %752 = vst.msk [vmem:[#allocation4 + $0xf0] sm:$0xff] %vm381, %v716
      %753 = vst.msk [vmem:[#allocation4 + $0xf8] sm:$0xff] %vm381, %v719
      %v754 = vld [vmem:[#allocation2 + $0x1] sm:$0xff]
      %v755 = vld [vmem:[#allocation2 + $0x9] sm:$0xff]
      %v756 = vld [vmem:[#allocation2 + $0x19] sm:$0xff]
      %v757 = vld [vmem:[#allocation2 + $0x21] sm:$0xff]
      %v758 = vld [vmem:[#allocation2 + $0x31] sm:$0xff]
      %v759 = vld [vmem:[#allocation2 + $0x39] sm:$0xff]
      %v760 = vld [vmem:[#allocation2 + $0x49] sm:$0xff]
      %v761 = vld [vmem:[#allocation2 + $0x51] sm:$0xff]
      %v762 = vld [vmem:[#allocation2 + $0x61] sm:$0xff]
      %v763 = vld [vmem:[#allocation2 + $0x69] sm:$0xff]
      %v764 = vld [vmem:[#allocation2 + $0x79] sm:$0xff]
      %v765 = vld [vmem:[#allocation2 + $0x81] sm:$0xff]
      %v766 = vld [vmem:[#allocation2 + $0x91] sm:$0xff]
      %v767 = vld [vmem:[#allocation2 + $0x99] sm:$0xff]
      %v768 = vld [vmem:[#allocation2 + $0xa9] sm:$0xff]
      %v769 = vld [vmem:[#allocation2 + $0xb1] sm:$0xff]
      %v770 = vld [vmem:[#allocation2 + $0xc1] sm:$0xff]
      %v771 = vld [vmem:[#allocation2 + $0xc9] sm:$0xff]
      %v772 = vld [vmem:[#allocation2 + $0xd9] sm:$0xff]
      %v773 = vld [vmem:[#allocation2 + $0xe1] sm:$0xff]
      %v774 = vld [vmem:[#allocation2 + $0xf1] sm:$0xff]
      %v775 = vld [vmem:[#allocation2 + $0xf9] sm:$0xff]
      %v776 = vld [vmem:[#allocation2 + $0x109] sm:$0xff]
      %v777 = vld [vmem:[#allocation2 + $0x111] sm:$0xff]
      %v778 = vld [vmem:[#allocation2 + $0x121] sm:$0xff]
      %v779 = vld [vmem:[#allocation2 + $0x129] sm:$0xff]
      %v780 = vld [vmem:[#allocation2 + $0x139] sm:$0xff]
      %v781 = vld [vmem:[#allocation2 + $0x141] sm:$0xff]
      %v782 = vld [vmem:[#allocation2 + $0x151] sm:$0xff]
      %v783 = vld [vmem:[#allocation2 + $0x159] sm:$0xff]
      %v784 = vld [vmem:[#allocation2 + $0x169] sm:$0xff]
      %v785 = vld [vmem:[#allocation2 + $0x171] sm:$0xff]
      %v786 = vpack.c.bf16 %v755, %v754
      %v787 = vpack.c.bf16 %v757, %v756
      %v788 = vpack.c.bf16 %v759, %v758
      %v789 = vpack.c.bf16 %v761, %v760
      %v790 = vpack.c.bf16 %v763, %v762
      %v791 = vpack.c.bf16 %v765, %v764
      %v792 = vpack.c.bf16 %v767, %v766
      %v793 = vpack.c.bf16 %v769, %v768
      %v794 = vpack.c.bf16 %v771, %v770
      %v795 = vpack.c.bf16 %v773, %v772
      %v796 = vpack.c.bf16 %v775, %v774
      %v797 = vpack.c.bf16 %v777, %v776
      %v798 = vpack.c.bf16 %v779, %v778
      %v799 = vpack.c.bf16 %v781, %v780
      %v800 = vpack.c.bf16 %v783, %v782
      %v801 = vpack.c.bf16 %v785, %v784
      %s802 = scalar_lea.vmem %s1, 2
      %v803 = vld [vmem:[%s802] sm:$0x3]
      %v805 = vsel %vm381, %v786, 0
      %v808 = vsel %vm381, %v787, 0
      %v811 = vsel %vm381, %v788, 0
      %v814 = vsel %vm381, %v789, 0
      %v817 = vsel %vm381, %v790, 0
      %v820 = vsel %vm381, %v791, 0
      %v823 = vsel %vm381, %v792, 0
      %v826 = vsel %vm381, %v793, 0
      %v829 = vsel %vm381, %v794, 0
      %v832 = vsel %vm381, %v795, 0
      %v835 = vsel %vm381, %v796, 0
      %v838 = vsel %vm381, %v797, 0
      %v841 = vsel %vm381, %v798, 0
      %v844 = vsel %vm381, %v799, 0
      %v847 = vsel %vm381, %v800, 0
      %v850 = vsel %vm381, %v801, 0
      %v853 = vsel %vm557, %v803, 0
      %855 = vmatprep.subr.bf16.mxu0 0
      %856 = vmatpush1.bf16.msra.mxu0 %v853
      %857 = vmatprep.subr.bf16.mxu0 0
      %858 = vmatpush1.bf16.msra.mxu0 0
      %859 = vmatprep.subr.bf16.mxu0 0
      %860 = vmatpush1.bf16.msra.mxu0 0
      %861 = vmatprep.subr.bf16.mxu0 0
      %862 = vmatpush1.bf16.msra.mxu0 0
      %863 = vmatprep.subr.bf16.mxu0 0
      %864 = vmatpush1.bf16.msra.mxu0 0
      %865 = vmatprep.subr.bf16.mxu0 0
      %866 = vmatpush1.bf16.msra.mxu0 0
      %867 = vmatprep.subr.bf16.mxu0 0
      %868 = vmatpush1.bf16.msra.mxu0 0
      %869 = vmatprep.subr.bf16.mxu0 0
      %870 = vmatpush1.bf16.msra.mxu0 0
      %871 = vmatprep.subr.bf16.mxu0 0
      %872 = vmatpush1.bf16.msra.mxu0 0
      %873 = vmatprep.subr.bf16.mxu0 0
      %874 = vmatpush1.bf16.msra.mxu0 0
      %875 = vmatprep.subr.bf16.mxu0 0
      %876 = vmatpush1.bf16.msra.mxu0 0
      %877 = vmatprep.subr.bf16.mxu0 0
      %878 = vmatpush1.bf16.msra.mxu0 0
      %879 = vmatprep.subr.bf16.mxu0 0
      %880 = vmatpush1.bf16.msra.mxu0 0
      %881 = vmatprep.subr.bf16.mxu0 0
      %882 = vmatpush1.bf16.msra.mxu0 0
      %883 = vmatprep.subr.bf16.mxu0 0
      %884 = vmatpush1.bf16.msra.mxu0 0
      %885 = vmatprep.subr.bf16.mxu0 0
      %886 = vmatpush1.bf16.msra.mxu0 0
      %887 = vmatprep.mubr.bf16.mxu0 0
      %888 = vmatmul.mubr.bf16.gmra.mrb[0].mxu0 %v805
      %v889 = vpop.f32.mrb[0].mxu0
      %v890 = vadd.f32 0.0, %v889
      %v891 = vpop.f32.mrb[0].mxu0
      %v892 = vpop.f32.mrb[0].mxu0
      %v893 = vadd.f32 0.0, %v892
      %v894 = vpop.f32.mrb[0].mxu0
      %895 = vmatprep.mubr.bf16.mxu0 0
      %896 = vmatmul.mubr.bf16.gmra.mrb[0].mxu0 %v808
      %v897 = vpop.f32.mrb[0].mxu0
      %v898 = vadd.f32 0.0, %v897
      %v899 = vpop.f32.mrb[0].mxu0
      %v900 = vpop.f32.mrb[0].mxu0
      %v901 = vadd.f32 0.0, %v900
      %v902 = vpop.f32.mrb[0].mxu0
      %903 = vmatprep.mubr.bf16.mxu0 0
      %904 = vmatmul.mubr.bf16.gmra.mrb[0].mxu0 %v811
      %v905 = vpop.f32.mrb[0].mxu0
      %v906 = vadd.f32 0.0, %v905
      %v907 = vpop.f32.mrb[0].mxu0
      %v908 = vpop.f32.mrb[0].mxu0
      %v909 = vadd.f32 0.0, %v908
      %v910 = vpop.f32.mrb[0].mxu0
      %911 = vmatprep.mubr.bf16.mxu0 0
      %912 = vmatmul.mubr.bf16.gmra.mrb[0].mxu0 %v814
      %v913 = vpop.f32.mrb[0].mxu0
      %v914 = vadd.f32 0.0, %v913
      %v915 = vpop.f32.mrb[0].mxu0
      %v916 = vpop.f32.mrb[0].mxu0
      %v917 = vadd.f32 0.0, %v916
      %v918 = vpop.f32.mrb[0].mxu0
      %919 = vmatprep.mubr.bf16.mxu0 0
      %920 = vmatmul.mubr.bf16.gmra.mrb[0].mxu0 %v817
      %v921 = vpop.f32.mrb[0].mxu0
      %v922 = vadd.f32 0.0, %v921
      %v923 = vpop.f32.mrb[0].mxu0
      %v924 = vpop.f32.mrb[0].mxu0
      %v925 = vadd.f32 0.0, %v924
      %v926 = vpop.f32.mrb[0].mxu0
      %927 = vmatprep.mubr.bf16.mxu0 0
      %928 = vmatmul.mubr.bf16.gmra.mrb[0].mxu0 %v820
      %v929 = vpop.f32.mrb[0].mxu0
      %v930 = vadd.f32 0.0, %v929
      %v931 = vpop.f32.mrb[0].mxu0
      %v932 = vpop.f32.mrb[0].mxu0
      %v933 = vadd.f32 0.0, %v932
      %v934 = vpop.f32.mrb[0].mxu0
      %935 = vmatprep.mubr.bf16.mxu0 0
      %936 = vmatmul.mubr.bf16.gmra.mrb[0].mxu0 %v823
      %v937 = vpop.f32.mrb[0].mxu0
      %v938 = vadd.f32 0.0, %v937
      %v939 = vpop.f32.mrb[0].mxu0
      %v940 = vpop.f32.mrb[0].mxu0
      %v941 = vadd.f32 0.0, %v940
      %v942 = vpop.f32.mrb[0].mxu0
      %943 = vmatprep.mubr.bf16.mxu0 0
      %944 = vmatmul.mubr.bf16.gmra.mrb[0].mxu0 %v826
      %v945 = vpop.f32.mrb[0].mxu0
      %v946 = vadd.f32 0.0, %v945
      %v947 = vpop.f32.mrb[0].mxu0
      %v948 = vpop.f32.mrb[0].mxu0
      %v949 = vadd.f32 0.0, %v948
      %v950 = vpop.f32.mrb[0].mxu0
      %951 = vmatprep.mubr.bf16.mxu0 0
      %952 = vmatmul.mubr.bf16.gmra.mrb[0].mxu0 %v829
      %v953 = vpop.f32.mrb[0].mxu0
      %v954 = vadd.f32 0.0, %v953
      %v955 = vpop.f32.mrb[0].mxu0
      %v956 = vpop.f32.mrb[0].mxu0
      %v957 = vadd.f32 0.0, %v956
      %v958 = vpop.f32.mrb[0].mxu0
      %959 = vmatprep.mubr.bf16.mxu0 0
      %960 = vmatmul.mubr.bf16.gmra.mrb[0].mxu0 %v832
      %v961 = vpop.f32.mrb[0].mxu0
      %v962 = vadd.f32 0.0, %v961
      %v963 = vpop.f32.mrb[0].mxu0
      %v964 = vpop.f32.mrb[0].mxu0
      %v965 = vadd.f32 0.0, %v964
      %v966 = vpop.f32.mrb[0].mxu0
      %967 = vmatprep.mubr.bf16.mxu0 0
      %968 = vmatmul.mubr.bf16.gmra.mrb[0].mxu0 %v835
      %v969 = vpop.f32.mrb[0].mxu0
      %v970 = vadd.f32 0.0, %v969
      %v971 = vpop.f32.mrb[0].mxu0
      %v972 = vpop.f32.mrb[0].mxu0
      %v973 = vadd.f32 0.0, %v972
      %v974 = vpop.f32.mrb[0].mxu0
      %975 = vmatprep.mubr.bf16.mxu0 0
      %976 = vmatmul.mubr.bf16.gmra.mrb[0].mxu0 %v838
      %v977 = vpop.f32.mrb[0].mxu0
      %v978 = vadd.f32 0.0, %v977
      %v979 = vpop.f32.mrb[0].mxu0
      %v980 = vpop.f32.mrb[0].mxu0
      %v981 = vadd.f32 0.0, %v980
      %v982 = vpop.f32.mrb[0].mxu0
      %983 = vmatprep.mubr.bf16.mxu0 0
      %984 = vmatmul.mubr.bf16.gmra.mrb[0].mxu0 %v841
      %v985 = vpop.f32.mrb[0].mxu0
      %v986 = vadd.f32 0.0, %v985
      %v987 = vpop.f32.mrb[0].mxu0
      %v988 = vpop.f32.mrb[0].mxu0
      %v989 = vadd.f32 0.0, %v988
      %v990 = vpop.f32.mrb[0].mxu0
      %991 = vmatprep.mubr.bf16.mxu0 0
      %992 = vmatmul.mubr.bf16.gmra.mrb[0].mxu0 %v844
      %v993 = vpop.f32.mrb[0].mxu0
      %v994 = vadd.f32 0.0, %v993
      %v995 = vpop.f32.mrb[0].mxu0
      %v996 = vpop.f32.mrb[0].mxu0
      %v997 = vadd.f32 0.0, %v996
      %v998 = vpop.f32.mrb[0].mxu0
      %999 = vmatprep.mubr.bf16.mxu0 0
      %1000 = vmatmul.mubr.bf16.gmra.mrb[0].mxu0 %v847
      %v1001 = vpop.f32.mrb[0].mxu0
      %v1002 = vadd.f32 0.0, %v1001
      %v1003 = vpop.f32.mrb[0].mxu0
      %v1004 = vpop.f32.mrb[0].mxu0
      %v1005 = vadd.f32 0.0, %v1004
      %v1006 = vpop.f32.mrb[0].mxu0
      %1007 = vmatprep.mubr.bf16.mxu0 0
      %1008 = vmatmul.mubr.bf16.gmra.mrb[0].mxu0 %v850
      %v1009 = vpop.f32.mrb[0].mxu0
      %v1010 = vadd.f32 0.0, %v1009
      %v1011 = vpop.f32.mrb[0].mxu0
      %v1012 = vpop.f32.mrb[0].mxu0
      %v1013 = vadd.f32 0.0, %v1012
      %v1014 = vpop.f32.mrb[0].mxu0
      %1015 = vdwg.mxu0
      %v1016 = vld [vmem:[#allocation4] sm:$0xff]
      %v1017 = vld [vmem:[#allocation4 + $0x8] sm:$0xff]
      %v1018 = vld [vmem:[#allocation4 + $0x10] sm:$0xff]
      %v1019 = vld [vmem:[#allocation4 + $0x18] sm:$0xff]
      %v1020 = vld [vmem:[#allocation4 + $0x20] sm:$0xff]
      %v1021 = vld [vmem:[#allocation4 + $0x28] sm:$0xff]
      %v1022 = vld [vmem:[#allocation4 + $0x30] sm:$0xff]
      %v1023 = vld [vmem:[#allocation4 + $0x38] sm:$0xff]
      %v1024 = vld [vmem:[#allocation4 + $0x40] sm:$0xff]
      %v1025 = vld [vmem:[#allocation4 + $0x48] sm:$0xff]
      %v1026 = vld [vmem:[#allocation4 + $0x50] sm:$0xff]
      %v1027 = vld [vmem:[#allocation4 + $0x58] sm:$0xff]
      %v1028 = vld [vmem:[#allocation4 + $0x60] sm:$0xff]
      %v1029 = vld [vmem:[#allocation4 + $0x68] sm:$0xff]
      %v1030 = vld [vmem:[#allocation4 + $0x70] sm:$0xff]
      %v1031 = vld [vmem:[#allocation4 + $0x78] sm:$0xff]
      %v1032 = vld [vmem:[#allocation4 + $0x80] sm:$0xff]
      %v1033 = vld [vmem:[#allocation4 + $0x88] sm:$0xff]
      %v1034 = vld [vmem:[#allocation4 + $0x90] sm:$0xff]
      %v1035 = vld [vmem:[#allocation4 + $0x98] sm:$0xff]
      %v1036 = vld [vmem:[#allocation4 + $0xa0] sm:$0xff]
      %v1037 = vld [vmem:[#allocation4 + $0xa8] sm:$0xff]
      %v1038 = vld [vmem:[#allocation4 + $0xb0] sm:$0xff]
      %v1039 = vld [vmem:[#allocation4 + $0xb8] sm:$0xff]
      %v1040 = vld [vmem:[#allocation4 + $0xc0] sm:$0xff]
      %v1041 = vld [vmem:[#allocation4 + $0xc8] sm:$0xff]
      %v1042 = vld [vmem:[#allocation4 + $0xd0] sm:$0xff]
      %v1043 = vld [vmem:[#allocation4 + $0xd8] sm:$0xff]
      %v1044 = vld [vmem:[#allocation4 + $0xe0] sm:$0xff]
      %v1045 = vld [vmem:[#allocation4 + $0xe8] sm:$0xff]
      %v1046 = vld [vmem:[#allocation4 + $0xf0] sm:$0xff]
      %v1047 = vld [vmem:[#allocation4 + $0xf8] sm:$0xff]
      %v1048 = vadd.f32 %v1016, %v890
      %v1049 = vadd.f32 %v1017, %v893
      %v1050 = vadd.f32 %v1018, %v898
      %v1051 = vadd.f32 %v1019, %v901
      %v1052 = vadd.f32 %v1020, %v906
      %v1053 = vadd.f32 %v1021, %v909
      %v1054 = vadd.f32 %v1022, %v914
      %v1055 = vadd.f32 %v1023, %v917
      %v1056 = vadd.f32 %v1024, %v922
      %v1057 = vadd.f32 %v1025, %v925
      %v1058 = vadd.f32 %v1026, %v930
      %v1059 = vadd.f32 %v1027, %v933
      %v1060 = vadd.f32 %v1028, %v938
      %v1061 = vadd.f32 %v1029, %v941
      %v1062 = vadd.f32 %v1030, %v946
      %v1063 = vadd.f32 %v1031, %v949
      %v1064 = vadd.f32 %v1032, %v954
      %v1065 = vadd.f32 %v1033, %v957
      %v1066 = vadd.f32 %v1034, %v962
      %v1067 = vadd.f32 %v1035, %v965
      %v1068 = vadd.f32 %v1036, %v970
      %v1069 = vadd.f32 %v1037, %v973
      %v1070 = vadd.f32 %v1038, %v978
      %v1071 = vadd.f32 %v1039, %v981
      %v1072 = vadd.f32 %v1040, %v986
      %v1073 = vadd.f32 %v1041, %v989
      %v1074 = vadd.f32 %v1042, %v994
      %v1075 = vadd.f32 %v1043, %v997
      %v1076 = vadd.f32 %v1044, %v1002
      %v1077 = vadd.f32 %v1045, %v1005
      %v1078 = vadd.f32 %v1046, %v1010
      %v1079 = vadd.f32 %v1047, %v1013
      %1080 = vst.msk [vmem:[#allocation4] sm:$0xff] %vm381, %v1048
      %1081 = vst.msk [vmem:[#allocation4 + $0x8] sm:$0xff] %vm381, %v1049
      %1082 = vst.msk [vmem:[#allocation4 + $0x10] sm:$0xff] %vm381, %v1050
      %1083 = vst.msk [vmem:[#allocation4 + $0x18] sm:$0xff] %vm381, %v1051
      %1084 = vst.msk [vmem:[#allocation4 + $0x20] sm:$0xff] %vm381, %v1052
      %1085 = vst.msk [vmem:[#allocation4 + $0x28] sm:$0xff] %vm381, %v1053
      %1086 = vst.msk [vmem:[#allocation4 + $0x30] sm:$0xff] %vm381, %v1054
      %1087 = vst.msk [vmem:[#allocation4 + $0x38] sm:$0xff] %vm381, %v1055
      %1088 = vst.msk [vmem:[#allocation4 + $0x40] sm:$0xff] %vm381, %v1056
      %1089 = vst.msk [vmem:[#allocation4 + $0x48] sm:$0xff] %vm381, %v1057
      %1090 = vst.msk [vmem:[#allocation4 + $0x50] sm:$0xff] %vm381, %v1058
      %1091 = vst.msk [vmem:[#allocation4 + $0x58] sm:$0xff] %vm381, %v1059
      %1092 = vst.msk [vmem:[#allocation4 + $0x60] sm:$0xff] %vm381, %v1060
      %1093 = vst.msk [vmem:[#allocation4 + $0x68] sm:$0xff] %vm381, %v1061
      %1094 = vst.msk [vmem:[#allocation4 + $0x70] sm:$0xff] %vm381, %v1062
      %1095 = vst.msk [vmem:[#allocation4 + $0x78] sm:$0xff] %vm381, %v1063
      %1096 = vst.msk [vmem:[#allocation4 + $0x80] sm:$0xff] %vm381, %v1064
      %1097 = vst.msk [vmem:[#allocation4 + $0x88] sm:$0xff] %vm381, %v1065
      %1098 = vst.msk [vmem:[#allocation4 + $0x90] sm:$0xff] %vm381, %v1066
      %1099 = vst.msk [vmem:[#allocation4 + $0x98] sm:$0xff] %vm381, %v1067
      %1100 = vst.msk [vmem:[#allocation4 + $0xa0] sm:$0xff] %vm381, %v1068
      %1101 = vst.msk [vmem:[#allocation4 + $0xa8] sm:$0xff] %vm381, %v1069
      %1102 = vst.msk [vmem:[#allocation4 + $0xb0] sm:$0xff] %vm381, %v1070
      %1103 = vst.msk [vmem:[#allocation4 + $0xb8] sm:$0xff] %vm381, %v1071
      %1104 = vst.msk [vmem:[#allocation4 + $0xc0] sm:$0xff] %vm381, %v1072
      %1105 = vst.msk [vmem:[#allocation4 + $0xc8] sm:$0xff] %vm381, %v1073
      %1106 = vst.msk [vmem:[#allocation4 + $0xd0] sm:$0xff] %vm381, %v1074
      %1107 = vst.msk [vmem:[#allocation4 + $0xd8] sm:$0xff] %vm381, %v1075
      %1108 = vst.msk [vmem:[#allocation4 + $0xe0] sm:$0xff] %vm381, %v1076
      %1109 = vst.msk [vmem:[#allocation4 + $0xe8] sm:$0xff] %vm381, %v1077
      %1110 = vst.msk [vmem:[#allocation4 + $0xf0] sm:$0xff] %vm381, %v1078
      %1111 = vst.msk [vmem:[#allocation4 + $0xf8] sm:$0xff] %vm381, %v1079
      %v1112 = vld [vmem:[#allocation2 + $0x2] sm:$0xff]
      %v1113 = vld [vmem:[#allocation2 + $0xa] sm:$0xff]
      %v1114 = vld [vmem:[#allocation2 + $0x1a] sm:$0xff]
      %v1115 = vld [vmem:[#allocation2 + $0x22] sm:$0xff]
      %v1116 = vld [vmem:[#allocation2 + $0x32] sm:$0xff]
      %v1117 = vld [vmem:[#allocation2 + $0x3a] sm:$0xff]
      %v1118 = vld [vmem:[#allocation2 + $0x4a] sm:$0xff]
      %v1119 = vld [vmem:[#allocation2 + $0x52] sm:$0xff]
      %v1120 = vld [vmem:[#allocation2 + $0x62] sm:$0xff]
      %v1121 = vld [vmem:[#allocation2 + $0x6a] sm:$0xff]
      %v1122 = vld [vmem:[#allocation2 + $0x7a] sm:$0xff]
      %v1123 = vld [vmem:[#allocation2 + $0x82] sm:$0xff]
      %v1124 = vld [vmem:[#allocation2 + $0x92] sm:$0xff]
      %v1125 = vld [vmem:[#allocation2 + $0x9a] sm:$0xff]
      %v1126 = vld [vmem:[#allocation2 + $0xaa] sm:$0xff]
      %v1127 = vld [vmem:[#allocation2 + $0xb2] sm:$0xff]
      %v1128 = vld [vmem:[#allocation2 + $0xc2] sm:$0xff]
      %v1129 = vld [vmem:[#allocation2 + $0xca] sm:$0xff]
      %v1130 = vld [vmem:[#allocation2 + $0xda] sm:$0xff]
      %v1131 = vld [vmem:[#allocation2 + $0xe2] sm:$0xff]
      %v1132 = vld [vmem:[#allocation2 + $0xf2] sm:$0xff]
      %v1133 = vld [vmem:[#allocation2 + $0xfa] sm:$0xff]
      %v1134 = vld [vmem:[#allocation2 + $0x10a] sm:$0xff]
      %v1135 = vld [vmem:[#allocation2 + $0x112] sm:$0xff]
      %v1136 = vld [vmem:[#allocation2 + $0x122] sm:$0xff]
      %v1137 = vld [vmem:[#allocation2 + $0x12a] sm:$0xff]
      %v1138 = vld [vmem:[#allocation2 + $0x13a] sm:$0xff]
      %v1139 = vld [vmem:[#allocation2 + $0x142] sm:$0xff]
      %v1140 = vld [vmem:[#allocation2 + $0x152] sm:$0xff]
      %v1141 = vld [vmem:[#allocation2 + $0x15a] sm:$0xff]
      %v1142 = vld [vmem:[#allocation2 + $0x16a] sm:$0xff]
      %v1143 = vld [vmem:[#allocation2 + $0x172] sm:$0xff]
      %v1144 = vpack.c.bf16 %v1113, %v1112
      %v1145 = vpack.c.bf16 %v1115, %v1114
      %v1146 = vpack.c.bf16 %v1117, %v1116
      %v1147 = vpack.c.bf16 %v1119, %v1118
      %v1148 = vpack.c.bf16 %v1121, %v1120
      %v1149 = vpack.c.bf16 %v1123, %v1122
      %v1150 = vpack.c.bf16 %v1125, %v1124
      %v1151 = vpack.c.bf16 %v1127, %v1126
      %v1152 = vpack.c.bf16 %v1129, %v1128
      %v1153 = vpack.c.bf16 %v1131, %v1130
      %v1154 = vpack.c.bf16 %v1133, %v1132
      %v1155 = vpack.c.bf16 %v1135, %v1134
      %v1156 = vpack.c.bf16 %v1137, %v1136
      %v1157 = vpack.c.bf16 %v1139, %v1138
      %v1158 = vpack.c.bf16 %v1141, %v1140
      %v1159 = vpack.c.bf16 %v1143, %v1142
      %s1160 = scalar_lea.vmem %s1, 4
      %v1161 = vld [vmem:[%s1160] sm:$0x3]
      %v1163 = vsel %vm381, %v1144, 0
      %v1166 = vsel %vm381, %v1145, 0
      %v1169 = vsel %vm381, %v1146, 0
      %v1172 = vsel %vm381, %v1147, 0
      %v1175 = vsel %vm381, %v1148, 0
      %v1178 = vsel %vm381, %v1149, 0
      %v1181 = vsel %vm381, %v1150, 0
      %v1184 = vsel %vm381, %v1151, 0
      %v1187 = vsel %vm381, %v1152, 0
      %v1190 = vsel %vm381, %v1153, 0
      %v1193 = vsel %vm381, %v1154, 0
      %v1196 = vsel %vm381, %v1155, 0
      %v1199 = vsel %vm381, %v1156, 0
      %v1202 = vsel %vm381, %v1157, 0
      %v1205 = vsel %vm381, %v1158, 0
      %v1208 = vsel %vm381, %v1159, 0
      %v1211 = vsel %vm557, %v1161, 0
      %1213 = vmatprep.subr.bf16.mxu0 0
      %1214 = vmatpush1.bf16.msra.mxu0 %v1211
      %1215 = vmatprep.subr.bf16.mxu0 0
      %1216 = vmatpush1.bf16.msra.mxu0 0
      %1217 = vmatprep.subr.bf16.mxu0 0
      %1218 = vmatpush1.bf16.msra.mxu0 0
      %1219 = vmatprep.subr.bf16.mxu0 0
      %1220 = vmatpush1.bf16.msra.mxu0 0
      %1221 = vmatprep.subr.bf16.mxu0 0
      %1222 = vmatpush1.bf16.msra.mxu0 0
      %1223 = vmatprep.subr.bf16.mxu0 0
      %1224 = vmatpush1.bf16.msra.mxu0 0
      %1225 = vmatprep.subr.bf16.mxu0 0
      %1226 = vmatpush1.bf16.msra.mxu0 0
      %1227 = vmatprep.subr.bf16.mxu0 0
      %1228 = vmatpush1.bf16.msra.mxu0 0
      %1229 = vmatprep.subr.bf16.mxu0 0
      %1230 = vmatpush1.bf16.msra.mxu0 0
      %1231 = vmatprep.subr.bf16.mxu0 0
      %1232 = vmatpush1.bf16.msra.mxu0 0
      %1233 = vmatprep.subr.bf16.mxu0 0
      %1234 = vmatpush1.bf16.msra.mxu0 0
      %1235 = vmatprep.subr.bf16.mxu0 0
      %1236 = vmatpush1.bf16.msra.mxu0 0
      %1237 = vmatprep.subr.bf16.mxu0 0
      %1238 = vmatpush1.bf16.msra.mxu0 0
      %1239 = vmatprep.subr.bf16.mxu0 0
      %1240 = vmatpush1.bf16.msra.mxu0 0
      %1241 = vmatprep.subr.bf16.mxu0 0
      %1242 = vmatpush1.bf16.msra.mxu0 0
      %1243 = vmatprep.subr.bf16.mxu0 0
      %1244 = vmatpush1.bf16.msra.mxu0 0
      %1245 = vmatprep.mubr.bf16.mxu0 0
      %1246 = vmatmul.mubr.bf16.gmra.mrb[0].mxu0 %v1163
      %v1247 = vpop.f32.mrb[0].mxu0
      %v1248 = vadd.f32 0.0, %v1247
      %v1249 = vpop.f32.mrb[0].mxu0
      %v1250 = vpop.f32.mrb[0].mxu0
      %v1251 = vadd.f32 0.0, %v1250
      %v1252 = vpop.f32.mrb[0].mxu0
      %1253 = vmatprep.mubr.bf16.mxu0 0
      %1254 = vmatmul.mubr.bf16.gmra.mrb[0].mxu0 %v1166
      %v1255 = vpop.f32.mrb[0].mxu0
      %v1256 = vadd.f32 0.0, %v1255
      %v1257 = vpop.f32.mrb[0].mxu0
      %v1258 = vpop.f32.mrb[0].mxu0
      %v1259 = vadd.f32 0.0, %v1258
      %v1260 = vpop.f32.mrb[0].mxu0
      %1261 = vmatprep.mubr.bf16.mxu0 0
      %1262 = vmatmul.mubr.bf16.gmra.mrb[0].mxu0 %v1169
      %v1263 = vpop.f32.mrb[0].mxu0
      %v1264 = vadd.f32 0.0, %v1263
      %v1265 = vpop.f32.mrb[0].mxu0
      %v1266 = vpop.f32.mrb[0].mxu0
      %v1267 = vadd.f32 0.0, %v1266
      %v1268 = vpop.f32.mrb[0].mxu0
      %1269 = vmatprep.mubr.bf16.mxu0 0
      %1270 = vmatmul.mubr.bf16.gmra.mrb[0].mxu0 %v1172
      %v1271 = vpop.f32.mrb[0].mxu0
      %v1272 = vadd.f32 0.0, %v1271
      %v1273 = vpop.f32.mrb[0].mxu0
      %v1274 = vpop.f32.mrb[0].mxu0
      %v1275 = vadd.f32 0.0, %v1274
      %v1276 = vpop.f32.mrb[0].mxu0
      %1277 = vmatprep.mubr.bf16.mxu0 0
      %1278 = vmatmul.mubr.bf16.gmra.mrb[0].mxu0 %v1175
      %v1279 = vpop.f32.mrb[0].mxu0
      %v1280 = vadd.f32 0.0, %v1279
      %v1281 = vpop.f32.mrb[0].mxu0
      %v1282 = vpop.f32.mrb[0].mxu0
      %v1283 = vadd.f32 0.0, %v1282
      %v1284 = vpop.f32.mrb[0].mxu0
      %1285 = vmatprep.mubr.bf16.mxu0 0
      %1286 = vmatmul.mubr.bf16.gmra.mrb[0].mxu0 %v1178
      %v1287 = vpop.f32.mrb[0].mxu0
      %v1288 = vadd.f32 0.0, %v1287
      %v1289 = vpop.f32.mrb[0].mxu0
      %v1290 = vpop.f32.mrb[0].mxu0
      %v1291 = vadd.f32 0.0, %v1290
      %v1292 = vpop.f32.mrb[0].mxu0
      %1293 = vmatprep.mubr.bf16.mxu0 0
      %1294 = vmatmul.mubr.bf16.gmra.mrb[0].mxu0 %v1181
      %v1295 = vpop.f32.mrb[0].mxu0
      %v1296 = vadd.f32 0.0, %v1295
      %v1297 = vpop.f32.mrb[0].mxu0
      %v1298 = vpop.f32.mrb[0].mxu0
      %v1299 = vadd.f32 0.0, %v1298
      %v1300 = vpop.f32.mrb[0].mxu0
      %1301 = vmatprep.mubr.bf16.mxu0 0
      %1302 = vmatmul.mubr.bf16.gmra.mrb[0].mxu0 %v1184
      %v1303 = vpop.f32.mrb[0].mxu0
      %v1304 = vadd.f32 0.0, %v1303
      %v1305 = vpop.f32.mrb[0].mxu0
      %v1306 = vpop.f32.mrb[0].mxu0
      %v1307 = vadd.f32 0.0, %v1306
      %v1308 = vpop.f32.mrb[0].mxu0
      %1309 = vmatprep.mubr.bf16.mxu0 0
      %1310 = vmatmul.mubr.bf16.gmra.mrb[0].mxu0 %v1187
      %v1311 = vpop.f32.mrb[0].mxu0
      %v1312 = vadd.f32 0.0, %v1311
      %v1313 = vpop.f32.mrb[0].mxu0
      %v1314 = vpop.f32.mrb[0].mxu0
      %v1315 = vadd.f32 0.0, %v1314
      %v1316 = vpop.f32.mrb[0].mxu0
      %1317 = vmatprep.mubr.bf16.mxu0 0
      %1318 = vmatmul.mubr.bf16.gmra.mrb[0].mxu0 %v1190
      %v1319 = vpop.f32.mrb[0].mxu0
      %v1320 = vadd.f32 0.0, %v1319
      %v1321 = vpop.f32.mrb[0].mxu0
      %v1322 = vpop.f32.mrb[0].mxu0
      %v1323 = vadd.f32 0.0, %v1322
      %v1324 = vpop.f32.mrb[0].mxu0
      %1325 = vmatprep.mubr.bf16.mxu0 0
      %1326 = vmatmul.mubr.bf16.gmra.mrb[0].mxu0 %v1193
      %v1327 = vpop.f32.mrb[0].mxu0
      %v1328 = vadd.f32 0.0, %v1327
      %v1329 = vpop.f32.mrb[0].mxu0
      %v1330 = vpop.f32.mrb[0].mxu0
      %v1331 = vadd.f32 0.0, %v1330
      %v1332 = vpop.f32.mrb[0].mxu0
      %1333 = vmatprep.mubr.bf16.mxu0 0
      %1334 = vmatmul.mubr.bf16.gmra.mrb[0].mxu0 %v1196
      %v1335 = vpop.f32.mrb[0].mxu0
      %v1336 = vadd.f32 0.0, %v1335
      %v1337 = vpop.f32.mrb[0].mxu0
      %v1338 = vpop.f32.mrb[0].mxu0
      %v1339 = vadd.f32 0.0, %v1338
      %v1340 = vpop.f32.mrb[0].mxu0
      %1341 = vmatprep.mubr.bf16.mxu0 0
      %1342 = vmatmul.mubr.bf16.gmra.mrb[0].mxu0 %v1199
      %v1343 = vpop.f32.mrb[0].mxu0
      %v1344 = vadd.f32 0.0, %v1343
      %v1345 = vpop.f32.mrb[0].mxu0
      %v1346 = vpop.f32.mrb[0].mxu0
      %v1347 = vadd.f32 0.0, %v1346
      %v1348 = vpop.f32.mrb[0].mxu0
      %1349 = vmatprep.mubr.bf16.mxu0 0
      %1350 = vmatmul.mubr.bf16.gmra.mrb[0].mxu0 %v1202
      %v1351 = vpop.f32.mrb[0].mxu0
      %v1352 = vadd.f32 0.0, %v1351
      %v1353 = vpop.f32.mrb[0].mxu0
      %v1354 = vpop.f32.mrb[0].mxu0
      %v1355 = vadd.f32 0.0, %v1354
      %v1356 = vpop.f32.mrb[0].mxu0
      %1357 = vmatprep.mubr.bf16.mxu0 0
      %1358 = vmatmul.mubr.bf16.gmra.mrb[0].mxu0 %v1205
      %v1359 = vpop.f32.mrb[0].mxu0
      %v1360 = vadd.f32 0.0, %v1359
      %v1361 = vpop.f32.mrb[0].mxu0
      %v1362 = vpop.f32.mrb[0].mxu0
      %v1363 = vadd.f32 0.0, %v1362
      %v1364 = vpop.f32.mrb[0].mxu0
      %1365 = vmatprep.mubr.bf16.mxu0 0
      %1366 = vmatmul.mubr.bf16.gmra.mrb[0].mxu0 %v1208
      %v1367 = vpop.f32.mrb[0].mxu0
      %v1368 = vadd.f32 0.0, %v1367
      %v1369 = vpop.f32.mrb[0].mxu0
      %v1370 = vpop.f32.mrb[0].mxu0
      %v1371 = vadd.f32 0.0, %v1370
      %v1372 = vpop.f32.mrb[0].mxu0
      %1373 = vdwg.mxu0
      %v1374 = vld [vmem:[#allocation4] sm:$0xff]
      %v1375 = vld [vmem:[#allocation4 + $0x8] sm:$0xff]
      %v1376 = vld [vmem:[#allocation4 + $0x10] sm:$0xff]
      %v1377 = vld [vmem:[#allocation4 + $0x18] sm:$0xff]
      %v1378 = vld [vmem:[#allocation4 + $0x20] sm:$0xff]
      %v1379 = vld [vmem:[#allocation4 + $0x28] sm:$0xff]
      %v1380 = vld [vmem:[#allocation4 + $0x30] sm:$0xff]
      %v1381 = vld [vmem:[#allocation4 + $0x38] sm:$0xff]
      %v1382 = vld [vmem:[#allocation4 + $0x40] sm:$0xff]
      %v1383 = vld [vmem:[#allocation4 + $0x48] sm:$0xff]
      %v1384 = vld [vmem:[#allocation4 + $0x50] sm:$0xff]
      %v1385 = vld [vmem:[#allocation4 + $0x58] sm:$0xff]
      %v1386 = vld [vmem:[#allocation4 + $0x60] sm:$0xff]
      %v1387 = vld [vmem:[#allocation4 + $0x68] sm:$0xff]
      %v1388 = vld [vmem:[#allocation4 + $0x70] sm:$0xff]
      %v1389 = vld [vmem:[#allocation4 + $0x78] sm:$0xff]
      %v1390 = vld [vmem:[#allocation4 + $0x80] sm:$0xff]
      %v1391 = vld [vmem:[#allocation4 + $0x88] sm:$0xff]
      %v1392 = vld [vmem:[#allocation4 + $0x90] sm:$0xff]
      %v1393 = vld [vmem:[#allocation4 + $0x98] sm:$0xff]
      %v1394 = vld [vmem:[#allocation4 + $0xa0] sm:$0xff]
      %v1395 = vld [vmem:[#allocation4 + $0xa8] sm:$0xff]
      %v1396 = vld [vmem:[#allocation4 + $0xb0] sm:$0xff]
      %v1397 = vld [vmem:[#allocation4 + $0xb8] sm:$0xff]
      %v1398 = vld [vmem:[#allocation4 + $0xc0] sm:$0xff]
      %v1399 = vld [vmem:[#allocation4 + $0xc8] sm:$0xff]
      %v1400 = vld [vmem:[#allocation4 + $0xd0] sm:$0xff]
      %v1401 = vld [vmem:[#allocation4 + $0xd8] sm:$0xff]
      %v1402 = vld [vmem:[#allocation4 + $0xe0] sm:$0xff]
      %v1403 = vld [vmem:[#allocation4 + $0xe8] sm:$0xff]
      %v1404 = vld [vmem:[#allocation4 + $0xf0] sm:$0xff]
      %v1405 = vld [vmem:[#allocation4 + $0xf8] sm:$0xff]
      %v1406 = vadd.f32 %v1374, %v1248
      %v1407 = vadd.f32 %v1375, %v1251
      %v1408 = vadd.f32 %v1376, %v1256
      %v1409 = vadd.f32 %v1377, %v1259
      %v1410 = vadd.f32 %v1378, %v1264
      %v1411 = vadd.f32 %v1379, %v1267
      %v1412 = vadd.f32 %v1380, %v1272
      %v1413 = vadd.f32 %v1381, %v1275
      %v1414 = vadd.f32 %v1382, %v1280
      %v1415 = vadd.f32 %v1383, %v1283
      %v1416 = vadd.f32 %v1384, %v1288
      %v1417 = vadd.f32 %v1385, %v1291
      %v1418 = vadd.f32 %v1386, %v1296
      %v1419 = vadd.f32 %v1387, %v1299
      %v1420 = vadd.f32 %v1388, %v1304
      %v1421 = vadd.f32 %v1389, %v1307
      %v1422 = vadd.f32 %v1390, %v1312
      %v1423 = vadd.f32 %v1391, %v1315
      %v1424 = vadd.f32 %v1392, %v1320
      %v1425 = vadd.f32 %v1393, %v1323
      %v1426 = vadd.f32 %v1394, %v1328
      %v1427 = vadd.f32 %v1395, %v1331
      %v1428 = vadd.f32 %v1396, %v1336
      %v1429 = vadd.f32 %v1397, %v1339
      %v1430 = vadd.f32 %v1398, %v1344
      %v1431 = vadd.f32 %v1399, %v1347
      %v1432 = vadd.f32 %v1400, %v1352
      %v1433 = vadd.f32 %v1401, %v1355
      %v1434 = vadd.f32 %v1402, %v1360
      %v1435 = vadd.f32 %v1403, %v1363
      %v1436 = vadd.f32 %v1404, %v1368
      %v1437 = vadd.f32 %v1405, %v1371
      %1438 = vst.msk [vmem:[#allocation4] sm:$0xff] %vm381, %v1406
      %1439 = vst.msk [vmem:[#allocation4 + $0x8] sm:$0xff] %vm381, %v1407
      %1440 = vst.msk [vmem:[#allocation4 + $0x10] sm:$0xff] %vm381, %v1408
      %1441 = vst.msk [vmem:[#allocation4 + $0x18] sm:$0xff] %vm381, %v1409
      %1442 = vst.msk [vmem:[#allocation4 + $0x20] sm:$0xff] %vm381, %v1410
      %1443 = vst.msk [vmem:[#allocation4 + $0x28] sm:$0xff] %vm381, %v1411
      %1444 = vst.msk [vmem:[#allocation4 + $0x30] sm:$0xff] %vm381, %v1412
      %1445 = vst.msk [vmem:[#allocation4 + $0x38] sm:$0xff] %vm381, %v1413
      %1446 = vst.msk [vmem:[#allocation4 + $0x40] sm:$0xff] %vm381, %v1414
      %1447 = vst.msk [vmem:[#allocation4 + $0x48] sm:$0xff] %vm381, %v1415
      %1448 = vst.msk [vmem:[#allocation4 + $0x50] sm:$0xff] %vm381, %v1416
      %1449 = vst.msk [vmem:[#allocation4 + $0x58] sm:$0xff] %vm381, %v1417
      %1450 = vst.msk [vmem:[#allocation4 + $0x60] sm:$0xff] %vm381, %v1418
      %1451 = vst.msk [vmem:[#allocation4 + $0x68] sm:$0xff] %vm381, %v1419
      %1452 = vst.msk [vmem:[#allocation4 + $0x70] sm:$0xff] %vm381, %v1420
      %1453 = vst.msk [vmem:[#allocation4 + $0x78] sm:$0xff] %vm381, %v1421
      %1454 = vst.msk [vmem:[#allocation4 + $0x80] sm:$0xff] %vm381, %v1422
      %1455 = vst.msk [vmem:[#allocation4 + $0x88] sm:$0xff] %vm381, %v1423
      %1456 = vst.msk [vmem:[#allocation4 + $0x90] sm:$0xff] %vm381, %v1424
      %1457 = vst.msk [vmem:[#allocation4 + $0x98] sm:$0xff] %vm381, %v1425
      %1458 = vst.msk [vmem:[#allocation4 + $0xa0] sm:$0xff] %vm381, %v1426
      %1459 = vst.msk [vmem:[#allocation4 + $0xa8] sm:$0xff] %vm381, %v1427
      %1460 = vst.msk [vmem:[#allocation4 + $0xb0] sm:$0xff] %vm381, %v1428
      %1461 = vst.msk [vmem:[#allocation4 + $0xb8] sm:$0xff] %vm381, %v1429
      %1462 = vst.msk [vmem:[#allocation4 + $0xc0] sm:$0xff] %vm381, %v1430
      %1463 = vst.msk [vmem:[#allocation4 + $0xc8] sm:$0xff] %vm381, %v1431
      %1464 = vst.msk [vmem:[#allocation4 + $0xd0] sm:$0xff] %vm381, %v1432
      %1465 = vst.msk [vmem:[#allocation4 + $0xd8] sm:$0xff] %vm381, %v1433
      %1466 = vst.msk [vmem:[#allocation4 + $0xe0] sm:$0xff] %vm381, %v1434
      %1467 = vst.msk [vmem:[#allocation4 + $0xe8] sm:$0xff] %vm381, %v1435
      %1468 = vst.msk [vmem:[#allocation4 + $0xf0] sm:$0xff] %vm381, %v1436
      %1469 = vst.msk [vmem:[#allocation4 + $0xf8] sm:$0xff] %vm381, %v1437
      %v1470 = vld [vmem:[%s427] sm:$0xff]
      %v1471 = vld [vmem:[%s427 + $0x8] sm:$0xff]
      %v1472 = vld [vmem:[%s427 + $0x18] sm:$0xff]
      %v1473 = vld [vmem:[%s427 + $0x20] sm:$0xff]
      %v1474 = vld [vmem:[%s427 + $0x30] sm:$0xff]
      %v1475 = vld [vmem:[%s427 + $0x38] sm:$0xff]
      %v1476 = vld [vmem:[%s427 + $0x48] sm:$0xff]
      %v1477 = vld [vmem:[%s427 + $0x50] sm:$0xff]
      %v1478 = vld [vmem:[%s427 + $0x60] sm:$0xff]
      %v1479 = vld [vmem:[%s427 + $0x68] sm:$0xff]
      %v1480 = vld [vmem:[%s427 + $0x78] sm:$0xff]
      %v1481 = vld [vmem:[%s427 + $0x80] sm:$0xff]
      %v1482 = vld [vmem:[%s427 + $0x90] sm:$0xff]
      %v1483 = vld [vmem:[%s427 + $0x98] sm:$0xff]
      %v1484 = vld [vmem:[%s427 + $0xa8] sm:$0xff]
      %v1485 = vld [vmem:[%s427 + $0xb0] sm:$0xff]
      %v1486 = vld [vmem:[%s427 + $0xc0] sm:$0xff]
      %v1487 = vld [vmem:[%s427 + $0xc8] sm:$0xff]
      %v1488 = vld [vmem:[%s427 + $0xd8] sm:$0xff]
      %v1489 = vld [vmem:[%s427 + $0xe0] sm:$0xff]
      %v1490 = vld [vmem:[%s427 + $0xf0] sm:$0xff]
      %v1491 = vld [vmem:[%s427 + $0xf8] sm:$0xff]
      %v1492 = vld [vmem:[%s427 + $0x108] sm:$0xff]
      %v1493 = vld [vmem:[%s427 + $0x110] sm:$0xff]
      %v1494 = vld [vmem:[%s427 + $0x120] sm:$0xff]
      %v1495 = vld [vmem:[%s427 + $0x128] sm:$0xff]
      %v1496 = vld [vmem:[%s427 + $0x138] sm:$0xff]
      %v1497 = vld [vmem:[%s427 + $0x140] sm:$0xff]
      %v1498 = vld [vmem:[%s427 + $0x150] sm:$0xff]
      %v1499 = vld [vmem:[%s427 + $0x158] sm:$0xff]
      %v1500 = vld [vmem:[%s427 + $0x168] sm:$0xff]
      %v1501 = vld [vmem:[%s427 + $0x170] sm:$0xff]
      %v1502 = vpack.c.bf16 %v1471, %v1470
      %v1503 = vpack.c.bf16 %v1473, %v1472
      %v1504 = vpack.c.bf16 %v1475, %v1474
      %v1505 = vpack.c.bf16 %v1477, %v1476
      %v1506 = vpack.c.bf16 %v1479, %v1478
      %v1507 = vpack.c.bf16 %v1481, %v1480
      %v1508 = vpack.c.bf16 %v1483, %v1482
      %v1509 = vpack.c.bf16 %v1485, %v1484
      %v1510 = vpack.c.bf16 %v1487, %v1486
      %v1511 = vpack.c.bf16 %v1489, %v1488
      %v1512 = vpack.c.bf16 %v1491, %v1490
      %v1513 = vpack.c.bf16 %v1493, %v1492
      %v1514 = vpack.c.bf16 %v1495, %v1494
      %v1515 = vpack.c.bf16 %v1497, %v1496
      %v1516 = vpack.c.bf16 %v1499, %v1498
      %v1517 = vpack.c.bf16 %v1501, %v1500
      %s1518 = scalar_lea.vmem %s1, 6
      %v1519 = vld [vmem:[%s1518] sm:$0x3]
      %v1521 = vsel %vm381, %v1502, 0
      %v1524 = vsel %vm381, %v1503, 0
      %v1527 = vsel %vm381, %v1504, 0
      %v1530 = vsel %vm381, %v1505, 0
      %v1533 = vsel %vm381, %v1506, 0
      %v1536 = vsel %vm381, %v1507, 0
      %v1539 = vsel %vm381, %v1508, 0
      %v1542 = vsel %vm381, %v1509, 0
      %v1545 = vsel %vm381, %v1510, 0
      %v1548 = vsel %vm381, %v1511, 0
      %v1551 = vsel %vm381, %v1512, 0
      %v1554 = vsel %vm381, %v1513, 0
      %v1557 = vsel %vm381, %v1514, 0
      %v1560 = vsel %vm381, %v1515, 0
      %v1563 = vsel %vm381, %v1516, 0
      %v1566 = vsel %vm381, %v1517, 0
      %v1569 = vsel %vm557, %v1519, 0
      %1571 = vmatprep.subr.bf16.mxu0 0
      %1572 = vmatpush1.bf16.msra.mxu0 %v1569
      %1573 = vmatprep.subr.bf16.mxu0 0
      %1574 = vmatpush1.bf16.msra.mxu0 0
      %1575 = vmatprep.subr.bf16.mxu0 0
      %1576 = vmatpush1.bf16.msra.mxu0 0
      %1577 = vmatprep.subr.bf16.mxu0 0
      %1578 = vmatpush1.bf16.msra.mxu0 0
      %1579 = vmatprep.subr.bf16.mxu0 0
      %1580 = vmatpush1.bf16.msra.mxu0 0
      %1581 = vmatprep.subr.bf16.mxu0 0
      %1582 = vmatpush1.bf16.msra.mxu0 0
      %1583 = vmatprep.subr.bf16.mxu0 0
      %1584 = vmatpush1.bf16.msra.mxu0 0
      %1585 = vmatprep.subr.bf16.mxu0 0
      %1586 = vmatpush1.bf16.msra.mxu0 0
      %1587 = vmatprep.subr.bf16.mxu0 0
      %1588 = vmatpush1.bf16.msra.mxu0 0
      %1589 = vmatprep.subr.bf16.mxu0 0
      %1590 = vmatpush1.bf16.msra.mxu0 0
      %1591 = vmatprep.subr.bf16.mxu0 0
      %1592 = vmatpush1.bf16.msra.mxu0 0
      %1593 = vmatprep.subr.bf16.mxu0 0
      %1594 = vmatpush1.bf16.msra.mxu0 0
      %1595 = vmatprep.subr.bf16.mxu0 0
      %1596 = vmatpush1.bf16.msra.mxu0 0
      %1597 = vmatprep.subr.bf16.mxu0 0
      %1598 = vmatpush1.bf16.msra.mxu0 0
      %1599 = vmatprep.subr.bf16.mxu0 0
      %1600 = vmatpush1.bf16.msra.mxu0 0
      %1601 = vmatprep.subr.bf16.mxu0 0
      %1602 = vmatpush1.bf16.msra.mxu0 0
      %1603 = vmatprep.mubr.bf16.mxu0 0
      %1604 = vmatmul.mubr.bf16.gmra.mrb[0].mxu0 %v1521
      %v1605 = vpop.f32.mrb[0].mxu0
      %v1606 = vadd.f32 0.0, %v1605
      %v1607 = vpop.f32.mrb[0].mxu0
      %v1608 = vpop.f32.mrb[0].mxu0
      %v1609 = vadd.f32 0.0, %v1608
      %v1610 = vpop.f32.mrb[0].mxu0
      %1611 = vmatprep.mubr.bf16.mxu0 0
      %1612 = vmatmul.mubr.bf16.gmra.mrb[0].mxu0 %v1524
      %v1613 = vpop.f32.mrb[0].mxu0
      %v1614 = vadd.f32 0.0, %v1613
      %v1615 = vpop.f32.mrb[0].mxu0
      %v1616 = vpop.f32.mrb[0].mxu0
      %v1617 = vadd.f32 0.0, %v1616
      %v1618 = vpop.f32.mrb[0].mxu0
      %1619 = vmatprep.mubr.bf16.mxu0 0
      %1620 = vmatmul.mubr.bf16.gmra.mrb[0].mxu0 %v1527
      %v1621 = vpop.f32.mrb[0].mxu0
      %v1622 = vadd.f32 0.0, %v1621
      %v1623 = vpop.f32.mrb[0].mxu0
      %v1624 = vpop.f32.mrb[0].mxu0
      %v1625 = vadd.f32 0.0, %v1624
      %v1626 = vpop.f32.mrb[0].mxu0
      %1627 = vmatprep.mubr.bf16.mxu0 0
      %1628 = vmatmul.mubr.bf16.gmra.mrb[0].mxu0 %v1530
      %v1629 = vpop.f32.mrb[0].mxu0
      %v1630 = vadd.f32 0.0, %v1629
      %v1631 = vpop.f32.mrb[0].mxu0
      %v1632 = vpop.f32.mrb[0].mxu0
      %v1633 = vadd.f32 0.0, %v1632
      %v1634 = vpop.f32.mrb[0].mxu0
      %1635 = vmatprep.mubr.bf16.mxu0 0
      %1636 = vmatmul.mubr.bf16.gmra.mrb[0].mxu0 %v1533
      %v1637 = vpop.f32.mrb[0].mxu0
      %v1638 = vadd.f32 0.0, %v1637
      %v1639 = vpop.f32.mrb[0].mxu0
      %v1640 = vpop.f32.mrb[0].mxu0
      %v1641 = vadd.f32 0.0, %v1640
      %v1642 = vpop.f32.mrb[0].mxu0
      %1643 = vmatprep.mubr.bf16.mxu0 0
      %1644 = vmatmul.mubr.bf16.gmra.mrb[0].mxu0 %v1536
      %v1645 = vpop.f32.mrb[0].mxu0
      %v1646 = vadd.f32 0.0, %v1645
      %v1647 = vpop.f32.mrb[0].mxu0
      %v1648 = vpop.f32.mrb[0].mxu0
      %v1649 = vadd.f32 0.0, %v1648
      %v1650 = vpop.f32.mrb[0].mxu0
      %1651 = vmatprep.mubr.bf16.mxu0 0
      %1652 = vmatmul.mubr.bf16.gmra.mrb[0].mxu0 %v1539
      %v1653 = vpop.f32.mrb[0].mxu0
      %v1654 = vadd.f32 0.0, %v1653
      %v1655 = vpop.f32.mrb[0].mxu0
      %v1656 = vpop.f32.mrb[0].mxu0
      %v1657 = vadd.f32 0.0, %v1656
      %v1658 = vpop.f32.mrb[0].mxu0
      %1659 = vmatprep.mubr.bf16.mxu0 0
      %1660 = vmatmul.mubr.bf16.gmra.mrb[0].mxu0 %v1542
      %v1661 = vpop.f32.mrb[0].mxu0
      %v1662 = vadd.f32 0.0, %v1661
      %v1663 = vpop.f32.mrb[0].mxu0
      %v1664 = vpop.f32.mrb[0].mxu0
      %v1665 = vadd.f32 0.0, %v1664
      %v1666 = vpop.f32.mrb[0].mxu0
      %1667 = vmatprep.mubr.bf16.mxu0 0
      %1668 = vmatmul.mubr.bf16.gmra.mrb[0].mxu0 %v1545
      %v1669 = vpop.f32.mrb[0].mxu0
      %v1670 = vadd.f32 0.0, %v1669
      %v1671 = vpop.f32.mrb[0].mxu0
      %v1672 = vpop.f32.mrb[0].mxu0
      %v1673 = vadd.f32 0.0, %v1672
      %v1674 = vpop.f32.mrb[0].mxu0
      %1675 = vmatprep.mubr.bf16.mxu0 0
      %1676 = vmatmul.mubr.bf16.gmra.mrb[0].mxu0 %v1548
      %v1677 = vpop.f32.mrb[0].mxu0
      %v1678 = vadd.f32 0.0, %v1677
      %v1679 = vpop.f32.mrb[0].mxu0
      %v1680 = vpop.f32.mrb[0].mxu0
      %v1681 = vadd.f32 0.0, %v1680
      %v1682 = vpop.f32.mrb[0].mxu0
      %1683 = vmatprep.mubr.bf16.mxu0 0
      %1684 = vmatmul.mubr.bf16.gmra.mrb[0].mxu0 %v1551
      %v1685 = vpop.f32.mrb[0].mxu0
      %v1686 = vadd.f32 0.0, %v1685
      %v1687 = vpop.f32.mrb[0].mxu0
      %v1688 = vpop.f32.mrb[0].mxu0
      %v1689 = vadd.f32 0.0, %v1688
      %v1690 = vpop.f32.mrb[0].mxu0
      %1691 = vmatprep.mubr.bf16.mxu0 0
      %1692 = vmatmul.mubr.bf16.gmra.mrb[0].mxu0 %v1554
      %v1693 = vpop.f32.mrb[0].mxu0
      %v1694 = vadd.f32 0.0, %v1693
      %v1695 = vpop.f32.mrb[0].mxu0
      %v1696 = vpop.f32.mrb[0].mxu0
      %v1697 = vadd.f32 0.0, %v1696
      %v1698 = vpop.f32.mrb[0].mxu0
      %1699 = vmatprep.mubr.bf16.mxu0 0
      %1700 = vmatmul.mubr.bf16.gmra.mrb[0].mxu0 %v1557
      %v1701 = vpop.f32.mrb[0].mxu0
      %v1702 = vadd.f32 0.0, %v1701
      %v1703 = vpop.f32.mrb[0].mxu0
      %v1704 = vpop.f32.mrb[0].mxu0
      %v1705 = vadd.f32 0.0, %v1704
      %v1706 = vpop.f32.mrb[0].mxu0
      %1707 = vmatprep.mubr.bf16.mxu0 0
      %1708 = vmatmul.mubr.bf16.gmra.mrb[0].mxu0 %v1560
      %v1709 = vpop.f32.mrb[0].mxu0
      %v1710 = vadd.f32 0.0, %v1709
      %v1711 = vpop.f32.mrb[0].mxu0
      %v1712 = vpop.f32.mrb[0].mxu0
      %v1713 = vadd.f32 0.0, %v1712
      %v1714 = vpop.f32.mrb[0].mxu0
      %1715 = vmatprep.mubr.bf16.mxu0 0
      %1716 = vmatmul.mubr.bf16.gmra.mrb[0].mxu0 %v1563
      %v1717 = vpop.f32.mrb[0].mxu0
      %v1718 = vadd.f32 0.0, %v1717
      %v1719 = vpop.f32.mrb[0].mxu0
      %v1720 = vpop.f32.mrb[0].mxu0
      %v1721 = vadd.f32 0.0, %v1720
      %v1722 = vpop.f32.mrb[0].mxu0
      %1723 = vmatprep.mubr.bf16.mxu0 0
      %1724 = vmatmul.mubr.bf16.gmra.mrb[0].mxu0 %v1566
      %v1725 = vpop.f32.mrb[0].mxu0
      %v1726 = vadd.f32 0.0, %v1725
      %v1727 = vpop.f32.mrb[0].mxu0
      %v1728 = vpop.f32.mrb[0].mxu0
      %v1729 = vadd.f32 0.0, %v1728
      %v1730 = vpop.f32.mrb[0].mxu0
      %1731 = vdwg.mxu0
      %v1732 = vld [vmem:[#allocation4] sm:$0xff]
      %v1733 = vld [vmem:[#allocation4 + $0x8] sm:$0xff]
      %v1734 = vld [vmem:[#allocation4 + $0x10] sm:$0xff]
      %v1735 = vld [vmem:[#allocation4 + $0x18] sm:$0xff]
      %v1736 = vld [vmem:[#allocation4 + $0x20] sm:$0xff]
      %v1737 = vld [vmem:[#allocation4 + $0x28] sm:$0xff]
      %v1738 = vld [vmem:[#allocation4 + $0x30] sm:$0xff]
      %v1739 = vld [vmem:[#allocation4 + $0x38] sm:$0xff]
      %v1740 = vld [vmem:[#allocation4 + $0x40] sm:$0xff]
      %v1741 = vld [vmem:[#allocation4 + $0x48] sm:$0xff]
      %v1742 = vld [vmem:[#allocation4 + $0x50] sm:$0xff]
      %v1743 = vld [vmem:[#allocation4 + $0x58] sm:$0xff]
      %v1744 = vld [vmem:[#allocation4 + $0x60] sm:$0xff]
      %v1745 = vld [vmem:[#allocation4 + $0x68] sm:$0xff]
      %v1746 = vld [vmem:[#allocation4 + $0x70] sm:$0xff]
      %v1747 = vld [vmem:[#allocation4 + $0x78] sm:$0xff]
      %v1748 = vld [vmem:[#allocation4 + $0x80] sm:$0xff]
      %v1749 = vld [vmem:[#allocation4 + $0x88] sm:$0xff]
      %v1750 = vld [vmem:[#allocation4 + $0x90] sm:$0xff]
      %v1751 = vld [vmem:[#allocation4 + $0x98] sm:$0xff]
      %v1752 = vld [vmem:[#allocation4 + $0xa0] sm:$0xff]
      %v1753 = vld [vmem:[#allocation4 + $0xa8] sm:$0xff]
      %v1754 = vld [vmem:[#allocation4 + $0xb0] sm:$0xff]
      %v1755 = vld [vmem:[#allocation4 + $0xb8] sm:$0xff]
      %v1756 = vld [vmem:[#allocation4 + $0xc0] sm:$0xff]
      %v1757 = vld [vmem:[#allocation4 + $0xc8] sm:$0xff]
      %v1758 = vld [vmem:[#allocation4 + $0xd0] sm:$0xff]
      %v1759 = vld [vmem:[#allocation4 + $0xd8] sm:$0xff]
      %v1760 = vld [vmem:[#allocation4 + $0xe0] sm:$0xff]
      %v1761 = vld [vmem:[#allocation4 + $0xe8] sm:$0xff]
      %v1762 = vld [vmem:[#allocation4 + $0xf0] sm:$0xff]
      %v1763 = vld [vmem:[#allocation4 + $0xf8] sm:$0xff]
      %v1764 = vadd.f32 %v1732, %v1606
      %v1765 = vadd.f32 %v1733, %v1609
      %v1766 = vadd.f32 %v1734, %v1614
      %v1767 = vadd.f32 %v1735, %v1617
      %v1768 = vadd.f32 %v1736, %v1622
      %v1769 = vadd.f32 %v1737, %v1625
      %v1770 = vadd.f32 %v1738, %v1630
      %v1771 = vadd.f32 %v1739, %v1633
      %v1772 = vadd.f32 %v1740, %v1638
      %v1773 = vadd.f32 %v1741, %v1641
      %v1774 = vadd.f32 %v1742, %v1646
      %v1775 = vadd.f32 %v1743, %v1649
      %v1776 = vadd.f32 %v1744, %v1654
      %v1777 = vadd.f32 %v1745, %v1657
      %v1778 = vadd.f32 %v1746, %v1662
      %v1779 = vadd.f32 %v1747, %v1665
      %v1780 = vadd.f32 %v1748, %v1670
      %v1781 = vadd.f32 %v1749, %v1673
      %v1782 = vadd.f32 %v1750, %v1678
      %v1783 = vadd.f32 %v1751, %v1681
      %v1784 = vadd.f32 %v1752, %v1686
      %v1785 = vadd.f32 %v1753, %v1689
      %v1786 = vadd.f32 %v1754, %v1694
      %v1787 = vadd.f32 %v1755, %v1697
      %v1788 = vadd.f32 %v1756, %v1702
      %v1789 = vadd.f32 %v1757, %v1705
      %v1790 = vadd.f32 %v1758, %v1710
      %v1791 = vadd.f32 %v1759, %v1713
      %v1792 = vadd.f32 %v1760, %v1718
      %v1793 = vadd.f32 %v1761, %v1721
      %v1794 = vadd.f32 %v1762, %v1726
      %v1795 = vadd.f32 %v1763, %v1729
      %1796 = vst.msk [vmem:[#allocation4] sm:$0xff] %vm381, %v1764
      %1797 = vst.msk [vmem:[#allocation4 + $0x8] sm:$0xff] %vm381, %v1765
      %1798 = vst.msk [vmem:[#allocation4 + $0x10] sm:$0xff] %vm381, %v1766
      %1799 = vst.msk [vmem:[#allocation4 + $0x18] sm:$0xff] %vm381, %v1767
      %1800 = vst.msk [vmem:[#allocation4 + $0x20] sm:$0xff] %vm381, %v1768
      %1801 = vst.msk [vmem:[#allocation4 + $0x28] sm:$0xff] %vm381, %v1769
      %1802 = vst.msk [vmem:[#allocation4 + $0x30] sm:$0xff] %vm381, %v1770
      %1803 = vst.msk [vmem:[#allocation4 + $0x38] sm:$0xff] %vm381, %v1771
      %1804 = vst.msk [vmem:[#allocation4 + $0x40] sm:$0xff] %vm381, %v1772
      %1805 = vst.msk [vmem:[#allocation4 + $0x48] sm:$0xff] %vm381, %v1773
      %1806 = vst.msk [vmem:[#allocation4 + $0x50] sm:$0xff] %vm381, %v1774
      %1807 = vst.msk [vmem:[#allocation4 + $0x58] sm:$0xff] %vm381, %v1775
      %1808 = vst.msk [vmem:[#allocation4 + $0x60] sm:$0xff] %vm381, %v1776
      %1809 = vst.msk [vmem:[#allocation4 + $0x68] sm:$0xff] %vm381, %v1777
      %1810 = vst.msk [vmem:[#allocation4 + $0x70] sm:$0xff] %vm381, %v1778
      %1811 = vst.msk [vmem:[#allocation4 + $0x78] sm:$0xff] %vm381, %v1779
      %1812 = vst.msk [vmem:[#allocation4 + $0x80] sm:$0xff] %vm381, %v1780
      %1813 = vst.msk [vmem:[#allocation4 + $0x88] sm:$0xff] %vm381, %v1781
      %1814 = vst.msk [vmem:[#allocation4 + $0x90] sm:$0xff] %vm381, %v1782
      %1815 = vst.msk [vmem:[#allocation4 + $0x98] sm:$0xff] %vm381, %v1783
      %1816 = vst.msk [vmem:[#allocation4 + $0xa0] sm:$0xff] %vm381, %v1784
      %1817 = vst.msk [vmem:[#allocation4 + $0xa8] sm:$0xff] %vm381, %v1785
      %1818 = vst.msk [vmem:[#allocation4 + $0xb0] sm:$0xff] %vm381, %v1786
      %1819 = vst.msk [vmem:[#allocation4 + $0xb8] sm:$0xff] %vm381, %v1787
      %1820 = vst.msk [vmem:[#allocation4 + $0xc0] sm:$0xff] %vm381, %v1788
      %1821 = vst.msk [vmem:[#allocation4 + $0xc8] sm:$0xff] %vm381, %v1789
      %1822 = vst.msk [vmem:[#allocation4 + $0xd0] sm:$0xff] %vm381, %v1790
      %1823 = vst.msk [vmem:[#allocation4 + $0xd8] sm:$0xff] %vm381, %v1791
      %1824 = vst.msk [vmem:[#allocation4 + $0xe0] sm:$0xff] %vm381, %v1792
      %1825 = vst.msk [vmem:[#allocation4 + $0xe8] sm:$0xff] %vm381, %v1793
      %1826 = vst.msk [vmem:[#allocation4 + $0xf0] sm:$0xff] %vm381, %v1794
      %1827 = vst.msk [vmem:[#allocation4 + $0xf8] sm:$0xff] %vm381, %v1795
      %v1828 = vld [vmem:[%s427 + $0x1] sm:$0xff]
      %v1829 = vld [vmem:[%s427 + $0x9] sm:$0xff]
      %v1830 = vld [vmem:[%s427 + $0x19] sm:$0xff]
      %v1831 = vld [vmem:[%s427 + $0x21] sm:$0xff]
      %v1832 = vld [vmem:[%s427 + $0x31] sm:$0xff]
      %v1833 = vld [vmem:[%s427 + $0x39] sm:$0xff]
      %v1834 = vld [vmem:[%s427 + $0x49] sm:$0xff]
      %v1835 = vld [vmem:[%s427 + $0x51] sm:$0xff]
      %v1836 = vld [vmem:[%s427 + $0x61] sm:$0xff]
      %v1837 = vld [vmem:[%s427 + $0x69] sm:$0xff]
      %v1838 = vld [vmem:[%s427 + $0x79] sm:$0xff]
      %v1839 = vld [vmem:[%s427 + $0x81] sm:$0xff]
      %v1840 = vld [vmem:[%s427 + $0x91] sm:$0xff]
      %v1841 = vld [vmem:[%s427 + $0x99] sm:$0xff]
      %v1842 = vld [vmem:[%s427 + $0xa9] sm:$0xff]
      %v1843 = vld [vmem:[%s427 + $0xb1] sm:$0xff]
      %v1844 = vld [vmem:[%s427 + $0xc1] sm:$0xff]
      %v1845 = vld [vmem:[%s427 + $0xc9] sm:$0xff]
      %v1846 = vld [vmem:[%s427 + $0xd9] sm:$0xff]
      %v1847 = vld [vmem:[%s427 + $0xe1] sm:$0xff]
      %v1848 = vld [vmem:[%s427 + $0xf1] sm:$0xff]
      %v1849 = vld [vmem:[%s427 + $0xf9] sm:$0xff]
      %v1850 = vld [vmem:[%s427 + $0x109] sm:$0xff]
      %v1851 = vld [vmem:[%s427 + $0x111] sm:$0xff]
      %v1852 = vld [vmem:[%s427 + $0x121] sm:$0xff]
      %v1853 = vld [vmem:[%s427 + $0x129] sm:$0xff]
      %v1854 = vld [vmem:[%s427 + $0x139] sm:$0xff]
      %v1855 = vld [vmem:[%s427 + $0x141] sm:$0xff]
      %v1856 = vld [vmem:[%s427 + $0x151] sm:$0xff]
      %v1857 = vld [vmem:[%s427 + $0x159] sm:$0xff]
      %v1858 = vld [vmem:[%s427 + $0x169] sm:$0xff]
      %v1859 = vld [vmem:[%s427 + $0x171] sm:$0xff]
      %v1860 = vpack.c.bf16 %v1829, %v1828
      %v1861 = vpack.c.bf16 %v1831, %v1830
      %v1862 = vpack.c.bf16 %v1833, %v1832
      %v1863 = vpack.c.bf16 %v1835, %v1834
      %v1864 = vpack.c.bf16 %v1837, %v1836
      %v1865 = vpack.c.bf16 %v1839, %v1838
      %v1866 = vpack.c.bf16 %v1841, %v1840
      %v1867 = vpack.c.bf16 %v1843, %v1842
      %v1868 = vpack.c.bf16 %v1845, %v1844
      %v1869 = vpack.c.bf16 %v1847, %v1846
      %v1870 = vpack.c.bf16 %v1849, %v1848
      %v1871 = vpack.c.bf16 %v1851, %v1850
      %v1872 = vpack.c.bf16 %v1853, %v1852
      %v1873 = vpack.c.bf16 %v1855, %v1854
      %v1874 = vpack.c.bf16 %v1857, %v1856
      %v1875 = vpack.c.bf16 %v1859, %v1858
      %s1876 = scalar_lea.vmem %s1, 8
      %v1877 = vld [vmem:[%s1876] sm:$0x3]
      %v1879 = vsel %vm381, %v1860, 0
      %v1882 = vsel %vm381, %v1861, 0
      %v1885 = vsel %vm381, %v1862, 0
      %v1888 = vsel %vm381, %v1863, 0
      %v1891 = vsel %vm381, %v1864, 0
      %v1894 = vsel %vm381, %v1865, 0
      %v1897 = vsel %vm381, %v1866, 0
      %v1900 = vsel %vm381, %v1867, 0
      %v1903 = vsel %vm381, %v1868, 0
      %v1906 = vsel %vm381, %v1869, 0
      %v1909 = vsel %vm381, %v1870, 0
      %v1912 = vsel %vm381, %v1871, 0
      %v1915 = vsel %vm381, %v1872, 0
      %v1918 = vsel %vm381, %v1873, 0
      %v1921 = vsel %vm381, %v1874, 0
      %v1924 = vsel %vm381, %v1875, 0
      %v1927 = vsel %vm557, %v1877, 0
      %1929 = vmatprep.subr.bf16.mxu0 0
      %1930 = vmatpush1.bf16.msra.mxu0 %v1927
      %1931 = vmatprep.subr.bf16.mxu0 0
      %1932 = vmatpush1.bf16.msra.mxu0 0
      %1933 = vmatprep.subr.bf16.mxu0 0
      %1934 = vmatpush1.bf16.msra.mxu0 0
      %1935 = vmatprep.subr.bf16.mxu0 0
      %1936 = vmatpush1.bf16.msra.mxu0 0
      %1937 = vmatprep.subr.bf16.mxu0 0
      %1938 = vmatpush1.bf16.msra.mxu0 0
      %1939 = vmatprep.subr.bf16.mxu0 0
      %1940 = vmatpush1.bf16.msra.mxu0 0
      %1941 = vmatprep.subr.bf16.mxu0 0
      %1942 = vmatpush1.bf16.msra.mxu0 0
      %1943 = vmatprep.subr.bf16.mxu0 0
      %1944 = vmatpush1.bf16.msra.mxu0 0
      %1945 = vmatprep.subr.bf16.mxu0 0
      %1946 = vmatpush1.bf16.msra.mxu0 0
      %1947 = vmatprep.subr.bf16.mxu0 0
      %1948 = vmatpush1.bf16.msra.mxu0 0
      %1949 = vmatprep.subr.bf16.mxu0 0
      %1950 = vmatpush1.bf16.msra.mxu0 0
      %1951 = vmatprep.subr.bf16.mxu0 0
      %1952 = vmatpush1.bf16.msra.mxu0 0
      %1953 = vmatprep.subr.bf16.mxu0 0
      %1954 = vmatpush1.bf16.msra.mxu0 0
      %1955 = vmatprep.subr.bf16.mxu0 0
      %1956 = vmatpush1.bf16.msra.mxu0 0
      %1957 = vmatprep.subr.bf16.mxu0 0
      %1958 = vmatpush1.bf16.msra.mxu0 0
      %1959 = vmatprep.subr.bf16.mxu0 0
      %1960 = vmatpush1.bf16.msra.mxu0 0
      %1961 = vmatprep.mubr.bf16.mxu0 0
      %1962 = vmatmul.mubr.bf16.gmra.mrb[0].mxu0 %v1879
      %v1963 = vpop.f32.mrb[0].mxu0
      %v1964 = vadd.f32 0.0, %v1963
      %v1965 = vpop.f32.mrb[0].mxu0
      %v1966 = vpop.f32.mrb[0].mxu0
      %v1967 = vadd.f32 0.0, %v1966
      %v1968 = vpop.f32.mrb[0].mxu0
      %1969 = vmatprep.mubr.bf16.mxu0 0
      %1970 = vmatmul.mubr.bf16.gmra.mrb[0].mxu0 %v1882
      %v1971 = vpop.f32.mrb[0].mxu0
      %v1972 = vadd.f32 0.0, %v1971
      %v1973 = vpop.f32.mrb[0].mxu0
      %v1974 = vpop.f32.mrb[0].mxu0
      %v1975 = vadd.f32 0.0, %v1974
      %v1976 = vpop.f32.mrb[0].mxu0
      %1977 = vmatprep.mubr.bf16.mxu0 0
      %1978 = vmatmul.mubr.bf16.gmra.mrb[0].mxu0 %v1885
      %v1979 = vpop.f32.mrb[0].mxu0
      %v1980 = vadd.f32 0.0, %v1979
      %v1981 = vpop.f32.mrb[0].mxu0
      %v1982 = vpop.f32.mrb[0].mxu0
      %v1983 = vadd.f32 0.0, %v1982
      %v1984 = vpop.f32.mrb[0].mxu0
      %1985 = vmatprep.mubr.bf16.mxu0 0
      %1986 = vmatmul.mubr.bf16.gmra.mrb[0].mxu0 %v1888
      %v1987 = vpop.f32.mrb[0].mxu0
      %v1988 = vadd.f32 0.0, %v1987
      %v1989 = vpop.f32.mrb[0].mxu0
      %v1990 = vpop.f32.mrb[0].mxu0
      %v1991 = vadd.f32 0.0, %v1990
      %v1992 = vpop.f32.mrb[0].mxu0
      %1993 = vmatprep.mubr.bf16.mxu0 0
      %1994 = vmatmul.mubr.bf16.gmra.mrb[0].mxu0 %v1891
      %v1995 = vpop.f32.mrb[0].mxu0
      %v1996 = vadd.f32 0.0, %v1995
      %v1997 = vpop.f32.mrb[0].mxu0
      %v1998 = vpop.f32.mrb[0].mxu0
      %v1999 = vadd.f32 0.0, %v1998
      %v2000 = vpop.f32.mrb[0].mxu0
      %2001 = vmatprep.mubr.bf16.mxu0 0
      %2002 = vmatmul.mubr.bf16.gmra.mrb[0].mxu0 %v1894
      %v2003 = vpop.f32.mrb[0].mxu0
      %v2004 = vadd.f32 0.0, %v2003
      %v2005 = vpop.f32.mrb[0].mxu0
      %v2006 = vpop.f32.mrb[0].mxu0
      %v2007 = vadd.f32 0.0, %v2006
      %v2008 = vpop.f32.mrb[0].mxu0
      %2009 = vmatprep.mubr.bf16.mxu0 0
      %2010 = vmatmul.mubr.bf16.gmra.mrb[0].mxu0 %v1897
      %v2011 = vpop.f32.mrb[0].mxu0
      %v2012 = vadd.f32 0.0, %v2011
      %v2013 = vpop.f32.mrb[0].mxu0
      %v2014 = vpop.f32.mrb[0].mxu0
      %v2015 = vadd.f32 0.0, %v2014
      %v2016 = vpop.f32.mrb[0].mxu0
      %2017 = vmatprep.mubr.bf16.mxu0 0
      %2018 = vmatmul.mubr.bf16.gmra.mrb[0].mxu0 %v1900
      %v2019 = vpop.f32.mrb[0].mxu0
      %v2020 = vadd.f32 0.0, %v2019
      %v2021 = vpop.f32.mrb[0].mxu0
      %v2022 = vpop.f32.mrb[0].mxu0
      %v2023 = vadd.f32 0.0, %v2022
      %v2024 = vpop.f32.mrb[0].mxu0
      %2025 = vmatprep.mubr.bf16.mxu0 0
      %2026 = vmatmul.mubr.bf16.gmra.mrb[0].mxu0 %v1903
      %v2027 = vpop.f32.mrb[0].mxu0
      %v2028 = vadd.f32 0.0, %v2027
      %v2029 = vpop.f32.mrb[0].mxu0
      %v2030 = vpop.f32.mrb[0].mxu0
      %v2031 = vadd.f32 0.0, %v2030
      %v2032 = vpop.f32.mrb[0].mxu0
      %2033 = vmatprep.mubr.bf16.mxu0 0
      %2034 = vmatmul.mubr.bf16.gmra.mrb[0].mxu0 %v1906
      %v2035 = vpop.f32.mrb[0].mxu0
      %v2036 = vadd.f32 0.0, %v2035
      %v2037 = vpop.f32.mrb[0].mxu0
      %v2038 = vpop.f32.mrb[0].mxu0
      %v2039 = vadd.f32 0.0, %v2038
      %v2040 = vpop.f32.mrb[0].mxu0
      %2041 = vmatprep.mubr.bf16.mxu0 0
      %2042 = vmatmul.mubr.bf16.gmra.mrb[0].mxu0 %v1909
      %v2043 = vpop.f32.mrb[0].mxu0
      %v2044 = vadd.f32 0.0, %v2043
      %v2045 = vpop.f32.mrb[0].mxu0
      %v2046 = vpop.f32.mrb[0].mxu0
      %v2047 = vadd.f32 0.0, %v2046
      %v2048 = vpop.f32.mrb[0].mxu0
      %2049 = vmatprep.mubr.bf16.mxu0 0
      %2050 = vmatmul.mubr.bf16.gmra.mrb[0].mxu0 %v1912
      %v2051 = vpop.f32.mrb[0].mxu0
      %v2052 = vadd.f32 0.0, %v2051
      %v2053 = vpop.f32.mrb[0].mxu0
      %v2054 = vpop.f32.mrb[0].mxu0
      %v2055 = vadd.f32 0.0, %v2054
      %v2056 = vpop.f32.mrb[0].mxu0
      %2057 = vmatprep.mubr.bf16.mxu0 0
      %2058 = vmatmul.mubr.bf16.gmra.mrb[0].mxu0 %v1915
      %v2059 = vpop.f32.mrb[0].mxu0
      %v2060 = vadd.f32 0.0, %v2059
      %v2061 = vpop.f32.mrb[0].mxu0
      %v2062 = vpop.f32.mrb[0].mxu0
      %v2063 = vadd.f32 0.0, %v2062
      %v2064 = vpop.f32.mrb[0].mxu0
      %2065 = vmatprep.mubr.bf16.mxu0 0
      %2066 = vmatmul.mubr.bf16.gmra.mrb[0].mxu0 %v1918
      %v2067 = vpop.f32.mrb[0].mxu0
      %v2068 = vadd.f32 0.0, %v2067
      %v2069 = vpop.f32.mrb[0].mxu0
      %v2070 = vpop.f32.mrb[0].mxu0
      %v2071 = vadd.f32 0.0, %v2070
      %v2072 = vpop.f32.mrb[0].mxu0
      %2073 = vmatprep.mubr.bf16.mxu0 0
      %2074 = vmatmul.mubr.bf16.gmra.mrb[0].mxu0 %v1921
      %v2075 = vpop.f32.mrb[0].mxu0
      %v2076 = vadd.f32 0.0, %v2075
      %v2077 = vpop.f32.mrb[0].mxu0
      %v2078 = vpop.f32.mrb[0].mxu0
      %v2079 = vadd.f32 0.0, %v2078
      %v2080 = vpop.f32.mrb[0].mxu0
      %2081 = vmatprep.mubr.bf16.mxu0 0
      %2082 = vmatmul.mubr.bf16.gmra.mrb[0].mxu0 %v1924
      %v2083 = vpop.f32.mrb[0].mxu0
      %v2084 = vadd.f32 0.0, %v2083
      %v2085 = vpop.f32.mrb[0].mxu0
      %v2086 = vpop.f32.mrb[0].mxu0
      %v2087 = vadd.f32 0.0, %v2086
      %v2088 = vpop.f32.mrb[0].mxu0
      %2089 = vdwg.mxu0
      %v2090 = vld [vmem:[#allocation4] sm:$0xff]
      %v2091 = vld [vmem:[#allocation4 + $0x8] sm:$0xff]
      %v2092 = vld [vmem:[#allocation4 + $0x10] sm:$0xff]
      %v2093 = vld [vmem:[#allocation4 + $0x18] sm:$0xff]
      %v2094 = vld [vmem:[#allocation4 + $0x20] sm:$0xff]
      %v2095 = vld [vmem:[#allocation4 + $0x28] sm:$0xff]
      %v2096 = vld [vmem:[#allocation4 + $0x30] sm:$0xff]
      %v2097 = vld [vmem:[#allocation4 + $0x38] sm:$0xff]
      %v2098 = vld [vmem:[#allocation4 + $0x40] sm:$0xff]
      %v2099 = vld [vmem:[#allocation4 + $0x48] sm:$0xff]
      %v2100 = vld [vmem:[#allocation4 + $0x50] sm:$0xff]
      %v2101 = vld [vmem:[#allocation4 + $0x58] sm:$0xff]
      %v2102 = vld [vmem:[#allocation4 + $0x60] sm:$0xff]
      %v2103 = vld [vmem:[#allocation4 + $0x68] sm:$0xff]
      %v2104 = vld [vmem:[#allocation4 + $0x70] sm:$0xff]
      %v2105 = vld [vmem:[#allocation4 + $0x78] sm:$0xff]
      %v2106 = vld [vmem:[#allocation4 + $0x80] sm:$0xff]
      %v2107 = vld [vmem:[#allocation4 + $0x88] sm:$0xff]
      %v2108 = vld [vmem:[#allocation4 + $0x90] sm:$0xff]
      %v2109 = vld [vmem:[#allocation4 + $0x98] sm:$0xff]
      %v2110 = vld [vmem:[#allocation4 + $0xa0] sm:$0xff]
      %v2111 = vld [vmem:[#allocation4 + $0xa8] sm:$0xff]
      %v2112 = vld [vmem:[#allocation4 + $0xb0] sm:$0xff]
      %v2113 = vld [vmem:[#allocation4 + $0xb8] sm:$0xff]
      %v2114 = vld [vmem:[#allocation4 + $0xc0] sm:$0xff]
      %v2115 = vld [vmem:[#allocation4 + $0xc8] sm:$0xff]
      %v2116 = vld [vmem:[#allocation4 + $0xd0] sm:$0xff]
      %v2117 = vld [vmem:[#allocation4 + $0xd8] sm:$0xff]
      %v2118 = vld [vmem:[#allocation4 + $0xe0] sm:$0xff]
      %v2119 = vld [vmem:[#allocation4 + $0xe8] sm:$0xff]
      %v2120 = vld [vmem:[#allocation4 + $0xf0] sm:$0xff]
      %v2121 = vld [vmem:[#allocation4 + $0xf8] sm:$0xff]
      %v2122 = vadd.f32 %v2090, %v1964
      %v2123 = vadd.f32 %v2091, %v1967
      %v2124 = vadd.f32 %v2092, %v1972
      %v2125 = vadd.f32 %v2093, %v1975
      %v2126 = vadd.f32 %v2094, %v1980
      %v2127 = vadd.f32 %v2095, %v1983
      %v2128 = vadd.f32 %v2096, %v1988
      %v2129 = vadd.f32 %v2097, %v1991
      %v2130 = vadd.f32 %v2098, %v1996
      %v2131 = vadd.f32 %v2099, %v1999
      %v2132 = vadd.f32 %v2100, %v2004
      %v2133 = vadd.f32 %v2101, %v2007
      %v2134 = vadd.f32 %v2102, %v2012
      %v2135 = vadd.f32 %v2103, %v2015
      %v2136 = vadd.f32 %v2104, %v2020
      %v2137 = vadd.f32 %v2105, %v2023
      %v2138 = vadd.f32 %v2106, %v2028
      %v2139 = vadd.f32 %v2107, %v2031
      %v2140 = vadd.f32 %v2108, %v2036
      %v2141 = vadd.f32 %v2109, %v2039
      %v2142 = vadd.f32 %v2110, %v2044
      %v2143 = vadd.f32 %v2111, %v2047
      %v2144 = vadd.f32 %v2112, %v2052
      %v2145 = vadd.f32 %v2113, %v2055
      %v2146 = vadd.f32 %v2114, %v2060
      %v2147 = vadd.f32 %v2115, %v2063
      %v2148 = vadd.f32 %v2116, %v2068
      %v2149 = vadd.f32 %v2117, %v2071
      %v2150 = vadd.f32 %v2118, %v2076
      %v2151 = vadd.f32 %v2119, %v2079
      %v2152 = vadd.f32 %v2120, %v2084
      %v2153 = vadd.f32 %v2121, %v2087
      %2154 = vst.msk [vmem:[#allocation4] sm:$0xff] %vm381, %v2122
      %2155 = vst.msk [vmem:[#allocation4 + $0x8] sm:$0xff] %vm381, %v2123
      %2156 = vst.msk [vmem:[#allocation4 + $0x10] sm:$0xff] %vm381, %v2124
      %2157 = vst.msk [vmem:[#allocation4 + $0x18] sm:$0xff] %vm381, %v2125
      %2158 = vst.msk [vmem:[#allocation4 + $0x20] sm:$0xff] %vm381, %v2126
      %2159 = vst.msk [vmem:[#allocation4 + $0x28] sm:$0xff] %vm381, %v2127
      %2160 = vst.msk [vmem:[#allocation4 + $0x30] sm:$0xff] %vm381, %v2128
      %2161 = vst.msk [vmem:[#allocation4 + $0x38] sm:$0xff] %vm381, %v2129
      %2162 = vst.msk [vmem:[#allocation4 + $0x40] sm:$0xff] %vm381, %v2130
      %2163 = vst.msk [vmem:[#allocation4 + $0x48] sm:$0xff] %vm381, %v2131
      %2164 = vst.msk [vmem:[#allocation4 + $0x50] sm:$0xff] %vm381, %v2132
      %2165 = vst.msk [vmem:[#allocation4 + $0x58] sm:$0xff] %vm381, %v2133
      %2166 = vst.msk [vmem:[#allocation4 + $0x60] sm:$0xff] %vm381, %v2134
      %2167 = vst.msk [vmem:[#allocation4 + $0x68] sm:$0xff] %vm381, %v2135
      %2168 = vst.msk [vmem:[#allocation4 + $0x70] sm:$0xff] %vm381, %v2136
      %2169 = vst.msk [vmem:[#allocation4 + $0x78] sm:$0xff] %vm381, %v2137
      %2170 = vst.msk [vmem:[#allocation4 + $0x80] sm:$0xff] %vm381, %v2138
      %2171 = vst.msk [vmem:[#allocation4 + $0x88] sm:$0xff] %vm381, %v2139
      %2172 = vst.msk [vmem:[#allocation4 + $0x90] sm:$0xff] %vm381, %v2140
      %2173 = vst.msk [vmem:[#allocation4 + $0x98] sm:$0xff] %vm381, %v2141
      %2174 = vst.msk [vmem:[#allocation4 + $0xa0] sm:$0xff] %vm381, %v2142
      %2175 = vst.msk [vmem:[#allocation4 + $0xa8] sm:$0xff] %vm381, %v2143
      %2176 = vst.msk [vmem:[#allocation4 + $0xb0] sm:$0xff] %vm381, %v2144
      %2177 = vst.msk [vmem:[#allocation4 + $0xb8] sm:$0xff] %vm381, %v2145
      %2178 = vst.msk [vmem:[#allocation4 + $0xc0] sm:$0xff] %vm381, %v2146
      %2179 = vst.msk [vmem:[#allocation4 + $0xc8] sm:$0xff] %vm381, %v2147
      %2180 = vst.msk [vmem:[#allocation4 + $0xd0] sm:$0xff] %vm381, %v2148
      %2181 = vst.msk [vmem:[#allocation4 + $0xd8] sm:$0xff] %vm381, %v2149
      %2182 = vst.msk [vmem:[#allocation4 + $0xe0] sm:$0xff] %vm381, %v2150
      %2183 = vst.msk [vmem:[#allocation4 + $0xe8] sm:$0xff] %vm381, %v2151
      %2184 = vst.msk [vmem:[#allocation4 + $0xf0] sm:$0xff] %vm381, %v2152
      %2185 = vst.msk [vmem:[#allocation4 + $0xf8] sm:$0xff] %vm381, %v2153
      %v2186 = vld [vmem:[%s427 + $0x2] sm:$0xff]
      %v2187 = vld [vmem:[%s427 + $0xa] sm:$0xff]
      %v2188 = vld [vmem:[%s427 + $0x1a] sm:$0xff]
      %v2189 = vld [vmem:[%s427 + $0x22] sm:$0xff]
      %v2190 = vld [vmem:[%s427 + $0x32] sm:$0xff]
      %v2191 = vld [vmem:[%s427 + $0x3a] sm:$0xff]
      %v2192 = vld [vmem:[%s427 + $0x4a] sm:$0xff]
      %v2193 = vld [vmem:[%s427 + $0x52] sm:$0xff]
      %v2194 = vld [vmem:[%s427 + $0x62] sm:$0xff]
      %v2195 = vld [vmem:[%s427 + $0x6a] sm:$0xff]
      %v2196 = vld [vmem:[%s427 + $0x7a] sm:$0xff]
      %v2197 = vld [vmem:[%s427 + $0x82] sm:$0xff]
      %v2198 = vld [vmem:[%s427 + $0x92] sm:$0xff]
      %v2199 = vld [vmem:[%s427 + $0x9a] sm:$0xff]
      %v2200 = vld [vmem:[%s427 + $0xaa] sm:$0xff]
      %v2201 = vld [vmem:[%s427 + $0xb2] sm:$0xff]
      %v2202 = vld [vmem:[%s427 + $0xc2] sm:$0xff]
      %v2203 = vld [vmem:[%s427 + $0xca] sm:$0xff]
      %v2204 = vld [vmem:[%s427 + $0xda] sm:$0xff]
      %v2205 = vld [vmem:[%s427 + $0xe2] sm:$0xff]
      %v2206 = vld [vmem:[%s427 + $0xf2] sm:$0xff]
      %v2207 = vld [vmem:[%s427 + $0xfa] sm:$0xff]
      %v2208 = vld [vmem:[%s427 + $0x10a] sm:$0xff]
      %v2209 = vld [vmem:[%s427 + $0x112] sm:$0xff]
      %v2210 = vld [vmem:[%s427 + $0x122] sm:$0xff]
      %v2211 = vld [vmem:[%s427 + $0x12a] sm:$0xff]
      %v2212 = vld [vmem:[%s427 + $0x13a] sm:$0xff]
      %v2213 = vld [vmem:[%s427 + $0x142] sm:$0xff]
      %v2214 = vld [vmem:[%s427 + $0x152] sm:$0xff]
      %v2215 = vld [vmem:[%s427 + $0x15a] sm:$0xff]
      %v2216 = vld [vmem:[%s427 + $0x16a] sm:$0xff]
      %v2217 = vld [vmem:[%s427 + $0x172] sm:$0xff]
      %v2218 = vpack.c.bf16 %v2187, %v2186
      %v2219 = vpack.c.bf16 %v2189, %v2188
      %v2220 = vpack.c.bf16 %v2191, %v2190
      %v2221 = vpack.c.bf16 %v2193, %v2192
      %v2222 = vpack.c.bf16 %v2195, %v2194
      %v2223 = vpack.c.bf16 %v2197, %v2196
      %v2224 = vpack.c.bf16 %v2199, %v2198
      %v2225 = vpack.c.bf16 %v2201, %v2200
      %v2226 = vpack.c.bf16 %v2203, %v2202
      %v2227 = vpack.c.bf16 %v2205, %v2204
      %v2228 = vpack.c.bf16 %v2207, %v2206
      %v2229 = vpack.c.bf16 %v2209, %v2208
      %v2230 = vpack.c.bf16 %v2211, %v2210
      %v2231 = vpack.c.bf16 %v2213, %v2212
      %v2232 = vpack.c.bf16 %v2215, %v2214
      %v2233 = vpack.c.bf16 %v2217, %v2216
      %s2234 = scalar_lea.vmem %s1, 10
      %v2235 = vld [vmem:[%s2234] sm:$0x3]
      %v2237 = vsel %vm381, %v2218, 0
      %v2240 = vsel %vm381, %v2219, 0
      %v2243 = vsel %vm381, %v2220, 0
      %v2246 = vsel %vm381, %v2221, 0
      %v2249 = vsel %vm381, %v2222, 0
      %v2252 = vsel %vm381, %v2223, 0
      %v2255 = vsel %vm381, %v2224, 0
      %v2258 = vsel %vm381, %v2225, 0
      %v2261 = vsel %vm381, %v2226, 0
      %v2264 = vsel %vm381, %v2227, 0
      %v2267 = vsel %vm381, %v2228, 0
      %v2270 = vsel %vm381, %v2229, 0
      %v2273 = vsel %vm381, %v2230, 0
      %v2276 = vsel %vm381, %v2231, 0
      %v2279 = vsel %vm381, %v2232, 0
      %v2282 = vsel %vm381, %v2233, 0
      %v2285 = vsel %vm557, %v2235, 0
      %2287 = vmatprep.subr.bf16.mxu0 0
      %2288 = vmatpush1.bf16.msra.mxu0 %v2285
      %2289 = vmatprep.subr.bf16.mxu0 0
      %2290 = vmatpush1.bf16.msra.mxu0 0
      %2291 = vmatprep.subr.bf16.mxu0 0
      %2292 = vmatpush1.bf16.msra.mxu0 0
      %2293 = vmatprep.subr.bf16.mxu0 0
      %2294 = vmatpush1.bf16.msra.mxu0 0
      %2295 = vmatprep.subr.bf16.mxu0 0
      %2296 = vmatpush1.bf16.msra.mxu0 0
      %2297 = vmatprep.subr.bf16.mxu0 0
      %2298 = vmatpush1.bf16.msra.mxu0 0
      %2299 = vmatprep.subr.bf16.mxu0 0
      %2300 = vmatpush1.bf16.msra.mxu0 0
      %2301 = vmatprep.subr.bf16.mxu0 0
      %2302 = vmatpush1.bf16.msra.mxu0 0
      %2303 = vmatprep.subr.bf16.mxu0 0
      %2304 = vmatpush1.bf16.msra.mxu0 0
      %2305 = vmatprep.subr.bf16.mxu0 0
      %2306 = vmatpush1.bf16.msra.mxu0 0
      %2307 = vmatprep.subr.bf16.mxu0 0
      %2308 = vmatpush1.bf16.msra.mxu0 0
      %2309 = vmatprep.subr.bf16.mxu0 0
      %2310 = vmatpush1.bf16.msra.mxu0 0
      %2311 = vmatprep.subr.bf16.mxu0 0
      %2312 = vmatpush1.bf16.msra.mxu0 0
      %2313 = vmatprep.subr.bf16.mxu0 0
      %2314 = vmatpush1.bf16.msra.mxu0 0
      %2315 = vmatprep.subr.bf16.mxu0 0
      %2316 = vmatpush1.bf16.msra.mxu0 0
      %2317 = vmatprep.subr.bf16.mxu0 0
      %2318 = vmatpush1.bf16.msra.mxu0 0
      %2319 = vmatprep.mubr.bf16.mxu0 0
      %2320 = vmatmul.mubr.bf16.gmra.mrb[0].mxu0 %v2237
      %v2321 = vpop.f32.mrb[0].mxu0
      %v2322 = vadd.f32 0.0, %v2321
      %v2323 = vpop.f32.mrb[0].mxu0
      %v2324 = vpop.f32.mrb[0].mxu0
      %v2325 = vadd.f32 0.0, %v2324
      %v2326 = vpop.f32.mrb[0].mxu0
      %2327 = vmatprep.mubr.bf16.mxu0 0
      %2328 = vmatmul.mubr.bf16.gmra.mrb[0].mxu0 %v2240
      %v2329 = vpop.f32.mrb[0].mxu0
      %v2330 = vadd.f32 0.0, %v2329
      %v2331 = vpop.f32.mrb[0].mxu0
      %v2332 = vpop.f32.mrb[0].mxu0
      %v2333 = vadd.f32 0.0, %v2332
      %v2334 = vpop.f32.mrb[0].mxu0
      %2335 = vmatprep.mubr.bf16.mxu0 0
      %2336 = vmatmul.mubr.bf16.gmra.mrb[0].mxu0 %v2243
      %v2337 = vpop.f32.mrb[0].mxu0
      %v2338 = vadd.f32 0.0, %v2337
      %v2339 = vpop.f32.mrb[0].mxu0
      %v2340 = vpop.f32.mrb[0].mxu0
      %v2341 = vadd.f32 0.0, %v2340
      %v2342 = vpop.f32.mrb[0].mxu0
      %2343 = vmatprep.mubr.bf16.mxu0 0
      %2344 = vmatmul.mubr.bf16.gmra.mrb[0].mxu0 %v2246
      %v2345 = vpop.f32.mrb[0].mxu0
      %v2346 = vadd.f32 0.0, %v2345
      %v2347 = vpop.f32.mrb[0].mxu0
      %v2348 = vpop.f32.mrb[0].mxu0
      %v2349 = vadd.f32 0.0, %v2348
      %v2350 = vpop.f32.mrb[0].mxu0
      %2351 = vmatprep.mubr.bf16.mxu0 0
      %2352 = vmatmul.mubr.bf16.gmra.mrb[0].mxu0 %v2249
      %v2353 = vpop.f32.mrb[0].mxu0
      %v2354 = vadd.f32 0.0, %v2353
      %v2355 = vpop.f32.mrb[0].mxu0
      %v2356 = vpop.f32.mrb[0].mxu0
      %v2357 = vadd.f32 0.0, %v2356
      %v2358 = vpop.f32.mrb[0].mxu0
      %2359 = vmatprep.mubr.bf16.mxu0 0
      %2360 = vmatmul.mubr.bf16.gmra.mrb[0].mxu0 %v2252
      %v2361 = vpop.f32.mrb[0].mxu0
      %v2362 = vadd.f32 0.0, %v2361
      %v2363 = vpop.f32.mrb[0].mxu0
      %v2364 = vpop.f32.mrb[0].mxu0
      %v2365 = vadd.f32 0.0, %v2364
      %v2366 = vpop.f32.mrb[0].mxu0
      %2367 = vmatprep.mubr.bf16.mxu0 0
      %2368 = vmatmul.mubr.bf16.gmra.mrb[0].mxu0 %v2255
      %v2369 = vpop.f32.mrb[0].mxu0
      %v2370 = vadd.f32 0.0, %v2369
      %v2371 = vpop.f32.mrb[0].mxu0
      %v2372 = vpop.f32.mrb[0].mxu0
      %v2373 = vadd.f32 0.0, %v2372
      %v2374 = vpop.f32.mrb[0].mxu0
      %2375 = vmatprep.mubr.bf16.mxu0 0
      %2376 = vmatmul.mubr.bf16.gmra.mrb[0].mxu0 %v2258
      %v2377 = vpop.f32.mrb[0].mxu0
      %v2378 = vadd.f32 0.0, %v2377
      %v2379 = vpop.f32.mrb[0].mxu0
      %v2380 = vpop.f32.mrb[0].mxu0
      %v2381 = vadd.f32 0.0, %v2380
      %v2382 = vpop.f32.mrb[0].mxu0
      %2383 = vmatprep.mubr.bf16.mxu0 0
      %2384 = vmatmul.mubr.bf16.gmra.mrb[0].mxu0 %v2261
      %v2385 = vpop.f32.mrb[0].mxu0
      %v2386 = vadd.f32 0.0, %v2385
      %v2387 = vpop.f32.mrb[0].mxu0
      %v2388 = vpop.f32.mrb[0].mxu0
      %v2389 = vadd.f32 0.0, %v2388
      %v2390 = vpop.f32.mrb[0].mxu0
      %2391 = vmatprep.mubr.bf16.mxu0 0
      %2392 = vmatmul.mubr.bf16.gmra.mrb[0].mxu0 %v2264
      %v2393 = vpop.f32.mrb[0].mxu0
      %v2394 = vadd.f32 0.0, %v2393
      %v2395 = vpop.f32.mrb[0].mxu0
      %v2396 = vpop.f32.mrb[0].mxu0
      %v2397 = vadd.f32 0.0, %v2396
      %v2398 = vpop.f32.mrb[0].mxu0
      %2399 = vmatprep.mubr.bf16.mxu0 0
      %2400 = vmatmul.mubr.bf16.gmra.mrb[0].mxu0 %v2267
      %v2401 = vpop.f32.mrb[0].mxu0
      %v2402 = vadd.f32 0.0, %v2401
      %v2403 = vpop.f32.mrb[0].mxu0
      %v2404 = vpop.f32.mrb[0].mxu0
      %v2405 = vadd.f32 0.0, %v2404
      %v2406 = vpop.f32.mrb[0].mxu0
      %2407 = vmatprep.mubr.bf16.mxu0 0
      %2408 = vmatmul.mubr.bf16.gmra.mrb[0].mxu0 %v2270
      %v2409 = vpop.f32.mrb[0].mxu0
      %v2410 = vadd.f32 0.0, %v2409
      %v2411 = vpop.f32.mrb[0].mxu0
      %v2412 = vpop.f32.mrb[0].mxu0
      %v2413 = vadd.f32 0.0, %v2412
      %v2414 = vpop.f32.mrb[0].mxu0
      %2415 = vmatprep.mubr.bf16.mxu0 0
      %2416 = vmatmul.mubr.bf16.gmra.mrb[0].mxu0 %v2273
      %v2417 = vpop.f32.mrb[0].mxu0
      %v2418 = vadd.f32 0.0, %v2417
      %v2419 = vpop.f32.mrb[0].mxu0
      %v2420 = vpop.f32.mrb[0].mxu0
      %v2421 = vadd.f32 0.0, %v2420
      %v2422 = vpop.f32.mrb[0].mxu0
      %2423 = vmatprep.mubr.bf16.mxu0 0
      %2424 = vmatmul.mubr.bf16.gmra.mrb[0].mxu0 %v2276
      %v2425 = vpop.f32.mrb[0].mxu0
      %v2426 = vadd.f32 0.0, %v2425
      %v2427 = vpop.f32.mrb[0].mxu0
      %v2428 = vpop.f32.mrb[0].mxu0
      %v2429 = vadd.f32 0.0, %v2428
      %v2430 = vpop.f32.mrb[0].mxu0
      %2431 = vmatprep.mubr.bf16.mxu0 0
      %2432 = vmatmul.mubr.bf16.gmra.mrb[0].mxu0 %v2279
      %v2433 = vpop.f32.mrb[0].mxu0
      %v2434 = vadd.f32 0.0, %v2433
      %v2435 = vpop.f32.mrb[0].mxu0
      %v2436 = vpop.f32.mrb[0].mxu0
      %v2437 = vadd.f32 0.0, %v2436
      %v2438 = vpop.f32.mrb[0].mxu0
      %2439 = vmatprep.mubr.bf16.mxu0 0
      %2440 = vmatmul.mubr.bf16.gmra.mrb[0].mxu0 %v2282
      %v2441 = vpop.f32.mrb[0].mxu0
      %v2442 = vadd.f32 0.0, %v2441
      %v2443 = vpop.f32.mrb[0].mxu0
      %v2444 = vpop.f32.mrb[0].mxu0
      %v2445 = vadd.f32 0.0, %v2444
      %v2446 = vpop.f32.mrb[0].mxu0
      %2447 = vdwg.mxu0
      %v2448 = vld [vmem:[#allocation4] sm:$0xff]
      %v2449 = vld [vmem:[#allocation4 + $0x8] sm:$0xff]
      %v2450 = vld [vmem:[#allocation4 + $0x10] sm:$0xff]
      %v2451 = vld [vmem:[#allocation4 + $0x18] sm:$0xff]
      %v2452 = vld [vmem:[#allocation4 + $0x20] sm:$0xff]
      %v2453 = vld [vmem:[#allocation4 + $0x28] sm:$0xff]
      %v2454 = vld [vmem:[#allocation4 + $0x30] sm:$0xff]
      %v2455 = vld [vmem:[#allocation4 + $0x38] sm:$0xff]
      %v2456 = vld [vmem:[#allocation4 + $0x40] sm:$0xff]
      %v2457 = vld [vmem:[#allocation4 + $0x48] sm:$0xff]
      %v2458 = vld [vmem:[#allocation4 + $0x50] sm:$0xff]
      %v2459 = vld [vmem:[#allocation4 + $0x58] sm:$0xff]
      %v2460 = vld [vmem:[#allocation4 + $0x60] sm:$0xff]
      %v2461 = vld [vmem:[#allocation4 + $0x68] sm:$0xff]
      %v2462 = vld [vmem:[#allocation4 + $0x70] sm:$0xff]
      %v2463 = vld [vmem:[#allocation4 + $0x78] sm:$0xff]
      %v2464 = vld [vmem:[#allocation4 + $0x80] sm:$0xff]
      %v2465 = vld [vmem:[#allocation4 + $0x88] sm:$0xff]
      %v2466 = vld [vmem:[#allocation4 + $0x90] sm:$0xff]
      %v2467 = vld [vmem:[#allocation4 + $0x98] sm:$0xff]
      %v2468 = vld [vmem:[#allocation4 + $0xa0] sm:$0xff]
      %v2469 = vld [vmem:[#allocation4 + $0xa8] sm:$0xff]
      %v2470 = vld [vmem:[#allocation4 + $0xb0] sm:$0xff]
      %v2471 = vld [vmem:[#allocation4 + $0xb8] sm:$0xff]
      %v2472 = vld [vmem:[#allocation4 + $0xc0] sm:$0xff]
      %v2473 = vld [vmem:[#allocation4 + $0xc8] sm:$0xff]
      %v2474 = vld [vmem:[#allocation4 + $0xd0] sm:$0xff]
      %v2475 = vld [vmem:[#allocation4 + $0xd8] sm:$0xff]
      %v2476 = vld [vmem:[#allocation4 + $0xe0] sm:$0xff]
      %v2477 = vld [vmem:[#allocation4 + $0xe8] sm:$0xff]
      %v2478 = vld [vmem:[#allocation4 + $0xf0] sm:$0xff]
      %v2479 = vld [vmem:[#allocation4 + $0xf8] sm:$0xff]
      %v2480 = vadd.f32 %v2448, %v2322
      %v2481 = vadd.f32 %v2449, %v2325
      %v2482 = vadd.f32 %v2450, %v2330
      %v2483 = vadd.f32 %v2451, %v2333
      %v2484 = vadd.f32 %v2452, %v2338
      %v2485 = vadd.f32 %v2453, %v2341
      %v2486 = vadd.f32 %v2454, %v2346
      %v2487 = vadd.f32 %v2455, %v2349
      %v2488 = vadd.f32 %v2456, %v2354
      %v2489 = vadd.f32 %v2457, %v2357
      %v2490 = vadd.f32 %v2458, %v2362
      %v2491 = vadd.f32 %v2459, %v2365
      %v2492 = vadd.f32 %v2460, %v2370
      %v2493 = vadd.f32 %v2461, %v2373
      %v2494 = vadd.f32 %v2462, %v2378
      %v2495 = vadd.f32 %v2463, %v2381
      %v2496 = vadd.f32 %v2464, %v2386
      %v2497 = vadd.f32 %v2465, %v2389
      %v2498 = vadd.f32 %v2466, %v2394
      %v2499 = vadd.f32 %v2467, %v2397
      %v2500 = vadd.f32 %v2468, %v2402
      %v2501 = vadd.f32 %v2469, %v2405
      %v2502 = vadd.f32 %v2470, %v2410
      %v2503 = vadd.f32 %v2471, %v2413
      %v2504 = vadd.f32 %v2472, %v2418
      %v2505 = vadd.f32 %v2473, %v2421
      %v2506 = vadd.f32 %v2474, %v2426
      %v2507 = vadd.f32 %v2475, %v2429
      %v2508 = vadd.f32 %v2476, %v2434
      %v2509 = vadd.f32 %v2477, %v2437
      %v2510 = vadd.f32 %v2478, %v2442
      %v2511 = vadd.f32 %v2479, %v2445
      %2512 = vst.msk [vmem:[#allocation4] sm:$0xff] %vm381, %v2480
      %2513 = vst.msk [vmem:[#allocation4 + $0x8] sm:$0xff] %vm381, %v2481
      %2514 = vst.msk [vmem:[#allocation4 + $0x10] sm:$0xff] %vm381, %v2482
      %2515 = vst.msk [vmem:[#allocation4 + $0x18] sm:$0xff] %vm381, %v2483
      %2516 = vst.msk [vmem:[#allocation4 + $0x20] sm:$0xff] %vm381, %v2484
      %2517 = vst.msk [vmem:[#allocation4 + $0x28] sm:$0xff] %vm381, %v2485
      %2518 = vst.msk [vmem:[#allocation4 + $0x30] sm:$0xff] %vm381, %v2486
      %2519 = vst.msk [vmem:[#allocation4 + $0x38] sm:$0xff] %vm381, %v2487
      %2520 = vst.msk [vmem:[#allocation4 + $0x40] sm:$0xff] %vm381, %v2488
      %2521 = vst.msk [vmem:[#allocation4 + $0x48] sm:$0xff] %vm381, %v2489
      %2522 = vst.msk [vmem:[#allocation4 + $0x50] sm:$0xff] %vm381, %v2490
      %2523 = vst.msk [vmem:[#allocation4 + $0x58] sm:$0xff] %vm381, %v2491
      %2524 = vst.msk [vmem:[#allocation4 + $0x60] sm:$0xff] %vm381, %v2492
      %2525 = vst.msk [vmem:[#allocation4 + $0x68] sm:$0xff] %vm381, %v2493
      %2526 = vst.msk [vmem:[#allocation4 + $0x70] sm:$0xff] %vm381, %v2494
      %2527 = vst.msk [vmem:[#allocation4 + $0x78] sm:$0xff] %vm381, %v2495
      %2528 = vst.msk [vmem:[#allocation4 + $0x80] sm:$0xff] %vm381, %v2496
      %2529 = vst.msk [vmem:[#allocation4 + $0x88] sm:$0xff] %vm381, %v2497
      %2530 = vst.msk [vmem:[#allocation4 + $0x90] sm:$0xff] %vm381, %v2498
      %2531 = vst.msk [vmem:[#allocation4 + $0x98] sm:$0xff] %vm381, %v2499
      %2532 = vst.msk [vmem:[#allocation4 + $0xa0] sm:$0xff] %vm381, %v2500
      %2533 = vst.msk [vmem:[#allocation4 + $0xa8] sm:$0xff] %vm381, %v2501
      %2534 = vst.msk [vmem:[#allocation4 + $0xb0] sm:$0xff] %vm381, %v2502
      %2535 = vst.msk [vmem:[#allocation4 + $0xb8] sm:$0xff] %vm381, %v2503
      %2536 = vst.msk [vmem:[#allocation4 + $0xc0] sm:$0xff] %vm381, %v2504
      %2537 = vst.msk [vmem:[#allocation4 + $0xc8] sm:$0xff] %vm381, %v2505
      %2538 = vst.msk [vmem:[#allocation4 + $0xd0] sm:$0xff] %vm381, %v2506
      %2539 = vst.msk [vmem:[#allocation4 + $0xd8] sm:$0xff] %vm381, %v2507
      %2540 = vst.msk [vmem:[#allocation4 + $0xe0] sm:$0xff] %vm381, %v2508
      %2541 = vst.msk [vmem:[#allocation4 + $0xe8] sm:$0xff] %vm381, %v2509
      %2542 = vst.msk [vmem:[#allocation4 + $0xf0] sm:$0xff] %vm381, %v2510
      %2543 = vst.msk [vmem:[#allocation4 + $0xf8] sm:$0xff] %vm381, %v2511
      %s2544 = scalar_lea.vmem [#allocation2], 48
      %v2545 = vld [vmem:[%s2544] sm:$0xff]
      %v2546 = vld [vmem:[%s2544 + $0x8] sm:$0xff]
      %v2547 = vld [vmem:[%s2544 + $0x18] sm:$0xff]
      %v2548 = vld [vmem:[%s2544 + $0x20] sm:$0xff]
      %v2549 = vld [vmem:[%s2544 + $0x30] sm:$0xff]
      %v2550 = vld [vmem:[%s2544 + $0x38] sm:$0xff]
      %v2551 = vld [vmem:[%s2544 + $0x48] sm:$0xff]
      %v2552 = vld [vmem:[%s2544 + $0x50] sm:$0xff]
      %v2553 = vld [vmem:[%s2544 + $0x60] sm:$0xff]
      %v2554 = vld [vmem:[%s2544 + $0x68] sm:$0xff]
      %v2555 = vld [vmem:[%s2544 + $0x78] sm:$0xff]
      %v2556 = vld [vmem:[%s2544 + $0x80] sm:$0xff]
      %v2557 = vld [vmem:[%s2544 + $0x90] sm:$0xff]
      %v2558 = vld [vmem:[%s2544 + $0x98] sm:$0xff]
      %v2559 = vld [vmem:[%s2544 + $0xa8] sm:$0xff]
      %v2560 = vld [vmem:[%s2544 + $0xb0] sm:$0xff]
      %v2561 = vld [vmem:[%s2544 + $0xc0] sm:$0xff]
      %v2562 = vld [vmem:[%s2544 + $0xc8] sm:$0xff]
      %v2563 = vld [vmem:[%s2544 + $0xd8] sm:$0xff]
      %v2564 = vld [vmem:[%s2544 + $0xe0] sm:$0xff]
      %v2565 = vld [vmem:[%s2544 + $0xf0] sm:$0xff]
      %v2566 = vld [vmem:[%s2544 + $0xf8] sm:$0xff]
      %v2567 = vld [vmem:[%s2544 + $0x108] sm:$0xff]
      %v2568 = vld [vmem:[%s2544 + $0x110] sm:$0xff]
      %v2569 = vld [vmem:[%s2544 + $0x120] sm:$0xff]
      %v2570 = vld [vmem:[%s2544 + $0x128] sm:$0xff]
      %v2571 = vld [vmem:[%s2544 + $0x138] sm:$0xff]
      %v2572 = vld [vmem:[%s2544 + $0x140] sm:$0xff]
      %v2573 = vld [vmem:[%s2544 + $0x150] sm:$0xff]
      %v2574 = vld [vmem:[%s2544 + $0x158] sm:$0xff]
      %v2575 = vld [vmem:[%s2544 + $0x168] sm:$0xff]
      %v2576 = vld [vmem:[%s2544 + $0x170] sm:$0xff]
      %v2577 = vpack.c.bf16 %v2546, %v2545
      %v2578 = vpack.c.bf16 %v2548, %v2547
      %v2579 = vpack.c.bf16 %v2550, %v2549
      %v2580 = vpack.c.bf16 %v2552, %v2551
      %v2581 = vpack.c.bf16 %v2554, %v2553
      %v2582 = vpack.c.bf16 %v2556, %v2555
      %v2583 = vpack.c.bf16 %v2558, %v2557
      %v2584 = vpack.c.bf16 %v2560, %v2559
      %v2585 = vpack.c.bf16 %v2562, %v2561
      %v2586 = vpack.c.bf16 %v2564, %v2563
      %v2587 = vpack.c.bf16 %v2566, %v2565
      %v2588 = vpack.c.bf16 %v2568, %v2567
      %v2589 = vpack.c.bf16 %v2570, %v2569
      %v2590 = vpack.c.bf16 %v2572, %v2571
      %v2591 = vpack.c.bf16 %v2574, %v2573
      %v2592 = vpack.c.bf16 %v2576, %v2575
      %s2593 = scalar_lea.vmem %s1, 12
      %v2594 = vld [vmem:[%s2593] sm:$0x3]
      %v2596 = vsel %vm381, %v2577, 0
      %v2599 = vsel %vm381, %v2578, 0
      %v2602 = vsel %vm381, %v2579, 0
      %v2605 = vsel %vm381, %v2580, 0
      %v2608 = vsel %vm381, %v2581, 0
      %v2611 = vsel %vm381, %v2582, 0
      %v2614 = vsel %vm381, %v2583, 0
      %v2617 = vsel %vm381, %v2584, 0
      %v2620 = vsel %vm381, %v2585, 0
      %v2623 = vsel %vm381, %v2586, 0
      %v2626 = vsel %vm381, %v2587, 0
      %v2629 = vsel %vm381, %v2588, 0
      %v2632 = vsel %vm381, %v2589, 0
      %v2635 = vsel %vm381, %v2590, 0
      %v2638 = vsel %vm381, %v2591, 0
      %v2641 = vsel %vm381, %v2592, 0
      %v2644 = vsel %vm557, %v2594, 0
      %2646 = vmatprep.subr.bf16.mxu0 0
      %2647 = vmatpush1.bf16.msra.mxu0 %v2644
      %2648 = vmatprep.subr.bf16.mxu0 0
      %2649 = vmatpush1.bf16.msra.mxu0 0
      %2650 = vmatprep.subr.bf16.mxu0 0
      %2651 = vmatpush1.bf16.msra.mxu0 0
      %2652 = vmatprep.subr.bf16.mxu0 0
      %2653 = vmatpush1.bf16.msra.mxu0 0
      %2654 = vmatprep.subr.bf16.mxu0 0
      %2655 = vmatpush1.bf16.msra.mxu0 0
      %2656 = vmatprep.subr.bf16.mxu0 0
      %2657 = vmatpush1.bf16.msra.mxu0 0
      %2658 = vmatprep.subr.bf16.mxu0 0
      %2659 = vmatpush1.bf16.msra.mxu0 0
      %2660 = vmatprep.subr.bf16.mxu0 0
      %2661 = vmatpush1.bf16.msra.mxu0 0
      %2662 = vmatprep.subr.bf16.mxu0 0
      %2663 = vmatpush1.bf16.msra.mxu0 0
      %2664 = vmatprep.subr.bf16.mxu0 0
      %2665 = vmatpush1.bf16.msra.mxu0 0
      %2666 = vmatprep.subr.bf16.mxu0 0
      %2667 = vmatpush1.bf16.msra.mxu0 0
      %2668 = vmatprep.subr.bf16.mxu0 0
      %2669 = vmatpush1.bf16.msra.mxu0 0
      %2670 = vmatprep.subr.bf16.mxu0 0
      %2671 = vmatpush1.bf16.msra.mxu0 0
      %2672 = vmatprep.subr.bf16.mxu0 0
      %2673 = vmatpush1.bf16.msra.mxu0 0
      %2674 = vmatprep.subr.bf16.mxu0 0
      %2675 = vmatpush1.bf16.msra.mxu0 0
      %2676 = vmatprep.subr.bf16.mxu0 0
      %2677 = vmatpush1.bf16.msra.mxu0 0
      %2678 = vmatprep.mubr.bf16.mxu0 0
      %2679 = vmatmul.mubr.bf16.gmra.mrb[0].mxu0 %v2596
      %v2680 = vpop.f32.mrb[0].mxu0
      %v2681 = vadd.f32 0.0, %v2680
      %v2682 = vpop.f32.mrb[0].mxu0
      %v2683 = vpop.f32.mrb[0].mxu0
      %v2684 = vadd.f32 0.0, %v2683
      %v2685 = vpop.f32.mrb[0].mxu0
      %2686 = vmatprep.mubr.bf16.mxu0 0
      %2687 = vmatmul.mubr.bf16.gmra.mrb[0].mxu0 %v2599
      %v2688 = vpop.f32.mrb[0].mxu0
      %v2689 = vadd.f32 0.0, %v2688
      %v2690 = vpop.f32.mrb[0].mxu0
      %v2691 = vpop.f32.mrb[0].mxu0
      %v2692 = vadd.f32 0.0, %v2691
      %v2693 = vpop.f32.mrb[0].mxu0
      %2694 = vmatprep.mubr.bf16.mxu0 0
      %2695 = vmatmul.mubr.bf16.gmra.mrb[0].mxu0 %v2602
      %v2696 = vpop.f32.mrb[0].mxu0
      %v2697 = vadd.f32 0.0, %v2696
      %v2698 = vpop.f32.mrb[0].mxu0
      %v2699 = vpop.f32.mrb[0].mxu0
      %v2700 = vadd.f32 0.0, %v2699
      %v2701 = vpop.f32.mrb[0].mxu0
      %2702 = vmatprep.mubr.bf16.mxu0 0
      %2703 = vmatmul.mubr.bf16.gmra.mrb[0].mxu0 %v2605
      %v2704 = vpop.f32.mrb[0].mxu0
      %v2705 = vadd.f32 0.0, %v2704
      %v2706 = vpop.f32.mrb[0].mxu0
      %v2707 = vpop.f32.mrb[0].mxu0
      %v2708 = vadd.f32 0.0, %v2707
      %v2709 = vpop.f32.mrb[0].mxu0
      %2710 = vmatprep.mubr.bf16.mxu0 0
      %2711 = vmatmul.mubr.bf16.gmra.mrb[0].mxu0 %v2608
      %v2712 = vpop.f32.mrb[0].mxu0
      %v2713 = vadd.f32 0.0, %v2712
      %v2714 = vpop.f32.mrb[0].mxu0
      %v2715 = vpop.f32.mrb[0].mxu0
      %v2716 = vadd.f32 0.0, %v2715
      %v2717 = vpop.f32.mrb[0].mxu0
      %2718 = vmatprep.mubr.bf16.mxu0 0
      %2719 = vmatmul.mubr.bf16.gmra.mrb[0].mxu0 %v2611
      %v2720 = vpop.f32.mrb[0].mxu0
      %v2721 = vadd.f32 0.0, %v2720
      %v2722 = vpop.f32.mrb[0].mxu0
      %v2723 = vpop.f32.mrb[0].mxu0
      %v2724 = vadd.f32 0.0, %v2723
      %v2725 = vpop.f32.mrb[0].mxu0
      %2726 = vmatprep.mubr.bf16.mxu0 0
      %2727 = vmatmul.mubr.bf16.gmra.mrb[0].mxu0 %v2614
      %v2728 = vpop.f32.mrb[0].mxu0
      %v2729 = vadd.f32 0.0, %v2728
      %v2730 = vpop.f32.mrb[0].mxu0
      %v2731 = vpop.f32.mrb[0].mxu0
      %v2732 = vadd.f32 0.0, %v2731
      %v2733 = vpop.f32.mrb[0].mxu0
      %2734 = vmatprep.mubr.bf16.mxu0 0
      %2735 = vmatmul.mubr.bf16.gmra.mrb[0].mxu0 %v2617
      %v2736 = vpop.f32.mrb[0].mxu0
      %v2737 = vadd.f32 0.0, %v2736
      %v2738 = vpop.f32.mrb[0].mxu0
      %v2739 = vpop.f32.mrb[0].mxu0
      %v2740 = vadd.f32 0.0, %v2739
      %v2741 = vpop.f32.mrb[0].mxu0
      %2742 = vmatprep.mubr.bf16.mxu0 0
      %2743 = vmatmul.mubr.bf16.gmra.mrb[0].mxu0 %v2620
      %v2744 = vpop.f32.mrb[0].mxu0
      %v2745 = vadd.f32 0.0, %v2744
      %v2746 = vpop.f32.mrb[0].mxu0
      %v2747 = vpop.f32.mrb[0].mxu0
      %v2748 = vadd.f32 0.0, %v2747
      %v2749 = vpop.f32.mrb[0].mxu0
      %2750 = vmatprep.mubr.bf16.mxu0 0
      %2751 = vmatmul.mubr.bf16.gmra.mrb[0].mxu0 %v2623
      %v2752 = vpop.f32.mrb[0].mxu0
      %v2753 = vadd.f32 0.0, %v2752
      %v2754 = vpop.f32.mrb[0].mxu0
      %v2755 = vpop.f32.mrb[0].mxu0
      %v2756 = vadd.f32 0.0, %v2755
      %v2757 = vpop.f32.mrb[0].mxu0
      %2758 = vmatprep.mubr.bf16.mxu0 0
      %2759 = vmatmul.mubr.bf16.gmra.mrb[0].mxu0 %v2626
      %v2760 = vpop.f32.mrb[0].mxu0
      %v2761 = vadd.f32 0.0, %v2760
      %v2762 = vpop.f32.mrb[0].mxu0
      %v2763 = vpop.f32.mrb[0].mxu0
      %v2764 = vadd.f32 0.0, %v2763
      %v2765 = vpop.f32.mrb[0].mxu0
      %2766 = vmatprep.mubr.bf16.mxu0 0
      %2767 = vmatmul.mubr.bf16.gmra.mrb[0].mxu0 %v2629
      %v2768 = vpop.f32.mrb[0].mxu0
      %v2769 = vadd.f32 0.0, %v2768
      %v2770 = vpop.f32.mrb[0].mxu0
      %v2771 = vpop.f32.mrb[0].mxu0
      %v2772 = vadd.f32 0.0, %v2771
      %v2773 = vpop.f32.mrb[0].mxu0
      %2774 = vmatprep.mubr.bf16.mxu0 0
      %2775 = vmatmul.mubr.bf16.gmra.mrb[0].mxu0 %v2632
      %v2776 = vpop.f32.mrb[0].mxu0
      %v2777 = vadd.f32 0.0, %v2776
      %v2778 = vpop.f32.mrb[0].mxu0
      %v2779 = vpop.f32.mrb[0].mxu0
      %v2780 = vadd.f32 0.0, %v2779
      %v2781 = vpop.f32.mrb[0].mxu0
      %2782 = vmatprep.mubr.bf16.mxu0 0
      %2783 = vmatmul.mubr.bf16.gmra.mrb[0].mxu0 %v2635
      %v2784 = vpop.f32.mrb[0].mxu0
      %v2785 = vadd.f32 0.0, %v2784
      %v2786 = vpop.f32.mrb[0].mxu0
      %v2787 = vpop.f32.mrb[0].mxu0
      %v2788 = vadd.f32 0.0, %v2787
      %v2789 = vpop.f32.mrb[0].mxu0
      %2790 = vmatprep.mubr.bf16.mxu0 0
      %2791 = vmatmul.mubr.bf16.gmra.mrb[0].mxu0 %v2638
      %v2792 = vpop.f32.mrb[0].mxu0
      %v2793 = vadd.f32 0.0, %v2792
      %v2794 = vpop.f32.mrb[0].mxu0
      %v2795 = vpop.f32.mrb[0].mxu0
      %v2796 = vadd.f32 0.0, %v2795
      %v2797 = vpop.f32.mrb[0].mxu0
      %2798 = vmatprep.mubr.bf16.mxu0 0
      %2799 = vmatmul.mubr.bf16.gmra.mrb[0].mxu0 %v2641
      %v2800 = vpop.f32.mrb[0].mxu0
      %v2801 = vadd.f32 0.0, %v2800
      %v2802 = vpop.f32.mrb[0].mxu0
      %v2803 = vpop.f32.mrb[0].mxu0
      %v2804 = vadd.f32 0.0, %v2803
      %v2805 = vpop.f32.mrb[0].mxu0
      %2806 = vdwg.mxu0
      %v2807 = vld [vmem:[#allocation4] sm:$0xff]
      %v2808 = vld [vmem:[#allocation4 + $0x8] sm:$0xff]
      %v2809 = vld [vmem:[#allocation4 + $0x10] sm:$0xff]
      %v2810 = vld [vmem:[#allocation4 + $0x18] sm:$0xff]
      %v2811 = vld [vmem:[#allocation4 + $0x20] sm:$0xff]
      %v2812 = vld [vmem:[#allocation4 + $0x28] sm:$0xff]
      %v2813 = vld [vmem:[#allocation4 + $0x30] sm:$0xff]
      %v2814 = vld [vmem:[#allocation4 + $0x38] sm:$0xff]
      %v2815 = vld [vmem:[#allocation4 + $0x40] sm:$0xff]
      %v2816 = vld [vmem:[#allocation4 + $0x48] sm:$0xff]
      %v2817 = vld [vmem:[#allocation4 + $0x50] sm:$0xff]
      %v2818 = vld [vmem:[#allocation4 + $0x58] sm:$0xff]
      %v2819 = vld [vmem:[#allocation4 + $0x60] sm:$0xff]
      %v2820 = vld [vmem:[#allocation4 + $0x68] sm:$0xff]
      %v2821 = vld [vmem:[#allocation4 + $0x70] sm:$0xff]
      %v2822 = vld [vmem:[#allocation4 + $0x78] sm:$0xff]
      %v2823 = vld [vmem:[#allocation4 + $0x80] sm:$0xff]
      %v2824 = vld [vmem:[#allocation4 + $0x88] sm:$0xff]
      %v2825 = vld [vmem:[#allocation4 + $0x90] sm:$0xff]
      %v2826 = vld [vmem:[#allocation4 + $0x98] sm:$0xff]
      %v2827 = vld [vmem:[#allocation4 + $0xa0] sm:$0xff]
      %v2828 = vld [vmem:[#allocation4 + $0xa8] sm:$0xff]
      %v2829 = vld [vmem:[#allocation4 + $0xb0] sm:$0xff]
      %v2830 = vld [vmem:[#allocation4 + $0xb8] sm:$0xff]
      %v2831 = vld [vmem:[#allocation4 + $0xc0] sm:$0xff]
      %v2832 = vld [vmem:[#allocation4 + $0xc8] sm:$0xff]
      %v2833 = vld [vmem:[#allocation4 + $0xd0] sm:$0xff]
      %v2834 = vld [vmem:[#allocation4 + $0xd8] sm:$0xff]
      %v2835 = vld [vmem:[#allocation4 + $0xe0] sm:$0xff]
      %v2836 = vld [vmem:[#allocation4 + $0xe8] sm:$0xff]
      %v2837 = vld [vmem:[#allocation4 + $0xf0] sm:$0xff]
      %v2838 = vld [vmem:[#allocation4 + $0xf8] sm:$0xff]
      %v2839 = vadd.f32 %v2807, %v2681
      %v2840 = vadd.f32 %v2808, %v2684
      %v2841 = vadd.f32 %v2809, %v2689
      %v2842 = vadd.f32 %v2810, %v2692
      %v2843 = vadd.f32 %v2811, %v2697
      %v2844 = vadd.f32 %v2812, %v2700
      %v2845 = vadd.f32 %v2813, %v2705
      %v2846 = vadd.f32 %v2814, %v2708
      %v2847 = vadd.f32 %v2815, %v2713
      %v2848 = vadd.f32 %v2816, %v2716
      %v2849 = vadd.f32 %v2817, %v2721
      %v2850 = vadd.f32 %v2818, %v2724
      %v2851 = vadd.f32 %v2819, %v2729
      %v2852 = vadd.f32 %v2820, %v2732
      %v2853 = vadd.f32 %v2821, %v2737
      %v2854 = vadd.f32 %v2822, %v2740
      %v2855 = vadd.f32 %v2823, %v2745
      %v2856 = vadd.f32 %v2824, %v2748
      %v2857 = vadd.f32 %v2825, %v2753
      %v2858 = vadd.f32 %v2826, %v2756
      %v2859 = vadd.f32 %v2827, %v2761
      %v2860 = vadd.f32 %v2828, %v2764
      %v2861 = vadd.f32 %v2829, %v2769
      %v2862 = vadd.f32 %v2830, %v2772
      %v2863 = vadd.f32 %v2831, %v2777
      %v2864 = vadd.f32 %v2832, %v2780
      %v2865 = vadd.f32 %v2833, %v2785
      %v2866 = vadd.f32 %v2834, %v2788
      %v2867 = vadd.f32 %v2835, %v2793
      %v2868 = vadd.f32 %v2836, %v2796
      %v2869 = vadd.f32 %v2837, %v2801
      %v2870 = vadd.f32 %v2838, %v2804
      %2871 = vst.msk [vmem:[#allocation4] sm:$0xff] %vm381, %v2839
      %2872 = vst.msk [vmem:[#allocation4 + $0x8] sm:$0xff] %vm381, %v2840
      %2873 = vst.msk [vmem:[#allocation4 + $0x10] sm:$0xff] %vm381, %v2841
      %2874 = vst.msk [vmem:[#allocation4 + $0x18] sm:$0xff] %vm381, %v2842
      %2875 = vst.msk [vmem:[#allocation4 + $0x20] sm:$0xff] %vm381, %v2843
      %2876 = vst.msk [vmem:[#allocation4 + $0x28] sm:$0xff] %vm381, %v2844
      %2877 = vst.msk [vmem:[#allocation4 + $0x30] sm:$0xff] %vm381, %v2845
      %2878 = vst.msk [vmem:[#allocation4 + $0x38] sm:$0xff] %vm381, %v2846
      %2879 = vst.msk [vmem:[#allocation4 + $0x40] sm:$0xff] %vm381, %v2847
      %2880 = vst.msk [vmem:[#allocation4 + $0x48] sm:$0xff] %vm381, %v2848
      %2881 = vst.msk [vmem:[#allocation4 + $0x50] sm:$0xff] %vm381, %v2849
      %2882 = vst.msk [vmem:[#allocation4 + $0x58] sm:$0xff] %vm381, %v2850
      %2883 = vst.msk [vmem:[#allocation4 + $0x60] sm:$0xff] %vm381, %v2851
      %2884 = vst.msk [vmem:[#allocation4 + $0x68] sm:$0xff] %vm381, %v2852
      %2885 = vst.msk [vmem:[#allocation4 + $0x70] sm:$0xff] %vm381, %v2853
      %2886 = vst.msk [vmem:[#allocation4 + $0x78] sm:$0xff] %vm381, %v2854
      %2887 = vst.msk [vmem:[#allocation4 + $0x80] sm:$0xff] %vm381, %v2855
      %2888 = vst.msk [vmem:[#allocation4 + $0x88] sm:$0xff] %vm381, %v2856
      %2889 = vst.msk [vmem:[#allocation4 + $0x90] sm:$0xff] %vm381, %v2857
      %2890 = vst.msk [vmem:[#allocation4 + $0x98] sm:$0xff] %vm381, %v2858
      %2891 = vst.msk [vmem:[#allocation4 + $0xa0] sm:$0xff] %vm381, %v2859
      %2892 = vst.msk [vmem:[#allocation4 + $0xa8] sm:$0xff] %vm381, %v2860
      %2893 = vst.msk [vmem:[#allocation4 + $0xb0] sm:$0xff] %vm381, %v2861
      %2894 = vst.msk [vmem:[#allocation4 + $0xb8] sm:$0xff] %vm381, %v2862
      %2895 = vst.msk [vmem:[#allocation4 + $0xc0] sm:$0xff] %vm381, %v2863
      %2896 = vst.msk [vmem:[#allocation4 + $0xc8] sm:$0xff] %vm381, %v2864
      %2897 = vst.msk [vmem:[#allocation4 + $0xd0] sm:$0xff] %vm381, %v2865
      %2898 = vst.msk [vmem:[#allocation4 + $0xd8] sm:$0xff] %vm381, %v2866
      %2899 = vst.msk [vmem:[#allocation4 + $0xe0] sm:$0xff] %vm381, %v2867
      %2900 = vst.msk [vmem:[#allocation4 + $0xe8] sm:$0xff] %vm381, %v2868
      %2901 = vst.msk [vmem:[#allocation4 + $0xf0] sm:$0xff] %vm381, %v2869
      %2902 = vst.msk [vmem:[#allocation4 + $0xf8] sm:$0xff] %vm381, %v2870
      %v2903 = vld [vmem:[%s2544 + $0x1] sm:$0xff]
      %v2904 = vld [vmem:[%s2544 + $0x9] sm:$0xff]
      %v2905 = vld [vmem:[%s2544 + $0x19] sm:$0xff]
      %v2906 = vld [vmem:[%s2544 + $0x21] sm:$0xff]
      %v2907 = vld [vmem:[%s2544 + $0x31] sm:$0xff]
      %v2908 = vld [vmem:[%s2544 + $0x39] sm:$0xff]
      %v2909 = vld [vmem:[%s2544 + $0x49] sm:$0xff]
      %v2910 = vld [vmem:[%s2544 + $0x51] sm:$0xff]
      %v2911 = vld [vmem:[%s2544 + $0x61] sm:$0xff]
      %v2912 = vld [vmem:[%s2544 + $0x69] sm:$0xff]
      %v2913 = vld [vmem:[%s2544 + $0x79] sm:$0xff]
      %v2914 = vld [vmem:[%s2544 + $0x81] sm:$0xff]
      %v2915 = vld [vmem:[%s2544 + $0x91] sm:$0xff]
      %v2916 = vld [vmem:[%s2544 + $0x99] sm:$0xff]
      %v2917 = vld [vmem:[%s2544 + $0xa9] sm:$0xff]
      %v2918 = vld [vmem:[%s2544 + $0xb1] sm:$0xff]
      %v2919 = vld [vmem:[%s2544 + $0xc1] sm:$0xff]
      %v2920 = vld [vmem:[%s2544 + $0xc9] sm:$0xff]
      %v2921 = vld [vmem:[%s2544 + $0xd9] sm:$0xff]
      %v2922 = vld [vmem:[%s2544 + $0xe1] sm:$0xff]
      %v2923 = vld [vmem:[%s2544 + $0xf1] sm:$0xff]
      %v2924 = vld [vmem:[%s2544 + $0xf9] sm:$0xff]
      %v2925 = vld [vmem:[%s2544 + $0x109] sm:$0xff]
      %v2926 = vld [vmem:[%s2544 + $0x111] sm:$0xff]
      %v2927 = vld [vmem:[%s2544 + $0x121] sm:$0xff]
      %v2928 = vld [vmem:[%s2544 + $0x129] sm:$0xff]
      %v2929 = vld [vmem:[%s2544 + $0x139] sm:$0xff]
      %v2930 = vld [vmem:[%s2544 + $0x141] sm:$0xff]
      %v2931 = vld [vmem:[%s2544 + $0x151] sm:$0xff]
      %v2932 = vld [vmem:[%s2544 + $0x159] sm:$0xff]
      %v2933 = vld [vmem:[%s2544 + $0x169] sm:$0xff]
      %v2934 = vld [vmem:[%s2544 + $0x171] sm:$0xff]
      %v2935 = vpack.c.bf16 %v2904, %v2903
      %v2936 = vpack.c.bf16 %v2906, %v2905
      %v2937 = vpack.c.bf16 %v2908, %v2907
      %v2938 = vpack.c.bf16 %v2910, %v2909
      %v2939 = vpack.c.bf16 %v2912, %v2911
      %v2940 = vpack.c.bf16 %v2914, %v2913
      %v2941 = vpack.c.bf16 %v2916, %v2915
      %v2942 = vpack.c.bf16 %v2918, %v2917
      %v2943 = vpack.c.bf16 %v2920, %v2919
      %v2944 = vpack.c.bf16 %v2922, %v2921
      %v2945 = vpack.c.bf16 %v2924, %v2923
      %v2946 = vpack.c.bf16 %v2926, %v2925
      %v2947 = vpack.c.bf16 %v2928, %v2927
      %v2948 = vpack.c.bf16 %v2930, %v2929
      %v2949 = vpack.c.bf16 %v2932, %v2931
      %v2950 = vpack.c.bf16 %v2934, %v2933
      %s2951 = scalar_lea.vmem %s1, 14
      %v2952 = vld [vmem:[%s2951] sm:$0x3]
      %v2954 = vsel %vm381, %v2935, 0
      %v2957 = vsel %vm381, %v2936, 0
      %v2960 = vsel %vm381, %v2937, 0
      %v2963 = vsel %vm381, %v2938, 0
      %v2966 = vsel %vm381, %v2939, 0
      %v2969 = vsel %vm381, %v2940, 0
      %v2972 = vsel %vm381, %v2941, 0
      %v2975 = vsel %vm381, %v2942, 0
      %v2978 = vsel %vm381, %v2943, 0
      %v2981 = vsel %vm381, %v2944, 0
      %v2984 = vsel %vm381, %v2945, 0
      %v2987 = vsel %vm381, %v2946, 0
      %v2990 = vsel %vm381, %v2947, 0
      %v2993 = vsel %vm381, %v2948, 0
      %v2996 = vsel %vm381, %v2949, 0
      %v2999 = vsel %vm381, %v2950, 0
      %v3002 = vsel %vm557, %v2952, 0
      %3004 = vmatprep.subr.bf16.mxu0 0
      %3005 = vmatpush1.bf16.msra.mxu0 %v3002
      %3006 = vmatprep.subr.bf16.mxu0 0
      %3007 = vmatpush1.bf16.msra.mxu0 0
      %3008 = vmatprep.subr.bf16.mxu0 0
      %3009 = vmatpush1.bf16.msra.mxu0 0
      %3010 = vmatprep.subr.bf16.mxu0 0
      %3011 = vmatpush1.bf16.msra.mxu0 0
      %3012 = vmatprep.subr.bf16.mxu0 0
      %3013 = vmatpush1.bf16.msra.mxu0 0
      %3014 = vmatprep.subr.bf16.mxu0 0
      %3015 = vmatpush1.bf16.msra.mxu0 0
      %3016 = vmatprep.subr.bf16.mxu0 0
      %3017 = vmatpush1.bf16.msra.mxu0 0
      %3018 = vmatprep.subr.bf16.mxu0 0
      %3019 = vmatpush1.bf16.msra.mxu0 0
      %3020 = vmatprep.subr.bf16.mxu0 0
      %3021 = vmatpush1.bf16.msra.mxu0 0
      %3022 = vmatprep.subr.bf16.mxu0 0
      %3023 = vmatpush1.bf16.msra.mxu0 0
      %3024 = vmatprep.subr.bf16.mxu0 0
      %3025 = vmatpush1.bf16.msra.mxu0 0
      %3026 = vmatprep.subr.bf16.mxu0 0
      %3027 = vmatpush1.bf16.msra.mxu0 0
      %3028 = vmatprep.subr.bf16.mxu0 0
      %3029 = vmatpush1.bf16.msra.mxu0 0
      %3030 = vmatprep.subr.bf16.mxu0 0
      %3031 = vmatpush1.bf16.msra.mxu0 0
      %3032 = vmatprep.subr.bf16.mxu0 0
      %3033 = vmatpush1.bf16.msra.mxu0 0
      %3034 = vmatprep.subr.bf16.mxu0 0
      %3035 = vmatpush1.bf16.msra.mxu0 0
      %3036 = vmatprep.mubr.bf16.mxu0 0
      %3037 = vmatmul.mubr.bf16.gmra.mrb[0].mxu0 %v2954
      %v3038 = vpop.f32.mrb[0].mxu0
      %v3039 = vadd.f32 0.0, %v3038
      %v3040 = vpop.f32.mrb[0].mxu0
      %v3041 = vpop.f32.mrb[0].mxu0
      %v3042 = vadd.f32 0.0, %v3041
      %v3043 = vpop.f32.mrb[0].mxu0
      %3044 = vmatprep.mubr.bf16.mxu0 0
      %3045 = vmatmul.mubr.bf16.gmra.mrb[0].mxu0 %v2957
      %v3046 = vpop.f32.mrb[0].mxu0
      %v3047 = vadd.f32 0.0, %v3046
      %v3048 = vpop.f32.mrb[0].mxu0
      %v3049 = vpop.f32.mrb[0].mxu0
      %v3050 = vadd.f32 0.0, %v3049
      %v3051 = vpop.f32.mrb[0].mxu0
      %3052 = vmatprep.mubr.bf16.mxu0 0
      %3053 = vmatmul.mubr.bf16.gmra.mrb[0].mxu0 %v2960
      %v3054 = vpop.f32.mrb[0].mxu0
      %v3055 = vadd.f32 0.0, %v3054
      %v3056 = vpop.f32.mrb[0].mxu0
      %v3057 = vpop.f32.mrb[0].mxu0
      %v3058 = vadd.f32 0.0, %v3057
      %v3059 = vpop.f32.mrb[0].mxu0
      %3060 = vmatprep.mubr.bf16.mxu0 0
      %3061 = vmatmul.mubr.bf16.gmra.mrb[0].mxu0 %v2963
      %v3062 = vpop.f32.mrb[0].mxu0
      %v3063 = vadd.f32 0.0, %v3062
      %v3064 = vpop.f32.mrb[0].mxu0
      %v3065 = vpop.f32.mrb[0].mxu0
      %v3066 = vadd.f32 0.0, %v3065
      %v3067 = vpop.f32.mrb[0].mxu0
      %3068 = vmatprep.mubr.bf16.mxu0 0
      %3069 = vmatmul.mubr.bf16.gmra.mrb[0].mxu0 %v2966
      %v3070 = vpop.f32.mrb[0].mxu0
      %v3071 = vadd.f32 0.0, %v3070
      %v3072 = vpop.f32.mrb[0].mxu0
      %v3073 = vpop.f32.mrb[0].mxu0
      %v3074 = vadd.f32 0.0, %v3073
      %v3075 = vpop.f32.mrb[0].mxu0
      %3076 = vmatprep.mubr.bf16.mxu0 0
      %3077 = vmatmul.mubr.bf16.gmra.mrb[0].mxu0 %v2969
      %v3078 = vpop.f32.mrb[0].mxu0
      %v3079 = vadd.f32 0.0, %v3078
      %v3080 = vpop.f32.mrb[0].mxu0
      %v3081 = vpop.f32.mrb[0].mxu0
      %v3082 = vadd.f32 0.0, %v3081
      %v3083 = vpop.f32.mrb[0].mxu0
      %3084 = vmatprep.mubr.bf16.mxu0 0
      %3085 = vmatmul.mubr.bf16.gmra.mrb[0].mxu0 %v2972
      %v3086 = vpop.f32.mrb[0].mxu0
      %v3087 = vadd.f32 0.0, %v3086
      %v3088 = vpop.f32.mrb[0].mxu0
      %v3089 = vpop.f32.mrb[0].mxu0
      %v3090 = vadd.f32 0.0, %v3089
      %v3091 = vpop.f32.mrb[0].mxu0
      %3092 = vmatprep.mubr.bf16.mxu0 0
      %3093 = vmatmul.mubr.bf16.gmra.mrb[0].mxu0 %v2975
      %v3094 = vpop.f32.mrb[0].mxu0
      %v3095 = vadd.f32 0.0, %v3094
      %v3096 = vpop.f32.mrb[0].mxu0
      %v3097 = vpop.f32.mrb[0].mxu0
      %v3098 = vadd.f32 0.0, %v3097
      %v3099 = vpop.f32.mrb[0].mxu0
      %3100 = vmatprep.mubr.bf16.mxu0 0
      %3101 = vmatmul.mubr.bf16.gmra.mrb[0].mxu0 %v2978
      %v3102 = vpop.f32.mrb[0].mxu0
      %v3103 = vadd.f32 0.0, %v3102
      %v3104 = vpop.f32.mrb[0].mxu0
      %v3105 = vpop.f32.mrb[0].mxu0
      %v3106 = vadd.f32 0.0, %v3105
      %v3107 = vpop.f32.mrb[0].mxu0
      %3108 = vmatprep.mubr.bf16.mxu0 0
      %3109 = vmatmul.mubr.bf16.gmra.mrb[0].mxu0 %v2981
      %v3110 = vpop.f32.mrb[0].mxu0
      %v3111 = vadd.f32 0.0, %v3110
      %v3112 = vpop.f32.mrb[0].mxu0
      %v3113 = vpop.f32.mrb[0].mxu0
      %v3114 = vadd.f32 0.0, %v3113
      %v3115 = vpop.f32.mrb[0].mxu0
      %3116 = vmatprep.mubr.bf16.mxu0 0
      %3117 = vmatmul.mubr.bf16.gmra.mrb[0].mxu0 %v2984
      %v3118 = vpop.f32.mrb[0].mxu0
      %v3119 = vadd.f32 0.0, %v3118
      %v3120 = vpop.f32.mrb[0].mxu0
      %v3121 = vpop.f32.mrb[0].mxu0
      %v3122 = vadd.f32 0.0, %v3121
      %v3123 = vpop.f32.mrb[0].mxu0
      %3124 = vmatprep.mubr.bf16.mxu0 0
      %3125 = vmatmul.mubr.bf16.gmra.mrb[0].mxu0 %v2987
      %v3126 = vpop.f32.mrb[0].mxu0
      %v3127 = vadd.f32 0.0, %v3126
      %v3128 = vpop.f32.mrb[0].mxu0
      %v3129 = vpop.f32.mrb[0].mxu0
      %v3130 = vadd.f32 0.0, %v3129
      %v3131 = vpop.f32.mrb[0].mxu0
      %3132 = vmatprep.mubr.bf16.mxu0 0
      %3133 = vmatmul.mubr.bf16.gmra.mrb[0].mxu0 %v2990
      %v3134 = vpop.f32.mrb[0].mxu0
      %v3135 = vadd.f32 0.0, %v3134
      %v3136 = vpop.f32.mrb[0].mxu0
      %v3137 = vpop.f32.mrb[0].mxu0
      %v3138 = vadd.f32 0.0, %v3137
      %v3139 = vpop.f32.mrb[0].mxu0
      %3140 = vmatprep.mubr.bf16.mxu0 0
      %3141 = vmatmul.mubr.bf16.gmra.mrb[0].mxu0 %v2993
      %v3142 = vpop.f32.mrb[0].mxu0
      %v3143 = vadd.f32 0.0, %v3142
      %v3144 = vpop.f32.mrb[0].mxu0
      %v3145 = vpop.f32.mrb[0].mxu0
      %v3146 = vadd.f32 0.0, %v3145
      %v3147 = vpop.f32.mrb[0].mxu0
      %3148 = vmatprep.mubr.bf16.mxu0 0
      %3149 = vmatmul.mubr.bf16.gmra.mrb[0].mxu0 %v2996
      %v3150 = vpop.f32.mrb[0].mxu0
      %v3151 = vadd.f32 0.0, %v3150
      %v3152 = vpop.f32.mrb[0].mxu0
      %v3153 = vpop.f32.mrb[0].mxu0
      %v3154 = vadd.f32 0.0, %v3153
      %v3155 = vpop.f32.mrb[0].mxu0
      %3156 = vmatprep.mubr.bf16.mxu0 0
      %3157 = vmatmul.mubr.bf16.gmra.mrb[0].mxu0 %v2999
      %v3158 = vpop.f32.mrb[0].mxu0
      %v3159 = vadd.f32 0.0, %v3158
      %v3160 = vpop.f32.mrb[0].mxu0
      %v3161 = vpop.f32.mrb[0].mxu0
      %v3162 = vadd.f32 0.0, %v3161
      %v3163 = vpop.f32.mrb[0].mxu0
      %3164 = vdwg.mxu0
      %v3165 = vld [vmem:[#allocation4] sm:$0xff]
      %v3166 = vld [vmem:[#allocation4 + $0x8] sm:$0xff]
      %v3167 = vld [vmem:[#allocation4 + $0x10] sm:$0xff]
      %v3168 = vld [vmem:[#allocation4 + $0x18] sm:$0xff]
      %v3169 = vld [vmem:[#allocation4 + $0x20] sm:$0xff]
      %v3170 = vld [vmem:[#allocation4 + $0x28] sm:$0xff]
      %v3171 = vld [vmem:[#allocation4 + $0x30] sm:$0xff]
      %v3172 = vld [vmem:[#allocation4 + $0x38] sm:$0xff]
      %v3173 = vld [vmem:[#allocation4 + $0x40] sm:$0xff]
      %v3174 = vld [vmem:[#allocation4 + $0x48] sm:$0xff]
      %v3175 = vld [vmem:[#allocation4 + $0x50] sm:$0xff]
      %v3176 = vld [vmem:[#allocation4 + $0x58] sm:$0xff]
      %v3177 = vld [vmem:[#allocation4 + $0x60] sm:$0xff]
      %v3178 = vld [vmem:[#allocation4 + $0x68] sm:$0xff]
      %v3179 = vld [vmem:[#allocation4 + $0x70] sm:$0xff]
      %v3180 = vld [vmem:[#allocation4 + $0x78] sm:$0xff]
      %v3181 = vld [vmem:[#allocation4 + $0x80] sm:$0xff]
      %v3182 = vld [vmem:[#allocation4 + $0x88] sm:$0xff]
      %v3183 = vld [vmem:[#allocation4 + $0x90] sm:$0xff]
      %v3184 = vld [vmem:[#allocation4 + $0x98] sm:$0xff]
      %v3185 = vld [vmem:[#allocation4 + $0xa0] sm:$0xff]
      %v3186 = vld [vmem:[#allocation4 + $0xa8] sm:$0xff]
      %v3187 = vld [vmem:[#allocation4 + $0xb0] sm:$0xff]
      %v3188 = vld [vmem:[#allocation4 + $0xb8] sm:$0xff]
      %v3189 = vld [vmem:[#allocation4 + $0xc0] sm:$0xff]
      %v3190 = vld [vmem:[#allocation4 + $0xc8] sm:$0xff]
      %v3191 = vld [vmem:[#allocation4 + $0xd0] sm:$0xff]
      %v3192 = vld [vmem:[#allocation4 + $0xd8] sm:$0xff]
      %v3193 = vld [vmem:[#allocation4 + $0xe0] sm:$0xff]
      %v3194 = vld [vmem:[#allocation4 + $0xe8] sm:$0xff]
      %v3195 = vld [vmem:[#allocation4 + $0xf0] sm:$0xff]
      %v3196 = vld [vmem:[#allocation4 + $0xf8] sm:$0xff]
      %v3197 = vadd.f32 %v3165, %v3039
      %v3198 = vadd.f32 %v3166, %v3042
      %v3199 = vadd.f32 %v3167, %v3047
      %v3200 = vadd.f32 %v3168, %v3050
      %v3201 = vadd.f32 %v3169, %v3055
      %v3202 = vadd.f32 %v3170, %v3058
      %v3203 = vadd.f32 %v3171, %v3063
      %v3204 = vadd.f32 %v3172, %v3066
      %v3205 = vadd.f32 %v3173, %v3071
      %v3206 = vadd.f32 %v3174, %v3074
      %v3207 = vadd.f32 %v3175, %v3079
      %v3208 = vadd.f32 %v3176, %v3082
      %v3209 = vadd.f32 %v3177, %v3087
      %v3210 = vadd.f32 %v3178, %v3090
      %v3211 = vadd.f32 %v3179, %v3095
      %v3212 = vadd.f32 %v3180, %v3098
      %v3213 = vadd.f32 %v3181, %v3103
      %v3214 = vadd.f32 %v3182, %v3106
      %v3215 = vadd.f32 %v3183, %v3111
      %v3216 = vadd.f32 %v3184, %v3114
      %v3217 = vadd.f32 %v3185, %v3119
      %v3218 = vadd.f32 %v3186, %v3122
      %v3219 = vadd.f32 %v3187, %v3127
      %v3220 = vadd.f32 %v3188, %v3130
      %v3221 = vadd.f32 %v3189, %v3135
      %v3222 = vadd.f32 %v3190, %v3138
      %v3223 = vadd.f32 %v3191, %v3143
      %v3224 = vadd.f32 %v3192, %v3146
      %v3225 = vadd.f32 %v3193, %v3151
      %v3226 = vadd.f32 %v3194, %v3154
      %v3227 = vadd.f32 %v3195, %v3159
      %v3228 = vadd.f32 %v3196, %v3162
      %3229 = vst.msk [vmem:[#allocation4] sm:$0xff] %vm381, %v3197
      %3230 = vst.msk [vmem:[#allocation4 + $0x8] sm:$0xff] %vm381, %v3198
      %3231 = vst.msk [vmem:[#allocation4 + $0x10] sm:$0xff] %vm381, %v3199
      %3232 = vst.msk [vmem:[#allocation4 + $0x18] sm:$0xff] %vm381, %v3200
      %3233 = vst.msk [vmem:[#allocation4 + $0x20] sm:$0xff] %vm381, %v3201
      %3234 = vst.msk [vmem:[#allocation4 + $0x28] sm:$0xff] %vm381, %v3202
      %3235 = vst.msk [vmem:[#allocation4 + $0x30] sm:$0xff] %vm381, %v3203
      %3236 = vst.msk [vmem:[#allocation4 + $0x38] sm:$0xff] %vm381, %v3204
      %3237 = vst.msk [vmem:[#allocation4 + $0x40] sm:$0xff] %vm381, %v3205
      %3238 = vst.msk [vmem:[#allocation4 + $0x48] sm:$0xff] %vm381, %v3206
      %3239 = vst.msk [vmem:[#allocation4 + $0x50] sm:$0xff] %vm381, %v3207
      %3240 = vst.msk [vmem:[#allocation4 + $0x58] sm:$0xff] %vm381, %v3208
      %3241 = vst.msk [vmem:[#allocation4 + $0x60] sm:$0xff] %vm381, %v3209
      %3242 = vst.msk [vmem:[#allocation4 + $0x68] sm:$0xff] %vm381, %v3210
      %3243 = vst.msk [vmem:[#allocation4 + $0x70] sm:$0xff] %vm381, %v3211
      %3244 = vst.msk [vmem:[#allocation4 + $0x78] sm:$0xff] %vm381, %v3212
      %3245 = vst.msk [vmem:[#allocation4 + $0x80] sm:$0xff] %vm381, %v3213
      %3246 = vst.msk [vmem:[#allocation4 + $0x88] sm:$0xff] %vm381, %v3214
      %3247 = vst.msk [vmem:[#allocation4 + $0x90] sm:$0xff] %vm381, %v3215
      %3248 = vst.msk [vmem:[#allocation4 + $0x98] sm:$0xff] %vm381, %v3216
      %3249 = vst.msk [vmem:[#allocation4 + $0xa0] sm:$0xff] %vm381, %v3217
      %3250 = vst.msk [vmem:[#allocation4 + $0xa8] sm:$0xff] %vm381, %v3218
      %3251 = vst.msk [vmem:[#allocation4 + $0xb0] sm:$0xff] %vm381, %v3219
      %3252 = vst.msk [vmem:[#allocation4 + $0xb8] sm:$0xff] %vm381, %v3220
      %3253 = vst.msk [vmem:[#allocation4 + $0xc0] sm:$0xff] %vm381, %v3221
      %3254 = vst.msk [vmem:[#allocation4 + $0xc8] sm:$0xff] %vm381, %v3222
      %3255 = vst.msk [vmem:[#allocation4 + $0xd0] sm:$0xff] %vm381, %v3223
      %3256 = vst.msk [vmem:[#allocation4 + $0xd8] sm:$0xff] %vm381, %v3224
      %3257 = vst.msk [vmem:[#allocation4 + $0xe0] sm:$0xff] %vm381, %v3225
      %3258 = vst.msk [vmem:[#allocation4 + $0xe8] sm:$0xff] %vm381, %v3226
      %3259 = vst.msk [vmem:[#allocation4 + $0xf0] sm:$0xff] %vm381, %v3227
      %3260 = vst.msk [vmem:[#allocation4 + $0xf8] sm:$0xff] %vm381, %v3228
      %v3261 = vld [vmem:[%s2544 + $0x2] sm:$0xff]
      %v3262 = vld [vmem:[%s2544 + $0xa] sm:$0xff]
      %v3263 = vld [vmem:[%s2544 + $0x1a] sm:$0xff]
      %v3264 = vld [vmem:[%s2544 + $0x22] sm:$0xff]
      %v3265 = vld [vmem:[%s2544 + $0x32] sm:$0xff]
      %v3266 = vld [vmem:[%s2544 + $0x3a] sm:$0xff]
      %v3267 = vld [vmem:[%s2544 + $0x4a] sm:$0xff]
      %v3268 = vld [vmem:[%s2544 + $0x52] sm:$0xff]
      %v3269 = vld [vmem:[%s2544 + $0x62] sm:$0xff]
      %v3270 = vld [vmem:[%s2544 + $0x6a] sm:$0xff]
      %v3271 = vld [vmem:[%s2544 + $0x7a] sm:$0xff]
      %v3272 = vld [vmem:[%s2544 + $0x82] sm:$0xff]
      %v3273 = vld [vmem:[%s2544 + $0x92] sm:$0xff]
      %v3274 = vld [vmem:[%s2544 + $0x9a] sm:$0xff]
      %v3275 = vld [vmem:[%s2544 + $0xaa] sm:$0xff]
      %v3276 = vld [vmem:[%s2544 + $0xb2] sm:$0xff]
      %v3277 = vld [vmem:[%s2544 + $0xc2] sm:$0xff]
      %v3278 = vld [vmem:[%s2544 + $0xca] sm:$0xff]
      %v3279 = vld [vmem:[%s2544 + $0xda] sm:$0xff]
      %v3280 = vld [vmem:[%s2544 + $0xe2] sm:$0xff]
      %v3281 = vld [vmem:[%s2544 + $0xf2] sm:$0xff]
      %v3282 = vld [vmem:[%s2544 + $0xfa] sm:$0xff]
      %v3283 = vld [vmem:[%s2544 + $0x10a] sm:$0xff]
      %v3284 = vld [vmem:[%s2544 + $0x112] sm:$0xff]
      %v3285 = vld [vmem:[%s2544 + $0x122] sm:$0xff]
      %v3286 = vld [vmem:[%s2544 + $0x12a] sm:$0xff]
      %v3287 = vld [vmem:[%s2544 + $0x13a] sm:$0xff]
      %v3288 = vld [vmem:[%s2544 + $0x142] sm:$0xff]
      %v3289 = vld [vmem:[%s2544 + $0x152] sm:$0xff]
      %v3290 = vld [vmem:[%s2544 + $0x15a] sm:$0xff]
      %v3291 = vld [vmem:[%s2544 + $0x16a] sm:$0xff]
      %v3292 = vld [vmem:[%s2544 + $0x172] sm:$0xff]
      %v3293 = vpack.c.bf16 %v3262, %v3261
      %v3294 = vpack.c.bf16 %v3264, %v3263
      %v3295 = vpack.c.bf16 %v3266, %v3265
      %v3296 = vpack.c.bf16 %v3268, %v3267
      %v3297 = vpack.c.bf16 %v3270, %v3269
      %v3298 = vpack.c.bf16 %v3272, %v3271
      %v3299 = vpack.c.bf16 %v3274, %v3273
      %v3300 = vpack.c.bf16 %v3276, %v3275
      %v3301 = vpack.c.bf16 %v3278, %v3277
      %v3302 = vpack.c.bf16 %v3280, %v3279
      %v3303 = vpack.c.bf16 %v3282, %v3281
      %v3304 = vpack.c.bf16 %v3284, %v3283
      %v3305 = vpack.c.bf16 %v3286, %v3285
      %v3306 = vpack.c.bf16 %v3288, %v3287
      %v3307 = vpack.c.bf16 %v3290, %v3289
      %v3308 = vpack.c.bf16 %v3292, %v3291
      %s3309 = scalar_lea.vmem %s1, 16
      %v3310 = vld [vmem:[%s3309] sm:$0x3]
      %v3312 = vsel %vm381, %v3293, 0
      %v3315 = vsel %vm381, %v3294, 0
      %v3318 = vsel %vm381, %v3295, 0
      %v3321 = vsel %vm381, %v3296, 0
      %v3324 = vsel %vm381, %v3297, 0
      %v3327 = vsel %vm381, %v3298, 0
      %v3330 = vsel %vm381, %v3299, 0
      %v3333 = vsel %vm381, %v3300, 0
      %v3336 = vsel %vm381, %v3301, 0
      %v3339 = vsel %vm381, %v3302, 0
      %v3342 = vsel %vm381, %v3303, 0
      %v3345 = vsel %vm381, %v3304, 0
      %v3348 = vsel %vm381, %v3305, 0
      %v3351 = vsel %vm381, %v3306, 0
      %v3354 = vsel %vm381, %v3307, 0
      %v3357 = vsel %vm381, %v3308, 0
      %v3360 = vsel %vm557, %v3310, 0
      %3362 = vmatprep.subr.bf16.mxu0 0
      %3363 = vmatpush1.bf16.msra.mxu0 %v3360
      %3364 = vmatprep.subr.bf16.mxu0 0
      %3365 = vmatpush1.bf16.msra.mxu0 0
      %3366 = vmatprep.subr.bf16.mxu0 0
      %3367 = vmatpush1.bf16.msra.mxu0 0
      %3368 = vmatprep.subr.bf16.mxu0 0
      %3369 = vmatpush1.bf16.msra.mxu0 0
      %3370 = vmatprep.subr.bf16.mxu0 0
      %3371 = vmatpush1.bf16.msra.mxu0 0
      %3372 = vmatprep.subr.bf16.mxu0 0
      %3373 = vmatpush1.bf16.msra.mxu0 0
      %3374 = vmatprep.subr.bf16.mxu0 0
      %3375 = vmatpush1.bf16.msra.mxu0 0
      %3376 = vmatprep.subr.bf16.mxu0 0
      %3377 = vmatpush1.bf16.msra.mxu0 0
      %3378 = vmatprep.subr.bf16.mxu0 0
      %3379 = vmatpush1.bf16.msra.mxu0 0
      %3380 = vmatprep.subr.bf16.mxu0 0
      %3381 = vmatpush1.bf16.msra.mxu0 0
      %3382 = vmatprep.subr.bf16.mxu0 0
      %3383 = vmatpush1.bf16.msra.mxu0 0
      %3384 = vmatprep.subr.bf16.mxu0 0
      %3385 = vmatpush1.bf16.msra.mxu0 0
      %3386 = vmatprep.subr.bf16.mxu0 0
      %3387 = vmatpush1.bf16.msra.mxu0 0
      %3388 = vmatprep.subr.bf16.mxu0 0
      %3389 = vmatpush1.bf16.msra.mxu0 0
      %3390 = vmatprep.subr.bf16.mxu0 0
      %3391 = vmatpush1.bf16.msra.mxu0 0
      %3392 = vmatprep.subr.bf16.mxu0 0
      %3393 = vmatpush1.bf16.msra.mxu0 0
      %3394 = vmatprep.mubr.bf16.mxu0 0
      %3395 = vmatmul.mubr.bf16.gmra.mrb[0].mxu0 %v3312
      %v3396 = vpop.f32.mrb[0].mxu0
      %v3397 = vadd.f32 0.0, %v3396
      %v3398 = vpop.f32.mrb[0].mxu0
      %v3399 = vpop.f32.mrb[0].mxu0
      %v3400 = vadd.f32 0.0, %v3399
      %v3401 = vpop.f32.mrb[0].mxu0
      %3402 = vmatprep.mubr.bf16.mxu0 0
      %3403 = vmatmul.mubr.bf16.gmra.mrb[0].mxu0 %v3315
      %v3404 = vpop.f32.mrb[0].mxu0
      %v3405 = vadd.f32 0.0, %v3404
      %v3406 = vpop.f32.mrb[0].mxu0
      %v3407 = vpop.f32.mrb[0].mxu0
      %v3408 = vadd.f32 0.0, %v3407
      %v3409 = vpop.f32.mrb[0].mxu0
      %3410 = vmatprep.mubr.bf16.mxu0 0
      %3411 = vmatmul.mubr.bf16.gmra.mrb[0].mxu0 %v3318
      %v3412 = vpop.f32.mrb[0].mxu0
      %v3413 = vadd.f32 0.0, %v3412
      %v3414 = vpop.f32.mrb[0].mxu0
      %v3415 = vpop.f32.mrb[0].mxu0
      %v3416 = vadd.f32 0.0, %v3415
      %v3417 = vpop.f32.mrb[0].mxu0
      %3418 = vmatprep.mubr.bf16.mxu0 0
      %3419 = vmatmul.mubr.bf16.gmra.mrb[0].mxu0 %v3321
      %v3420 = vpop.f32.mrb[0].mxu0
      %v3421 = vadd.f32 0.0, %v3420
      %v3422 = vpop.f32.mrb[0].mxu0
      %v3423 = vpop.f32.mrb[0].mxu0
      %v3424 = vadd.f32 0.0, %v3423
      %v3425 = vpop.f32.mrb[0].mxu0
      %3426 = vmatprep.mubr.bf16.mxu0 0
      %3427 = vmatmul.mubr.bf16.gmra.mrb[0].mxu0 %v3324
      %v3428 = vpop.f32.mrb[0].mxu0
      %v3429 = vadd.f32 0.0, %v3428
      %v3430 = vpop.f32.mrb[0].mxu0
      %v3431 = vpop.f32.mrb[0].mxu0
      %v3432 = vadd.f32 0.0, %v3431
      %v3433 = vpop.f32.mrb[0].mxu0
      %3434 = vmatprep.mubr.bf16.mxu0 0
      %3435 = vmatmul.mubr.bf16.gmra.mrb[0].mxu0 %v3327
      %v3436 = vpop.f32.mrb[0].mxu0
      %v3437 = vadd.f32 0.0, %v3436
      %v3438 = vpop.f32.mrb[0].mxu0
      %v3439 = vpop.f32.mrb[0].mxu0
      %v3440 = vadd.f32 0.0, %v3439
      %v3441 = vpop.f32.mrb[0].mxu0
      %3442 = vmatprep.mubr.bf16.mxu0 0
      %3443 = vmatmul.mubr.bf16.gmra.mrb[0].mxu0 %v3330
      %v3444 = vpop.f32.mrb[0].mxu0
      %v3445 = vadd.f32 0.0, %v3444
      %v3446 = vpop.f32.mrb[0].mxu0
      %v3447 = vpop.f32.mrb[0].mxu0
      %v3448 = vadd.f32 0.0, %v3447
      %v3449 = vpop.f32.mrb[0].mxu0
      %3450 = vmatprep.mubr.bf16.mxu0 0
      %3451 = vmatmul.mubr.bf16.gmra.mrb[0].mxu0 %v3333
      %v3452 = vpop.f32.mrb[0].mxu0
      %v3453 = vadd.f32 0.0, %v3452
      %v3454 = vpop.f32.mrb[0].mxu0
      %v3455 = vpop.f32.mrb[0].mxu0
      %v3456 = vadd.f32 0.0, %v3455
      %v3457 = vpop.f32.mrb[0].mxu0
      %3458 = vmatprep.mubr.bf16.mxu0 0
      %3459 = vmatmul.mubr.bf16.gmra.mrb[0].mxu0 %v3336
      %v3460 = vpop.f32.mrb[0].mxu0
      %v3461 = vadd.f32 0.0, %v3460
      %v3462 = vpop.f32.mrb[0].mxu0
      %v3463 = vpop.f32.mrb[0].mxu0
      %v3464 = vadd.f32 0.0, %v3463
      %v3465 = vpop.f32.mrb[0].mxu0
      %3466 = vmatprep.mubr.bf16.mxu0 0
      %3467 = vmatmul.mubr.bf16.gmra.mrb[0].mxu0 %v3339
      %v3468 = vpop.f32.mrb[0].mxu0
      %v3469 = vadd.f32 0.0, %v3468
      %v3470 = vpop.f32.mrb[0].mxu0
      %v3471 = vpop.f32.mrb[0].mxu0
      %v3472 = vadd.f32 0.0, %v3471
      %v3473 = vpop.f32.mrb[0].mxu0
      %3474 = vmatprep.mubr.bf16.mxu0 0
      %3475 = vmatmul.mubr.bf16.gmra.mrb[0].mxu0 %v3342
      %v3476 = vpop.f32.mrb[0].mxu0
      %v3477 = vadd.f32 0.0, %v3476
      %v3478 = vpop.f32.mrb[0].mxu0
      %v3479 = vpop.f32.mrb[0].mxu0
      %v3480 = vadd.f32 0.0, %v3479
      %v3481 = vpop.f32.mrb[0].mxu0
      %3482 = vmatprep.mubr.bf16.mxu0 0
      %3483 = vmatmul.mubr.bf16.gmra.mrb[0].mxu0 %v3345
      %v3484 = vpop.f32.mrb[0].mxu0
      %v3485 = vadd.f32 0.0, %v3484
      %v3486 = vpop.f32.mrb[0].mxu0
      %v3487 = vpop.f32.mrb[0].mxu0
      %v3488 = vadd.f32 0.0, %v3487
      %v3489 = vpop.f32.mrb[0].mxu0
      %3490 = vmatprep.mubr.bf16.mxu0 0
      %3491 = vmatmul.mubr.bf16.gmra.mrb[0].mxu0 %v3348
      %v3492 = vpop.f32.mrb[0].mxu0
      %v3493 = vadd.f32 0.0, %v3492
      %v3494 = vpop.f32.mrb[0].mxu0
      %v3495 = vpop.f32.mrb[0].mxu0
      %v3496 = vadd.f32 0.0, %v3495
      %v3497 = vpop.f32.mrb[0].mxu0
      %3498 = vmatprep.mubr.bf16.mxu0 0
      %3499 = vmatmul.mubr.bf16.gmra.mrb[0].mxu0 %v3351
      %v3500 = vpop.f32.mrb[0].mxu0
      %v3501 = vadd.f32 0.0, %v3500
      %v3502 = vpop.f32.mrb[0].mxu0
      %v3503 = vpop.f32.mrb[0].mxu0
      %v3504 = vadd.f32 0.0, %v3503
      %v3505 = vpop.f32.mrb[0].mxu0
      %3506 = vmatprep.mubr.bf16.mxu0 0
      %3507 = vmatmul.mubr.bf16.gmra.mrb[0].mxu0 %v3354
      %v3508 = vpop.f32.mrb[0].mxu0
      %v3509 = vadd.f32 0.0, %v3508
      %v3510 = vpop.f32.mrb[0].mxu0
      %v3511 = vpop.f32.mrb[0].mxu0
      %v3512 = vadd.f32 0.0, %v3511
      %v3513 = vpop.f32.mrb[0].mxu0
      %3514 = vmatprep.mubr.bf16.mxu0 0
      %3515 = vmatmul.mubr.bf16.gmra.mrb[0].mxu0 %v3357
      %v3516 = vpop.f32.mrb[0].mxu0
      %v3517 = vadd.f32 0.0, %v3516
      %v3518 = vpop.f32.mrb[0].mxu0
      %v3519 = vpop.f32.mrb[0].mxu0
      %v3520 = vadd.f32 0.0, %v3519
      %v3521 = vpop.f32.mrb[0].mxu0
      %3522 = vdwg.mxu0
      %v3523 = vld [vmem:[#allocation4] sm:$0xff]
      %v3524 = vld [vmem:[#allocation4 + $0x8] sm:$0xff]
      %v3525 = vld [vmem:[#allocation4 + $0x10] sm:$0xff]
      %v3526 = vld [vmem:[#allocation4 + $0x18] sm:$0xff]
      %v3527 = vld [vmem:[#allocation4 + $0x20] sm:$0xff]
      %v3528 = vld [vmem:[#allocation4 + $0x28] sm:$0xff]
      %v3529 = vld [vmem:[#allocation4 + $0x30] sm:$0xff]
      %v3530 = vld [vmem:[#allocation4 + $0x38] sm:$0xff]
      %v3531 = vld [vmem:[#allocation4 + $0x40] sm:$0xff]
      %v3532 = vld [vmem:[#allocation4 + $0x48] sm:$0xff]
      %v3533 = vld [vmem:[#allocation4 + $0x50] sm:$0xff]
      %v3534 = vld [vmem:[#allocation4 + $0x58] sm:$0xff]
      %v3535 = vld [vmem:[#allocation4 + $0x60] sm:$0xff]
      %v3536 = vld [vmem:[#allocation4 + $0x68] sm:$0xff]
      %v3537 = vld [vmem:[#allocation4 + $0x70] sm:$0xff]
      %v3538 = vld [vmem:[#allocation4 + $0x78] sm:$0xff]
      %v3539 = vld [vmem:[#allocation4 + $0x80] sm:$0xff]
      %v3540 = vld [vmem:[#allocation4 + $0x88] sm:$0xff]
      %v3541 = vld [vmem:[#allocation4 + $0x90] sm:$0xff]
      %v3542 = vld [vmem:[#allocation4 + $0x98] sm:$0xff]
      %v3543 = vld [vmem:[#allocation4 + $0xa0] sm:$0xff]
      %v3544 = vld [vmem:[#allocation4 + $0xa8] sm:$0xff]
      %v3545 = vld [vmem:[#allocation4 + $0xb0] sm:$0xff]
      %v3546 = vld [vmem:[#allocation4 + $0xb8] sm:$0xff]
      %v3547 = vld [vmem:[#allocation4 + $0xc0] sm:$0xff]
      %v3548 = vld [vmem:[#allocation4 + $0xc8] sm:$0xff]
      %v3549 = vld [vmem:[#allocation4 + $0xd0] sm:$0xff]
      %v3550 = vld [vmem:[#allocation4 + $0xd8] sm:$0xff]
      %v3551 = vld [vmem:[#allocation4 + $0xe0] sm:$0xff]
      %v3552 = vld [vmem:[#allocation4 + $0xe8] sm:$0xff]
      %v3553 = vld [vmem:[#allocation4 + $0xf0] sm:$0xff]
      %v3554 = vld [vmem:[#allocation4 + $0xf8] sm:$0xff]
      %v3555 = vadd.f32 %v3523, %v3397
      %v3556 = vadd.f32 %v3524, %v3400
      %v3557 = vadd.f32 %v3525, %v3405
      %v3558 = vadd.f32 %v3526, %v3408
      %v3559 = vadd.f32 %v3527, %v3413
      %v3560 = vadd.f32 %v3528, %v3416
      %v3561 = vadd.f32 %v3529, %v3421
      %v3562 = vadd.f32 %v3530, %v3424
      %v3563 = vadd.f32 %v3531, %v3429
      %v3564 = vadd.f32 %v3532, %v3432
      %v3565 = vadd.f32 %v3533, %v3437
      %v3566 = vadd.f32 %v3534, %v3440
      %v3567 = vadd.f32 %v3535, %v3445
      %v3568 = vadd.f32 %v3536, %v3448
      %v3569 = vadd.f32 %v3537, %v3453
      %v3570 = vadd.f32 %v3538, %v3456
      %v3571 = vadd.f32 %v3539, %v3461
      %v3572 = vadd.f32 %v3540, %v3464
      %v3573 = vadd.f32 %v3541, %v3469
      %v3574 = vadd.f32 %v3542, %v3472
      %v3575 = vadd.f32 %v3543, %v3477
      %v3576 = vadd.f32 %v3544, %v3480
      %v3577 = vadd.f32 %v3545, %v3485
      %v3578 = vadd.f32 %v3546, %v3488
      %v3579 = vadd.f32 %v3547, %v3493
      %v3580 = vadd.f32 %v3548, %v3496
      %v3581 = vadd.f32 %v3549, %v3501
      %v3582 = vadd.f32 %v3550, %v3504
      %v3583 = vadd.f32 %v3551, %v3509
      %v3584 = vadd.f32 %v3552, %v3512
      %v3585 = vadd.f32 %v3553, %v3517
      %v3586 = vadd.f32 %v3554, %v3520
      %3587 = vst.msk [vmem:[#allocation4] sm:$0xff] %vm381, %v3555
      %3588 = vst.msk [vmem:[#allocation4 + $0x8] sm:$0xff] %vm381, %v3556
      %3589 = vst.msk [vmem:[#allocation4 + $0x10] sm:$0xff] %vm381, %v3557
      %3590 = vst.msk [vmem:[#allocation4 + $0x18] sm:$0xff] %vm381, %v3558
      %3591 = vst.msk [vmem:[#allocation4 + $0x20] sm:$0xff] %vm381, %v3559
      %3592 = vst.msk [vmem:[#allocation4 + $0x28] sm:$0xff] %vm381, %v3560
      %3593 = vst.msk [vmem:[#allocation4 + $0x30] sm:$0xff] %vm381, %v3561
      %3594 = vst.msk [vmem:[#allocation4 + $0x38] sm:$0xff] %vm381, %v3562
      %3595 = vst.msk [vmem:[#allocation4 + $0x40] sm:$0xff] %vm381, %v3563
      %3596 = vst.msk [vmem:[#allocation4 + $0x48] sm:$0xff] %vm381, %v3564
      %3597 = vst.msk [vmem:[#allocation4 + $0x50] sm:$0xff] %vm381, %v3565
      %3598 = vst.msk [vmem:[#allocation4 + $0x58] sm:$0xff] %vm381, %v3566
      %3599 = vst.msk [vmem:[#allocation4 + $0x60] sm:$0xff] %vm381, %v3567
      %3600 = vst.msk [vmem:[#allocation4 + $0x68] sm:$0xff] %vm381, %v3568
      %3601 = vst.msk [vmem:[#allocation4 + $0x70] sm:$0xff] %vm381, %v3569
      %3602 = vst.msk [vmem:[#allocation4 + $0x78] sm:$0xff] %vm381, %v3570
      %3603 = vst.msk [vmem:[#allocation4 + $0x80] sm:$0xff] %vm381, %v3571
      %3604 = vst.msk [vmem:[#allocation4 + $0x88] sm:$0xff] %vm381, %v3572
      %3605 = vst.msk [vmem:[#allocation4 + $0x90] sm:$0xff] %vm381, %v3573
      %3606 = vst.msk [vmem:[#allocation4 + $0x98] sm:$0xff] %vm381, %v3574
      %3607 = vst.msk [vmem:[#allocation4 + $0xa0] sm:$0xff] %vm381, %v3575
      %3608 = vst.msk [vmem:[#allocation4 + $0xa8] sm:$0xff] %vm381, %v3576
      %3609 = vst.msk [vmem:[#allocation4 + $0xb0] sm:$0xff] %vm381, %v3577
      %3610 = vst.msk [vmem:[#allocation4 + $0xb8] sm:$0xff] %vm381, %v3578
      %3611 = vst.msk [vmem:[#allocation4 + $0xc0] sm:$0xff] %vm381, %v3579
      %3612 = vst.msk [vmem:[#allocation4 + $0xc8] sm:$0xff] %vm381, %v3580
      %3613 = vst.msk [vmem:[#allocation4 + $0xd0] sm:$0xff] %vm381, %v3581
      %3614 = vst.msk [vmem:[#allocation4 + $0xd8] sm:$0xff] %vm381, %v3582
      %3615 = vst.msk [vmem:[#allocation4 + $0xe0] sm:$0xff] %vm381, %v3583
      %3616 = vst.msk [vmem:[#allocation4 + $0xe8] sm:$0xff] %vm381, %v3584
      %3617 = vst.msk [vmem:[#allocation4 + $0xf0] sm:$0xff] %vm381, %v3585
      %3618 = vst.msk [vmem:[#allocation4 + $0xf8] sm:$0xff] %vm381, %v3586
      %v3619 = vld [vmem:[#allocation4] sm:$0xff]
      %v3620 = vld [vmem:[#allocation4 + $0x8] sm:$0xff]
      %v3621 = vld [vmem:[#allocation4 + $0x10] sm:$0xff]
      %v3622 = vld [vmem:[#allocation4 + $0x18] sm:$0xff]
      %v3623 = vld [vmem:[#allocation4 + $0x20] sm:$0xff]
      %v3624 = vld [vmem:[#allocation4 + $0x28] sm:$0xff]
      %v3625 = vld [vmem:[#allocation4 + $0x30] sm:$0xff]
      %v3626 = vld [vmem:[#allocation4 + $0x38] sm:$0xff]
      %v3627 = vld [vmem:[#allocation4 + $0x40] sm:$0xff]
      %v3628 = vld [vmem:[#allocation4 + $0x48] sm:$0xff]
      %v3629 = vld [vmem:[#allocation4 + $0x50] sm:$0xff]
      %v3630 = vld [vmem:[#allocation4 + $0x58] sm:$0xff]
      %v3631 = vld [vmem:[#allocation4 + $0x60] sm:$0xff]
      %v3632 = vld [vmem:[#allocation4 + $0x68] sm:$0xff]
      %v3633 = vld [vmem:[#allocation4 + $0x70] sm:$0xff]
      %v3634 = vld [vmem:[#allocation4 + $0x78] sm:$0xff]
      %v3635 = vld [vmem:[#allocation4 + $0x80] sm:$0xff]
      %v3636 = vld [vmem:[#allocation4 + $0x88] sm:$0xff]
      %v3637 = vld [vmem:[#allocation4 + $0x90] sm:$0xff]
      %v3638 = vld [vmem:[#allocation4 + $0x98] sm:$0xff]
      %v3639 = vld [vmem:[#allocation4 + $0xa0] sm:$0xff]
      %v3640 = vld [vmem:[#allocation4 + $0xa8] sm:$0xff]
      %v3641 = vld [vmem:[#allocation4 + $0xb0] sm:$0xff]
      %v3642 = vld [vmem:[#allocation4 + $0xb8] sm:$0xff]
      %v3643 = vld [vmem:[#allocation4 + $0xc0] sm:$0xff]
      %v3644 = vld [vmem:[#allocation4 + $0xc8] sm:$0xff]
      %v3645 = vld [vmem:[#allocation4 + $0xd0] sm:$0xff]
      %v3646 = vld [vmem:[#allocation4 + $0xd8] sm:$0xff]
      %v3647 = vld [vmem:[#allocation4 + $0xe0] sm:$0xff]
      %v3648 = vld [vmem:[#allocation4 + $0xe8] sm:$0xff]
      %v3649 = vld [vmem:[#allocation4 + $0xf0] sm:$0xff]
      %v3650 = vld [vmem:[#allocation4 + $0xf8] sm:$0xff]
      %v3651 = vld [vmem:[%s2] sm:$0x1]
      %v3653 = vlaneseq
      %v3654 = vshrl.u32 %v3653, 7
      %v3655 = vsub.s32 0, %v3654
      %v3656 = vrot.slane %v3651, %v3655
      %v3658 = vadd.f32 %v3619, %v3656
      %v3659 = vadd.f32 %v3620, %v3656
      %v3660 = vadd.f32 %v3621, %v3656
      %v3661 = vadd.f32 %v3622, %v3656
      %v3662 = vadd.f32 %v3623, %v3656
      %v3663 = vadd.f32 %v3624, %v3656
      %v3664 = vadd.f32 %v3625, %v3656
      %v3665 = vadd.f32 %v3626, %v3656
      %v3666 = vadd.f32 %v3627, %v3656
      %v3667 = vadd.f32 %v3628, %v3656
      %v3668 = vadd.f32 %v3629, %v3656
      %v3669 = vadd.f32 %v3630, %v3656
      %v3670 = vadd.f32 %v3631, %v3656
      %v3671 = vadd.f32 %v3632, %v3656
      %v3672 = vadd.f32 %v3633, %v3656
      %v3673 = vadd.f32 %v3634, %v3656
      %v3674 = vadd.f32 %v3635, %v3656
      %v3675 = vadd.f32 %v3636, %v3656
      %v3676 = vadd.f32 %v3637, %v3656
      %v3677 = vadd.f32 %v3638, %v3656
      %v3678 = vadd.f32 %v3639, %v3656
      %v3679 = vadd.f32 %v3640, %v3656
      %v3680 = vadd.f32 %v3641, %v3656
      %v3681 = vadd.f32 %v3642, %v3656
      %v3682 = vadd.f32 %v3643, %v3656
      %v3683 = vadd.f32 %v3644, %v3656
      %v3684 = vadd.f32 %v3645, %v3656
      %v3685 = vadd.f32 %v3646, %v3656
      %v3686 = vadd.f32 %v3647, %v3656
      %v3687 = vadd.f32 %v3648, %v3656
      %v3688 = vadd.f32 %v3649, %v3656
      %v3689 = vadd.f32 %v3650, %v3656
      %vm3690 = vcmp.gt.f32.partialorder %v3658, 0.0
      %vm3691 = vcmp.gt.f32.partialorder %v3659, 0.0
      %vm3692 = vcmp.gt.f32.partialorder %v3660, 0.0
      %vm3693 = vcmp.gt.f32.partialorder %v3661, 0.0
      %vm3694 = vcmp.gt.f32.partialorder %v3662, 0.0
      %vm3695 = vcmp.gt.f32.partialorder %v3663, 0.0
      %vm3696 = vcmp.gt.f32.partialorder %v3664, 0.0
      %vm3697 = vcmp.gt.f32.partialorder %v3665, 0.0
      %vm3698 = vcmp.gt.f32.partialorder %v3666, 0.0
      %vm3699 = vcmp.gt.f32.partialorder %v3667, 0.0
      %vm3700 = vcmp.gt.f32.partialorder %v3668, 0.0
      %vm3701 = vcmp.gt.f32.partialorder %v3669, 0.0
      %vm3702 = vcmp.gt.f32.partialorder %v3670, 0.0
      %vm3703 = vcmp.gt.f32.partialorder %v3671, 0.0
      %vm3704 = vcmp.gt.f32.partialorder %v3672, 0.0
      %vm3705 = vcmp.gt.f32.partialorder %v3673, 0.0
      %vm3706 = vcmp.gt.f32.partialorder %v3674, 0.0
      %vm3707 = vcmp.gt.f32.partialorder %v3675, 0.0
      %vm3708 = vcmp.gt.f32.partialorder %v3676, 0.0
      %vm3709 = vcmp.gt.f32.partialorder %v3677, 0.0
      %vm3710 = vcmp.gt.f32.partialorder %v3678, 0.0
      %vm3711 = vcmp.gt.f32.partialorder %v3679, 0.0
      %vm3712 = vcmp.gt.f32.partialorder %v3680, 0.0
      %vm3713 = vcmp.gt.f32.partialorder %v3681, 0.0
      %vm3714 = vcmp.gt.f32.partialorder %v3682, 0.0
      %vm3715 = vcmp.gt.f32.partialorder %v3683, 0.0
      %vm3716 = vcmp.gt.f32.partialorder %v3684, 0.0
      %vm3717 = vcmp.gt.f32.partialorder %v3685, 0.0
      %vm3718 = vcmp.gt.f32.partialorder %v3686, 0.0
      %vm3719 = vcmp.gt.f32.partialorder %v3687, 0.0
      %vm3720 = vcmp.gt.f32.partialorder %v3688, 0.0
      %vm3721 = vcmp.gt.f32.partialorder %v3689, 0.0
      %v3722 = vmul.f32 %v3658, 0.2
      %v3723 = vmul.f32 %v3659, 0.2
      %v3724 = vmul.f32 %v3660, 0.2
      %v3725 = vmul.f32 %v3661, 0.2
      %v3726 = vmul.f32 %v3662, 0.2
      %v3727 = vmul.f32 %v3663, 0.2
      %v3728 = vmul.f32 %v3664, 0.2
      %v3729 = vmul.f32 %v3665, 0.2
      %v3730 = vmul.f32 %v3666, 0.2
      %v3731 = vmul.f32 %v3667, 0.2
      %v3732 = vmul.f32 %v3668, 0.2
      %v3733 = vmul.f32 %v3669, 0.2
      %v3734 = vmul.f32 %v3670, 0.2
      %v3735 = vmul.f32 %v3671, 0.2
      %v3736 = vmul.f32 %v3672, 0.2
      %v3737 = vmul.f32 %v3673, 0.2
      %v3738 = vmul.f32 %v3674, 0.2
      %v3739 = vmul.f32 %v3675, 0.2
      %v3740 = vmul.f32 %v3676, 0.2
      %v3741 = vmul.f32 %v3677, 0.2
      %v3742 = vmul.f32 %v3678, 0.2
      %v3743 = vmul.f32 %v3679, 0.2
      %v3744 = vmul.f32 %v3680, 0.2
      %v3745 = vmul.f32 %v3681, 0.2
      %v3746 = vmul.f32 %v3682, 0.2
      %v3747 = vmul.f32 %v3683, 0.2
      %v3748 = vmul.f32 %v3684, 0.2
      %v3749 = vmul.f32 %v3685, 0.2
      %v3750 = vmul.f32 %v3686, 0.2
      %v3751 = vmul.f32 %v3687, 0.2
      %v3752 = vmul.f32 %v3688, 0.2
      %v3753 = vmul.f32 %v3689, 0.2
      %v3754 = vsel %vm3690, %v3658, %v3722
      %v3755 = vsel %vm3691, %v3659, %v3723
      %v3756 = vsel %vm3692, %v3660, %v3724
      %v3757 = vsel %vm3693, %v3661, %v3725
      %v3758 = vsel %vm3694, %v3662, %v3726
      %v3759 = vsel %vm3695, %v3663, %v3727
      %v3760 = vsel %vm3696, %v3664, %v3728
      %v3761 = vsel %vm3697, %v3665, %v3729
      %v3762 = vsel %vm3698, %v3666, %v3730
      %v3763 = vsel %vm3699, %v3667, %v3731
      %v3764 = vsel %vm3700, %v3668, %v3732
      %v3765 = vsel %vm3701, %v3669, %v3733
      %v3766 = vsel %vm3702, %v3670, %v3734
      %v3767 = vsel %vm3703, %v3671, %v3735
      %v3768 = vsel %vm3704, %v3672, %v3736
      %v3769 = vsel %vm3705, %v3673, %v3737
      %v3770 = vsel %vm3706, %v3674, %v3738
      %v3771 = vsel %vm3707, %v3675, %v3739
      %v3772 = vsel %vm3708, %v3676, %v3740
      %v3773 = vsel %vm3709, %v3677, %v3741
      %v3774 = vsel %vm3710, %v3678, %v3742
      %v3775 = vsel %vm3711, %v3679, %v3743
      %v3776 = vsel %vm3712, %v3680, %v3744
      %v3777 = vsel %vm3713, %v3681, %v3745
      %v3778 = vsel %vm3714, %v3682, %v3746
      %v3779 = vsel %vm3715, %v3683, %v3747
      %v3780 = vsel %vm3716, %v3684, %v3748
      %v3781 = vsel %vm3717, %v3685, %v3749
      %v3782 = vsel %vm3718, %v3686, %v3750
      %v3783 = vsel %vm3719, %v3687, %v3751
      %v3784 = vsel %vm3720, %v3688, %v3752
      %v3785 = vsel %vm3721, %v3689, %v3753
      %3786 = vst.msk [vmem:[#allocation3] sm:$0xff] %vm381, 0.0
      %3787 = vst.msk [vmem:[#allocation3 + $0x8] sm:$0xff] %vm381, 0.0
      %3788 = vst.msk [vmem:[#allocation3 + $0x10] sm:$0x3] %vm384, 0.0
      %s3789 = scalar_lea.vmem [#allocation3], 408
      %3790 = vst.msk [vmem:[%s3789] sm:$0xff] %vm381, 0.0
      %3791 = vst.msk [vmem:[%s3789 + $0x8] sm:$0xff] %vm381, 0.0
      %3792 = vst.msk [vmem:[%s3789 + $0x10] sm:$0x3] %vm384, 0.0
      %3793 = vst.msk [vmem:[#allocation3] sm:$0x1] %vm390, 0.0
      %3794 = vst.msk [vmem:[#allocation3 + $0x18] sm:$0x1] %vm390, 0.0
      %3795 = vst.msk [vmem:[#allocation3 + $0x30] sm:$0x1] %vm390, 0.0
      %3796 = vst.msk [vmem:[#allocation3 + $0x48] sm:$0x1] %vm390, 0.0
      %3797 = vst.msk [vmem:[#allocation3 + $0x60] sm:$0x1] %vm390, 0.0
      %3798 = vst.msk [vmem:[#allocation3 + $0x78] sm:$0x1] %vm390, 0.0
      %3799 = vst.msk [vmem:[#allocation3 + $0x90] sm:$0x1] %vm390, 0.0
      %3800 = vst.msk [vmem:[#allocation3 + $0xa8] sm:$0x1] %vm390, 0.0
      %3801 = vst.msk [vmem:[#allocation3 + $0xc0] sm:$0x1] %vm390, 0.0
      %3802 = vst.msk [vmem:[#allocation3 + $0xd8] sm:$0x1] %vm390, 0.0
      %3803 = vst.msk [vmem:[#allocation3 + $0xf0] sm:$0x1] %vm390, 0.0
      %3804 = vst.msk [vmem:[#allocation3 + $0x108] sm:$0x1] %vm390, 0.0
      %3805 = vst.msk [vmem:[#allocation3 + $0x120] sm:$0x1] %vm390, 0.0
      %3806 = vst.msk [vmem:[#allocation3 + $0x138] sm:$0x1] %vm390, 0.0
      %3807 = vst.msk [vmem:[#allocation3 + $0x150] sm:$0x1] %vm390, 0.0
      %3808 = vst.msk [vmem:[#allocation3 + $0x168] sm:$0x1] %vm390, 0.0
      %3809 = vst.msk [vmem:[#allocation3 + $0x180] sm:$0x1] %vm390, 0.0
      %3810 = vst.msk [vmem:[#allocation3 + $0x198] sm:$0x1] %vm390, 0.0
      %3811 = vst.msk [vmem:[#allocation3 + $0x11] sm:$0x1] %vm390, 0.0
      %3812 = vst.msk [vmem:[#allocation3 + $0x29] sm:$0x1] %vm390, 0.0
      %3813 = vst.msk [vmem:[#allocation3 + $0x41] sm:$0x1] %vm390, 0.0
      %3814 = vst.msk [vmem:[#allocation3 + $0x59] sm:$0x1] %vm390, 0.0
      %3815 = vst.msk [vmem:[#allocation3 + $0x71] sm:$0x1] %vm390, 0.0
      %3816 = vst.msk [vmem:[#allocation3 + $0x89] sm:$0x1] %vm390, 0.0
      %3817 = vst.msk [vmem:[#allocation3 + $0xa1] sm:$0x1] %vm390, 0.0
      %3818 = vst.msk [vmem:[#allocation3 + $0xb9] sm:$0x1] %vm390, 0.0
      %3819 = vst.msk [vmem:[#allocation3 + $0xd1] sm:$0x1] %vm390, 0.0
      %3820 = vst.msk [vmem:[#allocation3 + $0xe9] sm:$0x1] %vm390, 0.0
      %3821 = vst.msk [vmem:[#allocation3 + $0x101] sm:$0x1] %vm390, 0.0
      %3822 = vst.msk [vmem:[#allocation3 + $0x119] sm:$0x1] %vm390, 0.0
      %3823 = vst.msk [vmem:[#allocation3 + $0x131] sm:$0x1] %vm390, 0.0
      %3824 = vst.msk [vmem:[#allocation3 + $0x149] sm:$0x1] %vm390, 0.0
      %3825 = vst.msk [vmem:[#allocation3 + $0x161] sm:$0x1] %vm390, 0.0
      %3826 = vst.msk [vmem:[#allocation3 + $0x179] sm:$0x1] %vm390, 0.0
      %3827 = vst.msk [vmem:[#allocation3 + $0x191] sm:$0x1] %vm390, 0.0
      %3828 = vst.msk [vmem:[#allocation3 + $0x1a9] sm:$0x1] %vm390, 0.0
      %s3829 = scalar_lea.vmem [#allocation3], 24
      %3830 = vst.msk [vmem:[%s3829 + $0x1] sm:$0xff] %vm381, %v3754
      %3831 = vst.msk [vmem:[%s3829 + $0x9] sm:$0xff] %vm381, %v3755
      %3832 = vst.msk [vmem:[%s3829 + $0x19] sm:$0xff] %vm381, %v3756
      %3833 = vst.msk [vmem:[%s3829 + $0x21] sm:$0xff] %vm381, %v3757
      %3834 = vst.msk [vmem:[%s3829 + $0x31] sm:$0xff] %vm381, %v3758
      %3835 = vst.msk [vmem:[%s3829 + $0x39] sm:$0xff] %vm381, %v3759
      %3836 = vst.msk [vmem:[%s3829 + $0x49] sm:$0xff] %vm381, %v3760
      %3837 = vst.msk [vmem:[%s3829 + $0x51] sm:$0xff] %vm381, %v3761
      %3838 = vst.msk [vmem:[%s3829 + $0x61] sm:$0xff] %vm381, %v3762
      %3839 = vst.msk [vmem:[%s3829 + $0x69] sm:$0xff] %vm381, %v3763
      %3840 = vst.msk [vmem:[%s3829 + $0x79] sm:$0xff] %vm381, %v3764
      %3841 = vst.msk [vmem:[%s3829 + $0x81] sm:$0xff] %vm381, %v3765
      %3842 = vst.msk [vmem:[%s3829 + $0x91] sm:$0xff] %vm381, %v3766
      %3843 = vst.msk [vmem:[%s3829 + $0x99] sm:$0xff] %vm381, %v3767
      %3844 = vst.msk [vmem:[%s3829 + $0xa9] sm:$0xff] %vm381, %v3768
      %3845 = vst.msk [vmem:[%s3829 + $0xb1] sm:$0xff] %vm381, %v3769
      %3846 = vst.msk [vmem:[%s3829 + $0xc1] sm:$0xff] %vm381, %v3770
      %3847 = vst.msk [vmem:[%s3829 + $0xc9] sm:$0xff] %vm381, %v3771
      %3848 = vst.msk [vmem:[%s3829 + $0xd9] sm:$0xff] %vm381, %v3772
      %3849 = vst.msk [vmem:[%s3829 + $0xe1] sm:$0xff] %vm381, %v3773
      %3850 = vst.msk [vmem:[%s3829 + $0xf1] sm:$0xff] %vm381, %v3774
      %3851 = vst.msk [vmem:[%s3829 + $0xf9] sm:$0xff] %vm381, %v3775
      %3852 = vst.msk [vmem:[%s3829 + $0x109] sm:$0xff] %vm381, %v3776
      %3853 = vst.msk [vmem:[%s3829 + $0x111] sm:$0xff] %vm381, %v3777
      %3854 = vst.msk [vmem:[%s3829 + $0x121] sm:$0xff] %vm381, %v3778
      %3855 = vst.msk [vmem:[%s3829 + $0x129] sm:$0xff] %vm381, %v3779
      %3856 = vst.msk [vmem:[%s3829 + $0x139] sm:$0xff] %vm381, %v3780
      %3857 = vst.msk [vmem:[%s3829 + $0x141] sm:$0xff] %vm381, %v3781
      %3858 = vst.msk [vmem:[%s3829 + $0x151] sm:$0xff] %vm381, %v3782
      %3859 = vst.msk [vmem:[%s3829 + $0x159] sm:$0xff] %vm381, %v3783
      %3860 = vst.msk [vmem:[%s3829 + $0x169] sm:$0xff] %vm381, %v3784
      %3861 = vst.msk [vmem:[%s3829 + $0x171] sm:$0xff] %vm381, %v3785
      %v3862 = vld [vmem:[#allocation3] sm:$0xff]
      %v3863 = vld [vmem:[#allocation3 + $0x8] sm:$0xff]
      %v3864 = vld [vmem:[#allocation3 + $0x18] sm:$0xff]
      %v3865 = vld [vmem:[#allocation3 + $0x20] sm:$0xff]
      %v3866 = vld [vmem:[#allocation3 + $0x30] sm:$0xff]
      %v3867 = vld [vmem:[#allocation3 + $0x38] sm:$0xff]
      %v3868 = vld [vmem:[#allocation3 + $0x48] sm:$0xff]
      %v3869 = vld [vmem:[#allocation3 + $0x50] sm:$0xff]
      %v3870 = vld [vmem:[#allocation3 + $0x60] sm:$0xff]
      %v3871 = vld [vmem:[#allocation3 + $0x68] sm:$0xff]
      %v3872 = vld [vmem:[#allocation3 + $0x78] sm:$0xff]
      %v3873 = vld [vmem:[#allocation3 + $0x80] sm:$0xff]
      %v3874 = vld [vmem:[#allocation3 + $0x90] sm:$0xff]
      %v3875 = vld [vmem:[#allocation3 + $0x98] sm:$0xff]
      %v3876 = vld [vmem:[#allocation3 + $0xa8] sm:$0xff]
      %v3877 = vld [vmem:[#allocation3 + $0xb0] sm:$0xff]
      %v3878 = vld [vmem:[#allocation3 + $0xc0] sm:$0xff]
      %v3879 = vld [vmem:[#allocation3 + $0xc8] sm:$0xff]
      %v3880 = vld [vmem:[#allocation3 + $0xd8] sm:$0xff]
      %v3881 = vld [vmem:[#allocation3 + $0xe0] sm:$0xff]
      %v3882 = vld [vmem:[#allocation3 + $0xf0] sm:$0xff]
      %v3883 = vld [vmem:[#allocation3 + $0xf8] sm:$0xff]
      %v3884 = vld [vmem:[#allocation3 + $0x108] sm:$0xff]
      %v3885 = vld [vmem:[#allocation3 + $0x110] sm:$0xff]
      %v3886 = vld [vmem:[#allocation3 + $0x120] sm:$0xff]
      %v3887 = vld [vmem:[#allocation3 + $0x128] sm:$0xff]
      %v3888 = vld [vmem:[#allocation3 + $0x138] sm:$0xff]
      %v3889 = vld [vmem:[#allocation3 + $0x140] sm:$0xff]
      %v3890 = vld [vmem:[#allocation3 + $0x150] sm:$0xff]
      %v3891 = vld [vmem:[#allocation3 + $0x158] sm:$0xff]
      %v3892 = vld [vmem:[#allocation3 + $0x168] sm:$0xff]
      %v3893 = vld [vmem:[#allocation3 + $0x170] sm:$0xff]
      %v3894 = vpack.c.bf16 %v3863, %v3862
      %v3895 = vpack.c.bf16 %v3865, %v3864
      %v3896 = vpack.c.bf16 %v3867, %v3866
      %v3897 = vpack.c.bf16 %v3869, %v3868
      %v3898 = vpack.c.bf16 %v3871, %v3870
      %v3899 = vpack.c.bf16 %v3873, %v3872
      %v3900 = vpack.c.bf16 %v3875, %v3874
      %v3901 = vpack.c.bf16 %v3877, %v3876
      %v3902 = vpack.c.bf16 %v3879, %v3878
      %v3903 = vpack.c.bf16 %v3881, %v3880
      %v3904 = vpack.c.bf16 %v3883, %v3882
      %v3905 = vpack.c.bf16 %v3885, %v3884
      %v3906 = vpack.c.bf16 %v3887, %v3886
      %v3907 = vpack.c.bf16 %v3889, %v3888
      %v3908 = vpack.c.bf16 %v3891, %v3890
      %v3909 = vpack.c.bf16 %v3893, %v3892
      %v3910 = vld [vmem:[%s3] sm:$0x3]
      %v3912 = vsel %vm381, %v3894, 0
      %v3915 = vsel %vm381, %v3895, 0
      %v3918 = vsel %vm381, %v3896, 0
      %v3921 = vsel %vm381, %v3897, 0
      %v3924 = vsel %vm381, %v3898, 0
      %v3927 = vsel %vm381, %v3899, 0
      %v3930 = vsel %vm381, %v3900, 0
      %v3933 = vsel %vm381, %v3901, 0
      %v3936 = vsel %vm381, %v3902, 0
      %v3939 = vsel %vm381, %v3903, 0
      %v3942 = vsel %vm381, %v3904, 0
      %v3945 = vsel %vm381, %v3905, 0
      %v3948 = vsel %vm381, %v3906, 0
      %v3951 = vsel %vm381, %v3907, 0
      %v3954 = vsel %vm381, %v3908, 0
      %v3957 = vsel %vm381, %v3909, 0
      %v3960 = vsel %vm557, %v3910, 0
      %3962 = vmatprep.subr.bf16.mxu0 0
      %3963 = vmatpush1.bf16.msra.mxu0 %v3960
      %3964 = vmatprep.subr.bf16.mxu0 0
      %3965 = vmatpush1.bf16.msra.mxu0 0
      %3966 = vmatprep.subr.bf16.mxu0 0
      %3967 = vmatpush1.bf16.msra.mxu0 0
      %3968 = vmatprep.subr.bf16.mxu0 0
      %3969 = vmatpush1.bf16.msra.mxu0 0
      %3970 = vmatprep.subr.bf16.mxu0 0
      %3971 = vmatpush1.bf16.msra.mxu0 0
      %3972 = vmatprep.subr.bf16.mxu0 0
      %3973 = vmatpush1.bf16.msra.mxu0 0
      %3974 = vmatprep.subr.bf16.mxu0 0
      %3975 = vmatpush1.bf16.msra.mxu0 0
      %3976 = vmatprep.subr.bf16.mxu0 0
      %3977 = vmatpush1.bf16.msra.mxu0 0
      %3978 = vmatprep.subr.bf16.mxu0 0
      %3979 = vmatpush1.bf16.msra.mxu0 0
      %3980 = vmatprep.subr.bf16.mxu0 0
      %3981 = vmatpush1.bf16.msra.mxu0 0
      %3982 = vmatprep.subr.bf16.mxu0 0
      %3983 = vmatpush1.bf16.msra.mxu0 0
      %3984 = vmatprep.subr.bf16.mxu0 0
      %3985 = vmatpush1.bf16.msra.mxu0 0
      %3986 = vmatprep.subr.bf16.mxu0 0
      %3987 = vmatpush1.bf16.msra.mxu0 0
      %3988 = vmatprep.subr.bf16.mxu0 0
      %3989 = vmatpush1.bf16.msra.mxu0 0
      %3990 = vmatprep.subr.bf16.mxu0 0
      %3991 = vmatpush1.bf16.msra.mxu0 0
      %3992 = vmatprep.subr.bf16.mxu0 0
      %3993 = vmatpush1.bf16.msra.mxu0 0
      %3994 = vmatprep.mubr.bf16.mxu0 0
      %3995 = vmatmul.mubr.bf16.gmra.mrb[0].mxu0 %v3912
      %v3996 = vpop.f32.mrb[0].mxu0
      %v3997 = vadd.f32 0.0, %v3996
      %v3998 = vpop.f32.mrb[0].mxu0
      %v3999 = vpop.f32.mrb[0].mxu0
      %v4000 = vadd.f32 0.0, %v3999
      %v4001 = vpop.f32.mrb[0].mxu0
      %4002 = vmatprep.mubr.bf16.mxu0 0
      %4003 = vmatmul.mubr.bf16.gmra.mrb[0].mxu0 %v3915
      %v4004 = vpop.f32.mrb[0].mxu0
      %v4005 = vadd.f32 0.0, %v4004
      %v4006 = vpop.f32.mrb[0].mxu0
      %v4007 = vpop.f32.mrb[0].mxu0
      %v4008 = vadd.f32 0.0, %v4007
      %v4009 = vpop.f32.mrb[0].mxu0
      %4010 = vmatprep.mubr.bf16.mxu0 0
      %4011 = vmatmul.mubr.bf16.gmra.mrb[0].mxu0 %v3918
      %v4012 = vpop.f32.mrb[0].mxu0
      %v4013 = vadd.f32 0.0, %v4012
      %v4014 = vpop.f32.mrb[0].mxu0
      %v4015 = vpop.f32.mrb[0].mxu0
      %v4016 = vadd.f32 0.0, %v4015
      %v4017 = vpop.f32.mrb[0].mxu0
      %4018 = vmatprep.mubr.bf16.mxu0 0
      %4019 = vmatmul.mubr.bf16.gmra.mrb[0].mxu0 %v3921
      %v4020 = vpop.f32.mrb[0].mxu0
      %v4021 = vadd.f32 0.0, %v4020
      %v4022 = vpop.f32.mrb[0].mxu0
      %v4023 = vpop.f32.mrb[0].mxu0
      %v4024 = vadd.f32 0.0, %v4023
      %v4025 = vpop.f32.mrb[0].mxu0
      %4026 = vmatprep.mubr.bf16.mxu0 0
      %4027 = vmatmul.mubr.bf16.gmra.mrb[0].mxu0 %v3924
      %v4028 = vpop.f32.mrb[0].mxu0
      %v4029 = vadd.f32 0.0, %v4028
      %v4030 = vpop.f32.mrb[0].mxu0
      %v4031 = vpop.f32.mrb[0].mxu0
      %v4032 = vadd.f32 0.0, %v4031
      %v4033 = vpop.f32.mrb[0].mxu0
      %4034 = vmatprep.mubr.bf16.mxu0 0
      %4035 = vmatmul.mubr.bf16.gmra.mrb[0].mxu0 %v3927
      %v4036 = vpop.f32.mrb[0].mxu0
      %v4037 = vadd.f32 0.0, %v4036
      %v4038 = vpop.f32.mrb[0].mxu0
      %v4039 = vpop.f32.mrb[0].mxu0
      %v4040 = vadd.f32 0.0, %v4039
      %v4041 = vpop.f32.mrb[0].mxu0
      %4042 = vmatprep.mubr.bf16.mxu0 0
      %4043 = vmatmul.mubr.bf16.gmra.mrb[0].mxu0 %v3930
      %v4044 = vpop.f32.mrb[0].mxu0
      %v4045 = vadd.f32 0.0, %v4044
      %v4046 = vpop.f32.mrb[0].mxu0
      %v4047 = vpop.f32.mrb[0].mxu0
      %v4048 = vadd.f32 0.0, %v4047
      %v4049 = vpop.f32.mrb[0].mxu0
      %4050 = vmatprep.mubr.bf16.mxu0 0
      %4051 = vmatmul.mubr.bf16.gmra.mrb[0].mxu0 %v3933
      %v4052 = vpop.f32.mrb[0].mxu0
      %v4053 = vadd.f32 0.0, %v4052
      %v4054 = vpop.f32.mrb[0].mxu0
      %v4055 = vpop.f32.mrb[0].mxu0
      %v4056 = vadd.f32 0.0, %v4055
      %v4057 = vpop.f32.mrb[0].mxu0
      %4058 = vmatprep.mubr.bf16.mxu0 0
      %4059 = vmatmul.mubr.bf16.gmra.mrb[0].mxu0 %v3936
      %v4060 = vpop.f32.mrb[0].mxu0
      %v4061 = vadd.f32 0.0, %v4060
      %v4062 = vpop.f32.mrb[0].mxu0
      %v4063 = vpop.f32.mrb[0].mxu0
      %v4064 = vadd.f32 0.0, %v4063
      %v4065 = vpop.f32.mrb[0].mxu0
      %4066 = vmatprep.mubr.bf16.mxu0 0
      %4067 = vmatmul.mubr.bf16.gmra.mrb[0].mxu0 %v3939
      %v4068 = vpop.f32.mrb[0].mxu0
      %v4069 = vadd.f32 0.0, %v4068
      %v4070 = vpop.f32.mrb[0].mxu0
      %v4071 = vpop.f32.mrb[0].mxu0
      %v4072 = vadd.f32 0.0, %v4071
      %v4073 = vpop.f32.mrb[0].mxu0
      %4074 = vmatprep.mubr.bf16.mxu0 0
      %4075 = vmatmul.mubr.bf16.gmra.mrb[0].mxu0 %v3942
      %v4076 = vpop.f32.mrb[0].mxu0
      %v4077 = vadd.f32 0.0, %v4076
      %v4078 = vpop.f32.mrb[0].mxu0
      %v4079 = vpop.f32.mrb[0].mxu0
      %v4080 = vadd.f32 0.0, %v4079
      %v4081 = vpop.f32.mrb[0].mxu0
      %4082 = vmatprep.mubr.bf16.mxu0 0
      %4083 = vmatmul.mubr.bf16.gmra.mrb[0].mxu0 %v3945
      %v4084 = vpop.f32.mrb[0].mxu0
      %v4085 = vadd.f32 0.0, %v4084
      %v4086 = vpop.f32.mrb[0].mxu0
      %v4087 = vpop.f32.mrb[0].mxu0
      %v4088 = vadd.f32 0.0, %v4087
      %v4089 = vpop.f32.mrb[0].mxu0
      %4090 = vmatprep.mubr.bf16.mxu0 0
      %4091 = vmatmul.mubr.bf16.gmra.mrb[0].mxu0 %v3948
      %v4092 = vpop.f32.mrb[0].mxu0
      %v4093 = vadd.f32 0.0, %v4092
      %v4094 = vpop.f32.mrb[0].mxu0
      %v4095 = vpop.f32.mrb[0].mxu0
      %v4096 = vadd.f32 0.0, %v4095
      %v4097 = vpop.f32.mrb[0].mxu0
      %4098 = vmatprep.mubr.bf16.mxu0 0
      %4099 = vmatmul.mubr.bf16.gmra.mrb[0].mxu0 %v3951
      %v4100 = vpop.f32.mrb[0].mxu0
      %v4101 = vadd.f32 0.0, %v4100
      %v4102 = vpop.f32.mrb[0].mxu0
      %v4103 = vpop.f32.mrb[0].mxu0
      %v4104 = vadd.f32 0.0, %v4103
      %v4105 = vpop.f32.mrb[0].mxu0
      %4106 = vmatprep.mubr.bf16.mxu0 0
      %4107 = vmatmul.mubr.bf16.gmra.mrb[0].mxu0 %v3954
      %v4108 = vpop.f32.mrb[0].mxu0
      %v4109 = vadd.f32 0.0, %v4108
      %v4110 = vpop.f32.mrb[0].mxu0
      %v4111 = vpop.f32.mrb[0].mxu0
      %v4112 = vadd.f32 0.0, %v4111
      %v4113 = vpop.f32.mrb[0].mxu0
      %4114 = vmatprep.mubr.bf16.mxu0 0
      %4115 = vmatmul.mubr.bf16.gmra.mrb[0].mxu0 %v3957
      %v4116 = vpop.f32.mrb[0].mxu0
      %v4117 = vadd.f32 0.0, %v4116
      %v4118 = vpop.f32.mrb[0].mxu0
      %v4119 = vpop.f32.mrb[0].mxu0
      %v4120 = vadd.f32 0.0, %v4119
      %v4121 = vpop.f32.mrb[0].mxu0
      %4122 = vdwg.mxu0
      %vm4123 = vcmask 64512
      %4124 = vst.msk [vmem:[#allocation5] sm:$0xff] %vm4123, %v3997
      %4125 = vst.msk [vmem:[#allocation5 + $0x8] sm:$0xff] %vm4123, %v4000
      %4126 = vst.msk [vmem:[#allocation5 + $0x10] sm:$0xff] %vm4123, %v4005
      %4127 = vst.msk [vmem:[#allocation5 + $0x18] sm:$0xff] %vm4123, %v4008
      %4128 = vst.msk [vmem:[#allocation5 + $0x20] sm:$0xff] %vm4123, %v4013
      %4129 = vst.msk [vmem:[#allocation5 + $0x28] sm:$0xff] %vm4123, %v4016
      %4130 = vst.msk [vmem:[#allocation5 + $0x30] sm:$0xff] %vm4123, %v4021
      %4131 = vst.msk [vmem:[#allocation5 + $0x38] sm:$0xff] %vm4123, %v4024
      %4132 = vst.msk [vmem:[#allocation5 + $0x40] sm:$0xff] %vm4123, %v4029
      %4133 = vst.msk [vmem:[#allocation5 + $0x48] sm:$0xff] %vm4123, %v4032
      %4134 = vst.msk [vmem:[#allocation5 + $0x50] sm:$0xff] %vm4123, %v4037
      %4135 = vst.msk [vmem:[#allocation5 + $0x58] sm:$0xff] %vm4123, %v4040
      %4136 = vst.msk [vmem:[#allocation5 + $0x60] sm:$0xff] %vm4123, %v4045
      %4137 = vst.msk [vmem:[#allocation5 + $0x68] sm:$0xff] %vm4123, %v4048
      %4138 = vst.msk [vmem:[#allocation5 + $0x70] sm:$0xff] %vm4123, %v4053
      %4139 = vst.msk [vmem:[#allocation5 + $0x78] sm:$0xff] %vm4123, %v4056
      %4140 = vst.msk [vmem:[#allocation5 + $0x80] sm:$0xff] %vm4123, %v4061
      %4141 = vst.msk [vmem:[#allocation5 + $0x88] sm:$0xff] %vm4123, %v4064
      %4142 = vst.msk [vmem:[#allocation5 + $0x90] sm:$0xff] %vm4123, %v4069
      %4143 = vst.msk [vmem:[#allocation5 + $0x98] sm:$0xff] %vm4123, %v4072
      %4144 = vst.msk [vmem:[#allocation5 + $0xa0] sm:$0xff] %vm4123, %v4077
      %4145 = vst.msk [vmem:[#allocation5 + $0xa8] sm:$0xff] %vm4123, %v4080
      %4146 = vst.msk [vmem:[#allocation5 + $0xb0] sm:$0xff] %vm4123, %v4085
      %4147 = vst.msk [vmem:[#allocation5 + $0xb8] sm:$0xff] %vm4123, %v4088
      %4148 = vst.msk [vmem:[#allocation5 + $0xc0] sm:$0xff] %vm4123, %v4093
      %4149 = vst.msk [vmem:[#allocation5 + $0xc8] sm:$0xff] %vm4123, %v4096
      %4150 = vst.msk [vmem:[#allocation5 + $0xd0] sm:$0xff] %vm4123, %v4101
      %4151 = vst.msk [vmem:[#allocation5 + $0xd8] sm:$0xff] %vm4123, %v4104
      %4152 = vst.msk [vmem:[#allocation5 + $0xe0] sm:$0xff] %vm4123, %v4109
      %4153 = vst.msk [vmem:[#allocation5 + $0xe8] sm:$0xff] %vm4123, %v4112
      %4154 = vst.msk [vmem:[#allocation5 + $0xf0] sm:$0xff] %vm4123, %v4117
      %4155 = vst.msk [vmem:[#allocation5 + $0xf8] sm:$0xff] %vm4123, %v4120
      %v4156 = vld [vmem:[#allocation3 + $0x1] sm:$0xff]
      %v4157 = vld [vmem:[#allocation3 + $0x9] sm:$0xff]
      %v4158 = vld [vmem:[#allocation3 + $0x19] sm:$0xff]
      %v4159 = vld [vmem:[#allocation3 + $0x21] sm:$0xff]
      %v4160 = vld [vmem:[#allocation3 + $0x31] sm:$0xff]
      %v4161 = vld [vmem:[#allocation3 + $0x39] sm:$0xff]
      %v4162 = vld [vmem:[#allocation3 + $0x49] sm:$0xff]
      %v4163 = vld [vmem:[#allocation3 + $0x51] sm:$0xff]
      %v4164 = vld [vmem:[#allocation3 + $0x61] sm:$0xff]
      %v4165 = vld [vmem:[#allocation3 + $0x69] sm:$0xff]
      %v4166 = vld [vmem:[#allocation3 + $0x79] sm:$0xff]
      %v4167 = vld [vmem:[#allocation3 + $0x81] sm:$0xff]
      %v4168 = vld [vmem:[#allocation3 + $0x91] sm:$0xff]
      %v4169 = vld [vmem:[#allocation3 + $0x99] sm:$0xff]
      %v4170 = vld [vmem:[#allocation3 + $0xa9] sm:$0xff]
      %v4171 = vld [vmem:[#allocation3 + $0xb1] sm:$0xff]
      %v4172 = vld [vmem:[#allocation3 + $0xc1] sm:$0xff]
      %v4173 = vld [vmem:[#allocation3 + $0xc9] sm:$0xff]
      %v4174 = vld [vmem:[#allocation3 + $0xd9] sm:$0xff]
      %v4175 = vld [vmem:[#allocation3 + $0xe1] sm:$0xff]
      %v4176 = vld [vmem:[#allocation3 + $0xf1] sm:$0xff]
      %v4177 = vld [vmem:[#allocation3 + $0xf9] sm:$0xff]
      %v4178 = vld [vmem:[#allocation3 + $0x109] sm:$0xff]
      %v4179 = vld [vmem:[#allocation3 + $0x111] sm:$0xff]
      %v4180 = vld [vmem:[#allocation3 + $0x121] sm:$0xff]
      %v4181 = vld [vmem:[#allocation3 + $0x129] sm:$0xff]
      %v4182 = vld [vmem:[#allocation3 + $0x139] sm:$0xff]
      %v4183 = vld [vmem:[#allocation3 + $0x141] sm:$0xff]
      %v4184 = vld [vmem:[#allocation3 + $0x151] sm:$0xff]
      %v4185 = vld [vmem:[#allocation3 + $0x159] sm:$0xff]
      %v4186 = vld [vmem:[#allocation3 + $0x169] sm:$0xff]
      %v4187 = vld [vmem:[#allocation3 + $0x171] sm:$0xff]
      %v4188 = vpack.c.bf16 %v4157, %v4156
      %v4189 = vpack.c.bf16 %v4159, %v4158
      %v4190 = vpack.c.bf16 %v4161, %v4160
      %v4191 = vpack.c.bf16 %v4163, %v4162
      %v4192 = vpack.c.bf16 %v4165, %v4164
      %v4193 = vpack.c.bf16 %v4167, %v4166
      %v4194 = vpack.c.bf16 %v4169, %v4168
      %v4195 = vpack.c.bf16 %v4171, %v4170
      %v4196 = vpack.c.bf16 %v4173, %v4172
      %v4197 = vpack.c.bf16 %v4175, %v4174
      %v4198 = vpack.c.bf16 %v4177, %v4176
      %v4199 = vpack.c.bf16 %v4179, %v4178
      %v4200 = vpack.c.bf16 %v4181, %v4180
      %v4201 = vpack.c.bf16 %v4183, %v4182
      %v4202 = vpack.c.bf16 %v4185, %v4184
      %v4203 = vpack.c.bf16 %v4187, %v4186
      %s4204 = scalar_lea.vmem %s3, 2
      %v4205 = vld [vmem:[%s4204] sm:$0x3]
      %v4207 = vsel %vm381, %v4188, 0
      %v4210 = vsel %vm381, %v4189, 0
      %v4213 = vsel %vm381, %v4190, 0
      %v4216 = vsel %vm381, %v4191, 0
      %v4219 = vsel %vm381, %v4192, 0
      %v4222 = vsel %vm381, %v4193, 0
      %v4225 = vsel %vm381, %v4194, 0
      %v4228 = vsel %vm381, %v4195, 0
      %v4231 = vsel %vm381, %v4196, 0
      %v4234 = vsel %vm381, %v4197, 0
      %v4237 = vsel %vm381, %v4198, 0
      %v4240 = vsel %vm381, %v4199, 0
      %v4243 = vsel %vm381, %v4200, 0
      %v4246 = vsel %vm381, %v4201, 0
      %v4249 = vsel %vm381, %v4202, 0
      %v4252 = vsel %vm381, %v4203, 0
      %v4255 = vsel %vm557, %v4205, 0
      %4257 = vmatprep.subr.bf16.mxu0 0
      %4258 = vmatpush1.bf16.msra.mxu0 %v4255
      %4259 = vmatprep.subr.bf16.mxu0 0
      %4260 = vmatpush1.bf16.msra.mxu0 0
      %4261 = vmatprep.subr.bf16.mxu0 0
      %4262 = vmatpush1.bf16.msra.mxu0 0
      %4263 = vmatprep.subr.bf16.mxu0 0
      %4264 = vmatpush1.bf16.msra.mxu0 0
      %4265 = vmatprep.subr.bf16.mxu0 0
      %4266 = vmatpush1.bf16.msra.mxu0 0
      %4267 = vmatprep.subr.bf16.mxu0 0
      %4268 = vmatpush1.bf16.msra.mxu0 0
      %4269 = vmatprep.subr.bf16.mxu0 0
      %4270 = vmatpush1.bf16.msra.mxu0 0
      %4271 = vmatprep.subr.bf16.mxu0 0
      %4272 = vmatpush1.bf16.msra.mxu0 0
      %4273 = vmatprep.subr.bf16.mxu0 0
      %4274 = vmatpush1.bf16.msra.mxu0 0
      %4275 = vmatprep.subr.bf16.mxu0 0
      %4276 = vmatpush1.bf16.msra.mxu0 0
      %4277 = vmatprep.subr.bf16.mxu0 0
      %4278 = vmatpush1.bf16.msra.mxu0 0
      %4279 = vmatprep.subr.bf16.mxu0 0
      %4280 = vmatpush1.bf16.msra.mxu0 0
      %4281 = vmatprep.subr.bf16.mxu0 0
      %4282 = vmatpush1.bf16.msra.mxu0 0
      %4283 = vmatprep.subr.bf16.mxu0 0
      %4284 = vmatpush1.bf16.msra.mxu0 0
      %4285 = vmatprep.subr.bf16.mxu0 0
      %4286 = vmatpush1.bf16.msra.mxu0 0
      %4287 = vmatprep.subr.bf16.mxu0 0
      %4288 = vmatpush1.bf16.msra.mxu0 0
      %4289 = vmatprep.mubr.bf16.mxu0 0
      %4290 = vmatmul.mubr.bf16.gmra.mrb[0].mxu0 %v4207
      %v4291 = vpop.f32.mrb[0].mxu0
      %v4292 = vadd.f32 0.0, %v4291
      %v4293 = vpop.f32.mrb[0].mxu0
      %v4294 = vpop.f32.mrb[0].mxu0
      %v4295 = vadd.f32 0.0, %v4294
      %v4296 = vpop.f32.mrb[0].mxu0
      %4297 = vmatprep.mubr.bf16.mxu0 0
      %4298 = vmatmul.mubr.bf16.gmra.mrb[0].mxu0 %v4210
      %v4299 = vpop.f32.mrb[0].mxu0
      %v4300 = vadd.f32 0.0, %v4299
      %v4301 = vpop.f32.mrb[0].mxu0
      %v4302 = vpop.f32.mrb[0].mxu0
      %v4303 = vadd.f32 0.0, %v4302
      %v4304 = vpop.f32.mrb[0].mxu0
      %4305 = vmatprep.mubr.bf16.mxu0 0
      %4306 = vmatmul.mubr.bf16.gmra.mrb[0].mxu0 %v4213
      %v4307 = vpop.f32.mrb[0].mxu0
      %v4308 = vadd.f32 0.0, %v4307
      %v4309 = vpop.f32.mrb[0].mxu0
      %v4310 = vpop.f32.mrb[0].mxu0
      %v4311 = vadd.f32 0.0, %v4310
      %v4312 = vpop.f32.mrb[0].mxu0
      %4313 = vmatprep.mubr.bf16.mxu0 0
      %4314 = vmatmul.mubr.bf16.gmra.mrb[0].mxu0 %v4216
      %v4315 = vpop.f32.mrb[0].mxu0
      %v4316 = vadd.f32 0.0, %v4315
      %v4317 = vpop.f32.mrb[0].mxu0
      %v4318 = vpop.f32.mrb[0].mxu0
      %v4319 = vadd.f32 0.0, %v4318
      %v4320 = vpop.f32.mrb[0].mxu0
      %4321 = vmatprep.mubr.bf16.mxu0 0
      %4322 = vmatmul.mubr.bf16.gmra.mrb[0].mxu0 %v4219
      %v4323 = vpop.f32.mrb[0].mxu0
      %v4324 = vadd.f32 0.0, %v4323
      %v4325 = vpop.f32.mrb[0].mxu0
      %v4326 = vpop.f32.mrb[0].mxu0
      %v4327 = vadd.f32 0.0, %v4326
      %v4328 = vpop.f32.mrb[0].mxu0
      %4329 = vmatprep.mubr.bf16.mxu0 0
      %4330 = vmatmul.mubr.bf16.gmra.mrb[0].mxu0 %v4222
      %v4331 = vpop.f32.mrb[0].mxu0
      %v4332 = vadd.f32 0.0, %v4331
      %v4333 = vpop.f32.mrb[0].mxu0
      %v4334 = vpop.f32.mrb[0].mxu0
      %v4335 = vadd.f32 0.0, %v4334
      %v4336 = vpop.f32.mrb[0].mxu0
      %4337 = vmatprep.mubr.bf16.mxu0 0
      %4338 = vmatmul.mubr.bf16.gmra.mrb[0].mxu0 %v4225
      %v4339 = vpop.f32.mrb[0].mxu0
      %v4340 = vadd.f32 0.0, %v4339
      %v4341 = vpop.f32.mrb[0].mxu0
      %v4342 = vpop.f32.mrb[0].mxu0
      %v4343 = vadd.f32 0.0, %v4342
      %v4344 = vpop.f32.mrb[0].mxu0
      %4345 = vmatprep.mubr.bf16.mxu0 0
      %4346 = vmatmul.mubr.bf16.gmra.mrb[0].mxu0 %v4228
      %v4347 = vpop.f32.mrb[0].mxu0
      %v4348 = vadd.f32 0.0, %v4347
      %v4349 = vpop.f32.mrb[0].mxu0
      %v4350 = vpop.f32.mrb[0].mxu0
      %v4351 = vadd.f32 0.0, %v4350
      %v4352 = vpop.f32.mrb[0].mxu0
      %4353 = vmatprep.mubr.bf16.mxu0 0
      %4354 = vmatmul.mubr.bf16.gmra.mrb[0].mxu0 %v4231
      %v4355 = vpop.f32.mrb[0].mxu0
      %v4356 = vadd.f32 0.0, %v4355
      %v4357 = vpop.f32.mrb[0].mxu0
      %v4358 = vpop.f32.mrb[0].mxu0
      %v4359 = vadd.f32 0.0, %v4358
      %v4360 = vpop.f32.mrb[0].mxu0
      %4361 = vmatprep.mubr.bf16.mxu0 0
      %4362 = vmatmul.mubr.bf16.gmra.mrb[0].mxu0 %v4234
      %v4363 = vpop.f32.mrb[0].mxu0
      %v4364 = vadd.f32 0.0, %v4363
      %v4365 = vpop.f32.mrb[0].mxu0
      %v4366 = vpop.f32.mrb[0].mxu0
      %v4367 = vadd.f32 0.0, %v4366
      %v4368 = vpop.f32.mrb[0].mxu0
      %4369 = vmatprep.mubr.bf16.mxu0 0
      %4370 = vmatmul.mubr.bf16.gmra.mrb[0].mxu0 %v4237
      %v4371 = vpop.f32.mrb[0].mxu0
      %v4372 = vadd.f32 0.0, %v4371
      %v4373 = vpop.f32.mrb[0].mxu0
      %v4374 = vpop.f32.mrb[0].mxu0
      %v4375 = vadd.f32 0.0, %v4374
      %v4376 = vpop.f32.mrb[0].mxu0
      %4377 = vmatprep.mubr.bf16.mxu0 0
      %4378 = vmatmul.mubr.bf16.gmra.mrb[0].mxu0 %v4240
      %v4379 = vpop.f32.mrb[0].mxu0
      %v4380 = vadd.f32 0.0, %v4379
      %v4381 = vpop.f32.mrb[0].mxu0
      %v4382 = vpop.f32.mrb[0].mxu0
      %v4383 = vadd.f32 0.0, %v4382
      %v4384 = vpop.f32.mrb[0].mxu0
      %4385 = vmatprep.mubr.bf16.mxu0 0
      %4386 = vmatmul.mubr.bf16.gmra.mrb[0].mxu0 %v4243
      %v4387 = vpop.f32.mrb[0].mxu0
      %v4388 = vadd.f32 0.0, %v4387
      %v4389 = vpop.f32.mrb[0].mxu0
      %v4390 = vpop.f32.mrb[0].mxu0
      %v4391 = vadd.f32 0.0, %v4390
      %v4392 = vpop.f32.mrb[0].mxu0
      %4393 = vmatprep.mubr.bf16.mxu0 0
      %4394 = vmatmul.mubr.bf16.gmra.mrb[0].mxu0 %v4246
      %v4395 = vpop.f32.mrb[0].mxu0
      %v4396 = vadd.f32 0.0, %v4395
      %v4397 = vpop.f32.mrb[0].mxu0
      %v4398 = vpop.f32.mrb[0].mxu0
      %v4399 = vadd.f32 0.0, %v4398
      %v4400 = vpop.f32.mrb[0].mxu0
      %4401 = vmatprep.mubr.bf16.mxu0 0
      %4402 = vmatmul.mubr.bf16.gmra.mrb[0].mxu0 %v4249
      %v4403 = vpop.f32.mrb[0].mxu0
      %v4404 = vadd.f32 0.0, %v4403
      %v4405 = vpop.f32.mrb[0].mxu0
      %v4406 = vpop.f32.mrb[0].mxu0
      %v4407 = vadd.f32 0.0, %v4406
      %v4408 = vpop.f32.mrb[0].mxu0
      %4409 = vmatprep.mubr.bf16.mxu0 0
      %4410 = vmatmul.mubr.bf16.gmra.mrb[0].mxu0 %v4252
      %v4411 = vpop.f32.mrb[0].mxu0
      %v4412 = vadd.f32 0.0, %v4411
      %v4413 = vpop.f32.mrb[0].mxu0
      %v4414 = vpop.f32.mrb[0].mxu0
      %v4415 = vadd.f32 0.0, %v4414
      %v4416 = vpop.f32.mrb[0].mxu0
      %4417 = vdwg.mxu0
      %v4418 = vld [vmem:[#allocation5] sm:$0xff]
      %v4419 = vld [vmem:[#allocation5 + $0x8] sm:$0xff]
      %v4420 = vld [vmem:[#allocation5 + $0x10] sm:$0xff]
      %v4421 = vld [vmem:[#allocation5 + $0x18] sm:$0xff]
      %v4422 = vld [vmem:[#allocation5 + $0x20] sm:$0xff]
      %v4423 = vld [vmem:[#allocation5 + $0x28] sm:$0xff]
      %v4424 = vld [vmem:[#allocation5 + $0x30] sm:$0xff]
      %v4425 = vld [vmem:[#allocation5 + $0x38] sm:$0xff]
      %v4426 = vld [vmem:[#allocation5 + $0x40] sm:$0xff]
      %v4427 = vld [vmem:[#allocation5 + $0x48] sm:$0xff]
      %v4428 = vld [vmem:[#allocation5 + $0x50] sm:$0xff]
      %v4429 = vld [vmem:[#allocation5 + $0x58] sm:$0xff]
      %v4430 = vld [vmem:[#allocation5 + $0x60] sm:$0xff]
      %v4431 = vld [vmem:[#allocation5 + $0x68] sm:$0xff]
      %v4432 = vld [vmem:[#allocation5 + $0x70] sm:$0xff]
      %v4433 = vld [vmem:[#allocation5 + $0x78] sm:$0xff]
      %v4434 = vld [vmem:[#allocation5 + $0x80] sm:$0xff]
      %v4435 = vld [vmem:[#allocation5 + $0x88] sm:$0xff]
      %v4436 = vld [vmem:[#allocation5 + $0x90] sm:$0xff]
      %v4437 = vld [vmem:[#allocation5 + $0x98] sm:$0xff]
      %v4438 = vld [vmem:[#allocation5 + $0xa0] sm:$0xff]
      %v4439 = vld [vmem:[#allocation5 + $0xa8] sm:$0xff]
      %v4440 = vld [vmem:[#allocation5 + $0xb0] sm:$0xff]
      %v4441 = vld [vmem:[#allocation5 + $0xb8] sm:$0xff]
      %v4442 = vld [vmem:[#allocation5 + $0xc0] sm:$0xff]
      %v4443 = vld [vmem:[#allocation5 + $0xc8] sm:$0xff]
      %v4444 = vld [vmem:[#allocation5 + $0xd0] sm:$0xff]
      %v4445 = vld [vmem:[#allocation5 + $0xd8] sm:$0xff]
      %v4446 = vld [vmem:[#allocation5 + $0xe0] sm:$0xff]
      %v4447 = vld [vmem:[#allocation5 + $0xe8] sm:$0xff]
      %v4448 = vld [vmem:[#allocation5 + $0xf0] sm:$0xff]
      %v4449 = vld [vmem:[#allocation5 + $0xf8] sm:$0xff]
      %v4450 = vadd.f32 %v4418, %v4292
      %v4451 = vadd.f32 %v4419, %v4295
      %v4452 = vadd.f32 %v4420, %v4300
      %v4453 = vadd.f32 %v4421, %v4303
      %v4454 = vadd.f32 %v4422, %v4308
      %v4455 = vadd.f32 %v4423, %v4311
      %v4456 = vadd.f32 %v4424, %v4316
      %v4457 = vadd.f32 %v4425, %v4319
      %v4458 = vadd.f32 %v4426, %v4324
      %v4459 = vadd.f32 %v4427, %v4327
      %v4460 = vadd.f32 %v4428, %v4332
      %v4461 = vadd.f32 %v4429, %v4335
      %v4462 = vadd.f32 %v4430, %v4340
      %v4463 = vadd.f32 %v4431, %v4343
      %v4464 = vadd.f32 %v4432, %v4348
      %v4465 = vadd.f32 %v4433, %v4351
      %v4466 = vadd.f32 %v4434, %v4356
      %v4467 = vadd.f32 %v4435, %v4359
      %v4468 = vadd.f32 %v4436, %v4364
      %v4469 = vadd.f32 %v4437, %v4367
      %v4470 = vadd.f32 %v4438, %v4372
      %v4471 = vadd.f32 %v4439, %v4375
      %v4472 = vadd.f32 %v4440, %v4380
      %v4473 = vadd.f32 %v4441, %v4383
      %v4474 = vadd.f32 %v4442, %v4388
      %v4475 = vadd.f32 %v4443, %v4391
      %v4476 = vadd.f32 %v4444, %v4396
      %v4477 = vadd.f32 %v4445, %v4399
      %v4478 = vadd.f32 %v4446, %v4404
      %v4479 = vadd.f32 %v4447, %v4407
      %v4480 = vadd.f32 %v4448, %v4412
      %v4481 = vadd.f32 %v4449, %v4415
      %4482 = vst.msk [vmem:[#allocation5] sm:$0xff] %vm4123, %v4450
      %4483 = vst.msk [vmem:[#allocation5 + $0x8] sm:$0xff] %vm4123, %v4451
      %4484 = vst.msk [vmem:[#allocation5 + $0x10] sm:$0xff] %vm4123, %v4452
      %4485 = vst.msk [vmem:[#allocation5 + $0x18] sm:$0xff] %vm4123, %v4453
      %4486 = vst.msk [vmem:[#allocation5 + $0x20] sm:$0xff] %vm4123, %v4454
      %4487 = vst.msk [vmem:[#allocation5 + $0x28] sm:$0xff] %vm4123, %v4455
      %4488 = vst.msk [vmem:[#allocation5 + $0x30] sm:$0xff] %vm4123, %v4456
      %4489 = vst.msk [vmem:[#allocation5 + $0x38] sm:$0xff] %vm4123, %v4457
      %4490 = vst.msk [vmem:[#allocation5 + $0x40] sm:$0xff] %vm4123, %v4458
      %4491 = vst.msk [vmem:[#allocation5 + $0x48] sm:$0xff] %vm4123, %v4459
      %4492 = vst.msk [vmem:[#allocation5 + $0x50] sm:$0xff] %vm4123, %v4460
      %4493 = vst.msk [vmem:[#allocation5 + $0x58] sm:$0xff] %vm4123, %v4461
      %4494 = vst.msk [vmem:[#allocation5 + $0x60] sm:$0xff] %vm4123, %v4462
      %4495 = vst.msk [vmem:[#allocation5 + $0x68] sm:$0xff] %vm4123, %v4463
      %4496 = vst.msk [vmem:[#allocation5 + $0x70] sm:$0xff] %vm4123, %v4464
      %4497 = vst.msk [vmem:[#allocation5 + $0x78] sm:$0xff] %vm4123, %v4465
      %4498 = vst.msk [vmem:[#allocation5 + $0x80] sm:$0xff] %vm4123, %v4466
      %4499 = vst.msk [vmem:[#allocation5 + $0x88] sm:$0xff] %vm4123, %v4467
      %4500 = vst.msk [vmem:[#allocation5 + $0x90] sm:$0xff] %vm4123, %v4468
      %4501 = vst.msk [vmem:[#allocation5 + $0x98] sm:$0xff] %vm4123, %v4469
      %4502 = vst.msk [vmem:[#allocation5 + $0xa0] sm:$0xff] %vm4123, %v4470
      %4503 = vst.msk [vmem:[#allocation5 + $0xa8] sm:$0xff] %vm4123, %v4471
      %4504 = vst.msk [vmem:[#allocation5 + $0xb0] sm:$0xff] %vm4123, %v4472
      %4505 = vst.msk [vmem:[#allocation5 + $0xb8] sm:$0xff] %vm4123, %v4473
      %4506 = vst.msk [vmem:[#allocation5 + $0xc0] sm:$0xff] %vm4123, %v4474
      %4507 = vst.msk [vmem:[#allocation5 + $0xc8] sm:$0xff] %vm4123, %v4475
      %4508 = vst.msk [vmem:[#allocation5 + $0xd0] sm:$0xff] %vm4123, %v4476
      %4509 = vst.msk [vmem:[#allocation5 + $0xd8] sm:$0xff] %vm4123, %v4477
      %4510 = vst.msk [vmem:[#allocation5 + $0xe0] sm:$0xff] %vm4123, %v4478
      %4511 = vst.msk [vmem:[#allocation5 + $0xe8] sm:$0xff] %vm4123, %v4479
      %4512 = vst.msk [vmem:[#allocation5 + $0xf0] sm:$0xff] %vm4123, %v4480
      %4513 = vst.msk [vmem:[#allocation5 + $0xf8] sm:$0xff] %vm4123, %v4481
      %v4514 = vld [vmem:[#allocation3 + $0x2] sm:$0xff]
      %v4515 = vld [vmem:[#allocation3 + $0xa] sm:$0xff]
      %v4516 = vld [vmem:[#allocation3 + $0x1a] sm:$0xff]
      %v4517 = vld [vmem:[#allocation3 + $0x22] sm:$0xff]
      %v4518 = vld [vmem:[#allocation3 + $0x32] sm:$0xff]
      %v4519 = vld [vmem:[#allocation3 + $0x3a] sm:$0xff]
      %v4520 = vld [vmem:[#allocation3 + $0x4a] sm:$0xff]
      %v4521 = vld [vmem:[#allocation3 + $0x52] sm:$0xff]
      %v4522 = vld [vmem:[#allocation3 + $0x62] sm:$0xff]
      %v4523 = vld [vmem:[#allocation3 + $0x6a] sm:$0xff]
      %v4524 = vld [vmem:[#allocation3 + $0x7a] sm:$0xff]
      %v4525 = vld [vmem:[#allocation3 + $0x82] sm:$0xff]
      %v4526 = vld [vmem:[#allocation3 + $0x92] sm:$0xff]
      %v4527 = vld [vmem:[#allocation3 + $0x9a] sm:$0xff]
      %v4528 = vld [vmem:[#allocation3 + $0xaa] sm:$0xff]
      %v4529 = vld [vmem:[#allocation3 + $0xb2] sm:$0xff]
      %v4530 = vld [vmem:[#allocation3 + $0xc2] sm:$0xff]
      %v4531 = vld [vmem:[#allocation3 + $0xca] sm:$0xff]
      %v4532 = vld [vmem:[#allocation3 + $0xda] sm:$0xff]
      %v4533 = vld [vmem:[#allocation3 + $0xe2] sm:$0xff]
      %v4534 = vld [vmem:[#allocation3 + $0xf2] sm:$0xff]
      %v4535 = vld [vmem:[#allocation3 + $0xfa] sm:$0xff]
      %v4536 = vld [vmem:[#allocation3 + $0x10a] sm:$0xff]
      %v4537 = vld [vmem:[#allocation3 + $0x112] sm:$0xff]
      %v4538 = vld [vmem:[#allocation3 + $0x122] sm:$0xff]
      %v4539 = vld [vmem:[#allocation3 + $0x12a] sm:$0xff]
      %v4540 = vld [vmem:[#allocation3 + $0x13a] sm:$0xff]
      %v4541 = vld [vmem:[#allocation3 + $0x142] sm:$0xff]
      %v4542 = vld [vmem:[#allocation3 + $0x152] sm:$0xff]
      %v4543 = vld [vmem:[#allocation3 + $0x15a] sm:$0xff]
      %v4544 = vld [vmem:[#allocation3 + $0x16a] sm:$0xff]
      %v4545 = vld [vmem:[#allocation3 + $0x172] sm:$0xff]
      %v4546 = vpack.c.bf16 %v4515, %v4514
      %v4547 = vpack.c.bf16 %v4517, %v4516
      %v4548 = vpack.c.bf16 %v4519, %v4518
      %v4549 = vpack.c.bf16 %v4521, %v4520
      %v4550 = vpack.c.bf16 %v4523, %v4522
      %v4551 = vpack.c.bf16 %v4525, %v4524
      %v4552 = vpack.c.bf16 %v4527, %v4526
      %v4553 = vpack.c.bf16 %v4529, %v4528
      %v4554 = vpack.c.bf16 %v4531, %v4530
      %v4555 = vpack.c.bf16 %v4533, %v4532
      %v4556 = vpack.c.bf16 %v4535, %v4534
      %v4557 = vpack.c.bf16 %v4537, %v4536
      %v4558 = vpack.c.bf16 %v4539, %v4538
      %v4559 = vpack.c.bf16 %v4541, %v4540
      %v4560 = vpack.c.bf16 %v4543, %v4542
      %v4561 = vpack.c.bf16 %v4545, %v4544
      %s4562 = scalar_lea.vmem %s3, 4
      %v4563 = vld [vmem:[%s4562] sm:$0x3]
      %v4565 = vsel %vm381, %v4546, 0
      %v4568 = vsel %vm381, %v4547, 0
      %v4571 = vsel %vm381, %v4548, 0
      %v4574 = vsel %vm381, %v4549, 0
      %v4577 = vsel %vm381, %v4550, 0
      %v4580 = vsel %vm381, %v4551, 0
      %v4583 = vsel %vm381, %v4552, 0
      %v4586 = vsel %vm381, %v4553, 0
      %v4589 = vsel %vm381, %v4554, 0
      %v4592 = vsel %vm381, %v4555, 0
      %v4595 = vsel %vm381, %v4556, 0
      %v4598 = vsel %vm381, %v4557, 0
      %v4601 = vsel %vm381, %v4558, 0
      %v4604 = vsel %vm381, %v4559, 0
      %v4607 = vsel %vm381, %v4560, 0
      %v4610 = vsel %vm381, %v4561, 0
      %v4613 = vsel %vm557, %v4563, 0
      %4615 = vmatprep.subr.bf16.mxu0 0
      %4616 = vmatpush1.bf16.msra.mxu0 %v4613
      %4617 = vmatprep.subr.bf16.mxu0 0
      %4618 = vmatpush1.bf16.msra.mxu0 0
      %4619 = vmatprep.subr.bf16.mxu0 0
      %4620 = vmatpush1.bf16.msra.mxu0 0
      %4621 = vmatprep.subr.bf16.mxu0 0
      %4622 = vmatpush1.bf16.msra.mxu0 0
      %4623 = vmatprep.subr.bf16.mxu0 0
      %4624 = vmatpush1.bf16.msra.mxu0 0
      %4625 = vmatprep.subr.bf16.mxu0 0
      %4626 = vmatpush1.bf16.msra.mxu0 0
      %4627 = vmatprep.subr.bf16.mxu0 0
      %4628 = vmatpush1.bf16.msra.mxu0 0
      %4629 = vmatprep.subr.bf16.mxu0 0
      %4630 = vmatpush1.bf16.msra.mxu0 0
      %4631 = vmatprep.subr.bf16.mxu0 0
      %4632 = vmatpush1.bf16.msra.mxu0 0
      %4633 = vmatprep.subr.bf16.mxu0 0
      %4634 = vmatpush1.bf16.msra.mxu0 0
      %4635 = vmatprep.subr.bf16.mxu0 0
      %4636 = vmatpush1.bf16.msra.mxu0 0
      %4637 = vmatprep.subr.bf16.mxu0 0
      %4638 = vmatpush1.bf16.msra.mxu0 0
      %4639 = vmatprep.subr.bf16.mxu0 0
      %4640 = vmatpush1.bf16.msra.mxu0 0
      %4641 = vmatprep.subr.bf16.mxu0 0
      %4642 = vmatpush1.bf16.msra.mxu0 0
      %4643 = vmatprep.subr.bf16.mxu0 0
      %4644 = vmatpush1.bf16.msra.mxu0 0
      %4645 = vmatprep.subr.bf16.mxu0 0
      %4646 = vmatpush1.bf16.msra.mxu0 0
      %4647 = vmatprep.mubr.bf16.mxu0 0
      %4648 = vmatmul.mubr.bf16.gmra.mrb[0].mxu0 %v4565
      %v4649 = vpop.f32.mrb[0].mxu0
      %v4650 = vadd.f32 0.0, %v4649
      %v4651 = vpop.f32.mrb[0].mxu0
      %v4652 = vpop.f32.mrb[0].mxu0
      %v4653 = vadd.f32 0.0, %v4652
      %v4654 = vpop.f32.mrb[0].mxu0
      %4655 = vmatprep.mubr.bf16.mxu0 0
      %4656 = vmatmul.mubr.bf16.gmra.mrb[0].mxu0 %v4568
      %v4657 = vpop.f32.mrb[0].mxu0
      %v4658 = vadd.f32 0.0, %v4657
      %v4659 = vpop.f32.mrb[0].mxu0
      %v4660 = vpop.f32.mrb[0].mxu0
      %v4661 = vadd.f32 0.0, %v4660
      %v4662 = vpop.f32.mrb[0].mxu0
      %4663 = vmatprep.mubr.bf16.mxu0 0
      %4664 = vmatmul.mubr.bf16.gmra.mrb[0].mxu0 %v4571
      %v4665 = vpop.f32.mrb[0].mxu0
      %v4666 = vadd.f32 0.0, %v4665
      %v4667 = vpop.f32.mrb[0].mxu0
      %v4668 = vpop.f32.mrb[0].mxu0
      %v4669 = vadd.f32 0.0, %v4668
      %v4670 = vpop.f32.mrb[0].mxu0
      %4671 = vmatprep.mubr.bf16.mxu0 0
      %4672 = vmatmul.mubr.bf16.gmra.mrb[0].mxu0 %v4574
      %v4673 = vpop.f32.mrb[0].mxu0
      %v4674 = vadd.f32 0.0, %v4673
      %v4675 = vpop.f32.mrb[0].mxu0
      %v4676 = vpop.f32.mrb[0].mxu0
      %v4677 = vadd.f32 0.0, %v4676
      %v4678 = vpop.f32.mrb[0].mxu0
      %4679 = vmatprep.mubr.bf16.mxu0 0
      %4680 = vmatmul.mubr.bf16.gmra.mrb[0].mxu0 %v4577
      %v4681 = vpop.f32.mrb[0].mxu0
      %v4682 = vadd.f32 0.0, %v4681
      %v4683 = vpop.f32.mrb[0].mxu0
      %v4684 = vpop.f32.mrb[0].mxu0
      %v4685 = vadd.f32 0.0, %v4684
      %v4686 = vpop.f32.mrb[0].mxu0
      %4687 = vmatprep.mubr.bf16.mxu0 0
      %4688 = vmatmul.mubr.bf16.gmra.mrb[0].mxu0 %v4580
      %v4689 = vpop.f32.mrb[0].mxu0
      %v4690 = vadd.f32 0.0, %v4689
      %v4691 = vpop.f32.mrb[0].mxu0
      %v4692 = vpop.f32.mrb[0].mxu0
      %v4693 = vadd.f32 0.0, %v4692
      %v4694 = vpop.f32.mrb[0].mxu0
      %4695 = vmatprep.mubr.bf16.mxu0 0
      %4696 = vmatmul.mubr.bf16.gmra.mrb[0].mxu0 %v4583
      %v4697 = vpop.f32.mrb[0].mxu0
      %v4698 = vadd.f32 0.0, %v4697
      %v4699 = vpop.f32.mrb[0].mxu0
      %v4700 = vpop.f32.mrb[0].mxu0
      %v4701 = vadd.f32 0.0, %v4700
      %v4702 = vpop.f32.mrb[0].mxu0
      %4703 = vmatprep.mubr.bf16.mxu0 0
      %4704 = vmatmul.mubr.bf16.gmra.mrb[0].mxu0 %v4586
      %v4705 = vpop.f32.mrb[0].mxu0
      %v4706 = vadd.f32 0.0, %v4705
      %v4707 = vpop.f32.mrb[0].mxu0
      %v4708 = vpop.f32.mrb[0].mxu0
      %v4709 = vadd.f32 0.0, %v4708
      %v4710 = vpop.f32.mrb[0].mxu0
      %4711 = vmatprep.mubr.bf16.mxu0 0
      %4712 = vmatmul.mubr.bf16.gmra.mrb[0].mxu0 %v4589
      %v4713 = vpop.f32.mrb[0].mxu0
      %v4714 = vadd.f32 0.0, %v4713
      %v4715 = vpop.f32.mrb[0].mxu0
      %v4716 = vpop.f32.mrb[0].mxu0
      %v4717 = vadd.f32 0.0, %v4716
      %v4718 = vpop.f32.mrb[0].mxu0
      %4719 = vmatprep.mubr.bf16.mxu0 0
      %4720 = vmatmul.mubr.bf16.gmra.mrb[0].mxu0 %v4592
      %v4721 = vpop.f32.mrb[0].mxu0
      %v4722 = vadd.f32 0.0, %v4721
      %v4723 = vpop.f32.mrb[0].mxu0
      %v4724 = vpop.f32.mrb[0].mxu0
      %v4725 = vadd.f32 0.0, %v4724
      %v4726 = vpop.f32.mrb[0].mxu0
      %4727 = vmatprep.mubr.bf16.mxu0 0
      %4728 = vmatmul.mubr.bf16.gmra.mrb[0].mxu0 %v4595
      %v4729 = vpop.f32.mrb[0].mxu0
      %v4730 = vadd.f32 0.0, %v4729
      %v4731 = vpop.f32.mrb[0].mxu0
      %v4732 = vpop.f32.mrb[0].mxu0
      %v4733 = vadd.f32 0.0, %v4732
      %v4734 = vpop.f32.mrb[0].mxu0
      %4735 = vmatprep.mubr.bf16.mxu0 0
      %4736 = vmatmul.mubr.bf16.gmra.mrb[0].mxu0 %v4598
      %v4737 = vpop.f32.mrb[0].mxu0
      %v4738 = vadd.f32 0.0, %v4737
      %v4739 = vpop.f32.mrb[0].mxu0
      %v4740 = vpop.f32.mrb[0].mxu0
      %v4741 = vadd.f32 0.0, %v4740
      %v4742 = vpop.f32.mrb[0].mxu0
      %4743 = vmatprep.mubr.bf16.mxu0 0
      %4744 = vmatmul.mubr.bf16.gmra.mrb[0].mxu0 %v4601
      %v4745 = vpop.f32.mrb[0].mxu0
      %v4746 = vadd.f32 0.0, %v4745
      %v4747 = vpop.f32.mrb[0].mxu0
      %v4748 = vpop.f32.mrb[0].mxu0
      %v4749 = vadd.f32 0.0, %v4748
      %v4750 = vpop.f32.mrb[0].mxu0
      %4751 = vmatprep.mubr.bf16.mxu0 0
      %4752 = vmatmul.mubr.bf16.gmra.mrb[0].mxu0 %v4604
      %v4753 = vpop.f32.mrb[0].mxu0
      %v4754 = vadd.f32 0.0, %v4753
      %v4755 = vpop.f32.mrb[0].mxu0
      %v4756 = vpop.f32.mrb[0].mxu0
      %v4757 = vadd.f32 0.0, %v4756
      %v4758 = vpop.f32.mrb[0].mxu0
      %4759 = vmatprep.mubr.bf16.mxu0 0
      %4760 = vmatmul.mubr.bf16.gmra.mrb[0].mxu0 %v4607
      %v4761 = vpop.f32.mrb[0].mxu0
      %v4762 = vadd.f32 0.0, %v4761
      %v4763 = vpop.f32.mrb[0].mxu0
      %v4764 = vpop.f32.mrb[0].mxu0
      %v4765 = vadd.f32 0.0, %v4764
      %v4766 = vpop.f32.mrb[0].mxu0
      %4767 = vmatprep.mubr.bf16.mxu0 0
      %4768 = vmatmul.mubr.bf16.gmra.mrb[0].mxu0 %v4610
      %v4769 = vpop.f32.mrb[0].mxu0
      %v4770 = vadd.f32 0.0, %v4769
      %v4771 = vpop.f32.mrb[0].mxu0
      %v4772 = vpop.f32.mrb[0].mxu0
      %v4773 = vadd.f32 0.0, %v4772
      %v4774 = vpop.f32.mrb[0].mxu0
      %4775 = vdwg.mxu0
      %v4776 = vld [vmem:[#allocation5] sm:$0xff]
      %v4777 = vld [vmem:[#allocation5 + $0x8] sm:$0xff]
      %v4778 = vld [vmem:[#allocation5 + $0x10] sm:$0xff]
      %v4779 = vld [vmem:[#allocation5 + $0x18] sm:$0xff]
      %v4780 = vld [vmem:[#allocation5 + $0x20] sm:$0xff]
      %v4781 = vld [vmem:[#allocation5 + $0x28] sm:$0xff]
      %v4782 = vld [vmem:[#allocation5 + $0x30] sm:$0xff]
      %v4783 = vld [vmem:[#allocation5 + $0x38] sm:$0xff]
      %v4784 = vld [vmem:[#allocation5 + $0x40] sm:$0xff]
      %v4785 = vld [vmem:[#allocation5 + $0x48] sm:$0xff]
      %v4786 = vld [vmem:[#allocation5 + $0x50] sm:$0xff]
      %v4787 = vld [vmem:[#allocation5 + $0x58] sm:$0xff]
      %v4788 = vld [vmem:[#allocation5 + $0x60] sm:$0xff]
      %v4789 = vld [vmem:[#allocation5 + $0x68] sm:$0xff]
      %v4790 = vld [vmem:[#allocation5 + $0x70] sm:$0xff]
      %v4791 = vld [vmem:[#allocation5 + $0x78] sm:$0xff]
      %v4792 = vld [vmem:[#allocation5 + $0x80] sm:$0xff]
      %v4793 = vld [vmem:[#allocation5 + $0x88] sm:$0xff]
      %v4794 = vld [vmem:[#allocation5 + $0x90] sm:$0xff]
      %v4795 = vld [vmem:[#allocation5 + $0x98] sm:$0xff]
      %v4796 = vld [vmem:[#allocation5 + $0xa0] sm:$0xff]
      %v4797 = vld [vmem:[#allocation5 + $0xa8] sm:$0xff]
      %v4798 = vld [vmem:[#allocation5 + $0xb0] sm:$0xff]
      %v4799 = vld [vmem:[#allocation5 + $0xb8] sm:$0xff]
      %v4800 = vld [vmem:[#allocation5 + $0xc0] sm:$0xff]
      %v4801 = vld [vmem:[#allocation5 + $0xc8] sm:$0xff]
      %v4802 = vld [vmem:[#allocation5 + $0xd0] sm:$0xff]
      %v4803 = vld [vmem:[#allocation5 + $0xd8] sm:$0xff]
      %v4804 = vld [vmem:[#allocation5 + $0xe0] sm:$0xff]
      %v4805 = vld [vmem:[#allocation5 + $0xe8] sm:$0xff]
      %v4806 = vld [vmem:[#allocation5 + $0xf0] sm:$0xff]
      %v4807 = vld [vmem:[#allocation5 + $0xf8] sm:$0xff]
      %v4808 = vadd.f32 %v4776, %v4650
      %v4809 = vadd.f32 %v4777, %v4653
      %v4810 = vadd.f32 %v4778, %v4658
      %v4811 = vadd.f32 %v4779, %v4661
      %v4812 = vadd.f32 %v4780, %v4666
      %v4813 = vadd.f32 %v4781, %v4669
      %v4814 = vadd.f32 %v4782, %v4674
      %v4815 = vadd.f32 %v4783, %v4677
      %v4816 = vadd.f32 %v4784, %v4682
      %v4817 = vadd.f32 %v4785, %v4685
      %v4818 = vadd.f32 %v4786, %v4690
      %v4819 = vadd.f32 %v4787, %v4693
      %v4820 = vadd.f32 %v4788, %v4698
      %v4821 = vadd.f32 %v4789, %v4701
      %v4822 = vadd.f32 %v4790, %v4706
      %v4823 = vadd.f32 %v4791, %v4709
      %v4824 = vadd.f32 %v4792, %v4714
      %v4825 = vadd.f32 %v4793, %v4717
      %v4826 = vadd.f32 %v4794, %v4722
      %v4827 = vadd.f32 %v4795, %v4725
      %v4828 = vadd.f32 %v4796, %v4730
      %v4829 = vadd.f32 %v4797, %v4733
      %v4830 = vadd.f32 %v4798, %v4738
      %v4831 = vadd.f32 %v4799, %v4741
      %v4832 = vadd.f32 %v4800, %v4746
      %v4833 = vadd.f32 %v4801, %v4749
      %v4834 = vadd.f32 %v4802, %v4754
      %v4835 = vadd.f32 %v4803, %v4757
      %v4836 = vadd.f32 %v4804, %v4762
      %v4837 = vadd.f32 %v4805, %v4765
      %v4838 = vadd.f32 %v4806, %v4770
      %v4839 = vadd.f32 %v4807, %v4773
      %4840 = vst.msk [vmem:[#allocation5] sm:$0xff] %vm4123, %v4808
      %4841 = vst.msk [vmem:[#allocation5 + $0x8] sm:$0xff] %vm4123, %v4809
      %4842 = vst.msk [vmem:[#allocation5 + $0x10] sm:$0xff] %vm4123, %v4810
      %4843 = vst.msk [vmem:[#allocation5 + $0x18] sm:$0xff] %vm4123, %v4811
      %4844 = vst.msk [vmem:[#allocation5 + $0x20] sm:$0xff] %vm4123, %v4812
      %4845 = vst.msk [vmem:[#allocation5 + $0x28] sm:$0xff] %vm4123, %v4813
      %4846 = vst.msk [vmem:[#allocation5 + $0x30] sm:$0xff] %vm4123, %v4814
      %4847 = vst.msk [vmem:[#allocation5 + $0x38] sm:$0xff] %vm4123, %v4815
      %4848 = vst.msk [vmem:[#allocation5 + $0x40] sm:$0xff] %vm4123, %v4816
      %4849 = vst.msk [vmem:[#allocation5 + $0x48] sm:$0xff] %vm4123, %v4817
      %4850 = vst.msk [vmem:[#allocation5 + $0x50] sm:$0xff] %vm4123, %v4818
      %4851 = vst.msk [vmem:[#allocation5 + $0x58] sm:$0xff] %vm4123, %v4819
      %4852 = vst.msk [vmem:[#allocation5 + $0x60] sm:$0xff] %vm4123, %v4820
      %4853 = vst.msk [vmem:[#allocation5 + $0x68] sm:$0xff] %vm4123, %v4821
      %4854 = vst.msk [vmem:[#allocation5 + $0x70] sm:$0xff] %vm4123, %v4822
      %4855 = vst.msk [vmem:[#allocation5 + $0x78] sm:$0xff] %vm4123, %v4823
      %4856 = vst.msk [vmem:[#allocation5 + $0x80] sm:$0xff] %vm4123, %v4824
      %4857 = vst.msk [vmem:[#allocation5 + $0x88] sm:$0xff] %vm4123, %v4825
      %4858 = vst.msk [vmem:[#allocation5 + $0x90] sm:$0xff] %vm4123, %v4826
      %4859 = vst.msk [vmem:[#allocation5 + $0x98] sm:$0xff] %vm4123, %v4827
      %4860 = vst.msk [vmem:[#allocation5 + $0xa0] sm:$0xff] %vm4123, %v4828
      %4861 = vst.msk [vmem:[#allocation5 + $0xa8] sm:$0xff] %vm4123, %v4829
      %4862 = vst.msk [vmem:[#allocation5 + $0xb0] sm:$0xff] %vm4123, %v4830
      %4863 = vst.msk [vmem:[#allocation5 + $0xb8] sm:$0xff] %vm4123, %v4831
      %4864 = vst.msk [vmem:[#allocation5 + $0xc0] sm:$0xff] %vm4123, %v4832
      %4865 = vst.msk [vmem:[#allocation5 + $0xc8] sm:$0xff] %vm4123, %v4833
      %4866 = vst.msk [vmem:[#allocation5 + $0xd0] sm:$0xff] %vm4123, %v4834
      %4867 = vst.msk [vmem:[#allocation5 + $0xd8] sm:$0xff] %vm4123, %v4835
      %4868 = vst.msk [vmem:[#allocation5 + $0xe0] sm:$0xff] %vm4123, %v4836
      %4869 = vst.msk [vmem:[#allocation5 + $0xe8] sm:$0xff] %vm4123, %v4837
      %4870 = vst.msk [vmem:[#allocation5 + $0xf0] sm:$0xff] %vm4123, %v4838
      %4871 = vst.msk [vmem:[#allocation5 + $0xf8] sm:$0xff] %vm4123, %v4839
      %v4872 = vld [vmem:[%s3829] sm:$0xff]
      %v4873 = vld [vmem:[%s3829 + $0x8] sm:$0xff]
      %v4874 = vld [vmem:[%s3829 + $0x18] sm:$0xff]
      %v4875 = vld [vmem:[%s3829 + $0x20] sm:$0xff]
      %v4876 = vld [vmem:[%s3829 + $0x30] sm:$0xff]
      %v4877 = vld [vmem:[%s3829 + $0x38] sm:$0xff]
      %v4878 = vld [vmem:[%s3829 + $0x48] sm:$0xff]
      %v4879 = vld [vmem:[%s3829 + $0x50] sm:$0xff]
      %v4880 = vld [vmem:[%s3829 + $0x60] sm:$0xff]
      %v4881 = vld [vmem:[%s3829 + $0x68] sm:$0xff]
      %v4882 = vld [vmem:[%s3829 + $0x78] sm:$0xff]
      %v4883 = vld [vmem:[%s3829 + $0x80] sm:$0xff]
      %v4884 = vld [vmem:[%s3829 + $0x90] sm:$0xff]
      %v4885 = vld [vmem:[%s3829 + $0x98] sm:$0xff]
      %v4886 = vld [vmem:[%s3829 + $0xa8] sm:$0xff]
      %v4887 = vld [vmem:[%s3829 + $0xb0] sm:$0xff]
      %v4888 = vld [vmem:[%s3829 + $0xc0] sm:$0xff]
      %v4889 = vld [vmem:[%s3829 + $0xc8] sm:$0xff]
      %v4890 = vld [vmem:[%s3829 + $0xd8] sm:$0xff]
      %v4891 = vld [vmem:[%s3829 + $0xe0] sm:$0xff]
      %v4892 = vld [vmem:[%s3829 + $0xf0] sm:$0xff]
      %v4893 = vld [vmem:[%s3829 + $0xf8] sm:$0xff]
      %v4894 = vld [vmem:[%s3829 + $0x108] sm:$0xff]
      %v4895 = vld [vmem:[%s3829 + $0x110] sm:$0xff]
      %v4896 = vld [vmem:[%s3829 + $0x120] sm:$0xff]
      %v4897 = vld [vmem:[%s3829 + $0x128] sm:$0xff]
      %v4898 = vld [vmem:[%s3829 + $0x138] sm:$0xff]
      %v4899 = vld [vmem:[%s3829 + $0x140] sm:$0xff]
      %v4900 = vld [vmem:[%s3829 + $0x150] sm:$0xff]
      %v4901 = vld [vmem:[%s3829 + $0x158] sm:$0xff]
      %v4902 = vld [vmem:[%s3829 + $0x168] sm:$0xff]
      %v4903 = vld [vmem:[%s3829 + $0x170] sm:$0xff]
      %v4904 = vpack.c.bf16 %v4873, %v4872
      %v4905 = vpack.c.bf16 %v4875, %v4874
      %v4906 = vpack.c.bf16 %v4877, %v4876
      %v4907 = vpack.c.bf16 %v4879, %v4878
      %v4908 = vpack.c.bf16 %v4881, %v4880
      %v4909 = vpack.c.bf16 %v4883, %v4882
      %v4910 = vpack.c.bf16 %v4885, %v4884
      %v4911 = vpack.c.bf16 %v4887, %v4886
      %v4912 = vpack.c.bf16 %v4889, %v4888
      %v4913 = vpack.c.bf16 %v4891, %v4890
      %v4914 = vpack.c.bf16 %v4893, %v4892
      %v4915 = vpack.c.bf16 %v4895, %v4894
      %v4916 = vpack.c.bf16 %v4897, %v4896
      %v4917 = vpack.c.bf16 %v4899, %v4898
      %v4918 = vpack.c.bf16 %v4901, %v4900
      %v4919 = vpack.c.bf16 %v4903, %v4902
      %s4920 = scalar_lea.vmem %s3, 6
      %v4921 = vld [vmem:[%s4920] sm:$0x3]
      %v4923 = vsel %vm381, %v4904, 0
      %v4926 = vsel %vm381, %v4905, 0
      %v4929 = vsel %vm381, %v4906, 0
      %v4932 = vsel %vm381, %v4907, 0
      %v4935 = vsel %vm381, %v4908, 0
      %v4938 = vsel %vm381, %v4909, 0
      %v4941 = vsel %vm381, %v4910, 0
      %v4944 = vsel %vm381, %v4911, 0
      %v4947 = vsel %vm381, %v4912, 0
      %v4950 = vsel %vm381, %v4913, 0
      %v4953 = vsel %vm381, %v4914, 0
      %v4956 = vsel %vm381, %v4915, 0
      %v4959 = vsel %vm381, %v4916, 0
      %v4962 = vsel %vm381, %v4917, 0
      %v4965 = vsel %vm381, %v4918, 0
      %v4968 = vsel %vm381, %v4919, 0
      %v4971 = vsel %vm557, %v4921, 0
      %4973 = vmatprep.subr.bf16.mxu0 0
      %4974 = vmatpush1.bf16.msra.mxu0 %v4971
      %4975 = vmatprep.subr.bf16.mxu0 0
      %4976 = vmatpush1.bf16.msra.mxu0 0
      %4977 = vmatprep.subr.bf16.mxu0 0
      %4978 = vmatpush1.bf16.msra.mxu0 0
      %4979 = vmatprep.subr.bf16.mxu0 0
      %4980 = vmatpush1.bf16.msra.mxu0 0
      %4981 = vmatprep.subr.bf16.mxu0 0
      %4982 = vmatpush1.bf16.msra.mxu0 0
      %4983 = vmatprep.subr.bf16.mxu0 0
      %4984 = vmatpush1.bf16.msra.mxu0 0
      %4985 = vmatprep.subr.bf16.mxu0 0
      %4986 = vmatpush1.bf16.msra.mxu0 0
      %4987 = vmatprep.subr.bf16.mxu0 0
      %4988 = vmatpush1.bf16.msra.mxu0 0
      %4989 = vmatprep.subr.bf16.mxu0 0
      %4990 = vmatpush1.bf16.msra.mxu0 0
      %4991 = vmatprep.subr.bf16.mxu0 0
      %4992 = vmatpush1.bf16.msra.mxu0 0
      %4993 = vmatprep.subr.bf16.mxu0 0
      %4994 = vmatpush1.bf16.msra.mxu0 0
      %4995 = vmatprep.subr.bf16.mxu0 0
      %4996 = vmatpush1.bf16.msra.mxu0 0
      %4997 = vmatprep.subr.bf16.mxu0 0
      %4998 = vmatpush1.bf16.msra.mxu0 0
      %4999 = vmatprep.subr.bf16.mxu0 0
      %5000 = vmatpush1.bf16.msra.mxu0 0
      %5001 = vmatprep.subr.bf16.mxu0 0
      %5002 = vmatpush1.bf16.msra.mxu0 0
      %5003 = vmatprep.subr.bf16.mxu0 0
      %5004 = vmatpush1.bf16.msra.mxu0 0
      %5005 = vmatprep.mubr.bf16.mxu0 0
      %5006 = vmatmul.mubr.bf16.gmra.mrb[0].mxu0 %v4923
      %v5007 = vpop.f32.mrb[0].mxu0
      %v5008 = vadd.f32 0.0, %v5007
      %v5009 = vpop.f32.mrb[0].mxu0
      %v5010 = vpop.f32.mrb[0].mxu0
      %v5011 = vadd.f32 0.0, %v5010
      %v5012 = vpop.f32.mrb[0].mxu0
      %5013 = vmatprep.mubr.bf16.mxu0 0
      %5014 = vmatmul.mubr.bf16.gmra.mrb[0].mxu0 %v4926
      %v5015 = vpop.f32.mrb[0].mxu0
      %v5016 = vadd.f32 0.0, %v5015
      %v5017 = vpop.f32.mrb[0].mxu0
      %v5018 = vpop.f32.mrb[0].mxu0
      %v5019 = vadd.f32 0.0, %v5018
      %v5020 = vpop.f32.mrb[0].mxu0
      %5021 = vmatprep.mubr.bf16.mxu0 0
      %5022 = vmatmul.mubr.bf16.gmra.mrb[0].mxu0 %v4929
      %v5023 = vpop.f32.mrb[0].mxu0
      %v5024 = vadd.f32 0.0, %v5023
      %v5025 = vpop.f32.mrb[0].mxu0
      %v5026 = vpop.f32.mrb[0].mxu0
      %v5027 = vadd.f32 0.0, %v5026
      %v5028 = vpop.f32.mrb[0].mxu0
      %5029 = vmatprep.mubr.bf16.mxu0 0
      %5030 = vmatmul.mubr.bf16.gmra.mrb[0].mxu0 %v4932
      %v5031 = vpop.f32.mrb[0].mxu0
      %v5032 = vadd.f32 0.0, %v5031
      %v5033 = vpop.f32.mrb[0].mxu0
      %v5034 = vpop.f32.mrb[0].mxu0
      %v5035 = vadd.f32 0.0, %v5034
      %v5036 = vpop.f32.mrb[0].mxu0
      %5037 = vmatprep.mubr.bf16.mxu0 0
      %5038 = vmatmul.mubr.bf16.gmra.mrb[0].mxu0 %v4935
      %v5039 = vpop.f32.mrb[0].mxu0
      %v5040 = vadd.f32 0.0, %v5039
      %v5041 = vpop.f32.mrb[0].mxu0
      %v5042 = vpop.f32.mrb[0].mxu0
      %v5043 = vadd.f32 0.0, %v5042
      %v5044 = vpop.f32.mrb[0].mxu0
      %5045 = vmatprep.mubr.bf16.mxu0 0
      %5046 = vmatmul.mubr.bf16.gmra.mrb[0].mxu0 %v4938
      %v5047 = vpop.f32.mrb[0].mxu0
      %v5048 = vadd.f32 0.0, %v5047
      %v5049 = vpop.f32.mrb[0].mxu0
      %v5050 = vpop.f32.mrb[0].mxu0
      %v5051 = vadd.f32 0.0, %v5050
      %v5052 = vpop.f32.mrb[0].mxu0
      %5053 = vmatprep.mubr.bf16.mxu0 0
      %5054 = vmatmul.mubr.bf16.gmra.mrb[0].mxu0 %v4941
      %v5055 = vpop.f32.mrb[0].mxu0
      %v5056 = vadd.f32 0.0, %v5055
      %v5057 = vpop.f32.mrb[0].mxu0
      %v5058 = vpop.f32.mrb[0].mxu0
      %v5059 = vadd.f32 0.0, %v5058
      %v5060 = vpop.f32.mrb[0].mxu0
      %5061 = vmatprep.mubr.bf16.mxu0 0
      %5062 = vmatmul.mubr.bf16.gmra.mrb[0].mxu0 %v4944
      %v5063 = vpop.f32.mrb[0].mxu0
      %v5064 = vadd.f32 0.0, %v5063
      %v5065 = vpop.f32.mrb[0].mxu0
      %v5066 = vpop.f32.mrb[0].mxu0
      %v5067 = vadd.f32 0.0, %v5066
      %v5068 = vpop.f32.mrb[0].mxu0
      %5069 = vmatprep.mubr.bf16.mxu0 0
      %5070 = vmatmul.mubr.bf16.gmra.mrb[0].mxu0 %v4947
      %v5071 = vpop.f32.mrb[0].mxu0
      %v5072 = vadd.f32 0.0, %v5071
      %v5073 = vpop.f32.mrb[0].mxu0
      %v5074 = vpop.f32.mrb[0].mxu0
      %v5075 = vadd.f32 0.0, %v5074
      %v5076 = vpop.f32.mrb[0].mxu0
      %5077 = vmatprep.mubr.bf16.mxu0 0
      %5078 = vmatmul.mubr.bf16.gmra.mrb[0].mxu0 %v4950
      %v5079 = vpop.f32.mrb[0].mxu0
      %v5080 = vadd.f32 0.0, %v5079
      %v5081 = vpop.f32.mrb[0].mxu0
      %v5082 = vpop.f32.mrb[0].mxu0
      %v5083 = vadd.f32 0.0, %v5082
      %v5084 = vpop.f32.mrb[0].mxu0
      %5085 = vmatprep.mubr.bf16.mxu0 0
      %5086 = vmatmul.mubr.bf16.gmra.mrb[0].mxu0 %v4953
      %v5087 = vpop.f32.mrb[0].mxu0
      %v5088 = vadd.f32 0.0, %v5087
      %v5089 = vpop.f32.mrb[0].mxu0
      %v5090 = vpop.f32.mrb[0].mxu0
      %v5091 = vadd.f32 0.0, %v5090
      %v5092 = vpop.f32.mrb[0].mxu0
      %5093 = vmatprep.mubr.bf16.mxu0 0
      %5094 = vmatmul.mubr.bf16.gmra.mrb[0].mxu0 %v4956
      %v5095 = vpop.f32.mrb[0].mxu0
      %v5096 = vadd.f32 0.0, %v5095
      %v5097 = vpop.f32.mrb[0].mxu0
      %v5098 = vpop.f32.mrb[0].mxu0
      %v5099 = vadd.f32 0.0, %v5098
      %v5100 = vpop.f32.mrb[0].mxu0
      %5101 = vmatprep.mubr.bf16.mxu0 0
      %5102 = vmatmul.mubr.bf16.gmra.mrb[0].mxu0 %v4959
      %v5103 = vpop.f32.mrb[0].mxu0
      %v5104 = vadd.f32 0.0, %v5103
      %v5105 = vpop.f32.mrb[0].mxu0
      %v5106 = vpop.f32.mrb[0].mxu0
      %v5107 = vadd.f32 0.0, %v5106
      %v5108 = vpop.f32.mrb[0].mxu0
      %5109 = vmatprep.mubr.bf16.mxu0 0
      %5110 = vmatmul.mubr.bf16.gmra.mrb[0].mxu0 %v4962
      %v5111 = vpop.f32.mrb[0].mxu0
      %v5112 = vadd.f32 0.0, %v5111
      %v5113 = vpop.f32.mrb[0].mxu0
      %v5114 = vpop.f32.mrb[0].mxu0
      %v5115 = vadd.f32 0.0, %v5114
      %v5116 = vpop.f32.mrb[0].mxu0
      %5117 = vmatprep.mubr.bf16.mxu0 0
      %5118 = vmatmul.mubr.bf16.gmra.mrb[0].mxu0 %v4965
      %v5119 = vpop.f32.mrb[0].mxu0
      %v5120 = vadd.f32 0.0, %v5119
      %v5121 = vpop.f32.mrb[0].mxu0
      %v5122 = vpop.f32.mrb[0].mxu0
      %v5123 = vadd.f32 0.0, %v5122
      %v5124 = vpop.f32.mrb[0].mxu0
      %5125 = vmatprep.mubr.bf16.mxu0 0
      %5126 = vmatmul.mubr.bf16.gmra.mrb[0].mxu0 %v4968
      %v5127 = vpop.f32.mrb[0].mxu0
      %v5128 = vadd.f32 0.0, %v5127
      %v5129 = vpop.f32.mrb[0].mxu0
      %v5130 = vpop.f32.mrb[0].mxu0
      %v5131 = vadd.f32 0.0, %v5130
      %v5132 = vpop.f32.mrb[0].mxu0
      %5133 = vdwg.mxu0
      %v5134 = vld [vmem:[#allocation5] sm:$0xff]
      %v5135 = vld [vmem:[#allocation5 + $0x8] sm:$0xff]
      %v5136 = vld [vmem:[#allocation5 + $0x10] sm:$0xff]
      %v5137 = vld [vmem:[#allocation5 + $0x18] sm:$0xff]
      %v5138 = vld [vmem:[#allocation5 + $0x20] sm:$0xff]
      %v5139 = vld [vmem:[#allocation5 + $0x28] sm:$0xff]
      %v5140 = vld [vmem:[#allocation5 + $0x30] sm:$0xff]
      %v5141 = vld [vmem:[#allocation5 + $0x38] sm:$0xff]
      %v5142 = vld [vmem:[#allocation5 + $0x40] sm:$0xff]
      %v5143 = vld [vmem:[#allocation5 + $0x48] sm:$0xff]
      %v5144 = vld [vmem:[#allocation5 + $0x50] sm:$0xff]
      %v5145 = vld [vmem:[#allocation5 + $0x58] sm:$0xff]
      %v5146 = vld [vmem:[#allocation5 + $0x60] sm:$0xff]
      %v5147 = vld [vmem:[#allocation5 + $0x68] sm:$0xff]
      %v5148 = vld [vmem:[#allocation5 + $0x70] sm:$0xff]
      %v5149 = vld [vmem:[#allocation5 + $0x78] sm:$0xff]
      %v5150 = vld [vmem:[#allocation5 + $0x80] sm:$0xff]
      %v5151 = vld [vmem:[#allocation5 + $0x88] sm:$0xff]
      %v5152 = vld [vmem:[#allocation5 + $0x90] sm:$0xff]
      %v5153 = vld [vmem:[#allocation5 + $0x98] sm:$0xff]
      %v5154 = vld [vmem:[#allocation5 + $0xa0] sm:$0xff]
      %v5155 = vld [vmem:[#allocation5 + $0xa8] sm:$0xff]
      %v5156 = vld [vmem:[#allocation5 + $0xb0] sm:$0xff]
      %v5157 = vld [vmem:[#allocation5 + $0xb8] sm:$0xff]
      %v5158 = vld [vmem:[#allocation5 + $0xc0] sm:$0xff]
      %v5159 = vld [vmem:[#allocation5 + $0xc8] sm:$0xff]
      %v5160 = vld [vmem:[#allocation5 + $0xd0] sm:$0xff]
      %v5161 = vld [vmem:[#allocation5 + $0xd8] sm:$0xff]
      %v5162 = vld [vmem:[#allocation5 + $0xe0] sm:$0xff]
      %v5163 = vld [vmem:[#allocation5 + $0xe8] sm:$0xff]
      %v5164 = vld [vmem:[#allocation5 + $0xf0] sm:$0xff]
      %v5165 = vld [vmem:[#allocation5 + $0xf8] sm:$0xff]
      %v5166 = vadd.f32 %v5134, %v5008
      %v5167 = vadd.f32 %v5135, %v5011
      %v5168 = vadd.f32 %v5136, %v5016
      %v5169 = vadd.f32 %v5137, %v5019
      %v5170 = vadd.f32 %v5138, %v5024
      %v5171 = vadd.f32 %v5139, %v5027
      %v5172 = vadd.f32 %v5140, %v5032
      %v5173 = vadd.f32 %v5141, %v5035
      %v5174 = vadd.f32 %v5142, %v5040
      %v5175 = vadd.f32 %v5143, %v5043
      %v5176 = vadd.f32 %v5144, %v5048
      %v5177 = vadd.f32 %v5145, %v5051
      %v5178 = vadd.f32 %v5146, %v5056
      %v5179 = vadd.f32 %v5147, %v5059
      %v5180 = vadd.f32 %v5148, %v5064
      %v5181 = vadd.f32 %v5149, %v5067
      %v5182 = vadd.f32 %v5150, %v5072
      %v5183 = vadd.f32 %v5151, %v5075
      %v5184 = vadd.f32 %v5152, %v5080
      %v5185 = vadd.f32 %v5153, %v5083
      %v5186 = vadd.f32 %v5154, %v5088
      %v5187 = vadd.f32 %v5155, %v5091
      %v5188 = vadd.f32 %v5156, %v5096
      %v5189 = vadd.f32 %v5157, %v5099
      %v5190 = vadd.f32 %v5158, %v5104
      %v5191 = vadd.f32 %v5159, %v5107
      %v5192 = vadd.f32 %v5160, %v5112
      %v5193 = vadd.f32 %v5161, %v5115
      %v5194 = vadd.f32 %v5162, %v5120
      %v5195 = vadd.f32 %v5163, %v5123
      %v5196 = vadd.f32 %v5164, %v5128
      %v5197 = vadd.f32 %v5165, %v5131
      %5198 = vst.msk [vmem:[#allocation5] sm:$0xff] %vm4123, %v5166
      %5199 = vst.msk [vmem:[#allocation5 + $0x8] sm:$0xff] %vm4123, %v5167
      %5200 = vst.msk [vmem:[#allocation5 + $0x10] sm:$0xff] %vm4123, %v5168
      %5201 = vst.msk [vmem:[#allocation5 + $0x18] sm:$0xff] %vm4123, %v5169
      %5202 = vst.msk [vmem:[#allocation5 + $0x20] sm:$0xff] %vm4123, %v5170
      %5203 = vst.msk [vmem:[#allocation5 + $0x28] sm:$0xff] %vm4123, %v5171
      %5204 = vst.msk [vmem:[#allocation5 + $0x30] sm:$0xff] %vm4123, %v5172
      %5205 = vst.msk [vmem:[#allocation5 + $0x38] sm:$0xff] %vm4123, %v5173
      %5206 = vst.msk [vmem:[#allocation5 + $0x40] sm:$0xff] %vm4123, %v5174
      %5207 = vst.msk [vmem:[#allocation5 + $0x48] sm:$0xff] %vm4123, %v5175
      %5208 = vst.msk [vmem:[#allocation5 + $0x50] sm:$0xff] %vm4123, %v5176
      %5209 = vst.msk [vmem:[#allocation5 + $0x58] sm:$0xff] %vm4123, %v5177
      %5210 = vst.msk [vmem:[#allocation5 + $0x60] sm:$0xff] %vm4123, %v5178
      %5211 = vst.msk [vmem:[#allocation5 + $0x68] sm:$0xff] %vm4123, %v5179
      %5212 = vst.msk [vmem:[#allocation5 + $0x70] sm:$0xff] %vm4123, %v5180
      %5213 = vst.msk [vmem:[#allocation5 + $0x78] sm:$0xff] %vm4123, %v5181
      %5214 = vst.msk [vmem:[#allocation5 + $0x80] sm:$0xff] %vm4123, %v5182
      %5215 = vst.msk [vmem:[#allocation5 + $0x88] sm:$0xff] %vm4123, %v5183
      %5216 = vst.msk [vmem:[#allocation5 + $0x90] sm:$0xff] %vm4123, %v5184
      %5217 = vst.msk [vmem:[#allocation5 + $0x98] sm:$0xff] %vm4123, %v5185
      %5218 = vst.msk [vmem:[#allocation5 + $0xa0] sm:$0xff] %vm4123, %v5186
      %5219 = vst.msk [vmem:[#allocation5 + $0xa8] sm:$0xff] %vm4123, %v5187
      %5220 = vst.msk [vmem:[#allocation5 + $0xb0] sm:$0xff] %vm4123, %v5188
      %5221 = vst.msk [vmem:[#allocation5 + $0xb8] sm:$0xff] %vm4123, %v5189
      %5222 = vst.msk [vmem:[#allocation5 + $0xc0] sm:$0xff] %vm4123, %v5190
      %5223 = vst.msk [vmem:[#allocation5 + $0xc8] sm:$0xff] %vm4123, %v5191
      %5224 = vst.msk [vmem:[#allocation5 + $0xd0] sm:$0xff] %vm4123, %v5192
      %5225 = vst.msk [vmem:[#allocation5 + $0xd8] sm:$0xff] %vm4123, %v5193
      %5226 = vst.msk [vmem:[#allocation5 + $0xe0] sm:$0xff] %vm4123, %v5194
      %5227 = vst.msk [vmem:[#allocation5 + $0xe8] sm:$0xff] %vm4123, %v5195
      %5228 = vst.msk [vmem:[#allocation5 + $0xf0] sm:$0xff] %vm4123, %v5196
      %5229 = vst.msk [vmem:[#allocation5 + $0xf8] sm:$0xff] %vm4123, %v5197
      %v5230 = vld [vmem:[%s3829 + $0x1] sm:$0xff]
      %v5231 = vld [vmem:[%s3829 + $0x9] sm:$0xff]
      %v5232 = vld [vmem:[%s3829 + $0x19] sm:$0xff]
      %v5233 = vld [vmem:[%s3829 + $0x21] sm:$0xff]
      %v5234 = vld [vmem:[%s3829 + $0x31] sm:$0xff]
      %v5235 = vld [vmem:[%s3829 + $0x39] sm:$0xff]
      %v5236 = vld [vmem:[%s3829 + $0x49] sm:$0xff]
      %v5237 = vld [vmem:[%s3829 + $0x51] sm:$0xff]
      %v5238 = vld [vmem:[%s3829 + $0x61] sm:$0xff]
      %v5239 = vld [vmem:[%s3829 + $0x69] sm:$0xff]
      %v5240 = vld [vmem:[%s3829 + $0x79] sm:$0xff]
      %v5241 = vld [vmem:[%s3829 + $0x81] sm:$0xff]
      %v5242 = vld [vmem:[%s3829 + $0x91] sm:$0xff]
      %v5243 = vld [vmem:[%s3829 + $0x99] sm:$0xff]
      %v5244 = vld [vmem:[%s3829 + $0xa9] sm:$0xff]
      %v5245 = vld [vmem:[%s3829 + $0xb1] sm:$0xff]
      %v5246 = vld [vmem:[%s3829 + $0xc1] sm:$0xff]
      %v5247 = vld [vmem:[%s3829 + $0xc9] sm:$0xff]
      %v5248 = vld [vmem:[%s3829 + $0xd9] sm:$0xff]
      %v5249 = vld [vmem:[%s3829 + $0xe1] sm:$0xff]
      %v5250 = vld [vmem:[%s3829 + $0xf1] sm:$0xff]
      %v5251 = vld [vmem:[%s3829 + $0xf9] sm:$0xff]
      %v5252 = vld [vmem:[%s3829 + $0x109] sm:$0xff]
      %v5253 = vld [vmem:[%s3829 + $0x111] sm:$0xff]
      %v5254 = vld [vmem:[%s3829 + $0x121] sm:$0xff]
      %v5255 = vld [vmem:[%s3829 + $0x129] sm:$0xff]
      %v5256 = vld [vmem:[%s3829 + $0x139] sm:$0xff]
      %v5257 = vld [vmem:[%s3829 + $0x141] sm:$0xff]
      %v5258 = vld [vmem:[%s3829 + $0x151] sm:$0xff]
      %v5259 = vld [vmem:[%s3829 + $0x159] sm:$0xff]
      %v5260 = vld [vmem:[%s3829 + $0x169] sm:$0xff]
      %v5261 = vld [vmem:[%s3829 + $0x171] sm:$0xff]
      %v5262 = vpack.c.bf16 %v5231, %v5230
      %v5263 = vpack.c.bf16 %v5233, %v5232
      %v5264 = vpack.c.bf16 %v5235, %v5234
      %v5265 = vpack.c.bf16 %v5237, %v5236
      %v5266 = vpack.c.bf16 %v5239, %v5238
      %v5267 = vpack.c.bf16 %v5241, %v5240
      %v5268 = vpack.c.bf16 %v5243, %v5242
      %v5269 = vpack.c.bf16 %v5245, %v5244
      %v5270 = vpack.c.bf16 %v5247, %v5246
      %v5271 = vpack.c.bf16 %v5249, %v5248
      %v5272 = vpack.c.bf16 %v5251, %v5250
      %v5273 = vpack.c.bf16 %v5253, %v5252
      %v5274 = vpack.c.bf16 %v5255, %v5254
      %v5275 = vpack.c.bf16 %v5257, %v5256
      %v5276 = vpack.c.bf16 %v5259, %v5258
      %v5277 = vpack.c.bf16 %v5261, %v5260
      %s5278 = scalar_lea.vmem %s3, 8
      %v5279 = vld [vmem:[%s5278] sm:$0x3]
      %v5281 = vsel %vm381, %v5262, 0
      %v5284 = vsel %vm381, %v5263, 0
      %v5287 = vsel %vm381, %v5264, 0
      %v5290 = vsel %vm381, %v5265, 0
      %v5293 = vsel %vm381, %v5266, 0
      %v5296 = vsel %vm381, %v5267, 0
      %v5299 = vsel %vm381, %v5268, 0
      %v5302 = vsel %vm381, %v5269, 0
      %v5305 = vsel %vm381, %v5270, 0
      %v5308 = vsel %vm381, %v5271, 0
      %v5311 = vsel %vm381, %v5272, 0
      %v5314 = vsel %vm381, %v5273, 0
      %v5317 = vsel %vm381, %v5274, 0
      %v5320 = vsel %vm381, %v5275, 0
      %v5323 = vsel %vm381, %v5276, 0
      %v5326 = vsel %vm381, %v5277, 0
      %v5329 = vsel %vm557, %v5279, 0
      %5331 = vmatprep.subr.bf16.mxu0 0
      %5332 = vmatpush1.bf16.msra.mxu0 %v5329
      %5333 = vmatprep.subr.bf16.mxu0 0
      %5334 = vmatpush1.bf16.msra.mxu0 0
      %5335 = vmatprep.subr.bf16.mxu0 0
      %5336 = vmatpush1.bf16.msra.mxu0 0
      %5337 = vmatprep.subr.bf16.mxu0 0
      %5338 = vmatpush1.bf16.msra.mxu0 0
      %5339 = vmatprep.subr.bf16.mxu0 0
      %5340 = vmatpush1.bf16.msra.mxu0 0
      %5341 = vmatprep.subr.bf16.mxu0 0
      %5342 = vmatpush1.bf16.msra.mxu0 0
      %5343 = vmatprep.subr.bf16.mxu0 0
      %5344 = vmatpush1.bf16.msra.mxu0 0
      %5345 = vmatprep.subr.bf16.mxu0 0
      %5346 = vmatpush1.bf16.msra.mxu0 0
      %5347 = vmatprep.subr.bf16.mxu0 0
      %5348 = vmatpush1.bf16.msra.mxu0 0
      %5349 = vmatprep.subr.bf16.mxu0 0
      %5350 = vmatpush1.bf16.msra.mxu0 0
      %5351 = vmatprep.subr.bf16.mxu0 0
      %5352 = vmatpush1.bf16.msra.mxu0 0
      %5353 = vmatprep.subr.bf16.mxu0 0
      %5354 = vmatpush1.bf16.msra.mxu0 0
      %5355 = vmatprep.subr.bf16.mxu0 0
      %5356 = vmatpush1.bf16.msra.mxu0 0
      %5357 = vmatprep.subr.bf16.mxu0 0
      %5358 = vmatpush1.bf16.msra.mxu0 0
      %5359 = vmatprep.subr.bf16.mxu0 0
      %5360 = vmatpush1.bf16.msra.mxu0 0
      %5361 = vmatprep.subr.bf16.mxu0 0
      %5362 = vmatpush1.bf16.msra.mxu0 0
      %5363 = vmatprep.mubr.bf16.mxu0 0
      %5364 = vmatmul.mubr.bf16.gmra.mrb[0].mxu0 %v5281
      %v5365 = vpop.f32.mrb[0].mxu0
      %v5366 = vadd.f32 0.0, %v5365
      %v5367 = vpop.f32.mrb[0].mxu0
      %v5368 = vpop.f32.mrb[0].mxu0
      %v5369 = vadd.f32 0.0, %v5368
      %v5370 = vpop.f32.mrb[0].mxu0
      %5371 = vmatprep.mubr.bf16.mxu0 0
      %5372 = vmatmul.mubr.bf16.gmra.mrb[0].mxu0 %v5284
      %v5373 = vpop.f32.mrb[0].mxu0
      %v5374 = vadd.f32 0.0, %v5373
      %v5375 = vpop.f32.mrb[0].mxu0
      %v5376 = vpop.f32.mrb[0].mxu0
      %v5377 = vadd.f32 0.0, %v5376
      %v5378 = vpop.f32.mrb[0].mxu0
      %5379 = vmatprep.mubr.bf16.mxu0 0
      %5380 = vmatmul.mubr.bf16.gmra.mrb[0].mxu0 %v5287
      %v5381 = vpop.f32.mrb[0].mxu0
      %v5382 = vadd.f32 0.0, %v5381
      %v5383 = vpop.f32.mrb[0].mxu0
      %v5384 = vpop.f32.mrb[0].mxu0
      %v5385 = vadd.f32 0.0, %v5384
      %v5386 = vpop.f32.mrb[0].mxu0
      %5387 = vmatprep.mubr.bf16.mxu0 0
      %5388 = vmatmul.mubr.bf16.gmra.mrb[0].mxu0 %v5290
      %v5389 = vpop.f32.mrb[0].mxu0
      %v5390 = vadd.f32 0.0, %v5389
      %v5391 = vpop.f32.mrb[0].mxu0
      %v5392 = vpop.f32.mrb[0].mxu0
      %v5393 = vadd.f32 0.0, %v5392
      %v5394 = vpop.f32.mrb[0].mxu0
      %5395 = vmatprep.mubr.bf16.mxu0 0
      %5396 = vmatmul.mubr.bf16.gmra.mrb[0].mxu0 %v5293
      %v5397 = vpop.f32.mrb[0].mxu0
      %v5398 = vadd.f32 0.0, %v5397
      %v5399 = vpop.f32.mrb[0].mxu0
      %v5400 = vpop.f32.mrb[0].mxu0
      %v5401 = vadd.f32 0.0, %v5400
      %v5402 = vpop.f32.mrb[0].mxu0
      %5403 = vmatprep.mubr.bf16.mxu0 0
      %5404 = vmatmul.mubr.bf16.gmra.mrb[0].mxu0 %v5296
      %v5405 = vpop.f32.mrb[0].mxu0
      %v5406 = vadd.f32 0.0, %v5405
      %v5407 = vpop.f32.mrb[0].mxu0
      %v5408 = vpop.f32.mrb[0].mxu0
      %v5409 = vadd.f32 0.0, %v5408
      %v5410 = vpop.f32.mrb[0].mxu0
      %5411 = vmatprep.mubr.bf16.mxu0 0
      %5412 = vmatmul.mubr.bf16.gmra.mrb[0].mxu0 %v5299
      %v5413 = vpop.f32.mrb[0].mxu0
      %v5414 = vadd.f32 0.0, %v5413
      %v5415 = vpop.f32.mrb[0].mxu0
      %v5416 = vpop.f32.mrb[0].mxu0
      %v5417 = vadd.f32 0.0, %v5416
      %v5418 = vpop.f32.mrb[0].mxu0
      %5419 = vmatprep.mubr.bf16.mxu0 0
      %5420 = vmatmul.mubr.bf16.gmra.mrb[0].mxu0 %v5302
      %v5421 = vpop.f32.mrb[0].mxu0
      %v5422 = vadd.f32 0.0, %v5421
      %v5423 = vpop.f32.mrb[0].mxu0
      %v5424 = vpop.f32.mrb[0].mxu0
      %v5425 = vadd.f32 0.0, %v5424
      %v5426 = vpop.f32.mrb[0].mxu0
      %5427 = vmatprep.mubr.bf16.mxu0 0
      %5428 = vmatmul.mubr.bf16.gmra.mrb[0].mxu0 %v5305
      %v5429 = vpop.f32.mrb[0].mxu0
      %v5430 = vadd.f32 0.0, %v5429
      %v5431 = vpop.f32.mrb[0].mxu0
      %v5432 = vpop.f32.mrb[0].mxu0
      %v5433 = vadd.f32 0.0, %v5432
      %v5434 = vpop.f32.mrb[0].mxu0
      %5435 = vmatprep.mubr.bf16.mxu0 0
      %5436 = vmatmul.mubr.bf16.gmra.mrb[0].mxu0 %v5308
      %v5437 = vpop.f32.mrb[0].mxu0
      %v5438 = vadd.f32 0.0, %v5437
      %v5439 = vpop.f32.mrb[0].mxu0
      %v5440 = vpop.f32.mrb[0].mxu0
      %v5441 = vadd.f32 0.0, %v5440
      %v5442 = vpop.f32.mrb[0].mxu0
      %5443 = vmatprep.mubr.bf16.mxu0 0
      %5444 = vmatmul.mubr.bf16.gmra.mrb[0].mxu0 %v5311
      %v5445 = vpop.f32.mrb[0].mxu0
      %v5446 = vadd.f32 0.0, %v5445
      %v5447 = vpop.f32.mrb[0].mxu0
      %v5448 = vpop.f32.mrb[0].mxu0
      %v5449 = vadd.f32 0.0, %v5448
      %v5450 = vpop.f32.mrb[0].mxu0
      %5451 = vmatprep.mubr.bf16.mxu0 0
      %5452 = vmatmul.mubr.bf16.gmra.mrb[0].mxu0 %v5314
      %v5453 = vpop.f32.mrb[0].mxu0
      %v5454 = vadd.f32 0.0, %v5453
      %v5455 = vpop.f32.mrb[0].mxu0
      %v5456 = vpop.f32.mrb[0].mxu0
      %v5457 = vadd.f32 0.0, %v5456
      %v5458 = vpop.f32.mrb[0].mxu0
      %5459 = vmatprep.mubr.bf16.mxu0 0
      %5460 = vmatmul.mubr.bf16.gmra.mrb[0].mxu0 %v5317
      %v5461 = vpop.f32.mrb[0].mxu0
      %v5462 = vadd.f32 0.0, %v5461
      %v5463 = vpop.f32.mrb[0].mxu0
      %v5464 = vpop.f32.mrb[0].mxu0
      %v5465 = vadd.f32 0.0, %v5464
      %v5466 = vpop.f32.mrb[0].mxu0
      %5467 = vmatprep.mubr.bf16.mxu0 0
      %5468 = vmatmul.mubr.bf16.gmra.mrb[0].mxu0 %v5320
      %v5469 = vpop.f32.mrb[0].mxu0
      %v5470 = vadd.f32 0.0, %v5469
      %v5471 = vpop.f32.mrb[0].mxu0
      %v5472 = vpop.f32.mrb[0].mxu0
      %v5473 = vadd.f32 0.0, %v5472
      %v5474 = vpop.f32.mrb[0].mxu0
      %5475 = vmatprep.mubr.bf16.mxu0 0
      %5476 = vmatmul.mubr.bf16.gmra.mrb[0].mxu0 %v5323
      %v5477 = vpop.f32.mrb[0].mxu0
      %v5478 = vadd.f32 0.0, %v5477
      %v5479 = vpop.f32.mrb[0].mxu0
      %v5480 = vpop.f32.mrb[0].mxu0
      %v5481 = vadd.f32 0.0, %v5480
      %v5482 = vpop.f32.mrb[0].mxu0
      %5483 = vmatprep.mubr.bf16.mxu0 0
      %5484 = vmatmul.mubr.bf16.gmra.mrb[0].mxu0 %v5326
      %v5485 = vpop.f32.mrb[0].mxu0
      %v5486 = vadd.f32 0.0, %v5485
      %v5487 = vpop.f32.mrb[0].mxu0
      %v5488 = vpop.f32.mrb[0].mxu0
      %v5489 = vadd.f32 0.0, %v5488
      %v5490 = vpop.f32.mrb[0].mxu0
      %5491 = vdwg.mxu0
      %v5492 = vld [vmem:[#allocation5] sm:$0xff]
      %v5493 = vld [vmem:[#allocation5 + $0x8] sm:$0xff]
      %v5494 = vld [vmem:[#allocation5 + $0x10] sm:$0xff]
      %v5495 = vld [vmem:[#allocation5 + $0x18] sm:$0xff]
      %v5496 = vld [vmem:[#allocation5 + $0x20] sm:$0xff]
      %v5497 = vld [vmem:[#allocation5 + $0x28] sm:$0xff]
      %v5498 = vld [vmem:[#allocation5 + $0x30] sm:$0xff]
      %v5499 = vld [vmem:[#allocation5 + $0x38] sm:$0xff]
      %v5500 = vld [vmem:[#allocation5 + $0x40] sm:$0xff]
      %v5501 = vld [vmem:[#allocation5 + $0x48] sm:$0xff]
      %v5502 = vld [vmem:[#allocation5 + $0x50] sm:$0xff]
      %v5503 = vld [vmem:[#allocation5 + $0x58] sm:$0xff]
      %v5504 = vld [vmem:[#allocation5 + $0x60] sm:$0xff]
      %v5505 = vld [vmem:[#allocation5 + $0x68] sm:$0xff]
      %v5506 = vld [vmem:[#allocation5 + $0x70] sm:$0xff]
      %v5507 = vld [vmem:[#allocation5 + $0x78] sm:$0xff]
      %v5508 = vld [vmem:[#allocation5 + $0x80] sm:$0xff]
      %v5509 = vld [vmem:[#allocation5 + $0x88] sm:$0xff]
      %v5510 = vld [vmem:[#allocation5 + $0x90] sm:$0xff]
      %v5511 = vld [vmem:[#allocation5 + $0x98] sm:$0xff]
      %v5512 = vld [vmem:[#allocation5 + $0xa0] sm:$0xff]
      %v5513 = vld [vmem:[#allocation5 + $0xa8] sm:$0xff]
      %v5514 = vld [vmem:[#allocation5 + $0xb0] sm:$0xff]
      %v5515 = vld [vmem:[#allocation5 + $0xb8] sm:$0xff]
      %v5516 = vld [vmem:[#allocation5 + $0xc0] sm:$0xff]
      %v5517 = vld [vmem:[#allocation5 + $0xc8] sm:$0xff]
      %v5518 = vld [vmem:[#allocation5 + $0xd0] sm:$0xff]
      %v5519 = vld [vmem:[#allocation5 + $0xd8] sm:$0xff]
      %v5520 = vld [vmem:[#allocation5 + $0xe0] sm:$0xff]
      %v5521 = vld [vmem:[#allocation5 + $0xe8] sm:$0xff]
      %v5522 = vld [vmem:[#allocation5 + $0xf0] sm:$0xff]
      %v5523 = vld [vmem:[#allocation5 + $0xf8] sm:$0xff]
      %v5524 = vadd.f32 %v5492, %v5366
      %v5525 = vadd.f32 %v5493, %v5369
      %v5526 = vadd.f32 %v5494, %v5374
      %v5527 = vadd.f32 %v5495, %v5377
      %v5528 = vadd.f32 %v5496, %v5382
      %v5529 = vadd.f32 %v5497, %v5385
      %v5530 = vadd.f32 %v5498, %v5390
      %v5531 = vadd.f32 %v5499, %v5393
      %v5532 = vadd.f32 %v5500, %v5398
      %v5533 = vadd.f32 %v5501, %v5401
      %v5534 = vadd.f32 %v5502, %v5406
      %v5535 = vadd.f32 %v5503, %v5409
      %v5536 = vadd.f32 %v5504, %v5414
      %v5537 = vadd.f32 %v5505, %v5417
      %v5538 = vadd.f32 %v5506, %v5422
      %v5539 = vadd.f32 %v5507, %v5425
      %v5540 = vadd.f32 %v5508, %v5430
      %v5541 = vadd.f32 %v5509, %v5433
      %v5542 = vadd.f32 %v5510, %v5438
      %v5543 = vadd.f32 %v5511, %v5441
      %v5544 = vadd.f32 %v5512, %v5446
      %v5545 = vadd.f32 %v5513, %v5449
      %v5546 = vadd.f32 %v5514, %v5454
      %v5547 = vadd.f32 %v5515, %v5457
      %v5548 = vadd.f32 %v5516, %v5462
      %v5549 = vadd.f32 %v5517, %v5465
      %v5550 = vadd.f32 %v5518, %v5470
      %v5551 = vadd.f32 %v5519, %v5473
      %v5552 = vadd.f32 %v5520, %v5478
      %v5553 = vadd.f32 %v5521, %v5481
      %v5554 = vadd.f32 %v5522, %v5486
      %v5555 = vadd.f32 %v5523, %v5489
      %5556 = vst.msk [vmem:[#allocation5] sm:$0xff] %vm4123, %v5524
      %5557 = vst.msk [vmem:[#allocation5 + $0x8] sm:$0xff] %vm4123, %v5525
      %5558 = vst.msk [vmem:[#allocation5 + $0x10] sm:$0xff] %vm4123, %v5526
      %5559 = vst.msk [vmem:[#allocation5 + $0x18] sm:$0xff] %vm4123, %v5527
      %5560 = vst.msk [vmem:[#allocation5 + $0x20] sm:$0xff] %vm4123, %v5528
      %5561 = vst.msk [vmem:[#allocation5 + $0x28] sm:$0xff] %vm4123, %v5529
      %5562 = vst.msk [vmem:[#allocation5 + $0x30] sm:$0xff] %vm4123, %v5530
      %5563 = vst.msk [vmem:[#allocation5 + $0x38] sm:$0xff] %vm4123, %v5531
      %5564 = vst.msk [vmem:[#allocation5 + $0x40] sm:$0xff] %vm4123, %v5532
      %5565 = vst.msk [vmem:[#allocation5 + $0x48] sm:$0xff] %vm4123, %v5533
      %5566 = vst.msk [vmem:[#allocation5 + $0x50] sm:$0xff] %vm4123, %v5534
      %5567 = vst.msk [vmem:[#allocation5 + $0x58] sm:$0xff] %vm4123, %v5535
      %5568 = vst.msk [vmem:[#allocation5 + $0x60] sm:$0xff] %vm4123, %v5536
      %5569 = vst.msk [vmem:[#allocation5 + $0x68] sm:$0xff] %vm4123, %v5537
      %5570 = vst.msk [vmem:[#allocation5 + $0x70] sm:$0xff] %vm4123, %v5538
      %5571 = vst.msk [vmem:[#allocation5 + $0x78] sm:$0xff] %vm4123, %v5539
      %5572 = vst.msk [vmem:[#allocation5 + $0x80] sm:$0xff] %vm4123, %v5540
      %5573 = vst.msk [vmem:[#allocation5 + $0x88] sm:$0xff] %vm4123, %v5541
      %5574 = vst.msk [vmem:[#allocation5 + $0x90] sm:$0xff] %vm4123, %v5542
      %5575 = vst.msk [vmem:[#allocation5 + $0x98] sm:$0xff] %vm4123, %v5543
      %5576 = vst.msk [vmem:[#allocation5 + $0xa0] sm:$0xff] %vm4123, %v5544
      %5577 = vst.msk [vmem:[#allocation5 + $0xa8] sm:$0xff] %vm4123, %v5545
      %5578 = vst.msk [vmem:[#allocation5 + $0xb0] sm:$0xff] %vm4123, %v5546
      %5579 = vst.msk [vmem:[#allocation5 + $0xb8] sm:$0xff] %vm4123, %v5547
      %5580 = vst.msk [vmem:[#allocation5 + $0xc0] sm:$0xff] %vm4123, %v5548
      %5581 = vst.msk [vmem:[#allocation5 + $0xc8] sm:$0xff] %vm4123, %v5549
      %5582 = vst.msk [vmem:[#allocation5 + $0xd0] sm:$0xff] %vm4123, %v5550
      %5583 = vst.msk [vmem:[#allocation5 + $0xd8] sm:$0xff] %vm4123, %v5551
      %5584 = vst.msk [vmem:[#allocation5 + $0xe0] sm:$0xff] %vm4123, %v5552
      %5585 = vst.msk [vmem:[#allocation5 + $0xe8] sm:$0xff] %vm4123, %v5553
      %5586 = vst.msk [vmem:[#allocation5 + $0xf0] sm:$0xff] %vm4123, %v5554
      %5587 = vst.msk [vmem:[#allocation5 + $0xf8] sm:$0xff] %vm4123, %v5555
      %v5588 = vld [vmem:[%s3829 + $0x2] sm:$0xff]
      %v5589 = vld [vmem:[%s3829 + $0xa] sm:$0xff]
      %v5590 = vld [vmem:[%s3829 + $0x1a] sm:$0xff]
      %v5591 = vld [vmem:[%s3829 + $0x22] sm:$0xff]
      %v5592 = vld [vmem:[%s3829 + $0x32] sm:$0xff]
      %v5593 = vld [vmem:[%s3829 + $0x3a] sm:$0xff]
      %v5594 = vld [vmem:[%s3829 + $0x4a] sm:$0xff]
      %v5595 = vld [vmem:[%s3829 + $0x52] sm:$0xff]
      %v5596 = vld [vmem:[%s3829 + $0x62] sm:$0xff]
      %v5597 = vld [vmem:[%s3829 + $0x6a] sm:$0xff]
      %v5598 = vld [vmem:[%s3829 + $0x7a] sm:$0xff]
      %v5599 = vld [vmem:[%s3829 + $0x82] sm:$0xff]
      %v5600 = vld [vmem:[%s3829 + $0x92] sm:$0xff]
      %v5601 = vld [vmem:[%s3829 + $0x9a] sm:$0xff]
      %v5602 = vld [vmem:[%s3829 + $0xaa] sm:$0xff]
      %v5603 = vld [vmem:[%s3829 + $0xb2] sm:$0xff]
      %v5604 = vld [vmem:[%s3829 + $0xc2] sm:$0xff]
      %v5605 = vld [vmem:[%s3829 + $0xca] sm:$0xff]
      %v5606 = vld [vmem:[%s3829 + $0xda] sm:$0xff]
      %v5607 = vld [vmem:[%s3829 + $0xe2] sm:$0xff]
      %v5608 = vld [vmem:[%s3829 + $0xf2] sm:$0xff]
      %v5609 = vld [vmem:[%s3829 + $0xfa] sm:$0xff]
      %v5610 = vld [vmem:[%s3829 + $0x10a] sm:$0xff]
      %v5611 = vld [vmem:[%s3829 + $0x112] sm:$0xff]
      %v5612 = vld [vmem:[%s3829 + $0x122] sm:$0xff]
      %v5613 = vld [vmem:[%s3829 + $0x12a] sm:$0xff]
      %v5614 = vld [vmem:[%s3829 + $0x13a] sm:$0xff]
      %v5615 = vld [vmem:[%s3829 + $0x142] sm:$0xff]
      %v5616 = vld [vmem:[%s3829 + $0x152] sm:$0xff]
      %v5617 = vld [vmem:[%s3829 + $0x15a] sm:$0xff]
      %v5618 = vld [vmem:[%s3829 + $0x16a] sm:$0xff]
      %v5619 = vld [vmem:[%s3829 + $0x172] sm:$0xff]
      %v5620 = vpack.c.bf16 %v5589, %v5588
      %v5621 = vpack.c.bf16 %v5591, %v5590
      %v5622 = vpack.c.bf16 %v5593, %v5592
      %v5623 = vpack.c.bf16 %v5595, %v5594
      %v5624 = vpack.c.bf16 %v5597, %v5596
      %v5625 = vpack.c.bf16 %v5599, %v5598
      %v5626 = vpack.c.bf16 %v5601, %v5600
      %v5627 = vpack.c.bf16 %v5603, %v5602
      %v5628 = vpack.c.bf16 %v5605, %v5604
      %v5629 = vpack.c.bf16 %v5607, %v5606
      %v5630 = vpack.c.bf16 %v5609, %v5608
      %v5631 = vpack.c.bf16 %v5611, %v5610
      %v5632 = vpack.c.bf16 %v5613, %v5612
      %v5633 = vpack.c.bf16 %v5615, %v5614
      %v5634 = vpack.c.bf16 %v5617, %v5616
      %v5635 = vpack.c.bf16 %v5619, %v5618
      %s5636 = scalar_lea.vmem %s3, 10
      %v5637 = vld [vmem:[%s5636] sm:$0x3]
      %v5639 = vsel %vm381, %v5620, 0
      %v5642 = vsel %vm381, %v5621, 0
      %v5645 = vsel %vm381, %v5622, 0
      %v5648 = vsel %vm381, %v5623, 0
      %v5651 = vsel %vm381, %v5624, 0
      %v5654 = vsel %vm381, %v5625, 0
      %v5657 = vsel %vm381, %v5626, 0
      %v5660 = vsel %vm381, %v5627, 0
      %v5663 = vsel %vm381, %v5628, 0
      %v5666 = vsel %vm381, %v5629, 0
      %v5669 = vsel %vm381, %v5630, 0
      %v5672 = vsel %vm381, %v5631, 0
      %v5675 = vsel %vm381, %v5632, 0
      %v5678 = vsel %vm381, %v5633, 0
      %v5681 = vsel %vm381, %v5634, 0
      %v5684 = vsel %vm381, %v5635, 0
      %v5687 = vsel %vm557, %v5637, 0
      %5689 = vmatprep.subr.bf16.mxu0 0
      %5690 = vmatpush1.bf16.msra.mxu0 %v5687
      %5691 = vmatprep.subr.bf16.mxu0 0
      %5692 = vmatpush1.bf16.msra.mxu0 0
      %5693 = vmatprep.subr.bf16.mxu0 0
      %5694 = vmatpush1.bf16.msra.mxu0 0
      %5695 = vmatprep.subr.bf16.mxu0 0
      %5696 = vmatpush1.bf16.msra.mxu0 0
      %5697 = vmatprep.subr.bf16.mxu0 0
      %5698 = vmatpush1.bf16.msra.mxu0 0
      %5699 = vmatprep.subr.bf16.mxu0 0
      %5700 = vmatpush1.bf16.msra.mxu0 0
      %5701 = vmatprep.subr.bf16.mxu0 0
      %5702 = vmatpush1.bf16.msra.mxu0 0
      %5703 = vmatprep.subr.bf16.mxu0 0
      %5704 = vmatpush1.bf16.msra.mxu0 0
      %5705 = vmatprep.subr.bf16.mxu0 0
      %5706 = vmatpush1.bf16.msra.mxu0 0
      %5707 = vmatprep.subr.bf16.mxu0 0
      %5708 = vmatpush1.bf16.msra.mxu0 0
      %5709 = vmatprep.subr.bf16.mxu0 0
      %5710 = vmatpush1.bf16.msra.mxu0 0
      %5711 = vmatprep.subr.bf16.mxu0 0
      %5712 = vmatpush1.bf16.msra.mxu0 0
      %5713 = vmatprep.subr.bf16.mxu0 0
      %5714 = vmatpush1.bf16.msra.mxu0 0
      %5715 = vmatprep.subr.bf16.mxu0 0
      %5716 = vmatpush1.bf16.msra.mxu0 0
      %5717 = vmatprep.subr.bf16.mxu0 0
      %5718 = vmatpush1.bf16.msra.mxu0 0
      %5719 = vmatprep.subr.bf16.mxu0 0
      %5720 = vmatpush1.bf16.msra.mxu0 0
      %5721 = vmatprep.mubr.bf16.mxu0 0
      %5722 = vmatmul.mubr.bf16.gmra.mrb[0].mxu0 %v5639
      %v5723 = vpop.f32.mrb[0].mxu0
      %v5724 = vadd.f32 0.0, %v5723
      %v5725 = vpop.f32.mrb[0].mxu0
      %v5726 = vpop.f32.mrb[0].mxu0
      %v5727 = vadd.f32 0.0, %v5726
      %v5728 = vpop.f32.mrb[0].mxu0
      %5729 = vmatprep.mubr.bf16.mxu0 0
      %5730 = vmatmul.mubr.bf16.gmra.mrb[0].mxu0 %v5642
      %v5731 = vpop.f32.mrb[0].mxu0
      %v5732 = vadd.f32 0.0, %v5731
      %v5733 = vpop.f32.mrb[0].mxu0
      %v5734 = vpop.f32.mrb[0].mxu0
      %v5735 = vadd.f32 0.0, %v5734
      %v5736 = vpop.f32.mrb[0].mxu0
      %5737 = vmatprep.mubr.bf16.mxu0 0
      %5738 = vmatmul.mubr.bf16.gmra.mrb[0].mxu0 %v5645
      %v5739 = vpop.f32.mrb[0].mxu0
      %v5740 = vadd.f32 0.0, %v5739
      %v5741 = vpop.f32.mrb[0].mxu0
      %v5742 = vpop.f32.mrb[0].mxu0
      %v5743 = vadd.f32 0.0, %v5742
      %v5744 = vpop.f32.mrb[0].mxu0
      %5745 = vmatprep.mubr.bf16.mxu0 0
      %5746 = vmatmul.mubr.bf16.gmra.mrb[0].mxu0 %v5648
      %v5747 = vpop.f32.mrb[0].mxu0
      %v5748 = vadd.f32 0.0, %v5747
      %v5749 = vpop.f32.mrb[0].mxu0
      %v5750 = vpop.f32.mrb[0].mxu0
      %v5751 = vadd.f32 0.0, %v5750
      %v5752 = vpop.f32.mrb[0].mxu0
      %5753 = vmatprep.mubr.bf16.mxu0 0
      %5754 = vmatmul.mubr.bf16.gmra.mrb[0].mxu0 %v5651
      %v5755 = vpop.f32.mrb[0].mxu0
      %v5756 = vadd.f32 0.0, %v5755
      %v5757 = vpop.f32.mrb[0].mxu0
      %v5758 = vpop.f32.mrb[0].mxu0
      %v5759 = vadd.f32 0.0, %v5758
      %v5760 = vpop.f32.mrb[0].mxu0
      %5761 = vmatprep.mubr.bf16.mxu0 0
      %5762 = vmatmul.mubr.bf16.gmra.mrb[0].mxu0 %v5654
      %v5763 = vpop.f32.mrb[0].mxu0
      %v5764 = vadd.f32 0.0, %v5763
      %v5765 = vpop.f32.mrb[0].mxu0
      %v5766 = vpop.f32.mrb[0].mxu0
      %v5767 = vadd.f32 0.0, %v5766
      %v5768 = vpop.f32.mrb[0].mxu0
      %5769 = vmatprep.mubr.bf16.mxu0 0
      %5770 = vmatmul.mubr.bf16.gmra.mrb[0].mxu0 %v5657
      %v5771 = vpop.f32.mrb[0].mxu0
      %v5772 = vadd.f32 0.0, %v5771
      %v5773 = vpop.f32.mrb[0].mxu0
      %v5774 = vpop.f32.mrb[0].mxu0
      %v5775 = vadd.f32 0.0, %v5774
      %v5776 = vpop.f32.mrb[0].mxu0
      %5777 = vmatprep.mubr.bf16.mxu0 0
      %5778 = vmatmul.mubr.bf16.gmra.mrb[0].mxu0 %v5660
      %v5779 = vpop.f32.mrb[0].mxu0
      %v5780 = vadd.f32 0.0, %v5779
      %v5781 = vpop.f32.mrb[0].mxu0
      %v5782 = vpop.f32.mrb[0].mxu0
      %v5783 = vadd.f32 0.0, %v5782
      %v5784 = vpop.f32.mrb[0].mxu0
      %5785 = vmatprep.mubr.bf16.mxu0 0
      %5786 = vmatmul.mubr.bf16.gmra.mrb[0].mxu0 %v5663
      %v5787 = vpop.f32.mrb[0].mxu0
      %v5788 = vadd.f32 0.0, %v5787
      %v5789 = vpop.f32.mrb[0].mxu0
      %v5790 = vpop.f32.mrb[0].mxu0
      %v5791 = vadd.f32 0.0, %v5790
      %v5792 = vpop.f32.mrb[0].mxu0
      %5793 = vmatprep.mubr.bf16.mxu0 0
      %5794 = vmatmul.mubr.bf16.gmra.mrb[0].mxu0 %v5666
      %v5795 = vpop.f32.mrb[0].mxu0
      %v5796 = vadd.f32 0.0, %v5795
      %v5797 = vpop.f32.mrb[0].mxu0
      %v5798 = vpop.f32.mrb[0].mxu0
      %v5799 = vadd.f32 0.0, %v5798
      %v5800 = vpop.f32.mrb[0].mxu0
      %5801 = vmatprep.mubr.bf16.mxu0 0
      %5802 = vmatmul.mubr.bf16.gmra.mrb[0].mxu0 %v5669
      %v5803 = vpop.f32.mrb[0].mxu0
      %v5804 = vadd.f32 0.0, %v5803
      %v5805 = vpop.f32.mrb[0].mxu0
      %v5806 = vpop.f32.mrb[0].mxu0
      %v5807 = vadd.f32 0.0, %v5806
      %v5808 = vpop.f32.mrb[0].mxu0
      %5809 = vmatprep.mubr.bf16.mxu0 0
      %5810 = vmatmul.mubr.bf16.gmra.mrb[0].mxu0 %v5672
      %v5811 = vpop.f32.mrb[0].mxu0
      %v5812 = vadd.f32 0.0, %v5811
      %v5813 = vpop.f32.mrb[0].mxu0
      %v5814 = vpop.f32.mrb[0].mxu0
      %v5815 = vadd.f32 0.0, %v5814
      %v5816 = vpop.f32.mrb[0].mxu0
      %5817 = vmatprep.mubr.bf16.mxu0 0
      %5818 = vmatmul.mubr.bf16.gmra.mrb[0].mxu0 %v5675
      %v5819 = vpop.f32.mrb[0].mxu0
      %v5820 = vadd.f32 0.0, %v5819
      %v5821 = vpop.f32.mrb[0].mxu0
      %v5822 = vpop.f32.mrb[0].mxu0
      %v5823 = vadd.f32 0.0, %v5822
      %v5824 = vpop.f32.mrb[0].mxu0
      %5825 = vmatprep.mubr.bf16.mxu0 0
      %5826 = vmatmul.mubr.bf16.gmra.mrb[0].mxu0 %v5678
      %v5827 = vpop.f32.mrb[0].mxu0
      %v5828 = vadd.f32 0.0, %v5827
      %v5829 = vpop.f32.mrb[0].mxu0
      %v5830 = vpop.f32.mrb[0].mxu0
      %v5831 = vadd.f32 0.0, %v5830
      %v5832 = vpop.f32.mrb[0].mxu0
      %5833 = vmatprep.mubr.bf16.mxu0 0
      %5834 = vmatmul.mubr.bf16.gmra.mrb[0].mxu0 %v5681
      %v5835 = vpop.f32.mrb[0].mxu0
      %v5836 = vadd.f32 0.0, %v5835
      %v5837 = vpop.f32.mrb[0].mxu0
      %v5838 = vpop.f32.mrb[0].mxu0
      %v5839 = vadd.f32 0.0, %v5838
      %v5840 = vpop.f32.mrb[0].mxu0
      %5841 = vmatprep.mubr.bf16.mxu0 0
      %5842 = vmatmul.mubr.bf16.gmra.mrb[0].mxu0 %v5684
      %v5843 = vpop.f32.mrb[0].mxu0
      %v5844 = vadd.f32 0.0, %v5843
      %v5845 = vpop.f32.mrb[0].mxu0
      %v5846 = vpop.f32.mrb[0].mxu0
      %v5847 = vadd.f32 0.0, %v5846
      %v5848 = vpop.f32.mrb[0].mxu0
      %5849 = vdwg.mxu0
      %v5850 = vld [vmem:[#allocation5] sm:$0xff]
      %v5851 = vld [vmem:[#allocation5 + $0x8] sm:$0xff]
      %v5852 = vld [vmem:[#allocation5 + $0x10] sm:$0xff]
      %v5853 = vld [vmem:[#allocation5 + $0x18] sm:$0xff]
      %v5854 = vld [vmem:[#allocation5 + $0x20] sm:$0xff]
      %v5855 = vld [vmem:[#allocation5 + $0x28] sm:$0xff]
      %v5856 = vld [vmem:[#allocation5 + $0x30] sm:$0xff]
      %v5857 = vld [vmem:[#allocation5 + $0x38] sm:$0xff]
      %v5858 = vld [vmem:[#allocation5 + $0x40] sm:$0xff]
      %v5859 = vld [vmem:[#allocation5 + $0x48] sm:$0xff]
      %v5860 = vld [vmem:[#allocation5 + $0x50] sm:$0xff]
      %v5861 = vld [vmem:[#allocation5 + $0x58] sm:$0xff]
      %v5862 = vld [vmem:[#allocation5 + $0x60] sm:$0xff]
      %v5863 = vld [vmem:[#allocation5 + $0x68] sm:$0xff]
      %v5864 = vld [vmem:[#allocation5 + $0x70] sm:$0xff]
      %v5865 = vld [vmem:[#allocation5 + $0x78] sm:$0xff]
      %v5866 = vld [vmem:[#allocation5 + $0x80] sm:$0xff]
      %v5867 = vld [vmem:[#allocation5 + $0x88] sm:$0xff]
      %v5868 = vld [vmem:[#allocation5 + $0x90] sm:$0xff]
      %v5869 = vld [vmem:[#allocation5 + $0x98] sm:$0xff]
      %v5870 = vld [vmem:[#allocation5 + $0xa0] sm:$0xff]
      %v5871 = vld [vmem:[#allocation5 + $0xa8] sm:$0xff]
      %v5872 = vld [vmem:[#allocation5 + $0xb0] sm:$0xff]
      %v5873 = vld [vmem:[#allocation5 + $0xb8] sm:$0xff]
      %v5874 = vld [vmem:[#allocation5 + $0xc0] sm:$0xff]
      %v5875 = vld [vmem:[#allocation5 + $0xc8] sm:$0xff]
      %v5876 = vld [vmem:[#allocation5 + $0xd0] sm:$0xff]
      %v5877 = vld [vmem:[#allocation5 + $0xd8] sm:$0xff]
      %v5878 = vld [vmem:[#allocation5 + $0xe0] sm:$0xff]
      %v5879 = vld [vmem:[#allocation5 + $0xe8] sm:$0xff]
      %v5880 = vld [vmem:[#allocation5 + $0xf0] sm:$0xff]
      %v5881 = vld [vmem:[#allocation5 + $0xf8] sm:$0xff]
      %v5882 = vadd.f32 %v5850, %v5724
      %v5883 = vadd.f32 %v5851, %v5727
      %v5884 = vadd.f32 %v5852, %v5732
      %v5885 = vadd.f32 %v5853, %v5735
      %v5886 = vadd.f32 %v5854, %v5740
      %v5887 = vadd.f32 %v5855, %v5743
      %v5888 = vadd.f32 %v5856, %v5748
      %v5889 = vadd.f32 %v5857, %v5751
      %v5890 = vadd.f32 %v5858, %v5756
      %v5891 = vadd.f32 %v5859, %v5759
      %v5892 = vadd.f32 %v5860, %v5764
      %v5893 = vadd.f32 %v5861, %v5767
      %v5894 = vadd.f32 %v5862, %v5772
      %v5895 = vadd.f32 %v5863, %v5775
      %v5896 = vadd.f32 %v5864, %v5780
      %v5897 = vadd.f32 %v5865, %v5783
      %v5898 = vadd.f32 %v5866, %v5788
      %v5899 = vadd.f32 %v5867, %v5791
      %v5900 = vadd.f32 %v5868, %v5796
      %v5901 = vadd.f32 %v5869, %v5799
      %v5902 = vadd.f32 %v5870, %v5804
      %v5903 = vadd.f32 %v5871, %v5807
      %v5904 = vadd.f32 %v5872, %v5812
      %v5905 = vadd.f32 %v5873, %v5815
      %v5906 = vadd.f32 %v5874, %v5820
      %v5907 = vadd.f32 %v5875, %v5823
      %v5908 = vadd.f32 %v5876, %v5828
      %v5909 = vadd.f32 %v5877, %v5831
      %v5910 = vadd.f32 %v5878, %v5836
      %v5911 = vadd.f32 %v5879, %v5839
      %v5912 = vadd.f32 %v5880, %v5844
      %v5913 = vadd.f32 %v5881, %v5847
      %5914 = vst.msk [vmem:[#allocation5] sm:$0xff] %vm4123, %v5882
      %5915 = vst.msk [vmem:[#allocation5 + $0x8] sm:$0xff] %vm4123, %v5883
      %5916 = vst.msk [vmem:[#allocation5 + $0x10] sm:$0xff] %vm4123, %v5884
      %5917 = vst.msk [vmem:[#allocation5 + $0x18] sm:$0xff] %vm4123, %v5885
      %5918 = vst.msk [vmem:[#allocation5 + $0x20] sm:$0xff] %vm4123, %v5886
      %5919 = vst.msk [vmem:[#allocation5 + $0x28] sm:$0xff] %vm4123, %v5887
      %5920 = vst.msk [vmem:[#allocation5 + $0x30] sm:$0xff] %vm4123, %v5888
      %5921 = vst.msk [vmem:[#allocation5 + $0x38] sm:$0xff] %vm4123, %v5889
      %5922 = vst.msk [vmem:[#allocation5 + $0x40] sm:$0xff] %vm4123, %v5890
      %5923 = vst.msk [vmem:[#allocation5 + $0x48] sm:$0xff] %vm4123, %v5891
      %5924 = vst.msk [vmem:[#allocation5 + $0x50] sm:$0xff] %vm4123, %v5892
      %5925 = vst.msk [vmem:[#allocation5 + $0x58] sm:$0xff] %vm4123, %v5893
      %5926 = vst.msk [vmem:[#allocation5 + $0x60] sm:$0xff] %vm4123, %v5894
      %5927 = vst.msk [vmem:[#allocation5 + $0x68] sm:$0xff] %vm4123, %v5895
      %5928 = vst.msk [vmem:[#allocation5 + $0x70] sm:$0xff] %vm4123, %v5896
      %5929 = vst.msk [vmem:[#allocation5 + $0x78] sm:$0xff] %vm4123, %v5897
      %5930 = vst.msk [vmem:[#allocation5 + $0x80] sm:$0xff] %vm4123, %v5898
      %5931 = vst.msk [vmem:[#allocation5 + $0x88] sm:$0xff] %vm4123, %v5899
      %5932 = vst.msk [vmem:[#allocation5 + $0x90] sm:$0xff] %vm4123, %v5900
      %5933 = vst.msk [vmem:[#allocation5 + $0x98] sm:$0xff] %vm4123, %v5901
      %5934 = vst.msk [vmem:[#allocation5 + $0xa0] sm:$0xff] %vm4123, %v5902
      %5935 = vst.msk [vmem:[#allocation5 + $0xa8] sm:$0xff] %vm4123, %v5903
      %5936 = vst.msk [vmem:[#allocation5 + $0xb0] sm:$0xff] %vm4123, %v5904
      %5937 = vst.msk [vmem:[#allocation5 + $0xb8] sm:$0xff] %vm4123, %v5905
      %5938 = vst.msk [vmem:[#allocation5 + $0xc0] sm:$0xff] %vm4123, %v5906
      %5939 = vst.msk [vmem:[#allocation5 + $0xc8] sm:$0xff] %vm4123, %v5907
      %5940 = vst.msk [vmem:[#allocation5 + $0xd0] sm:$0xff] %vm4123, %v5908
      %5941 = vst.msk [vmem:[#allocation5 + $0xd8] sm:$0xff] %vm4123, %v5909
      %5942 = vst.msk [vmem:[#allocation5 + $0xe0] sm:$0xff] %vm4123, %v5910
      %5943 = vst.msk [vmem:[#allocation5 + $0xe8] sm:$0xff] %vm4123, %v5911
      %5944 = vst.msk [vmem:[#allocation5 + $0xf0] sm:$0xff] %vm4123, %v5912
      %5945 = vst.msk [vmem:[#allocation5 + $0xf8] sm:$0xff] %vm4123, %v5913
      %s5946 = scalar_lea.vmem [#allocation3], 48
      %v5947 = vld [vmem:[%s5946] sm:$0xff]
      %v5948 = vld [vmem:[%s5946 + $0x8] sm:$0xff]
      %v5949 = vld [vmem:[%s5946 + $0x18] sm:$0xff]
      %v5950 = vld [vmem:[%s5946 + $0x20] sm:$0xff]
      %v5951 = vld [vmem:[%s5946 + $0x30] sm:$0xff]
      %v5952 = vld [vmem:[%s5946 + $0x38] sm:$0xff]
      %v5953 = vld [vmem:[%s5946 + $0x48] sm:$0xff]
      %v5954 = vld [vmem:[%s5946 + $0x50] sm:$0xff]
      %v5955 = vld [vmem:[%s5946 + $0x60] sm:$0xff]
      %v5956 = vld [vmem:[%s5946 + $0x68] sm:$0xff]
      %v5957 = vld [vmem:[%s5946 + $0x78] sm:$0xff]
      %v5958 = vld [vmem:[%s5946 + $0x80] sm:$0xff]
      %v5959 = vld [vmem:[%s5946 + $0x90] sm:$0xff]
      %v5960 = vld [vmem:[%s5946 + $0x98] sm:$0xff]
      %v5961 = vld [vmem:[%s5946 + $0xa8] sm:$0xff]
      %v5962 = vld [vmem:[%s5946 + $0xb0] sm:$0xff]
      %v5963 = vld [vmem:[%s5946 + $0xc0] sm:$0xff]
      %v5964 = vld [vmem:[%s5946 + $0xc8] sm:$0xff]
      %v5965 = vld [vmem:[%s5946 + $0xd8] sm:$0xff]
      %v5966 = vld [vmem:[%s5946 + $0xe0] sm:$0xff]
      %v5967 = vld [vmem:[%s5946 + $0xf0] sm:$0xff]
      %v5968 = vld [vmem:[%s5946 + $0xf8] sm:$0xff]
      %v5969 = vld [vmem:[%s5946 + $0x108] sm:$0xff]
      %v5970 = vld [vmem:[%s5946 + $0x110] sm:$0xff]
      %v5971 = vld [vmem:[%s5946 + $0x120] sm:$0xff]
      %v5972 = vld [vmem:[%s5946 + $0x128] sm:$0xff]
      %v5973 = vld [vmem:[%s5946 + $0x138] sm:$0xff]
      %v5974 = vld [vmem:[%s5946 + $0x140] sm:$0xff]
      %v5975 = vld [vmem:[%s5946 + $0x150] sm:$0xff]
      %v5976 = vld [vmem:[%s5946 + $0x158] sm:$0xff]
      %v5977 = vld [vmem:[%s5946 + $0x168] sm:$0xff]
      %v5978 = vld [vmem:[%s5946 + $0x170] sm:$0xff]
      %v5979 = vpack.c.bf16 %v5948, %v5947
      %v5980 = vpack.c.bf16 %v5950, %v5949
      %v5981 = vpack.c.bf16 %v5952, %v5951
      %v5982 = vpack.c.bf16 %v5954, %v5953
      %v5983 = vpack.c.bf16 %v5956, %v5955
      %v5984 = vpack.c.bf16 %v5958, %v5957
      %v5985 = vpack.c.bf16 %v5960, %v5959
      %v5986 = vpack.c.bf16 %v5962, %v5961
      %v5987 = vpack.c.bf16 %v5964, %v5963
      %v5988 = vpack.c.bf16 %v5966, %v5965
      %v5989 = vpack.c.bf16 %v5968, %v5967
      %v5990 = vpack.c.bf16 %v5970, %v5969
      %v5991 = vpack.c.bf16 %v5972, %v5971
      %v5992 = vpack.c.bf16 %v5974, %v5973
      %v5993 = vpack.c.bf16 %v5976, %v5975
      %v5994 = vpack.c.bf16 %v5978, %v5977
      %s5995 = scalar_lea.vmem %s3, 12
      %v5996 = vld [vmem:[%s5995] sm:$0x3]
      %v5998 = vsel %vm381, %v5979, 0
      %v6001 = vsel %vm381, %v5980, 0
      %v6004 = vsel %vm381, %v5981, 0
      %v6007 = vsel %vm381, %v5982, 0
      %v6010 = vsel %vm381, %v5983, 0
      %v6013 = vsel %vm381, %v5984, 0
      %v6016 = vsel %vm381, %v5985, 0
      %v6019 = vsel %vm381, %v5986, 0
      %v6022 = vsel %vm381, %v5987, 0
      %v6025 = vsel %vm381, %v5988, 0
      %v6028 = vsel %vm381, %v5989, 0
      %v6031 = vsel %vm381, %v5990, 0
      %v6034 = vsel %vm381, %v5991, 0
      %v6037 = vsel %vm381, %v5992, 0
      %v6040 = vsel %vm381, %v5993, 0
      %v6043 = vsel %vm381, %v5994, 0
      %v6046 = vsel %vm557, %v5996, 0
      %6048 = vmatprep.subr.bf16.mxu0 0
      %6049 = vmatpush1.bf16.msra.mxu0 %v6046
      %6050 = vmatprep.subr.bf16.mxu0 0
      %6051 = vmatpush1.bf16.msra.mxu0 0
      %6052 = vmatprep.subr.bf16.mxu0 0
      %6053 = vmatpush1.bf16.msra.mxu0 0
      %6054 = vmatprep.subr.bf16.mxu0 0
      %6055 = vmatpush1.bf16.msra.mxu0 0
      %6056 = vmatprep.subr.bf16.mxu0 0
      %6057 = vmatpush1.bf16.msra.mxu0 0
      %6058 = vmatprep.subr.bf16.mxu0 0
      %6059 = vmatpush1.bf16.msra.mxu0 0
      %6060 = vmatprep.subr.bf16.mxu0 0
      %6061 = vmatpush1.bf16.msra.mxu0 0
      %6062 = vmatprep.subr.bf16.mxu0 0
      %6063 = vmatpush1.bf16.msra.mxu0 0
      %6064 = vmatprep.subr.bf16.mxu0 0
      %6065 = vmatpush1.bf16.msra.mxu0 0
      %6066 = vmatprep.subr.bf16.mxu0 0
      %6067 = vmatpush1.bf16.msra.mxu0 0
      %6068 = vmatprep.subr.bf16.mxu0 0
      %6069 = vmatpush1.bf16.msra.mxu0 0
      %6070 = vmatprep.subr.bf16.mxu0 0
      %6071 = vmatpush1.bf16.msra.mxu0 0
      %6072 = vmatprep.subr.bf16.mxu0 0
      %6073 = vmatpush1.bf16.msra.mxu0 0
      %6074 = vmatprep.subr.bf16.mxu0 0
      %6075 = vmatpush1.bf16.msra.mxu0 0
      %6076 = vmatprep.subr.bf16.mxu0 0
      %6077 = vmatpush1.bf16.msra.mxu0 0
      %6078 = vmatprep.subr.bf16.mxu0 0
      %6079 = vmatpush1.bf16.msra.mxu0 0
      %6080 = vmatprep.mubr.bf16.mxu0 0
      %6081 = vmatmul.mubr.bf16.gmra.mrb[0].mxu0 %v5998
      %v6082 = vpop.f32.mrb[0].mxu0
      %v6083 = vadd.f32 0.0, %v6082
      %v6084 = vpop.f32.mrb[0].mxu0
      %v6085 = vpop.f32.mrb[0].mxu0
      %v6086 = vadd.f32 0.0, %v6085
      %v6087 = vpop.f32.mrb[0].mxu0
      %6088 = vmatprep.mubr.bf16.mxu0 0
      %6089 = vmatmul.mubr.bf16.gmra.mrb[0].mxu0 %v6001
      %v6090 = vpop.f32.mrb[0].mxu0
      %v6091 = vadd.f32 0.0, %v6090
      %v6092 = vpop.f32.mrb[0].mxu0
      %v6093 = vpop.f32.mrb[0].mxu0
      %v6094 = vadd.f32 0.0, %v6093
      %v6095 = vpop.f32.mrb[0].mxu0
      %6096 = vmatprep.mubr.bf16.mxu0 0
      %6097 = vmatmul.mubr.bf16.gmra.mrb[0].mxu0 %v6004
      %v6098 = vpop.f32.mrb[0].mxu0
      %v6099 = vadd.f32 0.0, %v6098
      %v6100 = vpop.f32.mrb[0].mxu0
      %v6101 = vpop.f32.mrb[0].mxu0
      %v6102 = vadd.f32 0.0, %v6101
      %v6103 = vpop.f32.mrb[0].mxu0
      %6104 = vmatprep.mubr.bf16.mxu0 0
      %6105 = vmatmul.mubr.bf16.gmra.mrb[0].mxu0 %v6007
      %v6106 = vpop.f32.mrb[0].mxu0
      %v6107 = vadd.f32 0.0, %v6106
      %v6108 = vpop.f32.mrb[0].mxu0
      %v6109 = vpop.f32.mrb[0].mxu0
      %v6110 = vadd.f32 0.0, %v6109
      %v6111 = vpop.f32.mrb[0].mxu0
      %6112 = vmatprep.mubr.bf16.mxu0 0
      %6113 = vmatmul.mubr.bf16.gmra.mrb[0].mxu0 %v6010
      %v6114 = vpop.f32.mrb[0].mxu0
      %v6115 = vadd.f32 0.0, %v6114
      %v6116 = vpop.f32.mrb[0].mxu0
      %v6117 = vpop.f32.mrb[0].mxu0
      %v6118 = vadd.f32 0.0, %v6117
      %v6119 = vpop.f32.mrb[0].mxu0
      %6120 = vmatprep.mubr.bf16.mxu0 0
      %6121 = vmatmul.mubr.bf16.gmra.mrb[0].mxu0 %v6013
      %v6122 = vpop.f32.mrb[0].mxu0
      %v6123 = vadd.f32 0.0, %v6122
      %v6124 = vpop.f32.mrb[0].mxu0
      %v6125 = vpop.f32.mrb[0].mxu0
      %v6126 = vadd.f32 0.0, %v6125
      %v6127 = vpop.f32.mrb[0].mxu0
      %6128 = vmatprep.mubr.bf16.mxu0 0
      %6129 = vmatmul.mubr.bf16.gmra.mrb[0].mxu0 %v6016
      %v6130 = vpop.f32.mrb[0].mxu0
      %v6131 = vadd.f32 0.0, %v6130
      %v6132 = vpop.f32.mrb[0].mxu0
      %v6133 = vpop.f32.mrb[0].mxu0
      %v6134 = vadd.f32 0.0, %v6133
      %v6135 = vpop.f32.mrb[0].mxu0
      %6136 = vmatprep.mubr.bf16.mxu0 0
      %6137 = vmatmul.mubr.bf16.gmra.mrb[0].mxu0 %v6019
      %v6138 = vpop.f32.mrb[0].mxu0
      %v6139 = vadd.f32 0.0, %v6138
      %v6140 = vpop.f32.mrb[0].mxu0
      %v6141 = vpop.f32.mrb[0].mxu0
      %v6142 = vadd.f32 0.0, %v6141
      %v6143 = vpop.f32.mrb[0].mxu0
      %6144 = vmatprep.mubr.bf16.mxu0 0
      %6145 = vmatmul.mubr.bf16.gmra.mrb[0].mxu0 %v6022
      %v6146 = vpop.f32.mrb[0].mxu0
      %v6147 = vadd.f32 0.0, %v6146
      %v6148 = vpop.f32.mrb[0].mxu0
      %v6149 = vpop.f32.mrb[0].mxu0
      %v6150 = vadd.f32 0.0, %v6149
      %v6151 = vpop.f32.mrb[0].mxu0
      %6152 = vmatprep.mubr.bf16.mxu0 0
      %6153 = vmatmul.mubr.bf16.gmra.mrb[0].mxu0 %v6025
      %v6154 = vpop.f32.mrb[0].mxu0
      %v6155 = vadd.f32 0.0, %v6154
      %v6156 = vpop.f32.mrb[0].mxu0
      %v6157 = vpop.f32.mrb[0].mxu0
      %v6158 = vadd.f32 0.0, %v6157
      %v6159 = vpop.f32.mrb[0].mxu0
      %6160 = vmatprep.mubr.bf16.mxu0 0
      %6161 = vmatmul.mubr.bf16.gmra.mrb[0].mxu0 %v6028
      %v6162 = vpop.f32.mrb[0].mxu0
      %v6163 = vadd.f32 0.0, %v6162
      %v6164 = vpop.f32.mrb[0].mxu0
      %v6165 = vpop.f32.mrb[0].mxu0
      %v6166 = vadd.f32 0.0, %v6165
      %v6167 = vpop.f32.mrb[0].mxu0
      %6168 = vmatprep.mubr.bf16.mxu0 0
      %6169 = vmatmul.mubr.bf16.gmra.mrb[0].mxu0 %v6031
      %v6170 = vpop.f32.mrb[0].mxu0
      %v6171 = vadd.f32 0.0, %v6170
      %v6172 = vpop.f32.mrb[0].mxu0
      %v6173 = vpop.f32.mrb[0].mxu0
      %v6174 = vadd.f32 0.0, %v6173
      %v6175 = vpop.f32.mrb[0].mxu0
      %6176 = vmatprep.mubr.bf16.mxu0 0
      %6177 = vmatmul.mubr.bf16.gmra.mrb[0].mxu0 %v6034
      %v6178 = vpop.f32.mrb[0].mxu0
      %v6179 = vadd.f32 0.0, %v6178
      %v6180 = vpop.f32.mrb[0].mxu0
      %v6181 = vpop.f32.mrb[0].mxu0
      %v6182 = vadd.f32 0.0, %v6181
      %v6183 = vpop.f32.mrb[0].mxu0
      %6184 = vmatprep.mubr.bf16.mxu0 0
      %6185 = vmatmul.mubr.bf16.gmra.mrb[0].mxu0 %v6037
      %v6186 = vpop.f32.mrb[0].mxu0
      %v6187 = vadd.f32 0.0, %v6186
      %v6188 = vpop.f32.mrb[0].mxu0
      %v6189 = vpop.f32.mrb[0].mxu0
      %v6190 = vadd.f32 0.0, %v6189
      %v6191 = vpop.f32.mrb[0].mxu0
      %6192 = vmatprep.mubr.bf16.mxu0 0
      %6193 = vmatmul.mubr.bf16.gmra.mrb[0].mxu0 %v6040
      %v6194 = vpop.f32.mrb[0].mxu0
      %v6195 = vadd.f32 0.0, %v6194
      %v6196 = vpop.f32.mrb[0].mxu0
      %v6197 = vpop.f32.mrb[0].mxu0
      %v6198 = vadd.f32 0.0, %v6197
      %v6199 = vpop.f32.mrb[0].mxu0
      %6200 = vmatprep.mubr.bf16.mxu0 0
      %6201 = vmatmul.mubr.bf16.gmra.mrb[0].mxu0 %v6043
      %v6202 = vpop.f32.mrb[0].mxu0
      %v6203 = vadd.f32 0.0, %v6202
      %v6204 = vpop.f32.mrb[0].mxu0
      %v6205 = vpop.f32.mrb[0].mxu0
      %v6206 = vadd.f32 0.0, %v6205
      %v6207 = vpop.f32.mrb[0].mxu0
      %6208 = vdwg.mxu0
      %v6209 = vld [vmem:[#allocation5] sm:$0xff]
      %v6210 = vld [vmem:[#allocation5 + $0x8] sm:$0xff]
      %v6211 = vld [vmem:[#allocation5 + $0x10] sm:$0xff]
      %v6212 = vld [vmem:[#allocation5 + $0x18] sm:$0xff]
      %v6213 = vld [vmem:[#allocation5 + $0x20] sm:$0xff]
      %v6214 = vld [vmem:[#allocation5 + $0x28] sm:$0xff]
      %v6215 = vld [vmem:[#allocation5 + $0x30] sm:$0xff]
      %v6216 = vld [vmem:[#allocation5 + $0x38] sm:$0xff]
      %v6217 = vld [vmem:[#allocation5 + $0x40] sm:$0xff]
      %v6218 = vld [vmem:[#allocation5 + $0x48] sm:$0xff]
      %v6219 = vld [vmem:[#allocation5 + $0x50] sm:$0xff]
      %v6220 = vld [vmem:[#allocation5 + $0x58] sm:$0xff]
      %v6221 = vld [vmem:[#allocation5 + $0x60] sm:$0xff]
      %v6222 = vld [vmem:[#allocation5 + $0x68] sm:$0xff]
      %v6223 = vld [vmem:[#allocation5 + $0x70] sm:$0xff]
      %v6224 = vld [vmem:[#allocation5 + $0x78] sm:$0xff]
      %v6225 = vld [vmem:[#allocation5 + $0x80] sm:$0xff]
      %v6226 = vld [vmem:[#allocation5 + $0x88] sm:$0xff]
      %v6227 = vld [vmem:[#allocation5 + $0x90] sm:$0xff]
      %v6228 = vld [vmem:[#allocation5 + $0x98] sm:$0xff]
      %v6229 = vld [vmem:[#allocation5 + $0xa0] sm:$0xff]
      %v6230 = vld [vmem:[#allocation5 + $0xa8] sm:$0xff]
      %v6231 = vld [vmem:[#allocation5 + $0xb0] sm:$0xff]
      %v6232 = vld [vmem:[#allocation5 + $0xb8] sm:$0xff]
      %v6233 = vld [vmem:[#allocation5 + $0xc0] sm:$0xff]
      %v6234 = vld [vmem:[#allocation5 + $0xc8] sm:$0xff]
      %v6235 = vld [vmem:[#allocation5 + $0xd0] sm:$0xff]
      %v6236 = vld [vmem:[#allocation5 + $0xd8] sm:$0xff]
      %v6237 = vld [vmem:[#allocation5 + $0xe0] sm:$0xff]
      %v6238 = vld [vmem:[#allocation5 + $0xe8] sm:$0xff]
      %v6239 = vld [vmem:[#allocation5 + $0xf0] sm:$0xff]
      %v6240 = vld [vmem:[#allocation5 + $0xf8] sm:$0xff]
      %v6241 = vadd.f32 %v6209, %v6083
      %v6242 = vadd.f32 %v6210, %v6086
      %v6243 = vadd.f32 %v6211, %v6091
      %v6244 = vadd.f32 %v6212, %v6094
      %v6245 = vadd.f32 %v6213, %v6099
      %v6246 = vadd.f32 %v6214, %v6102
      %v6247 = vadd.f32 %v6215, %v6107
      %v6248 = vadd.f32 %v6216, %v6110
      %v6249 = vadd.f32 %v6217, %v6115
      %v6250 = vadd.f32 %v6218, %v6118
      %v6251 = vadd.f32 %v6219, %v6123
      %v6252 = vadd.f32 %v6220, %v6126
      %v6253 = vadd.f32 %v6221, %v6131
      %v6254 = vadd.f32 %v6222, %v6134
      %v6255 = vadd.f32 %v6223, %v6139
      %v6256 = vadd.f32 %v6224, %v6142
      %v6257 = vadd.f32 %v6225, %v6147
      %v6258 = vadd.f32 %v6226, %v6150
      %v6259 = vadd.f32 %v6227, %v6155
      %v6260 = vadd.f32 %v6228, %v6158
      %v6261 = vadd.f32 %v6229, %v6163
      %v6262 = vadd.f32 %v6230, %v6166
      %v6263 = vadd.f32 %v6231, %v6171
      %v6264 = vadd.f32 %v6232, %v6174
      %v6265 = vadd.f32 %v6233, %v6179
      %v6266 = vadd.f32 %v6234, %v6182
      %v6267 = vadd.f32 %v6235, %v6187
      %v6268 = vadd.f32 %v6236, %v6190
      %v6269 = vadd.f32 %v6237, %v6195
      %v6270 = vadd.f32 %v6238, %v6198
      %v6271 = vadd.f32 %v6239, %v6203
      %v6272 = vadd.f32 %v6240, %v6206
      %6273 = vst.msk [vmem:[#allocation5] sm:$0xff] %vm4123, %v6241
      %6274 = vst.msk [vmem:[#allocation5 + $0x8] sm:$0xff] %vm4123, %v6242
      %6275 = vst.msk [vmem:[#allocation5 + $0x10] sm:$0xff] %vm4123, %v6243
      %6276 = vst.msk [vmem:[#allocation5 + $0x18] sm:$0xff] %vm4123, %v6244
      %6277 = vst.msk [vmem:[#allocation5 + $0x20] sm:$0xff] %vm4123, %v6245
      %6278 = vst.msk [vmem:[#allocation5 + $0x28] sm:$0xff] %vm4123, %v6246
      %6279 = vst.msk [vmem:[#allocation5 + $0x30] sm:$0xff] %vm4123, %v6247
      %6280 = vst.msk [vmem:[#allocation5 + $0x38] sm:$0xff] %vm4123, %v6248
      %6281 = vst.msk [vmem:[#allocation5 + $0x40] sm:$0xff] %vm4123, %v6249
      %6282 = vst.msk [vmem:[#allocation5 + $0x48] sm:$0xff] %vm4123, %v6250
      %6283 = vst.msk [vmem:[#allocation5 + $0x50] sm:$0xff] %vm4123, %v6251
      %6284 = vst.msk [vmem:[#allocation5 + $0x58] sm:$0xff] %vm4123, %v6252
      %6285 = vst.msk [vmem:[#allocation5 + $0x60] sm:$0xff] %vm4123, %v6253
      %6286 = vst.msk [vmem:[#allocation5 + $0x68] sm:$0xff] %vm4123, %v6254
      %6287 = vst.msk [vmem:[#allocation5 + $0x70] sm:$0xff] %vm4123, %v6255
      %6288 = vst.msk [vmem:[#allocation5 + $0x78] sm:$0xff] %vm4123, %v6256
      %6289 = vst.msk [vmem:[#allocation5 + $0x80] sm:$0xff] %vm4123, %v6257
      %6290 = vst.msk [vmem:[#allocation5 + $0x88] sm:$0xff] %vm4123, %v6258
      %6291 = vst.msk [vmem:[#allocation5 + $0x90] sm:$0xff] %vm4123, %v6259
      %6292 = vst.msk [vmem:[#allocation5 + $0x98] sm:$0xff] %vm4123, %v6260
      %6293 = vst.msk [vmem:[#allocation5 + $0xa0] sm:$0xff] %vm4123, %v6261
      %6294 = vst.msk [vmem:[#allocation5 + $0xa8] sm:$0xff] %vm4123, %v6262
      %6295 = vst.msk [vmem:[#allocation5 + $0xb0] sm:$0xff] %vm4123, %v6263
      %6296 = vst.msk [vmem:[#allocation5 + $0xb8] sm:$0xff] %vm4123, %v6264
      %6297 = vst.msk [vmem:[#allocation5 + $0xc0] sm:$0xff] %vm4123, %v6265
      %6298 = vst.msk [vmem:[#allocation5 + $0xc8] sm:$0xff] %vm4123, %v6266
      %6299 = vst.msk [vmem:[#allocation5 + $0xd0] sm:$0xff] %vm4123, %v6267
      %6300 = vst.msk [vmem:[#allocation5 + $0xd8] sm:$0xff] %vm4123, %v6268
      %6301 = vst.msk [vmem:[#allocation5 + $0xe0] sm:$0xff] %vm4123, %v6269
      %6302 = vst.msk [vmem:[#allocation5 + $0xe8] sm:$0xff] %vm4123, %v6270
      %6303 = vst.msk [vmem:[#allocation5 + $0xf0] sm:$0xff] %vm4123, %v6271
      %6304 = vst.msk [vmem:[#allocation5 + $0xf8] sm:$0xff] %vm4123, %v6272
      %v6305 = vld [vmem:[%s5946 + $0x1] sm:$0xff]
      %v6306 = vld [vmem:[%s5946 + $0x9] sm:$0xff]
      %v6307 = vld [vmem:[%s5946 + $0x19] sm:$0xff]
      %v6308 = vld [vmem:[%s5946 + $0x21] sm:$0xff]
      %v6309 = vld [vmem:[%s5946 + $0x31] sm:$0xff]
      %v6310 = vld [vmem:[%s5946 + $0x39] sm:$0xff]
      %v6311 = vld [vmem:[%s5946 + $0x49] sm:$0xff]
      %v6312 = vld [vmem:[%s5946 + $0x51] sm:$0xff]
      %v6313 = vld [vmem:[%s5946 + $0x61] sm:$0xff]
      %v6314 = vld [vmem:[%s5946 + $0x69] sm:$0xff]
      %v6315 = vld [vmem:[%s5946 + $0x79] sm:$0xff]
      %v6316 = vld [vmem:[%s5946 + $0x81] sm:$0xff]
      %v6317 = vld [vmem:[%s5946 + $0x91] sm:$0xff]
      %v6318 = vld [vmem:[%s5946 + $0x99] sm:$0xff]
      %v6319 = vld [vmem:[%s5946 + $0xa9] sm:$0xff]
      %v6320 = vld [vmem:[%s5946 + $0xb1] sm:$0xff]
      %v6321 = vld [vmem:[%s5946 + $0xc1] sm:$0xff]
      %v6322 = vld [vmem:[%s5946 + $0xc9] sm:$0xff]
      %v6323 = vld [vmem:[%s5946 + $0xd9] sm:$0xff]
      %v6324 = vld [vmem:[%s5946 + $0xe1] sm:$0xff]
      %v6325 = vld [vmem:[%s5946 + $0xf1] sm:$0xff]
      %v6326 = vld [vmem:[%s5946 + $0xf9] sm:$0xff]
      %v6327 = vld [vmem:[%s5946 + $0x109] sm:$0xff]
      %v6328 = vld [vmem:[%s5946 + $0x111] sm:$0xff]
      %v6329 = vld [vmem:[%s5946 + $0x121] sm:$0xff]
      %v6330 = vld [vmem:[%s5946 + $0x129] sm:$0xff]
      %v6331 = vld [vmem:[%s5946 + $0x139] sm:$0xff]
      %v6332 = vld [vmem:[%s5946 + $0x141] sm:$0xff]
      %v6333 = vld [vmem:[%s5946 + $0x151] sm:$0xff]
      %v6334 = vld [vmem:[%s5946 + $0x159] sm:$0xff]
      %v6335 = vld [vmem:[%s5946 + $0x169] sm:$0xff]
      %v6336 = vld [vmem:[%s5946 + $0x171] sm:$0xff]
      %v6337 = vpack.c.bf16 %v6306, %v6305
      %v6338 = vpack.c.bf16 %v6308, %v6307
      %v6339 = vpack.c.bf16 %v6310, %v6309
      %v6340 = vpack.c.bf16 %v6312, %v6311
      %v6341 = vpack.c.bf16 %v6314, %v6313
      %v6342 = vpack.c.bf16 %v6316, %v6315
      %v6343 = vpack.c.bf16 %v6318, %v6317
      %v6344 = vpack.c.bf16 %v6320, %v6319
      %v6345 = vpack.c.bf16 %v6322, %v6321
      %v6346 = vpack.c.bf16 %v6324, %v6323
      %v6347 = vpack.c.bf16 %v6326, %v6325
      %v6348 = vpack.c.bf16 %v6328, %v6327
      %v6349 = vpack.c.bf16 %v6330, %v6329
      %v6350 = vpack.c.bf16 %v6332, %v6331
      %v6351 = vpack.c.bf16 %v6334, %v6333
      %v6352 = vpack.c.bf16 %v6336, %v6335
      %s6353 = scalar_lea.vmem %s3, 14
      %v6354 = vld [vmem:[%s6353] sm:$0x3]
      %v6356 = vsel %vm381, %v6337, 0
      %v6359 = vsel %vm381, %v6338, 0
      %v6362 = vsel %vm381, %v6339, 0
      %v6365 = vsel %vm381, %v6340, 0
      %v6368 = vsel %vm381, %v6341, 0
      %v6371 = vsel %vm381, %v6342, 0
      %v6374 = vsel %vm381, %v6343, 0
      %v6377 = vsel %vm381, %v6344, 0
      %v6380 = vsel %vm381, %v6345, 0
      %v6383 = vsel %vm381, %v6346, 0
      %v6386 = vsel %vm381, %v6347, 0
      %v6389 = vsel %vm381, %v6348, 0
      %v6392 = vsel %vm381, %v6349, 0
      %v6395 = vsel %vm381, %v6350, 0
      %v6398 = vsel %vm381, %v6351, 0
      %v6401 = vsel %vm381, %v6352, 0
      %v6404 = vsel %vm557, %v6354, 0
      %6406 = vmatprep.subr.bf16.mxu0 0
      %6407 = vmatpush1.bf16.msra.mxu0 %v6404
      %6408 = vmatprep.subr.bf16.mxu0 0
      %6409 = vmatpush1.bf16.msra.mxu0 0
      %6410 = vmatprep.subr.bf16.mxu0 0
      %6411 = vmatpush1.bf16.msra.mxu0 0
      %6412 = vmatprep.subr.bf16.mxu0 0
      %6413 = vmatpush1.bf16.msra.mxu0 0
      %6414 = vmatprep.subr.bf16.mxu0 0
      %6415 = vmatpush1.bf16.msra.mxu0 0
      %6416 = vmatprep.subr.bf16.mxu0 0
      %6417 = vmatpush1.bf16.msra.mxu0 0
      %6418 = vmatprep.subr.bf16.mxu0 0
      %6419 = vmatpush1.bf16.msra.mxu0 0
      %6420 = vmatprep.subr.bf16.mxu0 0
      %6421 = vmatpush1.bf16.msra.mxu0 0
      %6422 = vmatprep.subr.bf16.mxu0 0
      %6423 = vmatpush1.bf16.msra.mxu0 0
      %6424 = vmatprep.subr.bf16.mxu0 0
      %6425 = vmatpush1.bf16.msra.mxu0 0
      %6426 = vmatprep.subr.bf16.mxu0 0
      %6427 = vmatpush1.bf16.msra.mxu0 0
      %6428 = vmatprep.subr.bf16.mxu0 0
      %6429 = vmatpush1.bf16.msra.mxu0 0
      %6430 = vmatprep.subr.bf16.mxu0 0
      %6431 = vmatpush1.bf16.msra.mxu0 0
      %6432 = vmatprep.subr.bf16.mxu0 0
      %6433 = vmatpush1.bf16.msra.mxu0 0
      %6434 = vmatprep.subr.bf16.mxu0 0
      %6435 = vmatpush1.bf16.msra.mxu0 0
      %6436 = vmatprep.subr.bf16.mxu0 0
      %6437 = vmatpush1.bf16.msra.mxu0 0
      %6438 = vmatprep.mubr.bf16.mxu0 0
      %6439 = vmatmul.mubr.bf16.gmra.mrb[0].mxu0 %v6356
      %v6440 = vpop.f32.mrb[0].mxu0
      %v6441 = vadd.f32 0.0, %v6440
      %v6442 = vpop.f32.mrb[0].mxu0
      %v6443 = vpop.f32.mrb[0].mxu0
      %v6444 = vadd.f32 0.0, %v6443
      %v6445 = vpop.f32.mrb[0].mxu0
      %6446 = vmatprep.mubr.bf16.mxu0 0
      %6447 = vmatmul.mubr.bf16.gmra.mrb[0].mxu0 %v6359
      %v6448 = vpop.f32.mrb[0].mxu0
      %v6449 = vadd.f32 0.0, %v6448
      %v6450 = vpop.f32.mrb[0].mxu0
      %v6451 = vpop.f32.mrb[0].mxu0
      %v6452 = vadd.f32 0.0, %v6451
      %v6453 = vpop.f32.mrb[0].mxu0
      %6454 = vmatprep.mubr.bf16.mxu0 0
      %6455 = vmatmul.mubr.bf16.gmra.mrb[0].mxu0 %v6362
      %v6456 = vpop.f32.mrb[0].mxu0
      %v6457 = vadd.f32 0.0, %v6456
      %v6458 = vpop.f32.mrb[0].mxu0
      %v6459 = vpop.f32.mrb[0].mxu0
      %v6460 = vadd.f32 0.0, %v6459
      %v6461 = vpop.f32.mrb[0].mxu0
      %6462 = vmatprep.mubr.bf16.mxu0 0
      %6463 = vmatmul.mubr.bf16.gmra.mrb[0].mxu0 %v6365
      %v6464 = vpop.f32.mrb[0].mxu0
      %v6465 = vadd.f32 0.0, %v6464
      %v6466 = vpop.f32.mrb[0].mxu0
      %v6467 = vpop.f32.mrb[0].mxu0
      %v6468 = vadd.f32 0.0, %v6467
      %v6469 = vpop.f32.mrb[0].mxu0
      %6470 = vmatprep.mubr.bf16.mxu0 0
      %6471 = vmatmul.mubr.bf16.gmra.mrb[0].mxu0 %v6368
      %v6472 = vpop.f32.mrb[0].mxu0
      %v6473 = vadd.f32 0.0, %v6472
      %v6474 = vpop.f32.mrb[0].mxu0
      %v6475 = vpop.f32.mrb[0].mxu0
      %v6476 = vadd.f32 0.0, %v6475
      %v6477 = vpop.f32.mrb[0].mxu0
      %6478 = vmatprep.mubr.bf16.mxu0 0
      %6479 = vmatmul.mubr.bf16.gmra.mrb[0].mxu0 %v6371
      %v6480 = vpop.f32.mrb[0].mxu0
      %v6481 = vadd.f32 0.0, %v6480
      %v6482 = vpop.f32.mrb[0].mxu0
      %v6483 = vpop.f32.mrb[0].mxu0
      %v6484 = vadd.f32 0.0, %v6483
      %v6485 = vpop.f32.mrb[0].mxu0
      %6486 = vmatprep.mubr.bf16.mxu0 0
      %6487 = vmatmul.mubr.bf16.gmra.mrb[0].mxu0 %v6374
      %v6488 = vpop.f32.mrb[0].mxu0
      %v6489 = vadd.f32 0.0, %v6488
      %v6490 = vpop.f32.mrb[0].mxu0
      %v6491 = vpop.f32.mrb[0].mxu0
      %v6492 = vadd.f32 0.0, %v6491
      %v6493 = vpop.f32.mrb[0].mxu0
      %6494 = vmatprep.mubr.bf16.mxu0 0
      %6495 = vmatmul.mubr.bf16.gmra.mrb[0].mxu0 %v6377
      %v6496 = vpop.f32.mrb[0].mxu0
      %v6497 = vadd.f32 0.0, %v6496
      %v6498 = vpop.f32.mrb[0].mxu0
      %v6499 = vpop.f32.mrb[0].mxu0
      %v6500 = vadd.f32 0.0, %v6499
      %v6501 = vpop.f32.mrb[0].mxu0
      %6502 = vmatprep.mubr.bf16.mxu0 0
      %6503 = vmatmul.mubr.bf16.gmra.mrb[0].mxu0 %v6380
      %v6504 = vpop.f32.mrb[0].mxu0
      %v6505 = vadd.f32 0.0, %v6504
      %v6506 = vpop.f32.mrb[0].mxu0
      %v6507 = vpop.f32.mrb[0].mxu0
      %v6508 = vadd.f32 0.0, %v6507
      %v6509 = vpop.f32.mrb[0].mxu0
      %6510 = vmatprep.mubr.bf16.mxu0 0
      %6511 = vmatmul.mubr.bf16.gmra.mrb[0].mxu0 %v6383
      %v6512 = vpop.f32.mrb[0].mxu0
      %v6513 = vadd.f32 0.0, %v6512
      %v6514 = vpop.f32.mrb[0].mxu0
      %v6515 = vpop.f32.mrb[0].mxu0
      %v6516 = vadd.f32 0.0, %v6515
      %v6517 = vpop.f32.mrb[0].mxu0
      %6518 = vmatprep.mubr.bf16.mxu0 0
      %6519 = vmatmul.mubr.bf16.gmra.mrb[0].mxu0 %v6386
      %v6520 = vpop.f32.mrb[0].mxu0
      %v6521 = vadd.f32 0.0, %v6520
      %v6522 = vpop.f32.mrb[0].mxu0
      %v6523 = vpop.f32.mrb[0].mxu0
      %v6524 = vadd.f32 0.0, %v6523
      %v6525 = vpop.f32.mrb[0].mxu0
      %6526 = vmatprep.mubr.bf16.mxu0 0
      %6527 = vmatmul.mubr.bf16.gmra.mrb[0].mxu0 %v6389
      %v6528 = vpop.f32.mrb[0].mxu0
      %v6529 = vadd.f32 0.0, %v6528
      %v6530 = vpop.f32.mrb[0].mxu0
      %v6531 = vpop.f32.mrb[0].mxu0
      %v6532 = vadd.f32 0.0, %v6531
      %v6533 = vpop.f32.mrb[0].mxu0
      %6534 = vmatprep.mubr.bf16.mxu0 0
      %6535 = vmatmul.mubr.bf16.gmra.mrb[0].mxu0 %v6392
      %v6536 = vpop.f32.mrb[0].mxu0
      %v6537 = vadd.f32 0.0, %v6536
      %v6538 = vpop.f32.mrb[0].mxu0
      %v6539 = vpop.f32.mrb[0].mxu0
      %v6540 = vadd.f32 0.0, %v6539
      %v6541 = vpop.f32.mrb[0].mxu0
      %6542 = vmatprep.mubr.bf16.mxu0 0
      %6543 = vmatmul.mubr.bf16.gmra.mrb[0].mxu0 %v6395
      %v6544 = vpop.f32.mrb[0].mxu0
      %v6545 = vadd.f32 0.0, %v6544
      %v6546 = vpop.f32.mrb[0].mxu0
      %v6547 = vpop.f32.mrb[0].mxu0
      %v6548 = vadd.f32 0.0, %v6547
      %v6549 = vpop.f32.mrb[0].mxu0
      %6550 = vmatprep.mubr.bf16.mxu0 0
      %6551 = vmatmul.mubr.bf16.gmra.mrb[0].mxu0 %v6398
      %v6552 = vpop.f32.mrb[0].mxu0
      %v6553 = vadd.f32 0.0, %v6552
      %v6554 = vpop.f32.mrb[0].mxu0
      %v6555 = vpop.f32.mrb[0].mxu0
      %v6556 = vadd.f32 0.0, %v6555
      %v6557 = vpop.f32.mrb[0].mxu0
      %6558 = vmatprep.mubr.bf16.mxu0 0
      %6559 = vmatmul.mubr.bf16.gmra.mrb[0].mxu0 %v6401
      %v6560 = vpop.f32.mrb[0].mxu0
      %v6561 = vadd.f32 0.0, %v6560
      %v6562 = vpop.f32.mrb[0].mxu0
      %v6563 = vpop.f32.mrb[0].mxu0
      %v6564 = vadd.f32 0.0, %v6563
      %v6565 = vpop.f32.mrb[0].mxu0
      %6566 = vdwg.mxu0
      %v6567 = vld [vmem:[#allocation5] sm:$0xff]
      %v6568 = vld [vmem:[#allocation5 + $0x8] sm:$0xff]
      %v6569 = vld [vmem:[#allocation5 + $0x10] sm:$0xff]
      %v6570 = vld [vmem:[#allocation5 + $0x18] sm:$0xff]
      %v6571 = vld [vmem:[#allocation5 + $0x20] sm:$0xff]
      %v6572 = vld [vmem:[#allocation5 + $0x28] sm:$0xff]
      %v6573 = vld [vmem:[#allocation5 + $0x30] sm:$0xff]
      %v6574 = vld [vmem:[#allocation5 + $0x38] sm:$0xff]
      %v6575 = vld [vmem:[#allocation5 + $0x40] sm:$0xff]
      %v6576 = vld [vmem:[#allocation5 + $0x48] sm:$0xff]
      %v6577 = vld [vmem:[#allocation5 + $0x50] sm:$0xff]
      %v6578 = vld [vmem:[#allocation5 + $0x58] sm:$0xff]
      %v6579 = vld [vmem:[#allocation5 + $0x60] sm:$0xff]
      %v6580 = vld [vmem:[#allocation5 + $0x68] sm:$0xff]
      %v6581 = vld [vmem:[#allocation5 + $0x70] sm:$0xff]
      %v6582 = vld [vmem:[#allocation5 + $0x78] sm:$0xff]
      %v6583 = vld [vmem:[#allocation5 + $0x80] sm:$0xff]
      %v6584 = vld [vmem:[#allocation5 + $0x88] sm:$0xff]
      %v6585 = vld [vmem:[#allocation5 + $0x90] sm:$0xff]
      %v6586 = vld [vmem:[#allocation5 + $0x98] sm:$0xff]
      %v6587 = vld [vmem:[#allocation5 + $0xa0] sm:$0xff]
      %v6588 = vld [vmem:[#allocation5 + $0xa8] sm:$0xff]
      %v6589 = vld [vmem:[#allocation5 + $0xb0] sm:$0xff]
      %v6590 = vld [vmem:[#allocation5 + $0xb8] sm:$0xff]
      %v6591 = vld [vmem:[#allocation5 + $0xc0] sm:$0xff]
      %v6592 = vld [vmem:[#allocation5 + $0xc8] sm:$0xff]
      %v6593 = vld [vmem:[#allocation5 + $0xd0] sm:$0xff]
      %v6594 = vld [vmem:[#allocation5 + $0xd8] sm:$0xff]
      %v6595 = vld [vmem:[#allocation5 + $0xe0] sm:$0xff]
      %v6596 = vld [vmem:[#allocation5 + $0xe8] sm:$0xff]
      %v6597 = vld [vmem:[#allocation5 + $0xf0] sm:$0xff]
      %v6598 = vld [vmem:[#allocation5 + $0xf8] sm:$0xff]
      %v6599 = vadd.f32 %v6567, %v6441
      %v6600 = vadd.f32 %v6568, %v6444
      %v6601 = vadd.f32 %v6569, %v6449
      %v6602 = vadd.f32 %v6570, %v6452
      %v6603 = vadd.f32 %v6571, %v6457
      %v6604 = vadd.f32 %v6572, %v6460
      %v6605 = vadd.f32 %v6573, %v6465
      %v6606 = vadd.f32 %v6574, %v6468
      %v6607 = vadd.f32 %v6575, %v6473
      %v6608 = vadd.f32 %v6576, %v6476
      %v6609 = vadd.f32 %v6577, %v6481
      %v6610 = vadd.f32 %v6578, %v6484
      %v6611 = vadd.f32 %v6579, %v6489
      %v6612 = vadd.f32 %v6580, %v6492
      %v6613 = vadd.f32 %v6581, %v6497
      %v6614 = vadd.f32 %v6582, %v6500
      %v6615 = vadd.f32 %v6583, %v6505
      %v6616 = vadd.f32 %v6584, %v6508
      %v6617 = vadd.f32 %v6585, %v6513
      %v6618 = vadd.f32 %v6586, %v6516
      %v6619 = vadd.f32 %v6587, %v6521
      %v6620 = vadd.f32 %v6588, %v6524
      %v6621 = vadd.f32 %v6589, %v6529
      %v6622 = vadd.f32 %v6590, %v6532
      %v6623 = vadd.f32 %v6591, %v6537
      %v6624 = vadd.f32 %v6592, %v6540
      %v6625 = vadd.f32 %v6593, %v6545
      %v6626 = vadd.f32 %v6594, %v6548
      %v6627 = vadd.f32 %v6595, %v6553
      %v6628 = vadd.f32 %v6596, %v6556
      %v6629 = vadd.f32 %v6597, %v6561
      %v6630 = vadd.f32 %v6598, %v6564
      %6631 = vst.msk [vmem:[#allocation5] sm:$0xff] %vm4123, %v6599
      %6632 = vst.msk [vmem:[#allocation5 + $0x8] sm:$0xff] %vm4123, %v6600
      %6633 = vst.msk [vmem:[#allocation5 + $0x10] sm:$0xff] %vm4123, %v6601
      %6634 = vst.msk [vmem:[#allocation5 + $0x18] sm:$0xff] %vm4123, %v6602
      %6635 = vst.msk [vmem:[#allocation5 + $0x20] sm:$0xff] %vm4123, %v6603
      %6636 = vst.msk [vmem:[#allocation5 + $0x28] sm:$0xff] %vm4123, %v6604
      %6637 = vst.msk [vmem:[#allocation5 + $0x30] sm:$0xff] %vm4123, %v6605
      %6638 = vst.msk [vmem:[#allocation5 + $0x38] sm:$0xff] %vm4123, %v6606
      %6639 = vst.msk [vmem:[#allocation5 + $0x40] sm:$0xff] %vm4123, %v6607
      %6640 = vst.msk [vmem:[#allocation5 + $0x48] sm:$0xff] %vm4123, %v6608
      %6641 = vst.msk [vmem:[#allocation5 + $0x50] sm:$0xff] %vm4123, %v6609
      %6642 = vst.msk [vmem:[#allocation5 + $0x58] sm:$0xff] %vm4123, %v6610
      %6643 = vst.msk [vmem:[#allocation5 + $0x60] sm:$0xff] %vm4123, %v6611
      %6644 = vst.msk [vmem:[#allocation5 + $0x68] sm:$0xff] %vm4123, %v6612
      %6645 = vst.msk [vmem:[#allocation5 + $0x70] sm:$0xff] %vm4123, %v6613
      %6646 = vst.msk [vmem:[#allocation5 + $0x78] sm:$0xff] %vm4123, %v6614
      %6647 = vst.msk [vmem:[#allocation5 + $0x80] sm:$0xff] %vm4123, %v6615
      %6648 = vst.msk [vmem:[#allocation5 + $0x88] sm:$0xff] %vm4123, %v6616
      %6649 = vst.msk [vmem:[#allocation5 + $0x90] sm:$0xff] %vm4123, %v6617
      %6650 = vst.msk [vmem:[#allocation5 + $0x98] sm:$0xff] %vm4123, %v6618
      %6651 = vst.msk [vmem:[#allocation5 + $0xa0] sm:$0xff] %vm4123, %v6619
      %6652 = vst.msk [vmem:[#allocation5 + $0xa8] sm:$0xff] %vm4123, %v6620
      %6653 = vst.msk [vmem:[#allocation5 + $0xb0] sm:$0xff] %vm4123, %v6621
      %6654 = vst.msk [vmem:[#allocation5 + $0xb8] sm:$0xff] %vm4123, %v6622
      %6655 = vst.msk [vmem:[#allocation5 + $0xc0] sm:$0xff] %vm4123, %v6623
      %6656 = vst.msk [vmem:[#allocation5 + $0xc8] sm:$0xff] %vm4123, %v6624
      %6657 = vst.msk [vmem:[#allocation5 + $0xd0] sm:$0xff] %vm4123, %v6625
      %6658 = vst.msk [vmem:[#allocation5 + $0xd8] sm:$0xff] %vm4123, %v6626
      %6659 = vst.msk [vmem:[#allocation5 + $0xe0] sm:$0xff] %vm4123, %v6627
      %6660 = vst.msk [vmem:[#allocation5 + $0xe8] sm:$0xff] %vm4123, %v6628
      %6661 = vst.msk [vmem:[#allocation5 + $0xf0] sm:$0xff] %vm4123, %v6629
      %6662 = vst.msk [vmem:[#allocation5 + $0xf8] sm:$0xff] %vm4123, %v6630
      %v6663 = vld [vmem:[%s5946 + $0x2] sm:$0xff]
      %v6664 = vld [vmem:[%s5946 + $0xa] sm:$0xff]
      %v6665 = vld [vmem:[%s5946 + $0x1a] sm:$0xff]
      %v6666 = vld [vmem:[%s5946 + $0x22] sm:$0xff]
      %v6667 = vld [vmem:[%s5946 + $0x32] sm:$0xff]
      %v6668 = vld [vmem:[%s5946 + $0x3a] sm:$0xff]
      %v6669 = vld [vmem:[%s5946 + $0x4a] sm:$0xff]
      %v6670 = vld [vmem:[%s5946 + $0x52] sm:$0xff]
      %v6671 = vld [vmem:[%s5946 + $0x62] sm:$0xff]
      %v6672 = vld [vmem:[%s5946 + $0x6a] sm:$0xff]
      %v6673 = vld [vmem:[%s5946 + $0x7a] sm:$0xff]
      %v6674 = vld [vmem:[%s5946 + $0x82] sm:$0xff]
      %v6675 = vld [vmem:[%s5946 + $0x92] sm:$0xff]
      %v6676 = vld [vmem:[%s5946 + $0x9a] sm:$0xff]
      %v6677 = vld [vmem:[%s5946 + $0xaa] sm:$0xff]
      %v6678 = vld [vmem:[%s5946 + $0xb2] sm:$0xff]
      %v6679 = vld [vmem:[%s5946 + $0xc2] sm:$0xff]
      %v6680 = vld [vmem:[%s5946 + $0xca] sm:$0xff]
      %v6681 = vld [vmem:[%s5946 + $0xda] sm:$0xff]
      %v6682 = vld [vmem:[%s5946 + $0xe2] sm:$0xff]
      %v6683 = vld [vmem:[%s5946 + $0xf2] sm:$0xff]
      %v6684 = vld [vmem:[%s5946 + $0xfa] sm:$0xff]
      %v6685 = vld [vmem:[%s5946 + $0x10a] sm:$0xff]
      %v6686 = vld [vmem:[%s5946 + $0x112] sm:$0xff]
      %v6687 = vld [vmem:[%s5946 + $0x122] sm:$0xff]
      %v6688 = vld [vmem:[%s5946 + $0x12a] sm:$0xff]
      %v6689 = vld [vmem:[%s5946 + $0x13a] sm:$0xff]
      %v6690 = vld [vmem:[%s5946 + $0x142] sm:$0xff]
      %v6691 = vld [vmem:[%s5946 + $0x152] sm:$0xff]
      %v6692 = vld [vmem:[%s5946 + $0x15a] sm:$0xff]
      %v6693 = vld [vmem:[%s5946 + $0x16a] sm:$0xff]
      %v6694 = vld [vmem:[%s5946 + $0x172] sm:$0xff]
      %v6695 = vpack.c.bf16 %v6664, %v6663
      %v6696 = vpack.c.bf16 %v6666, %v6665
      %v6697 = vpack.c.bf16 %v6668, %v6667
      %v6698 = vpack.c.bf16 %v6670, %v6669
      %v6699 = vpack.c.bf16 %v6672, %v6671
      %v6700 = vpack.c.bf16 %v6674, %v6673
      %v6701 = vpack.c.bf16 %v6676, %v6675
      %v6702 = vpack.c.bf16 %v6678, %v6677
      %v6703 = vpack.c.bf16 %v6680, %v6679
      %v6704 = vpack.c.bf16 %v6682, %v6681
      %v6705 = vpack.c.bf16 %v6684, %v6683
      %v6706 = vpack.c.bf16 %v6686, %v6685
      %v6707 = vpack.c.bf16 %v6688, %v6687
      %v6708 = vpack.c.bf16 %v6690, %v6689
      %v6709 = vpack.c.bf16 %v6692, %v6691
      %v6710 = vpack.c.bf16 %v6694, %v6693
      %s6711 = scalar_lea.vmem %s3, 16
      %v6712 = vld [vmem:[%s6711] sm:$0x3]
      %v6714 = vsel %vm381, %v6695, 0
      %v6717 = vsel %vm381, %v6696, 0
      %v6720 = vsel %vm381, %v6697, 0
      %v6723 = vsel %vm381, %v6698, 0
      %v6726 = vsel %vm381, %v6699, 0
      %v6729 = vsel %vm381, %v6700, 0
      %v6732 = vsel %vm381, %v6701, 0
      %v6735 = vsel %vm381, %v6702, 0
      %v6738 = vsel %vm381, %v6703, 0
      %v6741 = vsel %vm381, %v6704, 0
      %v6744 = vsel %vm381, %v6705, 0
      %v6747 = vsel %vm381, %v6706, 0
      %v6750 = vsel %vm381, %v6707, 0
      %v6753 = vsel %vm381, %v6708, 0
      %v6756 = vsel %vm381, %v6709, 0
      %v6759 = vsel %vm381, %v6710, 0
      %v6762 = vsel %vm557, %v6712, 0
      %6764 = vmatprep.subr.bf16.mxu0 0
      %6765 = vmatpush1.bf16.msra.mxu0 %v6762
      %6766 = vmatprep.subr.bf16.mxu0 0
      %6767 = vmatpush1.bf16.msra.mxu0 0
      %6768 = vmatprep.subr.bf16.mxu0 0
      %6769 = vmatpush1.bf16.msra.mxu0 0
      %6770 = vmatprep.subr.bf16.mxu0 0
      %6771 = vmatpush1.bf16.msra.mxu0 0
      %6772 = vmatprep.subr.bf16.mxu0 0
      %6773 = vmatpush1.bf16.msra.mxu0 0
      %6774 = vmatprep.subr.bf16.mxu0 0
      %6775 = vmatpush1.bf16.msra.mxu0 0
      %6776 = vmatprep.subr.bf16.mxu0 0
      %6777 = vmatpush1.bf16.msra.mxu0 0
      %6778 = vmatprep.subr.bf16.mxu0 0
      %6779 = vmatpush1.bf16.msra.mxu0 0
      %6780 = vmatprep.subr.bf16.mxu0 0
      %6781 = vmatpush1.bf16.msra.mxu0 0
      %6782 = vmatprep.subr.bf16.mxu0 0
      %6783 = vmatpush1.bf16.msra.mxu0 0
      %6784 = vmatprep.subr.bf16.mxu0 0
      %6785 = vmatpush1.bf16.msra.mxu0 0
      %6786 = vmatprep.subr.bf16.mxu0 0
      %6787 = vmatpush1.bf16.msra.mxu0 0
      %6788 = vmatprep.subr.bf16.mxu0 0
      %6789 = vmatpush1.bf16.msra.mxu0 0
      %6790 = vmatprep.subr.bf16.mxu0 0
      %6791 = vmatpush1.bf16.msra.mxu0 0
      %6792 = vmatprep.subr.bf16.mxu0 0
      %6793 = vmatpush1.bf16.msra.mxu0 0
      %6794 = vmatprep.subr.bf16.mxu0 0
      %6795 = vmatpush1.bf16.msra.mxu0 0
      %6796 = vmatprep.mubr.bf16.mxu0 0
      %6797 = vmatmul.mubr.bf16.gmra.mrb[0].mxu0 %v6714
      %v6798 = vpop.f32.mrb[0].mxu0
      %v6799 = vadd.f32 0.0, %v6798
      %v6800 = vpop.f32.mrb[0].mxu0
      %v6801 = vpop.f32.mrb[0].mxu0
      %v6802 = vadd.f32 0.0, %v6801
      %v6803 = vpop.f32.mrb[0].mxu0
      %6804 = vmatprep.mubr.bf16.mxu0 0
      %6805 = vmatmul.mubr.bf16.gmra.mrb[0].mxu0 %v6717
      %v6806 = vpop.f32.mrb[0].mxu0
      %v6807 = vadd.f32 0.0, %v6806
      %v6808 = vpop.f32.mrb[0].mxu0
      %v6809 = vpop.f32.mrb[0].mxu0
      %v6810 = vadd.f32 0.0, %v6809
      %v6811 = vpop.f32.mrb[0].mxu0
      %6812 = vmatprep.mubr.bf16.mxu0 0
      %6813 = vmatmul.mubr.bf16.gmra.mrb[0].mxu0 %v6720
      %v6814 = vpop.f32.mrb[0].mxu0
      %v6815 = vadd.f32 0.0, %v6814
      %v6816 = vpop.f32.mrb[0].mxu0
      %v6817 = vpop.f32.mrb[0].mxu0
      %v6818 = vadd.f32 0.0, %v6817
      %v6819 = vpop.f32.mrb[0].mxu0
      %6820 = vmatprep.mubr.bf16.mxu0 0
      %6821 = vmatmul.mubr.bf16.gmra.mrb[0].mxu0 %v6723
      %v6822 = vpop.f32.mrb[0].mxu0
      %v6823 = vadd.f32 0.0, %v6822
      %v6824 = vpop.f32.mrb[0].mxu0
      %v6825 = vpop.f32.mrb[0].mxu0
      %v6826 = vadd.f32 0.0, %v6825
      %v6827 = vpop.f32.mrb[0].mxu0
      %6828 = vmatprep.mubr.bf16.mxu0 0
      %6829 = vmatmul.mubr.bf16.gmra.mrb[0].mxu0 %v6726
      %v6830 = vpop.f32.mrb[0].mxu0
      %v6831 = vadd.f32 0.0, %v6830
      %v6832 = vpop.f32.mrb[0].mxu0
      %v6833 = vpop.f32.mrb[0].mxu0
      %v6834 = vadd.f32 0.0, %v6833
      %v6835 = vpop.f32.mrb[0].mxu0
      %6836 = vmatprep.mubr.bf16.mxu0 0
      %6837 = vmatmul.mubr.bf16.gmra.mrb[0].mxu0 %v6729
      %v6838 = vpop.f32.mrb[0].mxu0
      %v6839 = vadd.f32 0.0, %v6838
      %v6840 = vpop.f32.mrb[0].mxu0
      %v6841 = vpop.f32.mrb[0].mxu0
      %v6842 = vadd.f32 0.0, %v6841
      %v6843 = vpop.f32.mrb[0].mxu0
      %6844 = vmatprep.mubr.bf16.mxu0 0
      %6845 = vmatmul.mubr.bf16.gmra.mrb[0].mxu0 %v6732
      %v6846 = vpop.f32.mrb[0].mxu0
      %v6847 = vadd.f32 0.0, %v6846
      %v6848 = vpop.f32.mrb[0].mxu0
      %v6849 = vpop.f32.mrb[0].mxu0
      %v6850 = vadd.f32 0.0, %v6849
      %v6851 = vpop.f32.mrb[0].mxu0
      %6852 = vmatprep.mubr.bf16.mxu0 0
      %6853 = vmatmul.mubr.bf16.gmra.mrb[0].mxu0 %v6735
      %v6854 = vpop.f32.mrb[0].mxu0
      %v6855 = vadd.f32 0.0, %v6854
      %v6856 = vpop.f32.mrb[0].mxu0
      %v6857 = vpop.f32.mrb[0].mxu0
      %v6858 = vadd.f32 0.0, %v6857
      %v6859 = vpop.f32.mrb[0].mxu0
      %6860 = vmatprep.mubr.bf16.mxu0 0
      %6861 = vmatmul.mubr.bf16.gmra.mrb[0].mxu0 %v6738
      %v6862 = vpop.f32.mrb[0].mxu0
      %v6863 = vadd.f32 0.0, %v6862
      %v6864 = vpop.f32.mrb[0].mxu0
      %v6865 = vpop.f32.mrb[0].mxu0
      %v6866 = vadd.f32 0.0, %v6865
      %v6867 = vpop.f32.mrb[0].mxu0
      %6868 = vmatprep.mubr.bf16.mxu0 0
      %6869 = vmatmul.mubr.bf16.gmra.mrb[0].mxu0 %v6741
      %v6870 = vpop.f32.mrb[0].mxu0
      %v6871 = vadd.f32 0.0, %v6870
      %v6872 = vpop.f32.mrb[0].mxu0
      %v6873 = vpop.f32.mrb[0].mxu0
      %v6874 = vadd.f32 0.0, %v6873
      %v6875 = vpop.f32.mrb[0].mxu0
      %6876 = vmatprep.mubr.bf16.mxu0 0
      %6877 = vmatmul.mubr.bf16.gmra.mrb[0].mxu0 %v6744
      %v6878 = vpop.f32.mrb[0].mxu0
      %v6879 = vadd.f32 0.0, %v6878
      %v6880 = vpop.f32.mrb[0].mxu0
      %v6881 = vpop.f32.mrb[0].mxu0
      %v6882 = vadd.f32 0.0, %v6881
      %v6883 = vpop.f32.mrb[0].mxu0
      %6884 = vmatprep.mubr.bf16.mxu0 0
      %6885 = vmatmul.mubr.bf16.gmra.mrb[0].mxu0 %v6747
      %v6886 = vpop.f32.mrb[0].mxu0
      %v6887 = vadd.f32 0.0, %v6886
      %v6888 = vpop.f32.mrb[0].mxu0
      %v6889 = vpop.f32.mrb[0].mxu0
      %v6890 = vadd.f32 0.0, %v6889
      %v6891 = vpop.f32.mrb[0].mxu0
      %6892 = vmatprep.mubr.bf16.mxu0 0
      %6893 = vmatmul.mubr.bf16.gmra.mrb[0].mxu0 %v6750
      %v6894 = vpop.f32.mrb[0].mxu0
      %v6895 = vadd.f32 0.0, %v6894
      %v6896 = vpop.f32.mrb[0].mxu0
      %v6897 = vpop.f32.mrb[0].mxu0
      %v6898 = vadd.f32 0.0, %v6897
      %v6899 = vpop.f32.mrb[0].mxu0
      %6900 = vmatprep.mubr.bf16.mxu0 0
      %6901 = vmatmul.mubr.bf16.gmra.mrb[0].mxu0 %v6753
      %v6902 = vpop.f32.mrb[0].mxu0
      %v6903 = vadd.f32 0.0, %v6902
      %v6904 = vpop.f32.mrb[0].mxu0
      %v6905 = vpop.f32.mrb[0].mxu0
      %v6906 = vadd.f32 0.0, %v6905
      %v6907 = vpop.f32.mrb[0].mxu0
      %6908 = vmatprep.mubr.bf16.mxu0 0
      %6909 = vmatmul.mubr.bf16.gmra.mrb[0].mxu0 %v6756
      %v6910 = vpop.f32.mrb[0].mxu0
      %v6911 = vadd.f32 0.0, %v6910
      %v6912 = vpop.f32.mrb[0].mxu0
      %v6913 = vpop.f32.mrb[0].mxu0
      %v6914 = vadd.f32 0.0, %v6913
      %v6915 = vpop.f32.mrb[0].mxu0
      %6916 = vmatprep.mubr.bf16.mxu0 0
      %6917 = vmatmul.mubr.bf16.gmra.mrb[0].mxu0 %v6759
      %v6918 = vpop.f32.mrb[0].mxu0
      %v6919 = vadd.f32 0.0, %v6918
      %v6920 = vpop.f32.mrb[0].mxu0
      %v6921 = vpop.f32.mrb[0].mxu0
      %v6922 = vadd.f32 0.0, %v6921
      %v6923 = vpop.f32.mrb[0].mxu0
      %6924 = vdwg.mxu0
      %v6925 = vld [vmem:[#allocation5] sm:$0xff]
      %v6926 = vld [vmem:[#allocation5 + $0x8] sm:$0xff]
      %v6927 = vld [vmem:[#allocation5 + $0x10] sm:$0xff]
      %v6928 = vld [vmem:[#allocation5 + $0x18] sm:$0xff]
      %v6929 = vld [vmem:[#allocation5 + $0x20] sm:$0xff]
      %v6930 = vld [vmem:[#allocation5 + $0x28] sm:$0xff]
      %v6931 = vld [vmem:[#allocation5 + $0x30] sm:$0xff]
      %v6932 = vld [vmem:[#allocation5 + $0x38] sm:$0xff]
      %v6933 = vld [vmem:[#allocation5 + $0x40] sm:$0xff]
      %v6934 = vld [vmem:[#allocation5 + $0x48] sm:$0xff]
      %v6935 = vld [vmem:[#allocation5 + $0x50] sm:$0xff]
      %v6936 = vld [vmem:[#allocation5 + $0x58] sm:$0xff]
      %v6937 = vld [vmem:[#allocation5 + $0x60] sm:$0xff]
      %v6938 = vld [vmem:[#allocation5 + $0x68] sm:$0xff]
      %v6939 = vld [vmem:[#allocation5 + $0x70] sm:$0xff]
      %v6940 = vld [vmem:[#allocation5 + $0x78] sm:$0xff]
      %v6941 = vld [vmem:[#allocation5 + $0x80] sm:$0xff]
      %v6942 = vld [vmem:[#allocation5 + $0x88] sm:$0xff]
      %v6943 = vld [vmem:[#allocation5 + $0x90] sm:$0xff]
      %v6944 = vld [vmem:[#allocation5 + $0x98] sm:$0xff]
      %v6945 = vld [vmem:[#allocation5 + $0xa0] sm:$0xff]
      %v6946 = vld [vmem:[#allocation5 + $0xa8] sm:$0xff]
      %v6947 = vld [vmem:[#allocation5 + $0xb0] sm:$0xff]
      %v6948 = vld [vmem:[#allocation5 + $0xb8] sm:$0xff]
      %v6949 = vld [vmem:[#allocation5 + $0xc0] sm:$0xff]
      %v6950 = vld [vmem:[#allocation5 + $0xc8] sm:$0xff]
      %v6951 = vld [vmem:[#allocation5 + $0xd0] sm:$0xff]
      %v6952 = vld [vmem:[#allocation5 + $0xd8] sm:$0xff]
      %v6953 = vld [vmem:[#allocation5 + $0xe0] sm:$0xff]
      %v6954 = vld [vmem:[#allocation5 + $0xe8] sm:$0xff]
      %v6955 = vld [vmem:[#allocation5 + $0xf0] sm:$0xff]
      %v6956 = vld [vmem:[#allocation5 + $0xf8] sm:$0xff]
      %v6957 = vadd.f32 %v6925, %v6799
      %v6958 = vadd.f32 %v6926, %v6802
      %v6959 = vadd.f32 %v6927, %v6807
      %v6960 = vadd.f32 %v6928, %v6810
      %v6961 = vadd.f32 %v6929, %v6815
      %v6962 = vadd.f32 %v6930, %v6818
      %v6963 = vadd.f32 %v6931, %v6823
      %v6964 = vadd.f32 %v6932, %v6826
      %v6965 = vadd.f32 %v6933, %v6831
      %v6966 = vadd.f32 %v6934, %v6834
      %v6967 = vadd.f32 %v6935, %v6839
      %v6968 = vadd.f32 %v6936, %v6842
      %v6969 = vadd.f32 %v6937, %v6847
      %v6970 = vadd.f32 %v6938, %v6850
      %v6971 = vadd.f32 %v6939, %v6855
      %v6972 = vadd.f32 %v6940, %v6858
      %v6973 = vadd.f32 %v6941, %v6863
      %v6974 = vadd.f32 %v6942, %v6866
      %v6975 = vadd.f32 %v6943, %v6871
      %v6976 = vadd.f32 %v6944, %v6874
      %v6977 = vadd.f32 %v6945, %v6879
      %v6978 = vadd.f32 %v6946, %v6882
      %v6979 = vadd.f32 %v6947, %v6887
      %v6980 = vadd.f32 %v6948, %v6890
      %v6981 = vadd.f32 %v6949, %v6895
      %v6982 = vadd.f32 %v6950, %v6898
      %v6983 = vadd.f32 %v6951, %v6903
      %v6984 = vadd.f32 %v6952, %v6906
      %v6985 = vadd.f32 %v6953, %v6911
      %v6986 = vadd.f32 %v6954, %v6914
      %v6987 = vadd.f32 %v6955, %v6919
      %v6988 = vadd.f32 %v6956, %v6922
      %6989 = vst.msk [vmem:[#allocation5] sm:$0xff] %vm4123, %v6957
      %6990 = vst.msk [vmem:[#allocation5 + $0x8] sm:$0xff] %vm4123, %v6958
      %6991 = vst.msk [vmem:[#allocation5 + $0x10] sm:$0xff] %vm4123, %v6959
      %6992 = vst.msk [vmem:[#allocation5 + $0x18] sm:$0xff] %vm4123, %v6960
      %6993 = vst.msk [vmem:[#allocation5 + $0x20] sm:$0xff] %vm4123, %v6961
      %6994 = vst.msk [vmem:[#allocation5 + $0x28] sm:$0xff] %vm4123, %v6962
      %6995 = vst.msk [vmem:[#allocation5 + $0x30] sm:$0xff] %vm4123, %v6963
      %6996 = vst.msk [vmem:[#allocation5 + $0x38] sm:$0xff] %vm4123, %v6964
      %6997 = vst.msk [vmem:[#allocation5 + $0x40] sm:$0xff] %vm4123, %v6965
      %6998 = vst.msk [vmem:[#allocation5 + $0x48] sm:$0xff] %vm4123, %v6966
      %6999 = vst.msk [vmem:[#allocation5 + $0x50] sm:$0xff] %vm4123, %v6967
      %7000 = vst.msk [vmem:[#allocation5 + $0x58] sm:$0xff] %vm4123, %v6968
      %7001 = vst.msk [vmem:[#allocation5 + $0x60] sm:$0xff] %vm4123, %v6969
      %7002 = vst.msk [vmem:[#allocation5 + $0x68] sm:$0xff] %vm4123, %v6970
      %7003 = vst.msk [vmem:[#allocation5 + $0x70] sm:$0xff] %vm4123, %v6971
      %7004 = vst.msk [vmem:[#allocation5 + $0x78] sm:$0xff] %vm4123, %v6972
      %7005 = vst.msk [vmem:[#allocation5 + $0x80] sm:$0xff] %vm4123, %v6973
      %7006 = vst.msk [vmem:[#allocation5 + $0x88] sm:$0xff] %vm4123, %v6974
      %7007 = vst.msk [vmem:[#allocation5 + $0x90] sm:$0xff] %vm4123, %v6975
      %7008 = vst.msk [vmem:[#allocation5 + $0x98] sm:$0xff] %vm4123, %v6976
      %7009 = vst.msk [vmem:[#allocation5 + $0xa0] sm:$0xff] %vm4123, %v6977
      %7010 = vst.msk [vmem:[#allocation5 + $0xa8] sm:$0xff] %vm4123, %v6978
      %7011 = vst.msk [vmem:[#allocation5 + $0xb0] sm:$0xff] %vm4123, %v6979
      %7012 = vst.msk [vmem:[#allocation5 + $0xb8] sm:$0xff] %vm4123, %v6980
      %7013 = vst.msk [vmem:[#allocation5 + $0xc0] sm:$0xff] %vm4123, %v6981
      %7014 = vst.msk [vmem:[#allocation5 + $0xc8] sm:$0xff] %vm4123, %v6982
      %7015 = vst.msk [vmem:[#allocation5 + $0xd0] sm:$0xff] %vm4123, %v6983
      %7016 = vst.msk [vmem:[#allocation5 + $0xd8] sm:$0xff] %vm4123, %v6984
      %7017 = vst.msk [vmem:[#allocation5 + $0xe0] sm:$0xff] %vm4123, %v6985
      %7018 = vst.msk [vmem:[#allocation5 + $0xe8] sm:$0xff] %vm4123, %v6986
      %7019 = vst.msk [vmem:[#allocation5 + $0xf0] sm:$0xff] %vm4123, %v6987
      %7020 = vst.msk [vmem:[#allocation5 + $0xf8] sm:$0xff] %vm4123, %v6988
      %v7021 = vld [vmem:[#allocation5] sm:$0xff]
      %v7022 = vld [vmem:[#allocation5 + $0x8] sm:$0xff]
      %v7023 = vld [vmem:[#allocation5 + $0x10] sm:$0xff]
      %v7024 = vld [vmem:[#allocation5 + $0x18] sm:$0xff]
      %v7025 = vld [vmem:[#allocation5 + $0x20] sm:$0xff]
      %v7026 = vld [vmem:[#allocation5 + $0x28] sm:$0xff]
      %v7027 = vld [vmem:[#allocation5 + $0x30] sm:$0xff]
      %v7028 = vld [vmem:[#allocation5 + $0x38] sm:$0xff]
      %v7029 = vld [vmem:[#allocation5 + $0x40] sm:$0xff]
      %v7030 = vld [vmem:[#allocation5 + $0x48] sm:$0xff]
      %v7031 = vld [vmem:[#allocation5 + $0x50] sm:$0xff]
      %v7032 = vld [vmem:[#allocation5 + $0x58] sm:$0xff]
      %v7033 = vld [vmem:[#allocation5 + $0x60] sm:$0xff]
      %v7034 = vld [vmem:[#allocation5 + $0x68] sm:$0xff]
      %v7035 = vld [vmem:[#allocation5 + $0x70] sm:$0xff]
      %v7036 = vld [vmem:[#allocation5 + $0x78] sm:$0xff]
      %v7037 = vld [vmem:[#allocation5 + $0x80] sm:$0xff]
      %v7038 = vld [vmem:[#allocation5 + $0x88] sm:$0xff]
      %v7039 = vld [vmem:[#allocation5 + $0x90] sm:$0xff]
      %v7040 = vld [vmem:[#allocation5 + $0x98] sm:$0xff]
      %v7041 = vld [vmem:[#allocation5 + $0xa0] sm:$0xff]
      %v7042 = vld [vmem:[#allocation5 + $0xa8] sm:$0xff]
      %v7043 = vld [vmem:[#allocation5 + $0xb0] sm:$0xff]
      %v7044 = vld [vmem:[#allocation5 + $0xb8] sm:$0xff]
      %v7045 = vld [vmem:[#allocation5 + $0xc0] sm:$0xff]
      %v7046 = vld [vmem:[#allocation5 + $0xc8] sm:$0xff]
      %v7047 = vld [vmem:[#allocation5 + $0xd0] sm:$0xff]
      %v7048 = vld [vmem:[#allocation5 + $0xd8] sm:$0xff]
      %v7049 = vld [vmem:[#allocation5 + $0xe0] sm:$0xff]
      %v7050 = vld [vmem:[#allocation5 + $0xe8] sm:$0xff]
      %v7051 = vld [vmem:[#allocation5 + $0xf0] sm:$0xff]
      %v7052 = vld [vmem:[#allocation5 + $0xf8] sm:$0xff]
      %v7053 = vld [vmem:[%s4] sm:$0x1]
      %v7055 = vlaneseq
      %v7056 = vshrl.u32 %v7055, 7
      %v7057 = vsub.s32 0, %v7056
      %v7058 = vrot.slane %v7053, %v7057
      %v7060 = vadd.f32 %v7021, %v7058
      %v7061 = vadd.f32 %v7022, %v7058
      %v7062 = vadd.f32 %v7023, %v7058
      %v7063 = vadd.f32 %v7024, %v7058
      %v7064 = vadd.f32 %v7025, %v7058
      %v7065 = vadd.f32 %v7026, %v7058
      %v7066 = vadd.f32 %v7027, %v7058
      %v7067 = vadd.f32 %v7028, %v7058
      %v7068 = vadd.f32 %v7029, %v7058
      %v7069 = vadd.f32 %v7030, %v7058
      %v7070 = vadd.f32 %v7031, %v7058
      %v7071 = vadd.f32 %v7032, %v7058
      %v7072 = vadd.f32 %v7033, %v7058
      %v7073 = vadd.f32 %v7034, %v7058
      %v7074 = vadd.f32 %v7035, %v7058
      %v7075 = vadd.f32 %v7036, %v7058
      %v7076 = vadd.f32 %v7037, %v7058
      %v7077 = vadd.f32 %v7038, %v7058
      %v7078 = vadd.f32 %v7039, %v7058
      %v7079 = vadd.f32 %v7040, %v7058
      %v7080 = vadd.f32 %v7041, %v7058
      %v7081 = vadd.f32 %v7042, %v7058
      %v7082 = vadd.f32 %v7043, %v7058
      %v7083 = vadd.f32 %v7044, %v7058
      %v7084 = vadd.f32 %v7045, %v7058
      %v7085 = vadd.f32 %v7046, %v7058
      %v7086 = vadd.f32 %v7047, %v7058
      %v7087 = vadd.f32 %v7048, %v7058
      %v7088 = vadd.f32 %v7049, %v7058
      %v7089 = vadd.f32 %v7050, %v7058
      %v7090 = vadd.f32 %v7051, %v7058
      %v7091 = vadd.f32 %v7052, %v7058
      %v7092 = vld [vmem:[%s246] sm:$0xff]
      %v7093 = vld [vmem:[%s246 + $0x8] sm:$0xff]
      %v7094 = vld [vmem:[%s246 + $0x10] sm:$0xff]
      %v7095 = vld [vmem:[%s246 + $0x18] sm:$0xff]
      %v7096 = vld [vmem:[%s246 + $0x20] sm:$0xff]
      %v7097 = vld [vmem:[%s246 + $0x28] sm:$0xff]
      %v7098 = vld [vmem:[%s246 + $0x30] sm:$0xff]
      %v7099 = vld [vmem:[%s246 + $0x38] sm:$0xff]
      %v7100 = vld [vmem:[%s246 + $0x40] sm:$0xff]
      %v7101 = vld [vmem:[%s246 + $0x48] sm:$0xff]
      %v7102 = vld [vmem:[%s246 + $0x50] sm:$0xff]
      %v7103 = vld [vmem:[%s246 + $0x58] sm:$0xff]
      %v7104 = vld [vmem:[%s246 + $0x60] sm:$0xff]
      %v7105 = vld [vmem:[%s246 + $0x68] sm:$0xff]
      %v7106 = vld [vmem:[%s246 + $0x70] sm:$0xff]
      %v7107 = vld [vmem:[%s246 + $0x78] sm:$0xff]
      %v7108 = vld [vmem:[%s246 + $0x80] sm:$0xff]
      %v7109 = vld [vmem:[%s246 + $0x88] sm:$0xff]
      %v7110 = vld [vmem:[%s246 + $0x90] sm:$0xff]
      %v7111 = vld [vmem:[%s246 + $0x98] sm:$0xff]
      %v7112 = vld [vmem:[%s246 + $0xa0] sm:$0xff]
      %v7113 = vld [vmem:[%s246 + $0xa8] sm:$0xff]
      %v7114 = vld [vmem:[%s246 + $0xb0] sm:$0xff]
      %v7115 = vld [vmem:[%s246 + $0xb8] sm:$0xff]
      %v7116 = vld [vmem:[%s246 + $0xc0] sm:$0xff]
      %v7117 = vld [vmem:[%s246 + $0xc8] sm:$0xff]
      %v7118 = vld [vmem:[%s246 + $0xd0] sm:$0xff]
      %v7119 = vld [vmem:[%s246 + $0xd8] sm:$0xff]
      %v7120 = vld [vmem:[%s246 + $0xe0] sm:$0xff]
      %v7121 = vld [vmem:[%s246 + $0xe8] sm:$0xff]
      %v7122 = vld [vmem:[%s246 + $0xf0] sm:$0xff]
      %v7123 = vld [vmem:[%s246 + $0xf8] sm:$0xff]
      %v7124 = vpack.c.bf16 %v7093, %v7092
      %v7125 = vpack.c.bf16 %v7095, %v7094
      %v7126 = vpack.c.bf16 %v7097, %v7096
      %v7127 = vpack.c.bf16 %v7099, %v7098
      %v7128 = vpack.c.bf16 %v7101, %v7100
      %v7129 = vpack.c.bf16 %v7103, %v7102
      %v7130 = vpack.c.bf16 %v7105, %v7104
      %v7131 = vpack.c.bf16 %v7107, %v7106
      %v7132 = vpack.c.bf16 %v7109, %v7108
      %v7133 = vpack.c.bf16 %v7111, %v7110
      %v7134 = vpack.c.bf16 %v7113, %v7112
      %v7135 = vpack.c.bf16 %v7115, %v7114
      %v7136 = vpack.c.bf16 %v7117, %v7116
      %v7137 = vpack.c.bf16 %v7119, %v7118
      %v7138 = vpack.c.bf16 %v7121, %v7120
      %v7139 = vpack.c.bf16 %v7123, %v7122
      %v7140 = vld [vmem:[%s5] sm:$0x3]
      %v7141 = vmul.f32 %v7060, 0.1
      %v7142 = vmul.f32 %v7061, 0.1
      %v7143 = vmul.f32 %v7062, 0.1
      %v7144 = vmul.f32 %v7063, 0.1
      %v7145 = vmul.f32 %v7064, 0.1
      %v7146 = vmul.f32 %v7065, 0.1
      %v7147 = vmul.f32 %v7066, 0.1
      %v7148 = vmul.f32 %v7067, 0.1
      %v7149 = vmul.f32 %v7068, 0.1
      %v7150 = vmul.f32 %v7069, 0.1
      %v7151 = vmul.f32 %v7070, 0.1
      %v7152 = vmul.f32 %v7071, 0.1
      %v7153 = vmul.f32 %v7072, 0.1
      %v7154 = vmul.f32 %v7073, 0.1
      %v7155 = vmul.f32 %v7074, 0.1
      %v7156 = vmul.f32 %v7075, 0.1
      %v7157 = vmul.f32 %v7076, 0.1
      %v7158 = vmul.f32 %v7077, 0.1
      %v7159 = vmul.f32 %v7078, 0.1
      %v7160 = vmul.f32 %v7079, 0.1
      %v7161 = vmul.f32 %v7080, 0.1
      %v7162 = vmul.f32 %v7081, 0.1
      %v7163 = vmul.f32 %v7082, 0.1
      %v7164 = vmul.f32 %v7083, 0.1
      %v7165 = vmul.f32 %v7084, 0.1
      %v7166 = vmul.f32 %v7085, 0.1
      %v7167 = vmul.f32 %v7086, 0.1
      %v7168 = vmul.f32 %v7087, 0.1
      %v7169 = vmul.f32 %v7088, 0.1
      %v7170 = vmul.f32 %v7089, 0.1
      %v7171 = vmul.f32 %v7090, 0.1
      %v7172 = vmul.f32 %v7091, 0.1
      %v7174 = vsel %vm381, %v7124, 0
      %v7177 = vsel %vm381, %v7125, 0
      %v7180 = vsel %vm381, %v7126, 0
      %v7183 = vsel %vm381, %v7127, 0
      %v7186 = vsel %vm381, %v7128, 0
      %v7189 = vsel %vm381, %v7129, 0
      %v7192 = vsel %vm381, %v7130, 0
      %v7195 = vsel %vm381, %v7131, 0
      %v7198 = vsel %vm381, %v7132, 0
      %v7201 = vsel %vm381, %v7133, 0
      %v7204 = vsel %vm381, %v7134, 0
      %v7207 = vsel %vm381, %v7135, 0
      %v7210 = vsel %vm381, %v7136, 0
      %v7213 = vsel %vm381, %v7137, 0
      %v7216 = vsel %vm381, %v7138, 0
      %v7219 = vsel %vm381, %v7139, 0
      %v7222 = vsel %vm557, %v7140, 0
      %7224 = vmatprep.subr.bf16.mxu0 0
      %7225 = vmatpush1.bf16.msra.mxu0 %v7222
      %7226 = vmatprep.subr.bf16.mxu0 0
      %7227 = vmatpush1.bf16.msra.mxu0 0
      %7228 = vmatprep.subr.bf16.mxu0 0
      %7229 = vmatpush1.bf16.msra.mxu0 0
      %7230 = vmatprep.subr.bf16.mxu0 0
      %7231 = vmatpush1.bf16.msra.mxu0 0
      %7232 = vmatprep.subr.bf16.mxu0 0
      %7233 = vmatpush1.bf16.msra.mxu0 0
      %7234 = vmatprep.subr.bf16.mxu0 0
      %7235 = vmatpush1.bf16.msra.mxu0 0
      %7236 = vmatprep.subr.bf16.mxu0 0
      %7237 = vmatpush1.bf16.msra.mxu0 0
      %7238 = vmatprep.subr.bf16.mxu0 0
      %7239 = vmatpush1.bf16.msra.mxu0 0
      %7240 = vmatprep.subr.bf16.mxu0 0
      %7241 = vmatpush1.bf16.msra.mxu0 0
      %7242 = vmatprep.subr.bf16.mxu0 0
      %7243 = vmatpush1.bf16.msra.mxu0 0
      %7244 = vmatprep.subr.bf16.mxu0 0
      %7245 = vmatpush1.bf16.msra.mxu0 0
      %7246 = vmatprep.subr.bf16.mxu0 0
      %7247 = vmatpush1.bf16.msra.mxu0 0
      %7248 = vmatprep.subr.bf16.mxu0 0
      %7249 = vmatpush1.bf16.msra.mxu0 0
      %7250 = vmatprep.subr.bf16.mxu0 0
      %7251 = vmatpush1.bf16.msra.mxu0 0
      %7252 = vmatprep.subr.bf16.mxu0 0
      %7253 = vmatpush1.bf16.msra.mxu0 0
      %7254 = vmatprep.subr.bf16.mxu0 0
      %7255 = vmatpush1.bf16.msra.mxu0 0
      %7256 = vmatprep.mubr.bf16.mxu0 0
      %7257 = vmatmul.mubr.bf16.gmra.mrb[0].mxu0 %v7174
      %v7258 = vpop.f32.mrb[0].mxu0
      %v7259 = vadd.f32 %v7141, %v7258
      %v7260 = vpop.f32.mrb[0].mxu0
      %v7261 = vpop.f32.mrb[0].mxu0
      %v7262 = vadd.f32 %v7142, %v7261
      %v7263 = vpop.f32.mrb[0].mxu0
      %7264 = vmatprep.mubr.bf16.mxu0 0
      %7265 = vmatmul.mubr.bf16.gmra.mrb[0].mxu0 %v7177
      %v7266 = vpop.f32.mrb[0].mxu0
      %v7267 = vadd.f32 %v7143, %v7266
      %v7268 = vpop.f32.mrb[0].mxu0
      %v7269 = vpop.f32.mrb[0].mxu0
      %v7270 = vadd.f32 %v7144, %v7269
      %v7271 = vpop.f32.mrb[0].mxu0
      %7272 = vmatprep.mubr.bf16.mxu0 0
      %7273 = vmatmul.mubr.bf16.gmra.mrb[0].mxu0 %v7180
      %v7274 = vpop.f32.mrb[0].mxu0
      %v7275 = vadd.f32 %v7145, %v7274
      %v7276 = vpop.f32.mrb[0].mxu0
      %v7277 = vpop.f32.mrb[0].mxu0
      %v7278 = vadd.f32 %v7146, %v7277
      %v7279 = vpop.f32.mrb[0].mxu0
      %7280 = vmatprep.mubr.bf16.mxu0 0
      %7281 = vmatmul.mubr.bf16.gmra.mrb[0].mxu0 %v7183
      %v7282 = vpop.f32.mrb[0].mxu0
      %v7283 = vadd.f32 %v7147, %v7282
      %v7284 = vpop.f32.mrb[0].mxu0
      %v7285 = vpop.f32.mrb[0].mxu0
      %v7286 = vadd.f32 %v7148, %v7285
      %v7287 = vpop.f32.mrb[0].mxu0
      %7288 = vmatprep.mubr.bf16.mxu0 0
      %7289 = vmatmul.mubr.bf16.gmra.mrb[0].mxu0 %v7186
      %v7290 = vpop.f32.mrb[0].mxu0
      %v7291 = vadd.f32 %v7149, %v7290
      %v7292 = vpop.f32.mrb[0].mxu0
      %v7293 = vpop.f32.mrb[0].mxu0
      %v7294 = vadd.f32 %v7150, %v7293
      %v7295 = vpop.f32.mrb[0].mxu0
      %7296 = vmatprep.mubr.bf16.mxu0 0
      %7297 = vmatmul.mubr.bf16.gmra.mrb[0].mxu0 %v7189
      %v7298 = vpop.f32.mrb[0].mxu0
      %v7299 = vadd.f32 %v7151, %v7298
      %v7300 = vpop.f32.mrb[0].mxu0
      %v7301 = vpop.f32.mrb[0].mxu0
      %v7302 = vadd.f32 %v7152, %v7301
      %v7303 = vpop.f32.mrb[0].mxu0
      %7304 = vmatprep.mubr.bf16.mxu0 0
      %7305 = vmatmul.mubr.bf16.gmra.mrb[0].mxu0 %v7192
      %v7306 = vpop.f32.mrb[0].mxu0
      %v7307 = vadd.f32 %v7153, %v7306
      %v7308 = vpop.f32.mrb[0].mxu0
      %v7309 = vpop.f32.mrb[0].mxu0
      %v7310 = vadd.f32 %v7154, %v7309
      %v7311 = vpop.f32.mrb[0].mxu0
      %7312 = vmatprep.mubr.bf16.mxu0 0
      %7313 = vmatmul.mubr.bf16.gmra.mrb[0].mxu0 %v7195
      %v7314 = vpop.f32.mrb[0].mxu0
      %v7315 = vadd.f32 %v7155, %v7314
      %v7316 = vpop.f32.mrb[0].mxu0
      %v7317 = vpop.f32.mrb[0].mxu0
      %v7318 = vadd.f32 %v7156, %v7317
      %v7319 = vpop.f32.mrb[0].mxu0
      %7320 = vmatprep.mubr.bf16.mxu0 0
      %7321 = vmatmul.mubr.bf16.gmra.mrb[0].mxu0 %v7198
      %v7322 = vpop.f32.mrb[0].mxu0
      %v7323 = vadd.f32 %v7157, %v7322
      %v7324 = vpop.f32.mrb[0].mxu0
      %v7325 = vpop.f32.mrb[0].mxu0
      %v7326 = vadd.f32 %v7158, %v7325
      %v7327 = vpop.f32.mrb[0].mxu0
      %7328 = vmatprep.mubr.bf16.mxu0 0
      %7329 = vmatmul.mubr.bf16.gmra.mrb[0].mxu0 %v7201
      %v7330 = vpop.f32.mrb[0].mxu0
      %v7331 = vadd.f32 %v7159, %v7330
      %v7332 = vpop.f32.mrb[0].mxu0
      %v7333 = vpop.f32.mrb[0].mxu0
      %v7334 = vadd.f32 %v7160, %v7333
      %v7335 = vpop.f32.mrb[0].mxu0
      %7336 = vmatprep.mubr.bf16.mxu0 0
      %7337 = vmatmul.mubr.bf16.gmra.mrb[0].mxu0 %v7204
      %v7338 = vpop.f32.mrb[0].mxu0
      %v7339 = vadd.f32 %v7161, %v7338
      %v7340 = vpop.f32.mrb[0].mxu0
      %v7341 = vpop.f32.mrb[0].mxu0
      %v7342 = vadd.f32 %v7162, %v7341
      %v7343 = vpop.f32.mrb[0].mxu0
      %7344 = vmatprep.mubr.bf16.mxu0 0
      %7345 = vmatmul.mubr.bf16.gmra.mrb[0].mxu0 %v7207
      %v7346 = vpop.f32.mrb[0].mxu0
      %v7347 = vadd.f32 %v7163, %v7346
      %v7348 = vpop.f32.mrb[0].mxu0
      %v7349 = vpop.f32.mrb[0].mxu0
      %v7350 = vadd.f32 %v7164, %v7349
      %v7351 = vpop.f32.mrb[0].mxu0
      %7352 = vmatprep.mubr.bf16.mxu0 0
      %7353 = vmatmul.mubr.bf16.gmra.mrb[0].mxu0 %v7210
      %v7354 = vpop.f32.mrb[0].mxu0
      %v7355 = vadd.f32 %v7165, %v7354
      %v7356 = vpop.f32.mrb[0].mxu0
      %v7357 = vpop.f32.mrb[0].mxu0
      %v7358 = vadd.f32 %v7166, %v7357
      %v7359 = vpop.f32.mrb[0].mxu0
      %7360 = vmatprep.mubr.bf16.mxu0 0
      %7361 = vmatmul.mubr.bf16.gmra.mrb[0].mxu0 %v7213
      %v7362 = vpop.f32.mrb[0].mxu0
      %v7363 = vadd.f32 %v7167, %v7362
      %v7364 = vpop.f32.mrb[0].mxu0
      %v7365 = vpop.f32.mrb[0].mxu0
      %v7366 = vadd.f32 %v7168, %v7365
      %v7367 = vpop.f32.mrb[0].mxu0
      %7368 = vmatprep.mubr.bf16.mxu0 0
      %7369 = vmatmul.mubr.bf16.gmra.mrb[0].mxu0 %v7216
      %v7370 = vpop.f32.mrb[0].mxu0
      %v7371 = vadd.f32 %v7169, %v7370
      %v7372 = vpop.f32.mrb[0].mxu0
      %v7373 = vpop.f32.mrb[0].mxu0
      %v7374 = vadd.f32 %v7170, %v7373
      %v7375 = vpop.f32.mrb[0].mxu0
      %7376 = vmatprep.mubr.bf16.mxu0 0
      %7377 = vmatmul.mubr.bf16.gmra.mrb[0].mxu0 %v7219
      %v7378 = vpop.f32.mrb[0].mxu0
      %v7379 = vadd.f32 %v7171, %v7378
      %v7380 = vpop.f32.mrb[0].mxu0
      %v7381 = vpop.f32.mrb[0].mxu0
      %v7382 = vadd.f32 %v7172, %v7381
      %v7383 = vpop.f32.mrb[0].mxu0
      %7384 = vdwg.mxu0
      %7385 = vst.msk [vmem:[%s251] sm:$0xff] %vm4123, %v7259
      %7386 = vst.msk [vmem:[%s251 + $0x8] sm:$0xff] %vm4123, %v7262
      %7387 = vst.msk [vmem:[%s251 + $0x10] sm:$0xff] %vm4123, %v7267
      %7388 = vst.msk [vmem:[%s251 + $0x18] sm:$0xff] %vm4123, %v7270
      %7389 = vst.msk [vmem:[%s251 + $0x20] sm:$0xff] %vm4123, %v7275
      %7390 = vst.msk [vmem:[%s251 + $0x28] sm:$0xff] %vm4123, %v7278
      %7391 = vst.msk [vmem:[%s251 + $0x30] sm:$0xff] %vm4123, %v7283
      %7392 = vst.msk [vmem:[%s251 + $0x38] sm:$0xff] %vm4123, %v7286
      %7393 = vst.msk [vmem:[%s251 + $0x40] sm:$0xff] %vm4123, %v7291
      %7394 = vst.msk [vmem:[%s251 + $0x48] sm:$0xff] %vm4123, %v7294
      %7395 = vst.msk [vmem:[%s251 + $0x50] sm:$0xff] %vm4123, %v7299
      %7396 = vst.msk [vmem:[%s251 + $0x58] sm:$0xff] %vm4123, %v7302
      %7397 = vst.msk [vmem:[%s251 + $0x60] sm:$0xff] %vm4123, %v7307
      %7398 = vst.msk [vmem:[%s251 + $0x68] sm:$0xff] %vm4123, %v7310
      %7399 = vst.msk [vmem:[%s251 + $0x70] sm:$0xff] %vm4123, %v7315
      %7400 = vst.msk [vmem:[%s251 + $0x78] sm:$0xff] %vm4123, %v7318
      %7401 = vst.msk [vmem:[%s251 + $0x80] sm:$0xff] %vm4123, %v7323
      %7402 = vst.msk [vmem:[%s251 + $0x88] sm:$0xff] %vm4123, %v7326
      %7403 = vst.msk [vmem:[%s251 + $0x90] sm:$0xff] %vm4123, %v7331
      %7404 = vst.msk [vmem:[%s251 + $0x98] sm:$0xff] %vm4123, %v7334
      %7405 = vst.msk [vmem:[%s251 + $0xa0] sm:$0xff] %vm4123, %v7339
      %7406 = vst.msk [vmem:[%s251 + $0xa8] sm:$0xff] %vm4123, %v7342
      %7407 = vst.msk [vmem:[%s251 + $0xb0] sm:$0xff] %vm4123, %v7347
      %7408 = vst.msk [vmem:[%s251 + $0xb8] sm:$0xff] %vm4123, %v7350
      %7409 = vst.msk [vmem:[%s251 + $0xc0] sm:$0xff] %vm4123, %v7355
      %7410 = vst.msk [vmem:[%s251 + $0xc8] sm:$0xff] %vm4123, %v7358
      %7411 = vst.msk [vmem:[%s251 + $0xd0] sm:$0xff] %vm4123, %v7363
      %7412 = vst.msk [vmem:[%s251 + $0xd8] sm:$0xff] %vm4123, %v7366
      %7413 = vst.msk [vmem:[%s251 + $0xe0] sm:$0xff] %vm4123, %v7371
      %7414 = vst.msk [vmem:[%s251 + $0xe8] sm:$0xff] %vm4123, %v7374
      %7415 = vst.msk [vmem:[%s251 + $0xf0] sm:$0xff] %vm4123, %v7379
      %7416 = vst.msk [vmem:[%s251 + $0xf8] sm:$0xff] %vm4123, %v7382
      %p7417 = scmp.lt.s32.totalorder %s17, 1
      %s7418 = scalar_select %p7417, %s17, 1
      %s7419 = smul.addr %s7418, 32
      %s7420 = smul.addr %s7419, 8
      %s7421 = scalar_lea.vmem %s6, %s7420
      // Predicated region
      $region45: #{resnet_block_forward.1} parent=43 // pred_check
        %p7422 = pneg %p166
      $region46: #{resnet_block_forward.1} parent=43 // pred_check_branch
        %7424 = sbr.rel (%p7422) target = $region48
      $region47: #{resnet_block_forward.1} parent=43 // pred_region
        _
      $region48: #{resnet_block_forward.1} parent=43 // pred_fallthru
        _
    $region44: #{resnet_block_forward.1} parent=5 // pred_fallthru
      _
    %p7425 = scmp.le.s32.totalorder 2, %s12
    // Predicated region
    $region49: #{resnet_block_forward.1} parent=5 // pred_check
      %p7426 = pneg %p7425
    $region50: #{resnet_block_forward.1} parent=5 // pred_check_branch
      %7428 = sbr.rel (%p7426) target = $region52
    $region51: #{resnet_block_forward.1} parent=5 // pred_region
      %s7429 = ssub.s32 %s12, 2
      // Predicated region
      $region53: #{resnet_block_forward.1} parent=51 // pred_check
        %p7430 = pneg %p172
      $region54: #{resnet_block_forward.1} parent=51 // pred_check_branch
        %7432 = sbr.rel (%p7430) target = $region56
      $region55: #{resnet_block_forward.1} parent=51 // pred_region
        %p7433 = scmp.lt.s32.totalorder %s18, 1
        %s7434 = scalar_select %p7433, %s18, 1
        %s7435 = smul.addr %s7434, 32
        %s7436 = smul.addr %s7435, 8
        %s7437 = scalar_lea.vmem %s6, %s7436
      $region56: #{resnet_block_forward.1} parent=51 // pred_fallthru
        _
    $region52: #{resnet_block_forward.1} parent=5 // pred_fallthru
      _
  $region6: #{resnet_block_forward.1} parent=0 // loop_footer
    %s16 = sadd.s32 1, %s12
  $region7: #{resnet_block_forward.1} parent=0 // loop_footer_branch
    %11 = sbr.rel target = $region3
  $region8: #{resnet_block_forward.1} parent=0 // loop_exit
    _

</llo_original>
